<compile_context>
chip_gen: v5e
topology: v5e:2x2
jax: 0.10.0
libtpu: 0.0.40
codegen_flags: <defaults>
</compile_context>

<pallas_src>
import functools

import numpy as np
import jax
import jax.numpy as jnp
from jax.experimental import pallas as pl
from jax.experimental.pallas import tpu as pltpu

PATCH_SIZE = (8, 8, 8)
STEP_SIZE = 0.5
NUM_PATCHES = 8

SE_CHANNELS = [320, 256, 128, 64, 32]
FUSION_CHANNELS = [256, 128, 64, 32]
LEVEL_CHANNELS = SE_CHANNELS + FUSION_CHANNELS      # 9 levels, 1280 channels total

# Level -> TensorCore group assignment.  Each group has exactly 640 channels (5*128,
# so every lane dimension stays dense) and 40 hidden units (padded to 128 lanes).
# Keeping the two groups exactly balanced is what halves wall time on v7x.
LEVEL_GROUPS = [
    [0, 1, 3],                  # 320 + 256 + 64                    = 640 channels
    [2, 4, 5, 6, 7, 8],         # 128 + 32 + 256 + 128 + 64 + 32    = 640 channels
]
GROUP_C = 640
HIDDEN_PAD = 128


def _hidden(c):
    # Standard squeeze-excitation reduction ratio 16.
    # TODO(synk): the nnU-Net backbone (and hence its exact SE hidden width) is not
    # defined by the reference module; a standard ratio-16 SE block is assumed.
    return max(c // 16, 1)


# ----------------------------- Pallas kernel -------------------------------------

def fused_se_kernel(x_ref, pool_ref, w1_ref, b1_ref, w2_ref, b2_ref, o_ref,
                    *, inv_patches):
    """All levels of one channel group, all 8 patches, in one shot.

    x_ref   : (P*S, 640)  bf16  contiguous per-group feature slab (patch-major rows)
    pool_ref: (P, P*S)    bf16  block-diagonal (1/S) matrix -> per-patch mean on the MXU
    w1/b1   : (640, 128) bf16 / (1, 128) f32   block-diagonal FC1 (reduce) of this group
    w2/b2   : (128, 640) bf16 / (1, 640) f32   block-diagonal FC2 (expand) of this group
    o_ref   : (1, 640)    f32   patch-averaged per-channel attention weights
    """
    # Global average pool for all 8 patches at once, streamed through the MXU in bf16
    # with f32 accumulation; 1/S is folded into pool_ref so no rescale is needed.
    pooled = jnp.dot(pool_ref[...], x_ref[...],
                     preferred_element_type=jnp.float32)                   # (P, 640)
    # FC1 -> ReLU (batched M=8 bf16 matmul; hidden lanes padded to 128, pad cols zero).
    h = jnp.dot(pooled.astype(jnp.bfloat16), w1_ref[...],
                preferred_element_type=jnp.float32) + b1_ref[...]
    h = jnp.maximum(h, 0.0)                                                # (P, 128)
    # FC2 -> sigmoid (exp + reciprocal both land in the EUP slot).
    z = jnp.dot(h.astype(jnp.bfloat16), w2_ref[...],
                preferred_element_type=jnp.float32) + b2_ref[...]
    s = pl.reciprocal(1.0 + jnp.exp(-z), approx=True)                      # (P, 640)
    # Sum over the 8 patches and apply the module's "/ 8" right here.
    o_ref[...] = jnp.sum(s, axis=0, keepdims=True) * inv_patches           # (1, 640)


def fused_channel_attention(x_cat, pool_mat, w1_all, b1_all, w2_all, b2_all):
    """x_cat: (n_groups, P*S, 640) bf16.  Returns (n_groups, 640) f32 patch-averaged weights."""
    n_groups, PS, _ = x_cat.shape
    P = pool_mat.shape[0]

    kernel = functools.partial(fused_se_kernel, inv_patches=1.0 / P)

    out = pl.pallas_call(
        kernel,
        out_shape=jax.ShapeDtypeStruct((n_groups, 1, GROUP_C), jnp.float32),
        grid_spec=pltpu.PrefetchScalarGridSpec(
            num_scalar_prefetch=0,
            grid=(n_groups,),
            in_specs=[
                # contiguous per-group feature slab (best HBM burst efficiency)
                pl.BlockSpec((None, PS, GROUP_C), lambda g: (g, 0, 0)),
                pl.BlockSpec((P, PS), lambda g: (0, 0)),                  # pooling matrix
                pl.BlockSpec((GROUP_C, HIDDEN_PAD), lambda g: (g, 0)),    # FC1 weight bf16
                pl.BlockSpec((None, 1, HIDDEN_PAD), lambda g: (g, 0, 0)), # FC1 bias f32
                pl.BlockSpec((HIDDEN_PAD, GROUP_C), lambda g: (g, 0)),    # FC2 weight bf16
                pl.BlockSpec((None, 1, GROUP_C), lambda g: (g, 0, 0)),    # FC2 bias f32
            ],
            out_specs=pl.BlockSpec((None, 1, GROUP_C), lambda g: (g, 0, 0)),
        ),
        compiler_params=pltpu.CompilerParams(
            dimension_semantics=("parallel",),   # groups shard across TCs on v7x
            vmem_limit_bytes=32 * 1024 * 1024,   # ~12 MB used; safe on v5e/v6e/v7x
        ),
    )(x_cat, pool_mat, w1_all, b1_all, w2_all, b2_all)
    return out.reshape(n_groups, GROUP_C)


# ----------------------------- plain-JAX / numpy glue ------------------------------

def pad_nd_image(image, new_shape):
    old_shape = image.shape[-len(new_shape):]
    pad_amounts = [max(ns - os, 0) for ns, os in zip(new_shape, old_shape)]
    pads = [(0, 0)] * (image.ndim - len(new_shape)) + \
           [(p // 2, p - p // 2) for p in pad_amounts]
    return jnp.pad(image, pads)


def compute_steps_for_sliding_window(patch_size, image_size, step_size):
    target_step_sizes = [p * step_size for p in patch_size]
    num_steps = [int(np.ceil((i - k) / j)) + 1
                 for i, j, k in zip(image_size, target_step_sizes, patch_size)]
    steps = []
    for dim in range(len(patch_size)):
        max_step_value = image_size[dim] - patch_size[dim]
        if num_steps[dim] > 1:
            actual_step_size = max_step_value / (num_steps[dim] - 1)
        else:
            actual_step_size = 1e9
        steps.append([int(np.round(actual_step_size * i)) for i in range(num_steps[dim])])
    return steps


def make_se_params(key, channels):
    """Deterministic SE / fusion channel-attention parameters for every level."""
    params = []
    for i, c in enumerate(channels):
        h = _hidden(c)
        k1, k2, k3, k4 = jax.random.split(jax.random.fold_in(key, i), 4)
        w1 = jax.random.normal(k1, (c, h), dtype=jnp.float32) * 0.1
        b1 = jax.random.normal(k2, (h,), dtype=jnp.float32) * 0.05
        w2 = jax.random.normal(k3, (h, c), dtype=jnp.float32) * 0.1
        b2 = jax.random.normal(k4, (c,), dtype=jnp.float32) * 0.05
        params.append((w1, b1, w2, b2))
    return params


def make_feature_maps(patches_flat, key, channels):
    """Synthetic per-level feature maps (P, S, C) entering each channel-attention block."""
    # TODO(synk): the nnU-Net backbone producing these activations is not defined by
    # the module; feature maps are synthesized deterministically from the patch voxels.
    feats = []
    for i, c in enumerate(channels):
        proj = jax.random.normal(jax.random.fold_in(key, 100 + i), (c,), dtype=jnp.float32)
        feats.append(jnp.tanh(patches_flat[:, :, None] * proj[None, None, :]))  # (P, S, C)
    return feats


def pack_level_data(feats, params):
    """Pack per-level feature maps and SE parameters into the fused, lane-dense,
    per-group-contiguous layout (bf16 features, bf16 block-diagonal weights, f32 biases,
    pooling matrix carrying the 1/S scale)."""
    P, S, _ = feats[0].shape
    n_groups = len(LEVEL_GROUPS)
    w1_all = np.zeros((n_groups * GROUP_C, HIDDEN_PAD), np.float32)
    b1_all = np.zeros((n_groups, 1, HIDDEN_PAD), np.float32)
    w2_all = np.zeros((n_groups * HIDDEN_PAD, GROUP_C), np.float32)
    b2_all = np.zeros((n_groups, 1, GROUP_C), np.float32)
    level_slots = [None] * len(feats)
    x_groups = []
    for g, levels in enumerate(LEVEL_GROUPS):
        c_off, h_off = 0, 0
        g_feats = []
        for li in levels:
            w1, b1, w2, b2 = (np.asarray(p, np.float32) for p in params[li])
            c_l, h_l = w1.shape
            g_feats.append(np.asarray(feats[li], np.float32))
            # Pad columns of w1/b1 and pad rows of w2 are zero-initialized: this is what
            # keeps the 128-wide padded hidden dim from leaking across levels.
            w1_all[g * GROUP_C + c_off: g * GROUP_C + c_off + c_l, h_off:h_off + h_l] = w1
            b1_all[g, 0, h_off:h_off + h_l] = b1
            w2_all[g * HIDDEN_PAD + h_off: g * HIDDEN_PAD + h_off + h_l,
                   c_off:c_off + c_l] = w2
            b2_all[g, 0, c_off:c_off + c_l] = b2
            level_slots[li] = (g, c_off, c_l)
            c_off += c_l
            h_off += h_l
        assert c_off == GROUP_C and h_off <= HIDDEN_PAD
        x_groups.append(np.concatenate(g_feats, axis=-1).reshape(P * S, GROUP_C))
    # Contiguous per-group slabs: (n_groups, P*S, 640).
    x_cat = np.stack(x_groups, axis=0)
    # Block-diagonal pooling matrix with 1/S folded in (1/512 is exact in bf16).
    pool = np.kron(np.eye(P, dtype=np.float32),
                   np.full((1, S), 1.0 / S, np.float32))                   # (P, P*S)
    return (jnp.asarray(x_cat, dtype=jnp.bfloat16),
            jnp.asarray(pool, dtype=jnp.bfloat16),
            jnp.asarray(w1_all, dtype=jnp.bfloat16), jnp.asarray(b1_all),
            jnp.asarray(w2_all, dtype=jnp.bfloat16), jnp.asarray(b2_all),
            level_slots)


def reference_channel_attention(x_cat_bf16, params, level_slots, P, S):
    """Pure-JAX reference: per-level SE attention, averaged over patches (float32)."""
    n_groups = x_cat_bf16.shape[0]
    x = x_cat_bf16.astype(jnp.float32).reshape(n_groups, P, S, GROUP_C)
    refs = []
    for li, (w1, b1, w2, b2) in enumerate(params):
        g, c_off, c_l = level_slots[li]
        xl = x[g, :, :, c_off:c_off + c_l]                     # (P, S, C_l)
        pooled = jnp.mean(xl, axis=1)                          # (P, C_l)
        h = jnp.maximum(pooled @ w1 + b1[None, :], 0.0)
        z = h @ w2 + b2[None, :]
        s = jax.nn.sigmoid(z)
        refs.append(jnp.mean(s, axis=0))                       # sum over 8 patches / 8
    return refs


if __name__ == "__main__":
    key = jax.random.PRNGKey(0)
    k_x, k_params, k_feats = jax.random.split(key, 3)

    # 3D volume sized so the sliding window yields exactly 2*2*2 = 8 patches,
    # matching the hard-coded "/ 8" averaging in the reference forward().
    x = jax.random.normal(k_x, (1, 12, 12, 12), dtype=jnp.float32)

    data = pad_nd_image(x, PATCH_SIZE)
    steps = compute_steps_for_sliding_window(PATCH_SIZE, data.shape[1:], STEP_SIZE)
    data = data[None]  # (1, 1, D, H, W)

    patch_vox = PATCH_SIZE[0] * PATCH_SIZE[1] * PATCH_SIZE[2]
    patch_list = []
    for lx in steps[0]:
        for ly in steps[1]:
            for lz in steps[2]:
                patch = data[:, :, lx:lx + PATCH_SIZE[0],
                                   ly:ly + PATCH_SIZE[1],
                                   lz:lz + PATCH_SIZE[2]]
                patch_list.append(patch.reshape(patch_vox))
    patches_flat = jnp.stack(patch_list)                        # (P=8, S=512)
    assert patches_flat.shape[0] == NUM_PATCHES, \
        "module semantics assume 8 sliding-window patches"

    params = make_se_params(k_params, LEVEL_CHANNELS)
    feats = make_feature_maps(patches_flat, k_feats, LEVEL_CHANNELS)

    (x_cat, pool_mat, w1_all, b1_all, w2_all, b2_all,
     level_slots) = pack_level_data(feats, params)

    # One fused pallas_call: all 9 levels, all 8 patches.
    out = fused_channel_attention(x_cat, pool_mat, w1_all, b1_all, w2_all, b2_all)
    out = jax.block_until_ready(out)                            # (2, 640) f32, already /8

    out_f16 = out.astype(jnp.float16)                           # single cast for all levels
    level_weights = []
    for li in range(len(LEVEL_CHANNELS)):
        g, c_off, c_l = level_slots[li]
        level_weights.append(out_f16[g, c_off:c_off + c_l])
    se_weights = level_weights[:len(SE_CHANNELS)]
    fusion_weights = level_weights[len(SE_CHANNELS):]

    # Correctness check against a pure-JAX reference of the same math.
    refs = reference_channel_attention(x_cat, params, level_slots, NUM_PATCHES, patch_vox)
    for w, r in zip(level_weights, refs):
        np.testing.assert_allclose(np.asarray(w, np.float32), np.asarray(r, np.float32),
                                   atol=2e-2, rtol=2e-2)

    assert [w.shape for w in se_weights] == [(c,) for c in SE_CHANNELS]
    assert [w.shape for w in fusion_weights] == [(c,) for c in FUSION_CHANNELS]
    assert all(w.dtype == jnp.float16 for w in se_weights + fusion_weights)

    print("KERNEL_OK")
</pallas_src>

<mosaic_0001>
module attributes {stable_mosaic.version = 11 : i64} {
  func.func @fused_se_kernel(%arg0: i32, %arg1: memref<1x4096x640xbf16, #tpu.memory_space<vmem>>, %arg2: memref<8x4096xbf16, #tpu.memory_space<vmem>>, %arg3: memref<640x128xbf16, #tpu.memory_space<vmem>>, %arg4: memref<1x1x128xf32, #tpu.memory_space<vmem>>, %arg5: memref<128x640xbf16, #tpu.memory_space<vmem>>, %arg6: memref<1x1x640xf32, #tpu.memory_space<vmem>>, %arg7: memref<1x1x640xf32, #tpu.memory_space<vmem>>) attributes {dimension_semantics = [#tpu.dimension_semantics<parallel>], iteration_bounds = array<i64: 2>, scalar_prefetch = 0 : i64, scratch_operands = 0 : i64, tpu.core_type = #tpu.core_type<tc>, window_params = [{transform_indices = @transform_0, window_bounds = array<i64: 1, 4096, 640>}, {pipeline_mode = #tpu.pipeline_mode<synchronous>, transform_indices = @transform_1, window_bounds = array<i64: 8, 4096>}, {transform_indices = @transform_2, window_bounds = array<i64: 640, 128>}, {transform_indices = @transform_3, window_bounds = array<i64: 1, 1, 128>}, {transform_indices = @transform_4, window_bounds = array<i64: 128, 640>}, {transform_indices = @transform_5, window_bounds = array<i64: 1, 1, 640>}, {transform_indices = @transform_6, window_bounds = array<i64: 1, 1, 640>}]} {
    %c0 = arith.constant 0 : index
    %c0_0 = arith.constant 0 : index
    %0 = vector.load %arg2[%c0, %c0_0] : memref<8x4096xbf16, #tpu.memory_space<vmem>>, vector<8x4096xbf16>
    %c0_1 = arith.constant 0 : index
    %c0_2 = arith.constant 0 : index
    %c0_3 = arith.constant 0 : index
    %1 = vector.load %arg1[%c0_1, %c0_2, %c0_3] : memref<1x4096x640xbf16, #tpu.memory_space<vmem>>, vector<1x4096x640xbf16>
    %2 = vector.shape_cast %1 : vector<1x4096x640xbf16> to vector<4096x640xbf16>
    %cst = arith.constant dense<0.000000e+00> : vector<8x640xf32>
    %3 = tpu.matmul %0, %2, %cst {dimension_numbers = #tpu.dot_dimension_numbers<[1], [0], [0], [1], [0, 0, 1, 1], [], []>} : vector<8x4096xbf16>, vector<4096x640xbf16>, vector<8x640xf32> -> vector<8x640xf32>
    %4 = arith.truncf %3 : vector<8x640xf32> to vector<8x640xbf16>
    %c0_4 = arith.constant 0 : index
    %c0_5 = arith.constant 0 : index
    %5 = vector.load %arg3[%c0_4, %c0_5] : memref<640x128xbf16, #tpu.memory_space<vmem>>, vector<640x128xbf16>
    %cst_6 = arith.constant dense<0.000000e+00> : vector<8x128xf32>
    %6 = tpu.matmul %4, %5, %cst_6 {dimension_numbers = #tpu.dot_dimension_numbers<[1], [0], [0], [1], [0, 0, 1, 1], [], []>} : vector<8x640xbf16>, vector<640x128xbf16>, vector<8x128xf32> -> vector<8x128xf32>
    %c0_7 = arith.constant 0 : index
    %c0_8 = arith.constant 0 : index
    %c0_9 = arith.constant 0 : index
    %7 = vector.load %arg4[%c0_7, %c0_8, %c0_9] : memref<1x1x128xf32, #tpu.memory_space<vmem>>, vector<1x1x128xf32>
    %8 = vector.shape_cast %7 : vector<1x1x128xf32> to vector<1x128xf32>
    %9 = vector.broadcast %8 : vector<1x128xf32> to vector<8x128xf32>
    %10 = arith.addf %6, %9 : vector<8x128xf32>
    %cst_10 = arith.constant 0.000000e+00 : f32
    %11 = vector.broadcast %cst_10 : f32 to vector<8x128xf32>
    %12 = arith.maximumf %10, %11 : vector<8x128xf32>
    %13 = arith.truncf %12 : vector<8x128xf32> to vector<8x128xbf16>
    %c0_11 = arith.constant 0 : index
    %c0_12 = arith.constant 0 : index
    %14 = vector.load %arg5[%c0_11, %c0_12] : memref<128x640xbf16, #tpu.memory_space<vmem>>, vector<128x640xbf16>
    %cst_13 = arith.constant dense<0.000000e+00> : vector<8x640xf32>
    %15 = tpu.matmul %13, %14, %cst_13 {dimension_numbers = #tpu.dot_dimension_numbers<[1], [0], [0], [1], [0, 0, 1, 1], [], []>} : vector<8x128xbf16>, vector<128x640xbf16>, vector<8x640xf32> -> vector<8x640xf32>
    %c0_14 = arith.constant 0 : index
    %c0_15 = arith.constant 0 : index
    %c0_16 = arith.constant 0 : index
    %16 = vector.load %arg6[%c0_14, %c0_15, %c0_16] : memref<1x1x640xf32, #tpu.memory_space<vmem>>, vector<1x1x640xf32>
    %17 = vector.shape_cast %16 : vector<1x1x640xf32> to vector<1x640xf32>
    %18 = vector.broadcast %17 : vector<1x640xf32> to vector<8x640xf32>
    %19 = arith.addf %15, %18 : vector<8x640xf32>
    %cst_17 = arith.constant 0.000000e+00 : f32
    %20 = vector.broadcast %cst_17 : f32 to vector<8x640xf32>
    %21 = arith.subf %20, %19 : vector<8x640xf32>
    %22 = math.exp %21 : vector<8x640xf32>
    %cst_18 = arith.constant 1.000000e+00 : f32
    %23 = vector.broadcast %cst_18 : f32 to vector<8x640xf32>
    %24 = arith.addf %23, %22 : vector<8x640xf32>
    %25 = tpu.reciprocal %24 {approx = true} : vector<8x640xf32> -> vector<8x640xf32>
    %cst_19 = arith.constant dense<0.000000e+00> : vector<640xf32>
    %26 = vector.multi_reduction <add>, %25, %cst_19 [0] : vector<8x640xf32> to vector<640xf32>
    %27 = vector.shape_cast %26 : vector<640xf32> to vector<1x640xf32>
    %cst_20 = arith.constant 1.250000e-01 : f32
    %28 = vector.broadcast %cst_20 : f32 to vector<1x640xf32>
    %29 = arith.mulf %27, %28 : vector<1x640xf32>
    %c0_21 = arith.constant 0 : index
    %c0_22 = arith.constant 0 : index
    %c0_23 = arith.constant 0 : index
    %30 = vector.load %arg7[%c0_21, %c0_22, %c0_23] : memref<1x1x640xf32, #tpu.memory_space<vmem>>, vector<1x1x640xf32>
    %31 = vector.shape_cast %30 : vector<1x1x640xf32> to vector<1x640xf32>
    %32 = vector.shape_cast %29 : vector<1x640xf32> to vector<1x1x640xf32>
    tpu.vector_store %arg7[%c0_21, %c0_22, %c0_23], %32 {strides = array<i32>} : memref<1x1x640xf32, #tpu.memory_space<vmem>>, vector<1x1x640xf32>,
    return
  }
  func.func @transform_0(%arg0: i32) -> (i32, i32, i32) {
    %c0_i32 = arith.constant 0 : i32
    %c0_i32_0 = arith.constant 0 : i32
    %c0_i32_1 = arith.constant 0 : i32
    return %arg0, %c0_i32, %c0_i32_0 : i32, i32, i32
  }
  func.func @transform_1(%arg0: i32) -> (i32, i32) {
    %c0_i32 = arith.constant 0 : i32
    %c0_i32_0 = arith.constant 0 : i32
    %c0_i32_1 = arith.constant 0 : i32
    return %c0_i32, %c0_i32_0 : i32, i32
  }
  func.func @transform_2(%arg0: i32) -> (i32, i32) {
    %c0_i32 = arith.constant 0 : i32
    %c0_i32_0 = arith.constant 0 : i32
    return %arg0, %c0_i32 : i32, i32
  }
  func.func @transform_3(%arg0: i32) -> (i32, i32, i32) {
    %c0_i32 = arith.constant 0 : i32
    %c0_i32_0 = arith.constant 0 : i32
    %c0_i32_1 = arith.constant 0 : i32
    return %arg0, %c0_i32, %c0_i32_0 : i32, i32, i32
  }
  func.func @transform_4(%arg0: i32) -> (i32, i32) {
    %c0_i32 = arith.constant 0 : i32
    %c0_i32_0 = arith.constant 0 : i32
    return %arg0, %c0_i32 : i32, i32
  }
  func.func @transform_5(%arg0: i32) -> (i32, i32, i32) {
    %c0_i32 = arith.constant 0 : i32
    %c0_i32_0 = arith.constant 0 : i32
    %c0_i32_1 = arith.constant 0 : i32
    return %arg0, %c0_i32, %c0_i32_0 : i32, i32, i32
  }
  func.func @transform_6(%arg0: i32) -> (i32, i32, i32) {
    %c0_i32 = arith.constant 0 : i32
    %c0_i32_0 = arith.constant 0 : i32
    %c0_i32_1 = arith.constant 0 : i32
    return %arg0, %c0_i32, %c0_i32_0 : i32, i32, i32
  }
}

</mosaic_0001>

<llo_original>
// kernel: tpu_custom_call.1
$region0: #{tpu_custom_call.1}
  #allocation0 [shape = 'u32[]', space=smem, size = 0x4, offset = 0x4, fixed_abs, tag = 'smem constant byte address 0x4 - core index']
  #allocation1 [shape = 'u32[72,128]{1,0:T(1,128)}', space=vmem, size = 0x9000, scoped, tag = 'internal scratch']
  %s0 = inlined_call_operand.hbm [shape: bf16[2,4096,640], index: 0, kind: input, shape index: {}]
  %s1 = inlined_call_operand.hbm [shape: bf16[8,4096], index: 1, kind: input, shape index: {}]
  %s2 = inlined_call_operand.hbm [shape: bf16[1280,128], index: 2, kind: input, shape index: {}]
  %s3 = inlined_call_operand.hbm [shape: f32[2,1,128], index: 3, kind: input, shape index: {}]
  %s4 = inlined_call_operand.hbm [shape: bf16[256,640], index: 4, kind: input, shape index: {}]
  %s5 = inlined_call_operand.hbm [shape: f32[2,1,640], index: 5, kind: input, shape index: {}]
  %s6 = inlined_call_operand.hbm [shape: f32[2,1,640], index: 6, kind: output, shape index: {}]
  %s7 = sld [smem:[#allocation0]]
  $region81: #{tpu_custom_call.1} parent=0
    _
  %s9 = ssub.s32 1, %s7
  %s10 = scalar_select 0, %s9, %s7
  $region1: #{tpu_custom_call.1} parent=0
    #allocation2 [shape = 'u8[10485760]{0}', space=vmem, size = 0xa00000, scoped, tag = 'input window, operand 0']
    #allocation3 [shape = 's32[2]{0}', space=sflag, size = 0x8, scoped, tag = 'scoped memory for tpu_custom_call.1']
    #allocation4 [shape = 's32[2]{0}', space=sflag, size = 0x8, scoped, tag = 'scoped memory for tpu_custom_call.1']
    #allocation5 [shape = 'u8[65536]{0}', space=vmem, size = 0x10000, scoped, tag = 'input window, operand 1, single buffered']
    #allocation6 [shape = 's32[1]{0}', space=sflag, size = 0x4, scoped, tag = 'scoped memory for tpu_custom_call.1']
    #allocation7 [shape = 'u8[327680]{0}', space=vmem, size = 0x50000, scoped, tag = 'input window, operand 2']
    #allocation8 [shape = 'u8[1024]{0}', space=vmem, size = 0x400, scoped, tag = 'input window, operand 3']
    #allocation9 [shape = 'u8[327680]{0}', space=vmem, size = 0x50000, scoped, tag = 'input window, operand 4']
    #allocation10 [shape = 'u8[5120]{0}', space=vmem, size = 0x1400, scoped, tag = 'input window, operand 5']
    #allocation11 [shape = 'u8[5120]{0}', space=vmem, size = 0x1400, scoped, tag = 'output window, operand 0']
    %11 = vsyncpa [#allocation3], 0
    %s12 = scalar_lea.sflag [#allocation3], 1
    %13 = vsyncpa %s12, 0
    %14 = vsyncpa [#allocation6], 0
    %15 = vsyncpa [#allocation4], 0
    %s16 = scalar_lea.sflag [#allocation4], 1
    %17 = vsyncpa %s16, 0
    loop: start=0, step=1, limit=4
    $region2: #{tpu_custom_call.1} parent=1 // loop_pre_header
      _
    $region3: #{tpu_custom_call.1} parent=1 // loop_header
      %s19 = sphi 0, %s23
      %p20 = scmp.ge.s32.totalorder %s19, 4
      %s29 = sphi 0, %s31
      %s32 = sphi 0, %s29
      %s33 = sphi 0, %s32
      %s49 = sphi 0, %s33
      %s53 = sphi 0, %s53
      %s55 = sphi 0, %s53
      %s56 = sphi 0, %s55
      %s70 = sphi 0, %s56
      %s76 = sphi 0, %s78
      %s79 = sphi 0, %s76
      %s80 = sphi 0, %s79
      %s96 = sphi 0, %s80
      %s102 = sphi 0, %s104
      %s105 = sphi 0, %s102
      %s106 = sphi 0, %s105
      %s122 = sphi 0, %s106
      %s128 = sphi 0, %s130
      %s131 = sphi 0, %s128
      %s132 = sphi 0, %s131
      %s148 = sphi 0, %s132
      %s154 = sphi 0, %s156
      %s157 = sphi 0, %s154
      %s158 = sphi 0, %s157
      %s174 = sphi 0, %s158
      %s180 = sphi 0, %s182
      %s183 = sphi 0, %s180
      %s184 = sphi 0, %s183
      %s200 = sphi 0, %s184
    $region4: #{tpu_custom_call.1} parent=1 // loop_header_branch
      %22 = sbr.rel (%p20) target = $region8
    $region5: #{tpu_custom_call.1} parent=1 // loop_body
      %s24 = ssub.s32 %s19, 1
      %s25 = ssub.s32 %s19, 2
      %s26 = sadd.s32 %s19, 1
      %s27 = ssub.s32 %s19, %s26
      %p28 = scmp.eq.s32.totalorder %s27, 0
      %s30 = sadd.s32 %s29, 1
      %s31 = scalar_select %p28, %s29, %s30
      %p34 = pneg %p28
      %p35 = scmp.eq.s32.totalorder %s19, 1
      %p36 = por %p34, %p35
      %p37 = scmp.ne.s32.totalorder %s29, %s32
      %p38 = scmp.eq.s32.totalorder %s19, 0
      %p39 = por %p37, %p38
      %p40 = scmp.ne.s32.totalorder %s29, %s32
      %p41 = scmp.eq.s32.totalorder %s24, 1
      %p42 = por %p40, %p41
      %p43 = scmp.ne.s32.totalorder %s32, %s33
      %p44 = scmp.eq.s32.totalorder %s24, 0
      %p45 = por %p43, %p44
      %p46 = scmp.ne.s32.totalorder %s32, %s33
      %p47 = scmp.eq.s32.totalorder %s25, 1
      %p48 = por %p46, %p47
      %p50 = scmp.ne.s32.totalorder %s33, %s49
      %p51 = scmp.eq.s32.totalorder %s25, 0
      %p52 = por %p50, %p51
      %s54 = sadd.s32 %s53, 1
      %p57 = scmp.eq.s32.totalorder %s19, 1
      %p58 = scmp.ne.s32.totalorder %s53, %s55
      %p59 = scmp.eq.s32.totalorder %s19, 0
      %p60 = por %p58, %p59
      %p61 = scmp.ne.s32.totalorder %s53, %s55
      %p62 = scmp.eq.s32.totalorder %s24, 1
      %p63 = por %p61, %p62
      %p64 = scmp.ne.s32.totalorder %s55, %s56
      %p65 = scmp.eq.s32.totalorder %s24, 0
      %p66 = por %p64, %p65
      %p67 = scmp.ne.s32.totalorder %s55, %s56
      %p68 = scmp.eq.s32.totalorder %s25, 1
      %p69 = por %p67, %p68
      %p71 = scmp.ne.s32.totalorder %s56, %s70
      %p72 = scmp.eq.s32.totalorder %s25, 0
      %p73 = por %p71, %p72
      %s74 = ssub.s32 %s19, %s26
      %p75 = scmp.eq.s32.totalorder %s74, 0
      %s77 = sadd.s32 %s76, 1
      %s78 = scalar_select %p75, %s76, %s77
      %p81 = pneg %p75
      %p82 = scmp.eq.s32.totalorder %s19, 1
      %p83 = por %p81, %p82
      %p84 = scmp.ne.s32.totalorder %s76, %s79
      %p85 = scmp.eq.s32.totalorder %s19, 0
      %p86 = por %p84, %p85
      %p87 = scmp.ne.s32.totalorder %s76, %s79
      %p88 = scmp.eq.s32.totalorder %s24, 1
      %p89 = por %p87, %p88
      %p90 = scmp.ne.s32.totalorder %s79, %s80
      %p91 = scmp.eq.s32.totalorder %s24, 0
      %p92 = por %p90, %p91
      %p93 = scmp.ne.s32.totalorder %s79, %s80
      %p94 = scmp.eq.s32.totalorder %s25, 1
      %p95 = por %p93, %p94
      %p97 = scmp.ne.s32.totalorder %s80, %s96
      %p98 = scmp.eq.s32.totalorder %s25, 0
      %p99 = por %p97, %p98
      %s100 = ssub.s32 %s19, %s26
      %p101 = scmp.eq.s32.totalorder %s100, 0
      %s103 = sadd.s32 %s102, 1
      %s104 = scalar_select %p101, %s102, %s103
      %p107 = pneg %p101
      %p108 = scmp.eq.s32.totalorder %s19, 1
      %p109 = por %p107, %p108
      %p110 = scmp.ne.s32.totalorder %s102, %s105
      %p111 = scmp.eq.s32.totalorder %s19, 0
      %p112 = por %p110, %p111
      %p113 = scmp.ne.s32.totalorder %s102, %s105
      %p114 = scmp.eq.s32.totalorder %s24, 1
      %p115 = por %p113, %p114
      %p116 = scmp.ne.s32.totalorder %s105, %s106
      %p117 = scmp.eq.s32.totalorder %s24, 0
      %p118 = por %p116, %p117
      %p119 = scmp.ne.s32.totalorder %s105, %s106
      %p120 = scmp.eq.s32.totalorder %s25, 1
      %p121 = por %p119, %p120
      %p123 = scmp.ne.s32.totalorder %s106, %s122
      %p124 = scmp.eq.s32.totalorder %s25, 0
      %p125 = por %p123, %p124
      %s126 = ssub.s32 %s19, %s26
      %p127 = scmp.eq.s32.totalorder %s126, 0
      %s129 = sadd.s32 %s128, 1
      %s130 = scalar_select %p127, %s128, %s129
      %p133 = pneg %p127
      %p134 = scmp.eq.s32.totalorder %s19, 1
      %p135 = por %p133, %p134
      %p136 = scmp.ne.s32.totalorder %s128, %s131
      %p137 = scmp.eq.s32.totalorder %s19, 0
      %p138 = por %p136, %p137
      %p139 = scmp.ne.s32.totalorder %s128, %s131
      %p140 = scmp.eq.s32.totalorder %s24, 1
      %p141 = por %p139, %p140
      %p142 = scmp.ne.s32.totalorder %s131, %s132
      %p143 = scmp.eq.s32.totalorder %s24, 0
      %p144 = por %p142, %p143
      %p145 = scmp.ne.s32.totalorder %s131, %s132
      %p146 = scmp.eq.s32.totalorder %s25, 1
      %p147 = por %p145, %p146
      %p149 = scmp.ne.s32.totalorder %s132, %s148
      %p150 = scmp.eq.s32.totalorder %s25, 0
      %p151 = por %p149, %p150
      %s152 = ssub.s32 %s19, %s26
      %p153 = scmp.eq.s32.totalorder %s152, 0
      %s155 = sadd.s32 %s154, 1
      %s156 = scalar_select %p153, %s154, %s155
      %p159 = pneg %p153
      %p160 = scmp.eq.s32.totalorder %s19, 1
      %p161 = por %p159, %p160
      %p162 = scmp.ne.s32.totalorder %s154, %s157
      %p163 = scmp.eq.s32.totalorder %s19, 0
      %p164 = por %p162, %p163
      %p165 = scmp.ne.s32.totalorder %s154, %s157
      %p166 = scmp.eq.s32.totalorder %s24, 1
      %p167 = por %p165, %p166
      %p168 = scmp.ne.s32.totalorder %s157, %s158
      %p169 = scmp.eq.s32.totalorder %s24, 0
      %p170 = por %p168, %p169
      %p171 = scmp.ne.s32.totalorder %s157, %s158
      %p172 = scmp.eq.s32.totalorder %s25, 1
      %p173 = por %p171, %p172
      %p175 = scmp.ne.s32.totalorder %s158, %s174
      %p176 = scmp.eq.s32.totalorder %s25, 0
      %p177 = por %p175, %p176
      %s178 = ssub.s32 %s19, %s26
      %p179 = scmp.eq.s32.totalorder %s178, 0
      %s181 = sadd.s32 %s180, 1
      %s182 = scalar_select %p179, %s180, %s181
      %p185 = pneg %p179
      %p186 = scmp.eq.s32.totalorder %s19, 1
      %p187 = por %p185, %p186
      %p188 = scmp.ne.s32.totalorder %s180, %s183
      %p189 = scmp.eq.s32.totalorder %s19, 0
      %p190 = por %p188, %p189
      %p191 = scmp.ne.s32.totalorder %s180, %s183
      %p192 = scmp.eq.s32.totalorder %s24, 1
      %p193 = por %p191, %p192
      %p194 = scmp.ne.s32.totalorder %s183, %s184
      %p195 = scmp.eq.s32.totalorder %s24, 0
      %p196 = por %p194, %p195
      %p197 = scmp.ne.s32.totalorder %s183, %s184
      %p198 = scmp.eq.s32.totalorder %s25, 1
      %p199 = por %p197, %p198
      %p201 = scmp.ne.s32.totalorder %s184, %s200
      %p202 = scmp.eq.s32.totalorder %s25, 0
      %p203 = por %p201, %p202
      %p204 = scmp.le.s32.totalorder 1, %s19
      %p205 = scmp.lt.s32.totalorder %s19, 3
      %p206 = pnand %p204, %p205
      %p207 = pneg %p206
      // Predicated region
      $region9: #{tpu_custom_call.1} parent=5 // pred_check
        _
      $region10: #{tpu_custom_call.1} parent=5 // pred_check_branch
        %209 = sbr.rel (%p206) target = $region12
      $region11: #{tpu_custom_call.1} parent=5 // pred_region
        %s210 = ssub.s32 %s19, 1
        // Predicated region
        $region13: #{tpu_custom_call.1} parent=11 // pred_check
          %p211 = pneg %p66
        $region14: #{tpu_custom_call.1} parent=11 // pred_check_branch
          %213 = sbr.rel (%p211) target = $region16
        $region15: #{tpu_custom_call.1} parent=11 // pred_region
          %215 = vsyncadd [#allocation6], 0
          %s217 = sshll.u32 %s1, 4
          %s218 = int_to_ptr.hbm [resolvable:$true] %s217
          %s219 = sshll.u32 [#allocation5], 4
          %s220 = int_to_ptr.vmem [resolvable:$true] %s219
          %222 = dma.hbm_to_vmem [thread:$0]  %s218, 2048, %s220, [#allocation6]
        $region16: #{tpu_custom_call.1} parent=11 // pred_fallthru
          _
      $region12: #{tpu_custom_call.1} parent=5 // pred_fallthru
        _
      %p223 = scmp.lt.s32.totalorder %s19, 2
      // Predicated region
      $region17: #{tpu_custom_call.1} parent=5 // pred_check
        %p224 = pneg %p223
      $region18: #{tpu_custom_call.1} parent=5 // pred_check_branch
        %226 = sbr.rel (%p224) target = $region20
      $region19: #{tpu_custom_call.1} parent=5 // pred_region
        // Predicated region
        $region21: #{tpu_custom_call.1} parent=19 // pred_check
          %p227 = pneg %p39
        $region22: #{tpu_custom_call.1} parent=19 // pred_check_branch
          %229 = sbr.rel (%p227) target = $region24
        $region23: #{tpu_custom_call.1} parent=19 // pred_region
          %s230 = sand.u32 %s19, 1
          %s231 = scalar_lea.sflag [#allocation3], %s230
          %s232 = sand.u32 %s29, 1
          %s233 = smul.addr %s232, 10240
          %s234 = scalar_lea.vmem [#allocation2], %s233
          %236 = vsyncadd %s231, 0
          %s237 = smul.addr %s19, 2560
          %s238 = smul.addr %s237, 4
          %s239 = scalar_lea.hbm %s0, %s238
          %s240 = sshll.u32 %s239, 4
          %s241 = int_to_ptr.hbm [resolvable:$true] %s240
          %s242 = sshll.u32 %s234, 4
          %s243 = int_to_ptr.vmem [resolvable:$true] %s242
          %248 = dma.hbm_to_vmem [thread:$0]  %s241, 163840, %s243, %s231, 320, 320, 20
        $region24: #{tpu_custom_call.1} parent=19 // pred_fallthru
          _
        // Predicated region
        $region25: #{tpu_custom_call.1} parent=19 // pred_check
          %p249 = pneg %p86
        $region26: #{tpu_custom_call.1} parent=19 // pred_check_branch
          %251 = sbr.rel (%p249) target = $region28
        $region27: #{tpu_custom_call.1} parent=19 // pred_region
          %s252 = sand.u32 %s19, 1
          %s253 = scalar_lea.sflag [#allocation3], %s252
          %s254 = sand.u32 %s76, 1
          %s255 = smul.addr %s254, 320
          %s256 = scalar_lea.vmem [#allocation7], %s255
          %s257 = smul.u32 80, %s19
          %259 = vsyncadd %s253, 0
          %s260 = smul.addr %s257, 4
          %s261 = scalar_lea.hbm %s2, %s260
          %s262 = sshll.u32 %s261, 4
          %s263 = int_to_ptr.hbm [resolvable:$true] %s262
          %s264 = sshll.u32 %s256, 4
          %s265 = int_to_ptr.vmem [resolvable:$true] %s264
          %270 = dma.hbm_to_vmem [thread:$0]  %s263, 5120, %s265, %s253, 64, 64, 4
        $region28: #{tpu_custom_call.1} parent=19 // pred_fallthru
          _
        // Predicated region
        $region29: #{tpu_custom_call.1} parent=19 // pred_check
          %p271 = pneg %p112
        $region30: #{tpu_custom_call.1} parent=19 // pred_check_branch
          %273 = sbr.rel (%p271) target = $region32
        $region31: #{tpu_custom_call.1} parent=19 // pred_region
          %s274 = sand.u32 %s19, 1
          %s275 = scalar_lea.sflag [#allocation3], %s274
          %s276 = sand.u32 %s102, 1
          %s277 = scalar_lea.vmem [#allocation8], %s276
          %279 = vsyncadd %s275, 0
          %s280 = scalar_lea.hbm %s3, %s19
          %s282 = sshll.u32 %s280, 4
          %s283 = int_to_ptr.hbm [resolvable:$true] %s282
          %s284 = sshll.u32 %s277, 4
          %s285 = int_to_ptr.vmem [resolvable:$true] %s284
          %287 = dma.hbm_to_vmem [thread:$0]  %s283, 16, %s285, %s275
        $region32: #{tpu_custom_call.1} parent=19 // pred_fallthru
          _
        // Predicated region
        $region33: #{tpu_custom_call.1} parent=19 // pred_check
          %p288 = pneg %p138
        $region34: #{tpu_custom_call.1} parent=19 // pred_check_branch
          %290 = sbr.rel (%p288) target = $region36
        $region35: #{tpu_custom_call.1} parent=19 // pred_region
          %s291 = sand.u32 %s19, 1
          %s292 = scalar_lea.sflag [#allocation3], %s291
          %s293 = sand.u32 %s128, 1
          %s294 = smul.addr %s293, 320
          %s295 = scalar_lea.vmem [#allocation9], %s294
          %s296 = smul.u32 16, %s19
          %298 = vsyncadd %s292, 0
          %s299 = smul.addr %s296, 5
          %s300 = smul.addr %s299, 4
          %s301 = scalar_lea.hbm %s4, %s300
          %s302 = sshll.u32 %s301, 4
          %s303 = int_to_ptr.hbm [resolvable:$true] %s302
          %s304 = sshll.u32 %s295, 4
          %s305 = int_to_ptr.vmem [resolvable:$true] %s304
          %310 = dma.hbm_to_vmem [thread:$0]  %s303, 5120, %s305, %s292, 320, 320, 20
        $region36: #{tpu_custom_call.1} parent=19 // pred_fallthru
          _
        // Predicated region
        $region37: #{tpu_custom_call.1} parent=19 // pred_check
          %p311 = pneg %p164
        $region38: #{tpu_custom_call.1} parent=19 // pred_check_branch
          %313 = sbr.rel (%p311) target = $region40
        $region39: #{tpu_custom_call.1} parent=19 // pred_region
          %s314 = sand.u32 %s19, 1
          %s315 = scalar_lea.sflag [#allocation3], %s314
          %s316 = sand.u32 %s154, 1
          %s317 = smul.addr %s316, 5
          %s318 = scalar_lea.vmem [#allocation10], %s317
          %320 = vsyncadd %s315, 0
          %s321 = smul.addr %s19, 5
          %s322 = scalar_lea.hbm %s5, %s321
          %s324 = sshll.u32 %s322, 4
          %s325 = int_to_ptr.hbm [resolvable:$true] %s324
          %s326 = sshll.u32 %s318, 4
          %s327 = int_to_ptr.vmem [resolvable:$true] %s326
          %329 = dma.hbm_to_vmem [thread:$0]  %s325, 80, %s327, %s315
        $region40: #{tpu_custom_call.1} parent=19 // pred_fallthru
          _
      $region20: #{tpu_custom_call.1} parent=5 // pred_fallthru
        _
      %p330 = scmp.le.s32.totalorder 1, %s19
      %p331 = scmp.lt.s32.totalorder %s19, 3
      %p332 = pnand %p330, %p331
      %p333 = pneg %p332
      // Predicated region
      $region41: #{tpu_custom_call.1} parent=5 // pred_check
        _
      $region42: #{tpu_custom_call.1} parent=5 // pred_check_branch
        %335 = sbr.rel (%p332) target = $region44
      $region43: #{tpu_custom_call.1} parent=5 // pred_region
        %s336 = ssub.s32 %s19, 1
        %s337 = sand.u32 %s24, 1
        %s338 = scalar_lea.sflag [#allocation3], %s337
        %s339 = sand.u32 %s32, 1
        %s340 = smul.addr %s339, 10240
        %s341 = scalar_lea.vmem [#allocation2], %s340
        // Predicated region
        $region45: #{tpu_custom_call.1} parent=43 // pred_check
          %p342 = pneg %p45
        $region46: #{tpu_custom_call.1} parent=43 // pred_check_branch
          %344 = sbr.rel (%p342) target = $region48
        $region47: #{tpu_custom_call.1} parent=43 // pred_region
          %346 = dma.done %s338, 163840
        $region48: #{tpu_custom_call.1} parent=43 // pred_fallthru
          _
        // Predicated region
        $region49: #{tpu_custom_call.1} parent=43 // pred_check
          %p347 = pneg %p66
        $region50: #{tpu_custom_call.1} parent=43 // pred_check_branch
          %349 = sbr.rel (%p347) target = $region52
        $region51: #{tpu_custom_call.1} parent=43 // pred_region
          %351 = dma.done [#allocation6], 2048
        $region52: #{tpu_custom_call.1} parent=43 // pred_fallthru
          _
        %s352 = sand.u32 %s24, 1
        %s353 = scalar_lea.sflag [#allocation3], %s352
        %s354 = sand.u32 %s79, 1
        %s355 = smul.addr %s354, 320
        %s356 = scalar_lea.vmem [#allocation7], %s355
        // Predicated region
        $region53: #{tpu_custom_call.1} parent=43 // pred_check
          %p357 = pneg %p92
        $region54: #{tpu_custom_call.1} parent=43 // pred_check_branch
          %359 = sbr.rel (%p357) target = $region56
        $region55: #{tpu_custom_call.1} parent=43 // pred_region
          %361 = dma.done %s353, 5120
        $region56: #{tpu_custom_call.1} parent=43 // pred_fallthru
          _
        %s362 = sand.u32 %s24, 1
        %s363 = scalar_lea.sflag [#allocation3], %s362
        %s364 = sand.u32 %s105, 1
        %s365 = scalar_lea.vmem [#allocation8], %s364
        // Predicated region
        $region57: #{tpu_custom_call.1} parent=43 // pred_check
          %p366 = pneg %p118
        $region58: #{tpu_custom_call.1} parent=43 // pred_check_branch
          %368 = sbr.rel (%p366) target = $region60
        $region59: #{tpu_custom_call.1} parent=43 // pred_region
          %370 = dma.done %s363, 16
        $region60: #{tpu_custom_call.1} parent=43 // pred_fallthru
          _
        %s371 = sand.u32 %s24, 1
        %s372 = scalar_lea.sflag [#allocation3], %s371
        %s373 = sand.u32 %s131, 1
        %s374 = smul.addr %s373, 320
        %s375 = scalar_lea.vmem [#allocation9], %s374
        // Predicated region
        $region61: #{tpu_custom_call.1} parent=43 // pred_check
          %p376 = pneg %p144
        $region62: #{tpu_custom_call.1} parent=43 // pred_check_branch
          %378 = sbr.rel (%p376) target = $region64
        $region63: #{tpu_custom_call.1} parent=43 // pred_region
          %380 = dma.done %s372, 5120
        $region64: #{tpu_custom_call.1} parent=43 // pred_fallthru
          _
        %s381 = sand.u32 %s24, 1
        %s382 = scalar_lea.sflag [#allocation3], %s381
        %s383 = sand.u32 %s157, 1
        %s384 = smul.addr %s383, 5
        %s385 = scalar_lea.vmem [#allocation10], %s384
        // Predicated region
        $region65: #{tpu_custom_call.1} parent=43 // pred_check
          %p386 = pneg %p170
        $region66: #{tpu_custom_call.1} parent=43 // pred_check_branch
          %388 = sbr.rel (%p386) target = $region68
        $region67: #{tpu_custom_call.1} parent=43 // pred_region
          %390 = dma.done %s382, 80
        $region68: #{tpu_custom_call.1} parent=43 // pred_fallthru
          _
        %s391 = sand.u32 %s24, 1
        %s392 = scalar_lea.sflag [#allocation3], %s391
        %s393 = sand.u32 %s32, 1
        %s394 = smul.addr %s393, 10240
        %s395 = scalar_lea.vmem [#allocation2], %s394
        %p396 = pneg %p45
        %p397 = pneg %p42
        %p398 = pneg %p66
        %p399 = pneg %p63
        %s400 = sand.u32 %s24, 1
        %s401 = scalar_lea.sflag [#allocation3], %s400
        %s402 = sand.u32 %s79, 1
        %s403 = smul.addr %s402, 320
        %s404 = scalar_lea.vmem [#allocation7], %s403
        %p405 = pneg %p92
        %p406 = pneg %p89
        %s407 = sand.u32 %s24, 1
        %s408 = scalar_lea.sflag [#allocation3], %s407
        %s409 = sand.u32 %s105, 1
        %s410 = scalar_lea.vmem [#allocation8], %s409
        %p411 = pneg %p118
        %p412 = pneg %p115
        %s413 = sand.u32 %s24, 1
        %s414 = scalar_lea.sflag [#allocation3], %s413
        %s415 = sand.u32 %s131, 1
        %s416 = smul.addr %s415, 320
        %s417 = scalar_lea.vmem [#allocation9], %s416
        %p418 = pneg %p144
        %p419 = pneg %p141
        %s420 = sand.u32 %s24, 1
        %s421 = scalar_lea.sflag [#allocation3], %s420
        %s422 = sand.u32 %s157, 1
        %s423 = smul.addr %s422, 5
        %s424 = scalar_lea.vmem [#allocation10], %s423
        %p425 = pneg %p170
        %p426 = pneg %p167
        %p427 = pneg %p196
        %p428 = pneg %p193
        %s429 = sand.u32 %s183, 1
        %s430 = scalar_lea.sflag [#allocation4], %s429
        %s431 = sand.u32 %s183, 1
        %s432 = smul.addr %s431, 5
        %s433 = scalar_lea.vmem [#allocation11], %s432
        %s434 = smul.u32 80, %s24
        %s435 = smul.u32 16, %s24
        %v436 = vld [vmem:[#allocation5] sm:$0xff]
        %v437 = vld [vmem:[#allocation5 + $0x8] sm:$0xff]
        %v438 = vld [vmem:[#allocation5 + $0x10] sm:$0xff]
        %v439 = vld [vmem:[#allocation5 + $0x18] sm:$0xff]
        %v440 = vld [vmem:[#allocation5 + $0x20] sm:$0xff]
        %v441 = vld [vmem:[#allocation5 + $0x28] sm:$0xff]
        %v442 = vld [vmem:[#allocation5 + $0x30] sm:$0xff]
        %v443 = vld [vmem:[#allocation5 + $0x38] sm:$0xff]
        %v444 = vld [vmem:[#allocation5 + $0x40] sm:$0xff]
        %v445 = vld [vmem:[#allocation5 + $0x48] sm:$0xff]
        %v446 = vld [vmem:[#allocation5 + $0x50] sm:$0xff]
        %v447 = vld [vmem:[#allocation5 + $0x58] sm:$0xff]
        %v448 = vld [vmem:[#allocation5 + $0x60] sm:$0xff]
        %v449 = vld [vmem:[#allocation5 + $0x68] sm:$0xff]
        %v450 = vld [vmem:[#allocation5 + $0x70] sm:$0xff]
        %v451 = vld [vmem:[#allocation5 + $0x78] sm:$0xff]
        %v452 = vld [vmem:[%s341] sm:$0xff]
        %v453 = vld [vmem:[%s341 + $0x8] sm:$0xff]
        %v454 = vld [vmem:[%s341 + $0x10] sm:$0xf]
        %v455 = vld [vmem:[%s341 + $0x14] sm:$0xff]
        %v456 = vld [vmem:[%s341 + $0x1c] sm:$0xff]
        %v457 = vld [vmem:[%s341 + $0x24] sm:$0xf]
        %v458 = vld [vmem:[%s341 + $0x28] sm:$0xff]
        %v459 = vld [vmem:[%s341 + $0x30] sm:$0xff]
        %v460 = vld [vmem:[%s341 + $0x38] sm:$0xf]
        %v461 = vld [vmem:[%s341 + $0x3c] sm:$0xff]
        %v462 = vld [vmem:[%s341 + $0x44] sm:$0xff]
        %v463 = vld [vmem:[%s341 + $0x4c] sm:$0xf]
        %v464 = vld [vmem:[%s341 + $0x50] sm:$0xff]
        %v465 = vld [vmem:[%s341 + $0x58] sm:$0xff]
        %v466 = vld [vmem:[%s341 + $0x60] sm:$0xf]
        %v467 = vld [vmem:[%s341 + $0x64] sm:$0xff]
        %v468 = vld [vmem:[%s341 + $0x6c] sm:$0xff]
        %v469 = vld [vmem:[%s341 + $0x74] sm:$0xf]
        %v470 = vld [vmem:[%s341 + $0x78] sm:$0xff]
        %v471 = vld [vmem:[%s341 + $0x80] sm:$0xff]
        %v472 = vld [vmem:[%s341 + $0x88] sm:$0xf]
        %v473 = vld [vmem:[%s341 + $0x8c] sm:$0xff]
        %v474 = vld [vmem:[%s341 + $0x94] sm:$0xff]
        %v475 = vld [vmem:[%s341 + $0x9c] sm:$0xf]
        %v476 = vld [vmem:[%s341 + $0xa0] sm:$0xff]
        %v477 = vld [vmem:[%s341 + $0xa8] sm:$0xff]
        %v478 = vld [vmem:[%s341 + $0xb0] sm:$0xf]
        %v479 = vld [vmem:[%s341 + $0xb4] sm:$0xff]
        %v480 = vld [vmem:[%s341 + $0xbc] sm:$0xff]
        %v481 = vld [vmem:[%s341 + $0xc4] sm:$0xf]
        %v482 = vld [vmem:[%s341 + $0xc8] sm:$0xff]
        %v483 = vld [vmem:[%s341 + $0xd0] sm:$0xff]
        %v484 = vld [vmem:[%s341 + $0xd8] sm:$0xf]
        %v485 = vld [vmem:[%s341 + $0xdc] sm:$0xff]
        %v486 = vld [vmem:[%s341 + $0xe4] sm:$0xff]
        %v487 = vld [vmem:[%s341 + $0xec] sm:$0xf]
        %v488 = vld [vmem:[%s341 + $0xf0] sm:$0xff]
        %v489 = vld [vmem:[%s341 + $0xf8] sm:$0xff]
        %v490 = vld [vmem:[%s341 + $0x100] sm:$0xf]
        %v491 = vld [vmem:[%s341 + $0x104] sm:$0xff]
        %v492 = vld [vmem:[%s341 + $0x10c] sm:$0xff]
        %v493 = vld [vmem:[%s341 + $0x114] sm:$0xf]
        %v494 = vld [vmem:[%s341 + $0x118] sm:$0xff]
        %v495 = vld [vmem:[%s341 + $0x120] sm:$0xff]
        %v496 = vld [vmem:[%s341 + $0x128] sm:$0xf]
        %v497 = vld [vmem:[%s341 + $0x12c] sm:$0xff]
        %v498 = vld [vmem:[%s341 + $0x134] sm:$0xff]
        %v499 = vld [vmem:[%s341 + $0x13c] sm:$0xf]
        %v500 = vld [vmem:[%s341 + $0x140] sm:$0xff]
        %v501 = vld [vmem:[%s341 + $0x148] sm:$0xff]
        %v502 = vld [vmem:[%s341 + $0x150] sm:$0xf]
        %v503 = vld [vmem:[%s341 + $0x154] sm:$0xff]
        %v504 = vld [vmem:[%s341 + $0x15c] sm:$0xff]
        %v505 = vld [vmem:[%s341 + $0x164] sm:$0xf]
        %v506 = vld [vmem:[%s341 + $0x168] sm:$0xff]
        %v507 = vld [vmem:[%s341 + $0x170] sm:$0xff]
        %v508 = vld [vmem:[%s341 + $0x178] sm:$0xf]
        %v509 = vld [vmem:[%s341 + $0x17c] sm:$0xff]
        %v510 = vld [vmem:[%s341 + $0x184] sm:$0xff]
        %v511 = vld [vmem:[%s341 + $0x18c] sm:$0xf]
        %v512 = vld [vmem:[%s341 + $0x190] sm:$0xff]
        %v513 = vld [vmem:[%s341 + $0x198] sm:$0xff]
        %v514 = vld [vmem:[%s341 + $0x1a0] sm:$0xf]
        %v515 = vld [vmem:[%s341 + $0x1a4] sm:$0xff]
        %v516 = vld [vmem:[%s341 + $0x1ac] sm:$0xff]
        %v517 = vld [vmem:[%s341 + $0x1b4] sm:$0xf]
        %v518 = vld [vmem:[%s341 + $0x1b8] sm:$0xff]
        %v519 = vld [vmem:[%s341 + $0x1c0] sm:$0xff]
        %v520 = vld [vmem:[%s341 + $0x1c8] sm:$0xf]
        %v521 = vld [vmem:[%s341 + $0x1cc] sm:$0xff]
        %v522 = vld [vmem:[%s341 + $0x1d4] sm:$0xff]
        %v523 = vld [vmem:[%s341 + $0x1dc] sm:$0xf]
        %v524 = vld [vmem:[%s341 + $0x1e0] sm:$0xff]
        %v525 = vld [vmem:[%s341 + $0x1e8] sm:$0xff]
        %v526 = vld [vmem:[%s341 + $0x1f0] sm:$0xf]
        %v527 = vld [vmem:[%s341 + $0x1f4] sm:$0xff]
        %v528 = vld [vmem:[%s341 + $0x1fc] sm:$0xff]
        %v529 = vld [vmem:[%s341 + $0x204] sm:$0xf]
        %v530 = vld [vmem:[%s341 + $0x208] sm:$0xff]
        %v531 = vld [vmem:[%s341 + $0x210] sm:$0xff]
        %v532 = vld [vmem:[%s341 + $0x218] sm:$0xf]
        %v533 = vld [vmem:[%s341 + $0x21c] sm:$0xff]
        %v534 = vld [vmem:[%s341 + $0x224] sm:$0xff]
        %v535 = vld [vmem:[%s341 + $0x22c] sm:$0xf]
        %v536 = vld [vmem:[%s341 + $0x230] sm:$0xff]
        %v537 = vld [vmem:[%s341 + $0x238] sm:$0xff]
        %v538 = vld [vmem:[%s341 + $0x240] sm:$0xf]
        %v539 = vld [vmem:[%s341 + $0x244] sm:$0xff]
        %v540 = vld [vmem:[%s341 + $0x24c] sm:$0xff]
        %v541 = vld [vmem:[%s341 + $0x254] sm:$0xf]
        %v542 = vld [vmem:[%s341 + $0x258] sm:$0xff]
        %v543 = vld [vmem:[%s341 + $0x260] sm:$0xff]
        %v544 = vld [vmem:[%s341 + $0x268] sm:$0xf]
        %v545 = vld [vmem:[%s341 + $0x26c] sm:$0xff]
        %v546 = vld [vmem:[%s341 + $0x274] sm:$0xff]
        %v547 = vld [vmem:[%s341 + $0x27c] sm:$0xf]
        %v548 = vld [vmem:[%s341 + $0x280] sm:$0xff]
        %v549 = vld [vmem:[%s341 + $0x288] sm:$0xff]
        %v550 = vld [vmem:[%s341 + $0x290] sm:$0xf]
        %v551 = vld [vmem:[%s341 + $0x294] sm:$0xff]
        %v552 = vld [vmem:[%s341 + $0x29c] sm:$0xff]
        %v553 = vld [vmem:[%s341 + $0x2a4] sm:$0xf]
        %v554 = vld [vmem:[%s341 + $0x2a8] sm:$0xff]
        %v555 = vld [vmem:[%s341 + $0x2b0] sm:$0xff]
        %v556 = vld [vmem:[%s341 + $0x2b8] sm:$0xf]
        %v557 = vld [vmem:[%s341 + $0x2bc] sm:$0xff]
        %v558 = vld [vmem:[%s341 + $0x2c4] sm:$0xff]
        %v559 = vld [vmem:[%s341 + $0x2cc] sm:$0xf]
        %v560 = vld [vmem:[%s341 + $0x2d0] sm:$0xff]
        %v561 = vld [vmem:[%s341 + $0x2d8] sm:$0xff]
        %v562 = vld [vmem:[%s341 + $0x2e0] sm:$0xf]
        %v563 = vld [vmem:[%s341 + $0x2e4] sm:$0xff]
        %v564 = vld [vmem:[%s341 + $0x2ec] sm:$0xff]
        %v565 = vld [vmem:[%s341 + $0x2f4] sm:$0xf]
        %v566 = vld [vmem:[%s341 + $0x2f8] sm:$0xff]
        %v567 = vld [vmem:[%s341 + $0x300] sm:$0xff]
        %v568 = vld [vmem:[%s341 + $0x308] sm:$0xf]
        %v569 = vld [vmem:[%s341 + $0x30c] sm:$0xff]
        %v570 = vld [vmem:[%s341 + $0x314] sm:$0xff]
        %v571 = vld [vmem:[%s341 + $0x31c] sm:$0xf]
        %v572 = vld [vmem:[%s341 + $0x320] sm:$0xff]
        %v573 = vld [vmem:[%s341 + $0x328] sm:$0xff]
        %v574 = vld [vmem:[%s341 + $0x330] sm:$0xf]
        %v575 = vld [vmem:[%s341 + $0x334] sm:$0xff]
        %v576 = vld [vmem:[%s341 + $0x33c] sm:$0xff]
        %v577 = vld [vmem:[%s341 + $0x344] sm:$0xf]
        %v578 = vld [vmem:[%s341 + $0x348] sm:$0xff]
        %v579 = vld [vmem:[%s341 + $0x350] sm:$0xff]
        %v580 = vld [vmem:[%s341 + $0x358] sm:$0xf]
        %v581 = vld [vmem:[%s341 + $0x35c] sm:$0xff]
        %v582 = vld [vmem:[%s341 + $0x364] sm:$0xff]
        %v583 = vld [vmem:[%s341 + $0x36c] sm:$0xf]
        %v584 = vld [vmem:[%s341 + $0x370] sm:$0xff]
        %v585 = vld [vmem:[%s341 + $0x378] sm:$0xff]
        %v586 = vld [vmem:[%s341 + $0x380] sm:$0xf]
        %v587 = vld [vmem:[%s341 + $0x384] sm:$0xff]
        %v588 = vld [vmem:[%s341 + $0x38c] sm:$0xff]
        %v589 = vld [vmem:[%s341 + $0x394] sm:$0xf]
        %v590 = vld [vmem:[%s341 + $0x398] sm:$0xff]
        %v591 = vld [vmem:[%s341 + $0x3a0] sm:$0xff]
        %v592 = vld [vmem:[%s341 + $0x3a8] sm:$0xf]
        %v593 = vld [vmem:[%s341 + $0x3ac] sm:$0xff]
        %v594 = vld [vmem:[%s341 + $0x3b4] sm:$0xff]
        %v595 = vld [vmem:[%s341 + $0x3bc] sm:$0xf]
        %v596 = vld [vmem:[%s341 + $0x3c0] sm:$0xff]
        %v597 = vld [vmem:[%s341 + $0x3c8] sm:$0xff]
        %v598 = vld [vmem:[%s341 + $0x3d0] sm:$0xf]
        %v599 = vld [vmem:[%s341 + $0x3d4] sm:$0xff]
        %v600 = vld [vmem:[%s341 + $0x3dc] sm:$0xff]
        %v601 = vld [vmem:[%s341 + $0x3e4] sm:$0xf]
        %v602 = vld [vmem:[%s341 + $0x3e8] sm:$0xff]
        %v603 = vld [vmem:[%s341 + $0x3f0] sm:$0xff]
        %v604 = vld [vmem:[%s341 + $0x3f8] sm:$0xf]
        %v605 = vld [vmem:[%s341 + $0x3fc] sm:$0xff]
        %v606 = vld [vmem:[%s341 + $0x404] sm:$0xff]
        %v607 = vld [vmem:[%s341 + $0x40c] sm:$0xf]
        %v608 = vld [vmem:[%s341 + $0x410] sm:$0xff]
        %v609 = vld [vmem:[%s341 + $0x418] sm:$0xff]
        %v610 = vld [vmem:[%s341 + $0x420] sm:$0xf]
        %v611 = vld [vmem:[%s341 + $0x424] sm:$0xff]
        %v612 = vld [vmem:[%s341 + $0x42c] sm:$0xff]
        %v613 = vld [vmem:[%s341 + $0x434] sm:$0xf]
        %v614 = vld [vmem:[%s341 + $0x438] sm:$0xff]
        %v615 = vld [vmem:[%s341 + $0x440] sm:$0xff]
        %v616 = vld [vmem:[%s341 + $0x448] sm:$0xf]
        %v617 = vld [vmem:[%s341 + $0x44c] sm:$0xff]
        %v618 = vld [vmem:[%s341 + $0x454] sm:$0xff]
        %v619 = vld [vmem:[%s341 + $0x45c] sm:$0xf]
        %v620 = vld [vmem:[%s341 + $0x460] sm:$0xff]
        %v621 = vld [vmem:[%s341 + $0x468] sm:$0xff]
        %v622 = vld [vmem:[%s341 + $0x470] sm:$0xf]
        %v623 = vld [vmem:[%s341 + $0x474] sm:$0xff]
        %v624 = vld [vmem:[%s341 + $0x47c] sm:$0xff]
        %v625 = vld [vmem:[%s341 + $0x484] sm:$0xf]
        %v626 = vld [vmem:[%s341 + $0x488] sm:$0xff]
        %v627 = vld [vmem:[%s341 + $0x490] sm:$0xff]
        %v628 = vld [vmem:[%s341 + $0x498] sm:$0xf]
        %v629 = vld [vmem:[%s341 + $0x49c] sm:$0xff]
        %v630 = vld [vmem:[%s341 + $0x4a4] sm:$0xff]
        %v631 = vld [vmem:[%s341 + $0x4ac] sm:$0xf]
        %v632 = vld [vmem:[%s341 + $0x4b0] sm:$0xff]
        %v633 = vld [vmem:[%s341 + $0x4b8] sm:$0xff]
        %v634 = vld [vmem:[%s341 + $0x4c0] sm:$0xf]
        %v635 = vld [vmem:[%s341 + $0x4c4] sm:$0xff]
        %v636 = vld [vmem:[%s341 + $0x4cc] sm:$0xff]
        %v637 = vld [vmem:[%s341 + $0x4d4] sm:$0xf]
        %v638 = vld [vmem:[%s341 + $0x4d8] sm:$0xff]
        %v639 = vld [vmem:[%s341 + $0x4e0] sm:$0xff]
        %v640 = vld [vmem:[%s341 + $0x4e8] sm:$0xf]
        %v641 = vld [vmem:[%s341 + $0x4ec] sm:$0xff]
        %v642 = vld [vmem:[%s341 + $0x4f4] sm:$0xff]
        %v643 = vld [vmem:[%s341 + $0x4fc] sm:$0xf]
        %v644 = vld [vmem:[%s341 + $0x500] sm:$0xff]
        %v645 = vld [vmem:[%s341 + $0x508] sm:$0xff]
        %v646 = vld [vmem:[%s341 + $0x510] sm:$0xf]
        %v647 = vld [vmem:[%s341 + $0x514] sm:$0xff]
        %v648 = vld [vmem:[%s341 + $0x51c] sm:$0xff]
        %v649 = vld [vmem:[%s341 + $0x524] sm:$0xf]
        %v650 = vld [vmem:[%s341 + $0x528] sm:$0xff]
        %v651 = vld [vmem:[%s341 + $0x530] sm:$0xff]
        %v652 = vld [vmem:[%s341 + $0x538] sm:$0xf]
        %v653 = vld [vmem:[%s341 + $0x53c] sm:$0xff]
        %v654 = vld [vmem:[%s341 + $0x544] sm:$0xff]
        %v655 = vld [vmem:[%s341 + $0x54c] sm:$0xf]
        %v656 = vld [vmem:[%s341 + $0x550] sm:$0xff]
        %v657 = vld [vmem:[%s341 + $0x558] sm:$0xff]
        %v658 = vld [vmem:[%s341 + $0x560] sm:$0xf]
        %v659 = vld [vmem:[%s341 + $0x564] sm:$0xff]
        %v660 = vld [vmem:[%s341 + $0x56c] sm:$0xff]
        %v661 = vld [vmem:[%s341 + $0x574] sm:$0xf]
        %v662 = vld [vmem:[%s341 + $0x578] sm:$0xff]
        %v663 = vld [vmem:[%s341 + $0x580] sm:$0xff]
        %v664 = vld [vmem:[%s341 + $0x588] sm:$0xf]
        %v665 = vld [vmem:[%s341 + $0x58c] sm:$0xff]
        %v666 = vld [vmem:[%s341 + $0x594] sm:$0xff]
        %v667 = vld [vmem:[%s341 + $0x59c] sm:$0xf]
        %v668 = vld [vmem:[%s341 + $0x5a0] sm:$0xff]
        %v669 = vld [vmem:[%s341 + $0x5a8] sm:$0xff]
        %v670 = vld [vmem:[%s341 + $0x5b0] sm:$0xf]
        %v671 = vld [vmem:[%s341 + $0x5b4] sm:$0xff]
        %v672 = vld [vmem:[%s341 + $0x5bc] sm:$0xff]
        %v673 = vld [vmem:[%s341 + $0x5c4] sm:$0xf]
        %v674 = vld [vmem:[%s341 + $0x5c8] sm:$0xff]
        %v675 = vld [vmem:[%s341 + $0x5d0] sm:$0xff]
        %v676 = vld [vmem:[%s341 + $0x5d8] sm:$0xf]
        %v677 = vld [vmem:[%s341 + $0x5dc] sm:$0xff]
        %v678 = vld [vmem:[%s341 + $0x5e4] sm:$0xff]
        %v679 = vld [vmem:[%s341 + $0x5ec] sm:$0xf]
        %v680 = vld [vmem:[%s341 + $0x5f0] sm:$0xff]
        %v681 = vld [vmem:[%s341 + $0x5f8] sm:$0xff]
        %v682 = vld [vmem:[%s341 + $0x600] sm:$0xf]
        %v683 = vld [vmem:[%s341 + $0x604] sm:$0xff]
        %v684 = vld [vmem:[%s341 + $0x60c] sm:$0xff]
        %v685 = vld [vmem:[%s341 + $0x614] sm:$0xf]
        %v686 = vld [vmem:[%s341 + $0x618] sm:$0xff]
        %v687 = vld [vmem:[%s341 + $0x620] sm:$0xff]
        %v688 = vld [vmem:[%s341 + $0x628] sm:$0xf]
        %v689 = vld [vmem:[%s341 + $0x62c] sm:$0xff]
        %v690 = vld [vmem:[%s341 + $0x634] sm:$0xff]
        %v691 = vld [vmem:[%s341 + $0x63c] sm:$0xf]
        %v692 = vld [vmem:[%s341 + $0x640] sm:$0xff]
        %v693 = vld [vmem:[%s341 + $0x648] sm:$0xff]
        %v694 = vld [vmem:[%s341 + $0x650] sm:$0xf]
        %v695 = vld [vmem:[%s341 + $0x654] sm:$0xff]
        %v696 = vld [vmem:[%s341 + $0x65c] sm:$0xff]
        %v697 = vld [vmem:[%s341 + $0x664] sm:$0xf]
        %v698 = vld [vmem:[%s341 + $0x668] sm:$0xff]
        %v699 = vld [vmem:[%s341 + $0x670] sm:$0xff]
        %v700 = vld [vmem:[%s341 + $0x678] sm:$0xf]
        %v701 = vld [vmem:[%s341 + $0x67c] sm:$0xff]
        %v702 = vld [vmem:[%s341 + $0x684] sm:$0xff]
        %v703 = vld [vmem:[%s341 + $0x68c] sm:$0xf]
        %v704 = vld [vmem:[%s341 + $0x690] sm:$0xff]
        %v705 = vld [vmem:[%s341 + $0x698] sm:$0xff]
        %v706 = vld [vmem:[%s341 + $0x6a0] sm:$0xf]
        %v707 = vld [vmem:[%s341 + $0x6a4] sm:$0xff]
        %v708 = vld [vmem:[%s341 + $0x6ac] sm:$0xff]
        %v709 = vld [vmem:[%s341 + $0x6b4] sm:$0xf]
        %v710 = vld [vmem:[%s341 + $0x6b8] sm:$0xff]
        %v711 = vld [vmem:[%s341 + $0x6c0] sm:$0xff]
        %v712 = vld [vmem:[%s341 + $0x6c8] sm:$0xf]
        %v713 = vld [vmem:[%s341 + $0x6cc] sm:$0xff]
        %v714 = vld [vmem:[%s341 + $0x6d4] sm:$0xff]
        %v715 = vld [vmem:[%s341 + $0x6dc] sm:$0xf]
        %v716 = vld [vmem:[%s341 + $0x6e0] sm:$0xff]
        %v717 = vld [vmem:[%s341 + $0x6e8] sm:$0xff]
        %v718 = vld [vmem:[%s341 + $0x6f0] sm:$0xf]
        %v719 = vld [vmem:[%s341 + $0x6f4] sm:$0xff]
        %v720 = vld [vmem:[%s341 + $0x6fc] sm:$0xff]
        %v721 = vld [vmem:[%s341 + $0x704] sm:$0xf]
        %v722 = vld [vmem:[%s341 + $0x708] sm:$0xff]
        %v723 = vld [vmem:[%s341 + $0x710] sm:$0xff]
        %v724 = vld [vmem:[%s341 + $0x718] sm:$0xf]
        %v725 = vld [vmem:[%s341 + $0x71c] sm:$0xff]
        %v726 = vld [vmem:[%s341 + $0x724] sm:$0xff]
        %v727 = vld [vmem:[%s341 + $0x72c] sm:$0xf]
        %v728 = vld [vmem:[%s341 + $0x730] sm:$0xff]
        %v729 = vld [vmem:[%s341 + $0x738] sm:$0xff]
        %v730 = vld [vmem:[%s341 + $0x740] sm:$0xf]
        %v731 = vld [vmem:[%s341 + $0x744] sm:$0xff]
        %v732 = vld [vmem:[%s341 + $0x74c] sm:$0xff]
        %v733 = vld [vmem:[%s341 + $0x754] sm:$0xf]
        %v734 = vld [vmem:[%s341 + $0x758] sm:$0xff]
        %v735 = vld [vmem:[%s341 + $0x760] sm:$0xff]
        %v736 = vld [vmem:[%s341 + $0x768] sm:$0xf]
        %v737 = vld [vmem:[%s341 + $0x76c] sm:$0xff]
        %v738 = vld [vmem:[%s341 + $0x774] sm:$0xff]
        %v739 = vld [vmem:[%s341 + $0x77c] sm:$0xf]
        %v740 = vld [vmem:[%s341 + $0x780] sm:$0xff]
        %v741 = vld [vmem:[%s341 + $0x788] sm:$0xff]
        %v742 = vld [vmem:[%s341 + $0x790] sm:$0xf]
        %v743 = vld [vmem:[%s341 + $0x794] sm:$0xff]
        %v744 = vld [vmem:[%s341 + $0x79c] sm:$0xff]
        %v745 = vld [vmem:[%s341 + $0x7a4] sm:$0xf]
        %v746 = vld [vmem:[%s341 + $0x7a8] sm:$0xff]
        %v747 = vld [vmem:[%s341 + $0x7b0] sm:$0xff]
        %v748 = vld [vmem:[%s341 + $0x7b8] sm:$0xf]
        %v749 = vld [vmem:[%s341 + $0x7bc] sm:$0xff]
        %v750 = vld [vmem:[%s341 + $0x7c4] sm:$0xff]
        %v751 = vld [vmem:[%s341 + $0x7cc] sm:$0xf]
        %v752 = vld [vmem:[%s341 + $0x7d0] sm:$0xff]
        %v753 = vld [vmem:[%s341 + $0x7d8] sm:$0xff]
        %v754 = vld [vmem:[%s341 + $0x7e0] sm:$0xf]
        %v755 = vld [vmem:[%s341 + $0x7e4] sm:$0xff]
        %v756 = vld [vmem:[%s341 + $0x7ec] sm:$0xff]
        %v757 = vld [vmem:[%s341 + $0x7f4] sm:$0xf]
        %v758 = vld [vmem:[%s341 + $0x7f8] sm:$0xff]
        %v759 = vld [vmem:[%s341 + $0x800] sm:$0xff]
        %v760 = vld [vmem:[%s341 + $0x808] sm:$0xf]
        %v761 = vld [vmem:[%s341 + $0x80c] sm:$0xff]
        %v762 = vld [vmem:[%s341 + $0x814] sm:$0xff]
        %v763 = vld [vmem:[%s341 + $0x81c] sm:$0xf]
        %v764 = vld [vmem:[%s341 + $0x820] sm:$0xff]
        %v765 = vld [vmem:[%s341 + $0x828] sm:$0xff]
        %v766 = vld [vmem:[%s341 + $0x830] sm:$0xf]
        %v767 = vld [vmem:[%s341 + $0x834] sm:$0xff]
        %v768 = vld [vmem:[%s341 + $0x83c] sm:$0xff]
        %v769 = vld [vmem:[%s341 + $0x844] sm:$0xf]
        %v770 = vld [vmem:[%s341 + $0x848] sm:$0xff]
        %v771 = vld [vmem:[%s341 + $0x850] sm:$0xff]
        %v772 = vld [vmem:[%s341 + $0x858] sm:$0xf]
        %v773 = vld [vmem:[%s341 + $0x85c] sm:$0xff]
        %v774 = vld [vmem:[%s341 + $0x864] sm:$0xff]
        %v775 = vld [vmem:[%s341 + $0x86c] sm:$0xf]
        %v776 = vld [vmem:[%s341 + $0x870] sm:$0xff]
        %v777 = vld [vmem:[%s341 + $0x878] sm:$0xff]
        %v778 = vld [vmem:[%s341 + $0x880] sm:$0xf]
        %v779 = vld [vmem:[%s341 + $0x884] sm:$0xff]
        %v780 = vld [vmem:[%s341 + $0x88c] sm:$0xff]
        %v781 = vld [vmem:[%s341 + $0x894] sm:$0xf]
        %v782 = vld [vmem:[%s341 + $0x898] sm:$0xff]
        %v783 = vld [vmem:[%s341 + $0x8a0] sm:$0xff]
        %v784 = vld [vmem:[%s341 + $0x8a8] sm:$0xf]
        %v785 = vld [vmem:[%s341 + $0x8ac] sm:$0xff]
        %v786 = vld [vmem:[%s341 + $0x8b4] sm:$0xff]
        %v787 = vld [vmem:[%s341 + $0x8bc] sm:$0xf]
        %v788 = vld [vmem:[%s341 + $0x8c0] sm:$0xff]
        %v789 = vld [vmem:[%s341 + $0x8c8] sm:$0xff]
        %v790 = vld [vmem:[%s341 + $0x8d0] sm:$0xf]
        %v791 = vld [vmem:[%s341 + $0x8d4] sm:$0xff]
        %v792 = vld [vmem:[%s341 + $0x8dc] sm:$0xff]
        %v793 = vld [vmem:[%s341 + $0x8e4] sm:$0xf]
        %v794 = vld [vmem:[%s341 + $0x8e8] sm:$0xff]
        %v795 = vld [vmem:[%s341 + $0x8f0] sm:$0xff]
        %v796 = vld [vmem:[%s341 + $0x8f8] sm:$0xf]
        %v797 = vld [vmem:[%s341 + $0x8fc] sm:$0xff]
        %v798 = vld [vmem:[%s341 + $0x904] sm:$0xff]
        %v799 = vld [vmem:[%s341 + $0x90c] sm:$0xf]
        %v800 = vld [vmem:[%s341 + $0x910] sm:$0xff]
        %v801 = vld [vmem:[%s341 + $0x918] sm:$0xff]
        %v802 = vld [vmem:[%s341 + $0x920] sm:$0xf]
        %v803 = vld [vmem:[%s341 + $0x924] sm:$0xff]
        %v804 = vld [vmem:[%s341 + $0x92c] sm:$0xff]
        %v805 = vld [vmem:[%s341 + $0x934] sm:$0xf]
        %v806 = vld [vmem:[%s341 + $0x938] sm:$0xff]
        %v807 = vld [vmem:[%s341 + $0x940] sm:$0xff]
        %v808 = vld [vmem:[%s341 + $0x948] sm:$0xf]
        %v809 = vld [vmem:[%s341 + $0x94c] sm:$0xff]
        %v810 = vld [vmem:[%s341 + $0x954] sm:$0xff]
        %v811 = vld [vmem:[%s341 + $0x95c] sm:$0xf]
        %v812 = vld [vmem:[%s341 + $0x960] sm:$0xff]
        %v813 = vld [vmem:[%s341 + $0x968] sm:$0xff]
        %v814 = vld [vmem:[%s341 + $0x970] sm:$0xf]
        %v815 = vld [vmem:[%s341 + $0x974] sm:$0xff]
        %v816 = vld [vmem:[%s341 + $0x97c] sm:$0xff]
        %v817 = vld [vmem:[%s341 + $0x984] sm:$0xf]
        %v818 = vld [vmem:[%s341 + $0x988] sm:$0xff]
        %v819 = vld [vmem:[%s341 + $0x990] sm:$0xff]
        %v820 = vld [vmem:[%s341 + $0x998] sm:$0xf]
        %v821 = vld [vmem:[%s341 + $0x99c] sm:$0xff]
        %v822 = vld [vmem:[%s341 + $0x9a4] sm:$0xff]
        %v823 = vld [vmem:[%s341 + $0x9ac] sm:$0xf]
        %v824 = vld [vmem:[%s341 + $0x9b0] sm:$0xff]
        %v825 = vld [vmem:[%s341 + $0x9b8] sm:$0xff]
        %v826 = vld [vmem:[%s341 + $0x9c0] sm:$0xf]
        %v827 = vld [vmem:[%s341 + $0x9c4] sm:$0xff]
        %v828 = vld [vmem:[%s341 + $0x9cc] sm:$0xff]
        %v829 = vld [vmem:[%s341 + $0x9d4] sm:$0xf]
        %v830 = vld [vmem:[%s341 + $0x9d8] sm:$0xff]
        %v831 = vld [vmem:[%s341 + $0x9e0] sm:$0xff]
        %v832 = vld [vmem:[%s341 + $0x9e8] sm:$0xf]
        %v833 = vld [vmem:[%s341 + $0x9ec] sm:$0xff]
        %v834 = vld [vmem:[%s341 + $0x9f4] sm:$0xff]
        %v835 = vld [vmem:[%s341 + $0x9fc] sm:$0xf]
        %v836 = vld [vmem:[%s341 + $0xa00] sm:$0xff]
        %v837 = vld [vmem:[%s341 + $0xa08] sm:$0xff]
        %v838 = vld [vmem:[%s341 + $0xa10] sm:$0xf]
        %v839 = vld [vmem:[%s341 + $0xa14] sm:$0xff]
        %v840 = vld [vmem:[%s341 + $0xa1c] sm:$0xff]
        %v841 = vld [vmem:[%s341 + $0xa24] sm:$0xf]
        %v842 = vld [vmem:[%s341 + $0xa28] sm:$0xff]
        %v843 = vld [vmem:[%s341 + $0xa30] sm:$0xff]
        %v844 = vld [vmem:[%s341 + $0xa38] sm:$0xf]
        %v845 = vld [vmem:[%s341 + $0xa3c] sm:$0xff]
        %v846 = vld [vmem:[%s341 + $0xa44] sm:$0xff]
        %v847 = vld [vmem:[%s341 + $0xa4c] sm:$0xf]
        %v848 = vld [vmem:[%s341 + $0xa50] sm:$0xff]
        %v849 = vld [vmem:[%s341 + $0xa58] sm:$0xff]
        %v850 = vld [vmem:[%s341 + $0xa60] sm:$0xf]
        %v851 = vld [vmem:[%s341 + $0xa64] sm:$0xff]
        %v852 = vld [vmem:[%s341 + $0xa6c] sm:$0xff]
        %v853 = vld [vmem:[%s341 + $0xa74] sm:$0xf]
        %v854 = vld [vmem:[%s341 + $0xa78] sm:$0xff]
        %v855 = vld [vmem:[%s341 + $0xa80] sm:$0xff]
        %v856 = vld [vmem:[%s341 + $0xa88] sm:$0xf]
        %v857 = vld [vmem:[%s341 + $0xa8c] sm:$0xff]
        %v858 = vld [vmem:[%s341 + $0xa94] sm:$0xff]
        %v859 = vld [vmem:[%s341 + $0xa9c] sm:$0xf]
        %v860 = vld [vmem:[%s341 + $0xaa0] sm:$0xff]
        %v861 = vld [vmem:[%s341 + $0xaa8] sm:$0xff]
        %v862 = vld [vmem:[%s341 + $0xab0] sm:$0xf]
        %v863 = vld [vmem:[%s341 + $0xab4] sm:$0xff]
        %v864 = vld [vmem:[%s341 + $0xabc] sm:$0xff]
        %v865 = vld [vmem:[%s341 + $0xac4] sm:$0xf]
        %v866 = vld [vmem:[%s341 + $0xac8] sm:$0xff]
        %v867 = vld [vmem:[%s341 + $0xad0] sm:$0xff]
        %v868 = vld [vmem:[%s341 + $0xad8] sm:$0xf]
        %v869 = vld [vmem:[%s341 + $0xadc] sm:$0xff]
        %v870 = vld [vmem:[%s341 + $0xae4] sm:$0xff]
        %v871 = vld [vmem:[%s341 + $0xaec] sm:$0xf]
        %v872 = vld [vmem:[%s341 + $0xaf0] sm:$0xff]
        %v873 = vld [vmem:[%s341 + $0xaf8] sm:$0xff]
        %v874 = vld [vmem:[%s341 + $0xb00] sm:$0xf]
        %v875 = vld [vmem:[%s341 + $0xb04] sm:$0xff]
        %v876 = vld [vmem:[%s341 + $0xb0c] sm:$0xff]
        %v877 = vld [vmem:[%s341 + $0xb14] sm:$0xf]
        %v878 = vld [vmem:[%s341 + $0xb18] sm:$0xff]
        %v879 = vld [vmem:[%s341 + $0xb20] sm:$0xff]
        %v880 = vld [vmem:[%s341 + $0xb28] sm:$0xf]
        %v881 = vld [vmem:[%s341 + $0xb2c] sm:$0xff]
        %v882 = vld [vmem:[%s341 + $0xb34] sm:$0xff]
        %v883 = vld [vmem:[%s341 + $0xb3c] sm:$0xf]
        %v884 = vld [vmem:[%s341 + $0xb40] sm:$0xff]
        %v885 = vld [vmem:[%s341 + $0xb48] sm:$0xff]
        %v886 = vld [vmem:[%s341 + $0xb50] sm:$0xf]
        %v887 = vld [vmem:[%s341 + $0xb54] sm:$0xff]
        %v888 = vld [vmem:[%s341 + $0xb5c] sm:$0xff]
        %v889 = vld [vmem:[%s341 + $0xb64] sm:$0xf]
        %v890 = vld [vmem:[%s341 + $0xb68] sm:$0xff]
        %v891 = vld [vmem:[%s341 + $0xb70] sm:$0xff]
        %v892 = vld [vmem:[%s341 + $0xb78] sm:$0xf]
        %v893 = vld [vmem:[%s341 + $0xb7c] sm:$0xff]
        %v894 = vld [vmem:[%s341 + $0xb84] sm:$0xff]
        %v895 = vld [vmem:[%s341 + $0xb8c] sm:$0xf]
        %v896 = vld [vmem:[%s341 + $0xb90] sm:$0xff]
        %v897 = vld [vmem:[%s341 + $0xb98] sm:$0xff]
        %v898 = vld [vmem:[%s341 + $0xba0] sm:$0xf]
        %v899 = vld [vmem:[%s341 + $0xba4] sm:$0xff]
        %v900 = vld [vmem:[%s341 + $0xbac] sm:$0xff]
        %v901 = vld [vmem:[%s341 + $0xbb4] sm:$0xf]
        %v902 = vld [vmem:[%s341 + $0xbb8] sm:$0xff]
        %v903 = vld [vmem:[%s341 + $0xbc0] sm:$0xff]
        %v904 = vld [vmem:[%s341 + $0xbc8] sm:$0xf]
        %v905 = vld [vmem:[%s341 + $0xbcc] sm:$0xff]
        %v906 = vld [vmem:[%s341 + $0xbd4] sm:$0xff]
        %v907 = vld [vmem:[%s341 + $0xbdc] sm:$0xf]
        %v908 = vld [vmem:[%s341 + $0xbe0] sm:$0xff]
        %v909 = vld [vmem:[%s341 + $0xbe8] sm:$0xff]
        %v910 = vld [vmem:[%s341 + $0xbf0] sm:$0xf]
        %v911 = vld [vmem:[%s341 + $0xbf4] sm:$0xff]
        %v912 = vld [vmem:[%s341 + $0xbfc] sm:$0xff]
        %v913 = vld [vmem:[%s341 + $0xc04] sm:$0xf]
        %v914 = vld [vmem:[%s341 + $0xc08] sm:$0xff]
        %v915 = vld [vmem:[%s341 + $0xc10] sm:$0xff]
        %v916 = vld [vmem:[%s341 + $0xc18] sm:$0xf]
        %v917 = vld [vmem:[%s341 + $0xc1c] sm:$0xff]
        %v918 = vld [vmem:[%s341 + $0xc24] sm:$0xff]
        %v919 = vld [vmem:[%s341 + $0xc2c] sm:$0xf]
        %v920 = vld [vmem:[%s341 + $0xc30] sm:$0xff]
        %v921 = vld [vmem:[%s341 + $0xc38] sm:$0xff]
        %v922 = vld [vmem:[%s341 + $0xc40] sm:$0xf]
        %v923 = vld [vmem:[%s341 + $0xc44] sm:$0xff]
        %v924 = vld [vmem:[%s341 + $0xc4c] sm:$0xff]
        %v925 = vld [vmem:[%s341 + $0xc54] sm:$0xf]
        %v926 = vld [vmem:[%s341 + $0xc58] sm:$0xff]
        %v927 = vld [vmem:[%s341 + $0xc60] sm:$0xff]
        %v928 = vld [vmem:[%s341 + $0xc68] sm:$0xf]
        %v929 = vld [vmem:[%s341 + $0xc6c] sm:$0xff]
        %v930 = vld [vmem:[%s341 + $0xc74] sm:$0xff]
        %v931 = vld [vmem:[%s341 + $0xc7c] sm:$0xf]
        %v932 = vld [vmem:[%s341 + $0xc80] sm:$0xff]
        %v933 = vld [vmem:[%s341 + $0xc88] sm:$0xff]
        %v934 = vld [vmem:[%s341 + $0xc90] sm:$0xf]
        %v935 = vld [vmem:[%s341 + $0xc94] sm:$0xff]
        %v936 = vld [vmem:[%s341 + $0xc9c] sm:$0xff]
        %v937 = vld [vmem:[%s341 + $0xca4] sm:$0xf]
        %v938 = vld [vmem:[%s341 + $0xca8] sm:$0xff]
        %v939 = vld [vmem:[%s341 + $0xcb0] sm:$0xff]
        %v940 = vld [vmem:[%s341 + $0xcb8] sm:$0xf]
        %v941 = vld [vmem:[%s341 + $0xcbc] sm:$0xff]
        %v942 = vld [vmem:[%s341 + $0xcc4] sm:$0xff]
        %v943 = vld [vmem:[%s341 + $0xccc] sm:$0xf]
        %v944 = vld [vmem:[%s341 + $0xcd0] sm:$0xff]
        %v945 = vld [vmem:[%s341 + $0xcd8] sm:$0xff]
        %v946 = vld [vmem:[%s341 + $0xce0] sm:$0xf]
        %v947 = vld [vmem:[%s341 + $0xce4] sm:$0xff]
        %v948 = vld [vmem:[%s341 + $0xcec] sm:$0xff]
        %v949 = vld [vmem:[%s341 + $0xcf4] sm:$0xf]
        %v950 = vld [vmem:[%s341 + $0xcf8] sm:$0xff]
        %v951 = vld [vmem:[%s341 + $0xd00] sm:$0xff]
        %v952 = vld [vmem:[%s341 + $0xd08] sm:$0xf]
        %v953 = vld [vmem:[%s341 + $0xd0c] sm:$0xff]
        %v954 = vld [vmem:[%s341 + $0xd14] sm:$0xff]
        %v955 = vld [vmem:[%s341 + $0xd1c] sm:$0xf]
        %v956 = vld [vmem:[%s341 + $0xd20] sm:$0xff]
        %v957 = vld [vmem:[%s341 + $0xd28] sm:$0xff]
        %v958 = vld [vmem:[%s341 + $0xd30] sm:$0xf]
        %v959 = vld [vmem:[%s341 + $0xd34] sm:$0xff]
        %v960 = vld [vmem:[%s341 + $0xd3c] sm:$0xff]
        %v961 = vld [vmem:[%s341 + $0xd44] sm:$0xf]
        %v962 = vld [vmem:[%s341 + $0xd48] sm:$0xff]
        %v963 = vld [vmem:[%s341 + $0xd50] sm:$0xff]
        %v964 = vld [vmem:[%s341 + $0xd58] sm:$0xf]
        %v965 = vld [vmem:[%s341 + $0xd5c] sm:$0xff]
        %v966 = vld [vmem:[%s341 + $0xd64] sm:$0xff]
        %v967 = vld [vmem:[%s341 + $0xd6c] sm:$0xf]
        %v968 = vld [vmem:[%s341 + $0xd70] sm:$0xff]
        %v969 = vld [vmem:[%s341 + $0xd78] sm:$0xff]
        %v970 = vld [vmem:[%s341 + $0xd80] sm:$0xf]
        %v971 = vld [vmem:[%s341 + $0xd84] sm:$0xff]
        %v972 = vld [vmem:[%s341 + $0xd8c] sm:$0xff]
        %v973 = vld [vmem:[%s341 + $0xd94] sm:$0xf]
        %v974 = vld [vmem:[%s341 + $0xd98] sm:$0xff]
        %v975 = vld [vmem:[%s341 + $0xda0] sm:$0xff]
        %v976 = vld [vmem:[%s341 + $0xda8] sm:$0xf]
        %v977 = vld [vmem:[%s341 + $0xdac] sm:$0xff]
        %v978 = vld [vmem:[%s341 + $0xdb4] sm:$0xff]
        %v979 = vld [vmem:[%s341 + $0xdbc] sm:$0xf]
        %v980 = vld [vmem:[%s341 + $0xdc0] sm:$0xff]
        %v981 = vld [vmem:[%s341 + $0xdc8] sm:$0xff]
        %v982 = vld [vmem:[%s341 + $0xdd0] sm:$0xf]
        %v983 = vld [vmem:[%s341 + $0xdd4] sm:$0xff]
        %v984 = vld [vmem:[%s341 + $0xddc] sm:$0xff]
        %v985 = vld [vmem:[%s341 + $0xde4] sm:$0xf]
        %v986 = vld [vmem:[%s341 + $0xde8] sm:$0xff]
        %v987 = vld [vmem:[%s341 + $0xdf0] sm:$0xff]
        %v988 = vld [vmem:[%s341 + $0xdf8] sm:$0xf]
        %v989 = vld [vmem:[%s341 + $0xdfc] sm:$0xff]
        %v990 = vld [vmem:[%s341 + $0xe04] sm:$0xff]
        %v991 = vld [vmem:[%s341 + $0xe0c] sm:$0xf]
        %v992 = vld [vmem:[%s341 + $0xe10] sm:$0xff]
        %v993 = vld [vmem:[%s341 + $0xe18] sm:$0xff]
        %v994 = vld [vmem:[%s341 + $0xe20] sm:$0xf]
        %v995 = vld [vmem:[%s341 + $0xe24] sm:$0xff]
        %v996 = vld [vmem:[%s341 + $0xe2c] sm:$0xff]
        %v997 = vld [vmem:[%s341 + $0xe34] sm:$0xf]
        %v998 = vld [vmem:[%s341 + $0xe38] sm:$0xff]
        %v999 = vld [vmem:[%s341 + $0xe40] sm:$0xff]
        %v1000 = vld [vmem:[%s341 + $0xe48] sm:$0xf]
        %v1001 = vld [vmem:[%s341 + $0xe4c] sm:$0xff]
        %v1002 = vld [vmem:[%s341 + $0xe54] sm:$0xff]
        %v1003 = vld [vmem:[%s341 + $0xe5c] sm:$0xf]
        %v1004 = vld [vmem:[%s341 + $0xe60] sm:$0xff]
        %v1005 = vld [vmem:[%s341 + $0xe68] sm:$0xff]
        %v1006 = vld [vmem:[%s341 + $0xe70] sm:$0xf]
        %v1007 = vld [vmem:[%s341 + $0xe74] sm:$0xff]
        %v1008 = vld [vmem:[%s341 + $0xe7c] sm:$0xff]
        %v1009 = vld [vmem:[%s341 + $0xe84] sm:$0xf]
        %v1010 = vld [vmem:[%s341 + $0xe88] sm:$0xff]
        %v1011 = vld [vmem:[%s341 + $0xe90] sm:$0xff]
        %v1012 = vld [vmem:[%s341 + $0xe98] sm:$0xf]
        %v1013 = vld [vmem:[%s341 + $0xe9c] sm:$0xff]
        %v1014 = vld [vmem:[%s341 + $0xea4] sm:$0xff]
        %v1015 = vld [vmem:[%s341 + $0xeac] sm:$0xf]
        %v1016 = vld [vmem:[%s341 + $0xeb0] sm:$0xff]
        %v1017 = vld [vmem:[%s341 + $0xeb8] sm:$0xff]
        %v1018 = vld [vmem:[%s341 + $0xec0] sm:$0xf]
        %v1019 = vld [vmem:[%s341 + $0xec4] sm:$0xff]
        %v1020 = vld [vmem:[%s341 + $0xecc] sm:$0xff]
        %v1021 = vld [vmem:[%s341 + $0xed4] sm:$0xf]
        %v1022 = vld [vmem:[%s341 + $0xed8] sm:$0xff]
        %v1023 = vld [vmem:[%s341 + $0xee0] sm:$0xff]
        %v1024 = vld [vmem:[%s341 + $0xee8] sm:$0xf]
        %v1025 = vld [vmem:[%s341 + $0xeec] sm:$0xff]
        %v1026 = vld [vmem:[%s341 + $0xef4] sm:$0xff]
        %v1027 = vld [vmem:[%s341 + $0xefc] sm:$0xf]
        %v1028 = vld [vmem:[%s341 + $0xf00] sm:$0xff]
        %v1029 = vld [vmem:[%s341 + $0xf08] sm:$0xff]
        %v1030 = vld [vmem:[%s341 + $0xf10] sm:$0xf]
        %v1031 = vld [vmem:[%s341 + $0xf14] sm:$0xff]
        %v1032 = vld [vmem:[%s341 + $0xf1c] sm:$0xff]
        %v1033 = vld [vmem:[%s341 + $0xf24] sm:$0xf]
        %v1034 = vld [vmem:[%s341 + $0xf28] sm:$0xff]
        %v1035 = vld [vmem:[%s341 + $0xf30] sm:$0xff]
        %v1036 = vld [vmem:[%s341 + $0xf38] sm:$0xf]
        %v1037 = vld [vmem:[%s341 + $0xf3c] sm:$0xff]
        %v1038 = vld [vmem:[%s341 + $0xf44] sm:$0xff]
        %v1039 = vld [vmem:[%s341 + $0xf4c] sm:$0xf]
        %v1040 = vld [vmem:[%s341 + $0xf50] sm:$0xff]
        %v1041 = vld [vmem:[%s341 + $0xf58] sm:$0xff]
        %v1042 = vld [vmem:[%s341 + $0xf60] sm:$0xf]
        %v1043 = vld [vmem:[%s341 + $0xf64] sm:$0xff]
        %v1044 = vld [vmem:[%s341 + $0xf6c] sm:$0xff]
        %v1045 = vld [vmem:[%s341 + $0xf74] sm:$0xf]
        %v1046 = vld [vmem:[%s341 + $0xf78] sm:$0xff]
        %v1047 = vld [vmem:[%s341 + $0xf80] sm:$0xff]
        %v1048 = vld [vmem:[%s341 + $0xf88] sm:$0xf]
        %v1049 = vld [vmem:[%s341 + $0xf8c] sm:$0xff]
        %v1050 = vld [vmem:[%s341 + $0xf94] sm:$0xff]
        %v1051 = vld [vmem:[%s341 + $0xf9c] sm:$0xf]
        %v1052 = vld [vmem:[%s341 + $0xfa0] sm:$0xff]
        %v1053 = vld [vmem:[%s341 + $0xfa8] sm:$0xff]
        %v1054 = vld [vmem:[%s341 + $0xfb0] sm:$0xf]
        %v1055 = vld [vmem:[%s341 + $0xfb4] sm:$0xff]
        %v1056 = vld [vmem:[%s341 + $0xfbc] sm:$0xff]
        %v1057 = vld [vmem:[%s341 + $0xfc4] sm:$0xf]
        %v1058 = vld [vmem:[%s341 + $0xfc8] sm:$0xff]
        %v1059 = vld [vmem:[%s341 + $0xfd0] sm:$0xff]
        %v1060 = vld [vmem:[%s341 + $0xfd8] sm:$0xf]
        %v1061 = vld [vmem:[%s341 + $0xfdc] sm:$0xff]
        %v1062 = vld [vmem:[%s341 + $0xfe4] sm:$0xff]
        %v1063 = vld [vmem:[%s341 + $0xfec] sm:$0xf]
        %v1064 = vld [vmem:[%s341 + $0xff0] sm:$0xff]
        %v1065 = vld [vmem:[%s341 + $0xff8] sm:$0xff]
        %v1066 = vld [vmem:[%s341 + $0x1000] sm:$0xf]
        %v1067 = vld [vmem:[%s341 + $0x1004] sm:$0xff]
        %v1068 = vld [vmem:[%s341 + $0x100c] sm:$0xff]
        %v1069 = vld [vmem:[%s341 + $0x1014] sm:$0xf]
        %v1070 = vld [vmem:[%s341 + $0x1018] sm:$0xff]
        %v1071 = vld [vmem:[%s341 + $0x1020] sm:$0xff]
        %v1072 = vld [vmem:[%s341 + $0x1028] sm:$0xf]
        %v1073 = vld [vmem:[%s341 + $0x102c] sm:$0xff]
        %v1074 = vld [vmem:[%s341 + $0x1034] sm:$0xff]
        %v1075 = vld [vmem:[%s341 + $0x103c] sm:$0xf]
        %v1076 = vld [vmem:[%s341 + $0x1040] sm:$0xff]
        %v1077 = vld [vmem:[%s341 + $0x1048] sm:$0xff]
        %v1078 = vld [vmem:[%s341 + $0x1050] sm:$0xf]
        %v1079 = vld [vmem:[%s341 + $0x1054] sm:$0xff]
        %v1080 = vld [vmem:[%s341 + $0x105c] sm:$0xff]
        %v1081 = vld [vmem:[%s341 + $0x1064] sm:$0xf]
        %v1082 = vld [vmem:[%s341 + $0x1068] sm:$0xff]
        %v1083 = vld [vmem:[%s341 + $0x1070] sm:$0xff]
        %v1084 = vld [vmem:[%s341 + $0x1078] sm:$0xf]
        %v1085 = vld [vmem:[%s341 + $0x107c] sm:$0xff]
        %v1086 = vld [vmem:[%s341 + $0x1084] sm:$0xff]
        %v1087 = vld [vmem:[%s341 + $0x108c] sm:$0xf]
        %v1088 = vld [vmem:[%s341 + $0x1090] sm:$0xff]
        %v1089 = vld [vmem:[%s341 + $0x1098] sm:$0xff]
        %v1090 = vld [vmem:[%s341 + $0x10a0] sm:$0xf]
        %v1091 = vld [vmem:[%s341 + $0x10a4] sm:$0xff]
        %v1092 = vld [vmem:[%s341 + $0x10ac] sm:$0xff]
        %v1093 = vld [vmem:[%s341 + $0x10b4] sm:$0xf]
        %v1094 = vld [vmem:[%s341 + $0x10b8] sm:$0xff]
        %v1095 = vld [vmem:[%s341 + $0x10c0] sm:$0xff]
        %v1096 = vld [vmem:[%s341 + $0x10c8] sm:$0xf]
        %v1097 = vld [vmem:[%s341 + $0x10cc] sm:$0xff]
        %v1098 = vld [vmem:[%s341 + $0x10d4] sm:$0xff]
        %v1099 = vld [vmem:[%s341 + $0x10dc] sm:$0xf]
        %v1100 = vld [vmem:[%s341 + $0x10e0] sm:$0xff]
        %v1101 = vld [vmem:[%s341 + $0x10e8] sm:$0xff]
        %v1102 = vld [vmem:[%s341 + $0x10f0] sm:$0xf]
        %v1103 = vld [vmem:[%s341 + $0x10f4] sm:$0xff]
        %v1104 = vld [vmem:[%s341 + $0x10fc] sm:$0xff]
        %v1105 = vld [vmem:[%s341 + $0x1104] sm:$0xf]
        %v1106 = vld [vmem:[%s341 + $0x1108] sm:$0xff]
        %v1107 = vld [vmem:[%s341 + $0x1110] sm:$0xff]
        %v1108 = vld [vmem:[%s341 + $0x1118] sm:$0xf]
        %v1109 = vld [vmem:[%s341 + $0x111c] sm:$0xff]
        %v1110 = vld [vmem:[%s341 + $0x1124] sm:$0xff]
        %v1111 = vld [vmem:[%s341 + $0x112c] sm:$0xf]
        %v1112 = vld [vmem:[%s341 + $0x1130] sm:$0xff]
        %v1113 = vld [vmem:[%s341 + $0x1138] sm:$0xff]
        %v1114 = vld [vmem:[%s341 + $0x1140] sm:$0xf]
        %v1115 = vld [vmem:[%s341 + $0x1144] sm:$0xff]
        %v1116 = vld [vmem:[%s341 + $0x114c] sm:$0xff]
        %v1117 = vld [vmem:[%s341 + $0x1154] sm:$0xf]
        %v1118 = vld [vmem:[%s341 + $0x1158] sm:$0xff]
        %v1119 = vld [vmem:[%s341 + $0x1160] sm:$0xff]
        %v1120 = vld [vmem:[%s341 + $0x1168] sm:$0xf]
        %v1121 = vld [vmem:[%s341 + $0x116c] sm:$0xff]
        %v1122 = vld [vmem:[%s341 + $0x1174] sm:$0xff]
        %v1123 = vld [vmem:[%s341 + $0x117c] sm:$0xf]
        %v1124 = vld [vmem:[%s341 + $0x1180] sm:$0xff]
        %v1125 = vld [vmem:[%s341 + $0x1188] sm:$0xff]
        %v1126 = vld [vmem:[%s341 + $0x1190] sm:$0xf]
        %v1127 = vld [vmem:[%s341 + $0x1194] sm:$0xff]
        %v1128 = vld [vmem:[%s341 + $0x119c] sm:$0xff]
        %v1129 = vld [vmem:[%s341 + $0x11a4] sm:$0xf]
        %v1130 = vld [vmem:[%s341 + $0x11a8] sm:$0xff]
        %v1131 = vld [vmem:[%s341 + $0x11b0] sm:$0xff]
        %v1132 = vld [vmem:[%s341 + $0x11b8] sm:$0xf]
        %v1133 = vld [vmem:[%s341 + $0x11bc] sm:$0xff]
        %v1134 = vld [vmem:[%s341 + $0x11c4] sm:$0xff]
        %v1135 = vld [vmem:[%s341 + $0x11cc] sm:$0xf]
        %v1136 = vld [vmem:[%s341 + $0x11d0] sm:$0xff]
        %v1137 = vld [vmem:[%s341 + $0x11d8] sm:$0xff]
        %v1138 = vld [vmem:[%s341 + $0x11e0] sm:$0xf]
        %v1139 = vld [vmem:[%s341 + $0x11e4] sm:$0xff]
        %v1140 = vld [vmem:[%s341 + $0x11ec] sm:$0xff]
        %v1141 = vld [vmem:[%s341 + $0x11f4] sm:$0xf]
        %v1142 = vld [vmem:[%s341 + $0x11f8] sm:$0xff]
        %v1143 = vld [vmem:[%s341 + $0x1200] sm:$0xff]
        %v1144 = vld [vmem:[%s341 + $0x1208] sm:$0xf]
        %v1145 = vld [vmem:[%s341 + $0x120c] sm:$0xff]
        %v1146 = vld [vmem:[%s341 + $0x1214] sm:$0xff]
        %v1147 = vld [vmem:[%s341 + $0x121c] sm:$0xf]
        %v1148 = vld [vmem:[%s341 + $0x1220] sm:$0xff]
        %v1149 = vld [vmem:[%s341 + $0x1228] sm:$0xff]
        %v1150 = vld [vmem:[%s341 + $0x1230] sm:$0xf]
        %v1151 = vld [vmem:[%s341 + $0x1234] sm:$0xff]
        %v1152 = vld [vmem:[%s341 + $0x123c] sm:$0xff]
        %v1153 = vld [vmem:[%s341 + $0x1244] sm:$0xf]
        %v1154 = vld [vmem:[%s341 + $0x1248] sm:$0xff]
        %v1155 = vld [vmem:[%s341 + $0x1250] sm:$0xff]
        %v1156 = vld [vmem:[%s341 + $0x1258] sm:$0xf]
        %v1157 = vld [vmem:[%s341 + $0x125c] sm:$0xff]
        %v1158 = vld [vmem:[%s341 + $0x1264] sm:$0xff]
        %v1159 = vld [vmem:[%s341 + $0x126c] sm:$0xf]
        %v1160 = vld [vmem:[%s341 + $0x1270] sm:$0xff]
        %v1161 = vld [vmem:[%s341 + $0x1278] sm:$0xff]
        %v1162 = vld [vmem:[%s341 + $0x1280] sm:$0xf]
        %v1163 = vld [vmem:[%s341 + $0x1284] sm:$0xff]
        %v1164 = vld [vmem:[%s341 + $0x128c] sm:$0xff]
        %v1165 = vld [vmem:[%s341 + $0x1294] sm:$0xf]
        %v1166 = vld [vmem:[%s341 + $0x1298] sm:$0xff]
        %v1167 = vld [vmem:[%s341 + $0x12a0] sm:$0xff]
        %v1168 = vld [vmem:[%s341 + $0x12a8] sm:$0xf]
        %v1169 = vld [vmem:[%s341 + $0x12ac] sm:$0xff]
        %v1170 = vld [vmem:[%s341 + $0x12b4] sm:$0xff]
        %v1171 = vld [vmem:[%s341 + $0x12bc] sm:$0xf]
        %v1172 = vld [vmem:[%s341 + $0x12c0] sm:$0xff]
        %v1173 = vld [vmem:[%s341 + $0x12c8] sm:$0xff]
        %v1174 = vld [vmem:[%s341 + $0x12d0] sm:$0xf]
        %v1175 = vld [vmem:[%s341 + $0x12d4] sm:$0xff]
        %v1176 = vld [vmem:[%s341 + $0x12dc] sm:$0xff]
        %v1177 = vld [vmem:[%s341 + $0x12e4] sm:$0xf]
        %v1178 = vld [vmem:[%s341 + $0x12e8] sm:$0xff]
        %v1179 = vld [vmem:[%s341 + $0x12f0] sm:$0xff]
        %v1180 = vld [vmem:[%s341 + $0x12f8] sm:$0xf]
        %v1181 = vld [vmem:[%s341 + $0x12fc] sm:$0xff]
        %v1182 = vld [vmem:[%s341 + $0x1304] sm:$0xff]
        %v1183 = vld [vmem:[%s341 + $0x130c] sm:$0xf]
        %v1184 = vld [vmem:[%s341 + $0x1310] sm:$0xff]
        %v1185 = vld [vmem:[%s341 + $0x1318] sm:$0xff]
        %v1186 = vld [vmem:[%s341 + $0x1320] sm:$0xf]
        %v1187 = vld [vmem:[%s341 + $0x1324] sm:$0xff]
        %v1188 = vld [vmem:[%s341 + $0x132c] sm:$0xff]
        %v1189 = vld [vmem:[%s341 + $0x1334] sm:$0xf]
        %v1190 = vld [vmem:[%s341 + $0x1338] sm:$0xff]
        %v1191 = vld [vmem:[%s341 + $0x1340] sm:$0xff]
        %v1192 = vld [vmem:[%s341 + $0x1348] sm:$0xf]
        %v1193 = vld [vmem:[%s341 + $0x134c] sm:$0xff]
        %v1194 = vld [vmem:[%s341 + $0x1354] sm:$0xff]
        %v1195 = vld [vmem:[%s341 + $0x135c] sm:$0xf]
        %v1196 = vld [vmem:[%s341 + $0x1360] sm:$0xff]
        %v1197 = vld [vmem:[%s341 + $0x1368] sm:$0xff]
        %v1198 = vld [vmem:[%s341 + $0x1370] sm:$0xf]
        %v1199 = vld [vmem:[%s341 + $0x1374] sm:$0xff]
        %v1200 = vld [vmem:[%s341 + $0x137c] sm:$0xff]
        %v1201 = vld [vmem:[%s341 + $0x1384] sm:$0xf]
        %v1202 = vld [vmem:[%s341 + $0x1388] sm:$0xff]
        %v1203 = vld [vmem:[%s341 + $0x1390] sm:$0xff]
        %v1204 = vld [vmem:[%s341 + $0x1398] sm:$0xf]
        %v1205 = vld [vmem:[%s341 + $0x139c] sm:$0xff]
        %v1206 = vld [vmem:[%s341 + $0x13a4] sm:$0xff]
        %v1207 = vld [vmem:[%s341 + $0x13ac] sm:$0xf]
        %v1208 = vld [vmem:[%s341 + $0x13b0] sm:$0xff]
        %v1209 = vld [vmem:[%s341 + $0x13b8] sm:$0xff]
        %v1210 = vld [vmem:[%s341 + $0x13c0] sm:$0xf]
        %v1211 = vld [vmem:[%s341 + $0x13c4] sm:$0xff]
        %v1212 = vld [vmem:[%s341 + $0x13cc] sm:$0xff]
        %v1213 = vld [vmem:[%s341 + $0x13d4] sm:$0xf]
        %v1214 = vld [vmem:[%s341 + $0x13d8] sm:$0xff]
        %v1215 = vld [vmem:[%s341 + $0x13e0] sm:$0xff]
        %v1216 = vld [vmem:[%s341 + $0x13e8] sm:$0xf]
        %v1217 = vld [vmem:[%s341 + $0x13ec] sm:$0xff]
        %v1218 = vld [vmem:[%s341 + $0x13f4] sm:$0xff]
        %v1219 = vld [vmem:[%s341 + $0x13fc] sm:$0xf]
        %v1220 = vld [vmem:[%s341 + $0x1400] sm:$0xff]
        %v1221 = vld [vmem:[%s341 + $0x1408] sm:$0xff]
        %v1222 = vld [vmem:[%s341 + $0x1410] sm:$0xf]
        %v1223 = vld [vmem:[%s341 + $0x1414] sm:$0xff]
        %v1224 = vld [vmem:[%s341 + $0x141c] sm:$0xff]
        %v1225 = vld [vmem:[%s341 + $0x1424] sm:$0xf]
        %v1226 = vld [vmem:[%s341 + $0x1428] sm:$0xff]
        %v1227 = vld [vmem:[%s341 + $0x1430] sm:$0xff]
        %v1228 = vld [vmem:[%s341 + $0x1438] sm:$0xf]
        %v1229 = vld [vmem:[%s341 + $0x143c] sm:$0xff]
        %v1230 = vld [vmem:[%s341 + $0x1444] sm:$0xff]
        %v1231 = vld [vmem:[%s341 + $0x144c] sm:$0xf]
        %v1232 = vld [vmem:[%s341 + $0x1450] sm:$0xff]
        %v1233 = vld [vmem:[%s341 + $0x1458] sm:$0xff]
        %v1234 = vld [vmem:[%s341 + $0x1460] sm:$0xf]
        %v1235 = vld [vmem:[%s341 + $0x1464] sm:$0xff]
        %v1236 = vld [vmem:[%s341 + $0x146c] sm:$0xff]
        %v1237 = vld [vmem:[%s341 + $0x1474] sm:$0xf]
        %v1238 = vld [vmem:[%s341 + $0x1478] sm:$0xff]
        %v1239 = vld [vmem:[%s341 + $0x1480] sm:$0xff]
        %v1240 = vld [vmem:[%s341 + $0x1488] sm:$0xf]
        %v1241 = vld [vmem:[%s341 + $0x148c] sm:$0xff]
        %v1242 = vld [vmem:[%s341 + $0x1494] sm:$0xff]
        %v1243 = vld [vmem:[%s341 + $0x149c] sm:$0xf]
        %v1244 = vld [vmem:[%s341 + $0x14a0] sm:$0xff]
        %v1245 = vld [vmem:[%s341 + $0x14a8] sm:$0xff]
        %v1246 = vld [vmem:[%s341 + $0x14b0] sm:$0xf]
        %v1247 = vld [vmem:[%s341 + $0x14b4] sm:$0xff]
        %v1248 = vld [vmem:[%s341 + $0x14bc] sm:$0xff]
        %v1249 = vld [vmem:[%s341 + $0x14c4] sm:$0xf]
        %v1250 = vld [vmem:[%s341 + $0x14c8] sm:$0xff]
        %v1251 = vld [vmem:[%s341 + $0x14d0] sm:$0xff]
        %v1252 = vld [vmem:[%s341 + $0x14d8] sm:$0xf]
        %v1253 = vld [vmem:[%s341 + $0x14dc] sm:$0xff]
        %v1254 = vld [vmem:[%s341 + $0x14e4] sm:$0xff]
        %v1255 = vld [vmem:[%s341 + $0x14ec] sm:$0xf]
        %v1256 = vld [vmem:[%s341 + $0x14f0] sm:$0xff]
        %v1257 = vld [vmem:[%s341 + $0x14f8] sm:$0xff]
        %v1258 = vld [vmem:[%s341 + $0x1500] sm:$0xf]
        %v1259 = vld [vmem:[%s341 + $0x1504] sm:$0xff]
        %v1260 = vld [vmem:[%s341 + $0x150c] sm:$0xff]
        %v1261 = vld [vmem:[%s341 + $0x1514] sm:$0xf]
        %v1262 = vld [vmem:[%s341 + $0x1518] sm:$0xff]
        %v1263 = vld [vmem:[%s341 + $0x1520] sm:$0xff]
        %v1264 = vld [vmem:[%s341 + $0x1528] sm:$0xf]
        %v1265 = vld [vmem:[%s341 + $0x152c] sm:$0xff]
        %v1266 = vld [vmem:[%s341 + $0x1534] sm:$0xff]
        %v1267 = vld [vmem:[%s341 + $0x153c] sm:$0xf]
        %v1268 = vld [vmem:[%s341 + $0x1540] sm:$0xff]
        %v1269 = vld [vmem:[%s341 + $0x1548] sm:$0xff]
        %v1270 = vld [vmem:[%s341 + $0x1550] sm:$0xf]
        %v1271 = vld [vmem:[%s341 + $0x1554] sm:$0xff]
        %v1272 = vld [vmem:[%s341 + $0x155c] sm:$0xff]
        %v1273 = vld [vmem:[%s341 + $0x1564] sm:$0xf]
        %v1274 = vld [vmem:[%s341 + $0x1568] sm:$0xff]
        %v1275 = vld [vmem:[%s341 + $0x1570] sm:$0xff]
        %v1276 = vld [vmem:[%s341 + $0x1578] sm:$0xf]
        %v1277 = vld [vmem:[%s341 + $0x157c] sm:$0xff]
        %v1278 = vld [vmem:[%s341 + $0x1584] sm:$0xff]
        %v1279 = vld [vmem:[%s341 + $0x158c] sm:$0xf]
        %v1280 = vld [vmem:[%s341 + $0x1590] sm:$0xff]
        %v1281 = vld [vmem:[%s341 + $0x1598] sm:$0xff]
        %v1282 = vld [vmem:[%s341 + $0x15a0] sm:$0xf]
        %v1283 = vld [vmem:[%s341 + $0x15a4] sm:$0xff]
        %v1284 = vld [vmem:[%s341 + $0x15ac] sm:$0xff]
        %v1285 = vld [vmem:[%s341 + $0x15b4] sm:$0xf]
        %v1286 = vld [vmem:[%s341 + $0x15b8] sm:$0xff]
        %v1287 = vld [vmem:[%s341 + $0x15c0] sm:$0xff]
        %v1288 = vld [vmem:[%s341 + $0x15c8] sm:$0xf]
        %v1289 = vld [vmem:[%s341 + $0x15cc] sm:$0xff]
        %v1290 = vld [vmem:[%s341 + $0x15d4] sm:$0xff]
        %v1291 = vld [vmem:[%s341 + $0x15dc] sm:$0xf]
        %v1292 = vld [vmem:[%s341 + $0x15e0] sm:$0xff]
        %v1293 = vld [vmem:[%s341 + $0x15e8] sm:$0xff]
        %v1294 = vld [vmem:[%s341 + $0x15f0] sm:$0xf]
        %v1295 = vld [vmem:[%s341 + $0x15f4] sm:$0xff]
        %v1296 = vld [vmem:[%s341 + $0x15fc] sm:$0xff]
        %v1297 = vld [vmem:[%s341 + $0x1604] sm:$0xf]
        %v1298 = vld [vmem:[%s341 + $0x1608] sm:$0xff]
        %v1299 = vld [vmem:[%s341 + $0x1610] sm:$0xff]
        %v1300 = vld [vmem:[%s341 + $0x1618] sm:$0xf]
        %v1301 = vld [vmem:[%s341 + $0x161c] sm:$0xff]
        %v1302 = vld [vmem:[%s341 + $0x1624] sm:$0xff]
        %v1303 = vld [vmem:[%s341 + $0x162c] sm:$0xf]
        %v1304 = vld [vmem:[%s341 + $0x1630] sm:$0xff]
        %v1305 = vld [vmem:[%s341 + $0x1638] sm:$0xff]
        %v1306 = vld [vmem:[%s341 + $0x1640] sm:$0xf]
        %v1307 = vld [vmem:[%s341 + $0x1644] sm:$0xff]
        %v1308 = vld [vmem:[%s341 + $0x164c] sm:$0xff]
        %v1309 = vld [vmem:[%s341 + $0x1654] sm:$0xf]
        %v1310 = vld [vmem:[%s341 + $0x1658] sm:$0xff]
        %v1311 = vld [vmem:[%s341 + $0x1660] sm:$0xff]
        %v1312 = vld [vmem:[%s341 + $0x1668] sm:$0xf]
        %v1313 = vld [vmem:[%s341 + $0x166c] sm:$0xff]
        %v1314 = vld [vmem:[%s341 + $0x1674] sm:$0xff]
        %v1315 = vld [vmem:[%s341 + $0x167c] sm:$0xf]
        %v1316 = vld [vmem:[%s341 + $0x1680] sm:$0xff]
        %v1317 = vld [vmem:[%s341 + $0x1688] sm:$0xff]
        %v1318 = vld [vmem:[%s341 + $0x1690] sm:$0xf]
        %v1319 = vld [vmem:[%s341 + $0x1694] sm:$0xff]
        %v1320 = vld [vmem:[%s341 + $0x169c] sm:$0xff]
        %v1321 = vld [vmem:[%s341 + $0x16a4] sm:$0xf]
        %v1322 = vld [vmem:[%s341 + $0x16a8] sm:$0xff]
        %v1323 = vld [vmem:[%s341 + $0x16b0] sm:$0xff]
        %v1324 = vld [vmem:[%s341 + $0x16b8] sm:$0xf]
        %v1325 = vld [vmem:[%s341 + $0x16bc] sm:$0xff]
        %v1326 = vld [vmem:[%s341 + $0x16c4] sm:$0xff]
        %v1327 = vld [vmem:[%s341 + $0x16cc] sm:$0xf]
        %v1328 = vld [vmem:[%s341 + $0x16d0] sm:$0xff]
        %v1329 = vld [vmem:[%s341 + $0x16d8] sm:$0xff]
        %v1330 = vld [vmem:[%s341 + $0x16e0] sm:$0xf]
        %v1331 = vld [vmem:[%s341 + $0x16e4] sm:$0xff]
        %v1332 = vld [vmem:[%s341 + $0x16ec] sm:$0xff]
        %v1333 = vld [vmem:[%s341 + $0x16f4] sm:$0xf]
        %v1334 = vld [vmem:[%s341 + $0x16f8] sm:$0xff]
        %v1335 = vld [vmem:[%s341 + $0x1700] sm:$0xff]
        %v1336 = vld [vmem:[%s341 + $0x1708] sm:$0xf]
        %v1337 = vld [vmem:[%s341 + $0x170c] sm:$0xff]
        %v1338 = vld [vmem:[%s341 + $0x1714] sm:$0xff]
        %v1339 = vld [vmem:[%s341 + $0x171c] sm:$0xf]
        %v1340 = vld [vmem:[%s341 + $0x1720] sm:$0xff]
        %v1341 = vld [vmem:[%s341 + $0x1728] sm:$0xff]
        %v1342 = vld [vmem:[%s341 + $0x1730] sm:$0xf]
        %v1343 = vld [vmem:[%s341 + $0x1734] sm:$0xff]
        %v1344 = vld [vmem:[%s341 + $0x173c] sm:$0xff]
        %v1345 = vld [vmem:[%s341 + $0x1744] sm:$0xf]
        %v1346 = vld [vmem:[%s341 + $0x1748] sm:$0xff]
        %v1347 = vld [vmem:[%s341 + $0x1750] sm:$0xff]
        %v1348 = vld [vmem:[%s341 + $0x1758] sm:$0xf]
        %v1349 = vld [vmem:[%s341 + $0x175c] sm:$0xff]
        %v1350 = vld [vmem:[%s341 + $0x1764] sm:$0xff]
        %v1351 = vld [vmem:[%s341 + $0x176c] sm:$0xf]
        %v1352 = vld [vmem:[%s341 + $0x1770] sm:$0xff]
        %v1353 = vld [vmem:[%s341 + $0x1778] sm:$0xff]
        %v1354 = vld [vmem:[%s341 + $0x1780] sm:$0xf]
        %v1355 = vld [vmem:[%s341 + $0x1784] sm:$0xff]
        %v1356 = vld [vmem:[%s341 + $0x178c] sm:$0xff]
        %v1357 = vld [vmem:[%s341 + $0x1794] sm:$0xf]
        %v1358 = vld [vmem:[%s341 + $0x1798] sm:$0xff]
        %v1359 = vld [vmem:[%s341 + $0x17a0] sm:$0xff]
        %v1360 = vld [vmem:[%s341 + $0x17a8] sm:$0xf]
        %v1361 = vld [vmem:[%s341 + $0x17ac] sm:$0xff]
        %v1362 = vld [vmem:[%s341 + $0x17b4] sm:$0xff]
        %v1363 = vld [vmem:[%s341 + $0x17bc] sm:$0xf]
        %v1364 = vld [vmem:[%s341 + $0x17c0] sm:$0xff]
        %v1365 = vld [vmem:[%s341 + $0x17c8] sm:$0xff]
        %v1366 = vld [vmem:[%s341 + $0x17d0] sm:$0xf]
        %v1367 = vld [vmem:[%s341 + $0x17d4] sm:$0xff]
        %v1368 = vld [vmem:[%s341 + $0x17dc] sm:$0xff]
        %v1369 = vld [vmem:[%s341 + $0x17e4] sm:$0xf]
        %v1370 = vld [vmem:[%s341 + $0x17e8] sm:$0xff]
        %v1371 = vld [vmem:[%s341 + $0x17f0] sm:$0xff]
        %v1372 = vld [vmem:[%s341 + $0x17f8] sm:$0xf]
        %v1373 = vld [vmem:[%s341 + $0x17fc] sm:$0xff]
        %v1374 = vld [vmem:[%s341 + $0x1804] sm:$0xff]
        %v1375 = vld [vmem:[%s341 + $0x180c] sm:$0xf]
        %v1376 = vld [vmem:[%s341 + $0x1810] sm:$0xff]
        %v1377 = vld [vmem:[%s341 + $0x1818] sm:$0xff]
        %v1378 = vld [vmem:[%s341 + $0x1820] sm:$0xf]
        %v1379 = vld [vmem:[%s341 + $0x1824] sm:$0xff]
        %v1380 = vld [vmem:[%s341 + $0x182c] sm:$0xff]
        %v1381 = vld [vmem:[%s341 + $0x1834] sm:$0xf]
        %v1382 = vld [vmem:[%s341 + $0x1838] sm:$0xff]
        %v1383 = vld [vmem:[%s341 + $0x1840] sm:$0xff]
        %v1384 = vld [vmem:[%s341 + $0x1848] sm:$0xf]
        %v1385 = vld [vmem:[%s341 + $0x184c] sm:$0xff]
        %v1386 = vld [vmem:[%s341 + $0x1854] sm:$0xff]
        %v1387 = vld [vmem:[%s341 + $0x185c] sm:$0xf]
        %v1388 = vld [vmem:[%s341 + $0x1860] sm:$0xff]
        %v1389 = vld [vmem:[%s341 + $0x1868] sm:$0xff]
        %v1390 = vld [vmem:[%s341 + $0x1870] sm:$0xf]
        %v1391 = vld [vmem:[%s341 + $0x1874] sm:$0xff]
        %v1392 = vld [vmem:[%s341 + $0x187c] sm:$0xff]
        %v1393 = vld [vmem:[%s341 + $0x1884] sm:$0xf]
        %v1394 = vld [vmem:[%s341 + $0x1888] sm:$0xff]
        %v1395 = vld [vmem:[%s341 + $0x1890] sm:$0xff]
        %v1396 = vld [vmem:[%s341 + $0x1898] sm:$0xf]
        %v1397 = vld [vmem:[%s341 + $0x189c] sm:$0xff]
        %v1398 = vld [vmem:[%s341 + $0x18a4] sm:$0xff]
        %v1399 = vld [vmem:[%s341 + $0x18ac] sm:$0xf]
        %v1400 = vld [vmem:[%s341 + $0x18b0] sm:$0xff]
        %v1401 = vld [vmem:[%s341 + $0x18b8] sm:$0xff]
        %v1402 = vld [vmem:[%s341 + $0x18c0] sm:$0xf]
        %v1403 = vld [vmem:[%s341 + $0x18c4] sm:$0xff]
        %v1404 = vld [vmem:[%s341 + $0x18cc] sm:$0xff]
        %v1405 = vld [vmem:[%s341 + $0x18d4] sm:$0xf]
        %v1406 = vld [vmem:[%s341 + $0x18d8] sm:$0xff]
        %v1407 = vld [vmem:[%s341 + $0x18e0] sm:$0xff]
        %v1408 = vld [vmem:[%s341 + $0x18e8] sm:$0xf]
        %v1409 = vld [vmem:[%s341 + $0x18ec] sm:$0xff]
        %v1410 = vld [vmem:[%s341 + $0x18f4] sm:$0xff]
        %v1411 = vld [vmem:[%s341 + $0x18fc] sm:$0xf]
        %v1412 = vld [vmem:[%s341 + $0x1900] sm:$0xff]
        %v1413 = vld [vmem:[%s341 + $0x1908] sm:$0xff]
        %v1414 = vld [vmem:[%s341 + $0x1910] sm:$0xf]
        %v1415 = vld [vmem:[%s341 + $0x1914] sm:$0xff]
        %v1416 = vld [vmem:[%s341 + $0x191c] sm:$0xff]
        %v1417 = vld [vmem:[%s341 + $0x1924] sm:$0xf]
        %v1418 = vld [vmem:[%s341 + $0x1928] sm:$0xff]
        %v1419 = vld [vmem:[%s341 + $0x1930] sm:$0xff]
        %v1420 = vld [vmem:[%s341 + $0x1938] sm:$0xf]
        %v1421 = vld [vmem:[%s341 + $0x193c] sm:$0xff]
        %v1422 = vld [vmem:[%s341 + $0x1944] sm:$0xff]
        %v1423 = vld [vmem:[%s341 + $0x194c] sm:$0xf]
        %v1424 = vld [vmem:[%s341 + $0x1950] sm:$0xff]
        %v1425 = vld [vmem:[%s341 + $0x1958] sm:$0xff]
        %v1426 = vld [vmem:[%s341 + $0x1960] sm:$0xf]
        %v1427 = vld [vmem:[%s341 + $0x1964] sm:$0xff]
        %v1428 = vld [vmem:[%s341 + $0x196c] sm:$0xff]
        %v1429 = vld [vmem:[%s341 + $0x1974] sm:$0xf]
        %v1430 = vld [vmem:[%s341 + $0x1978] sm:$0xff]
        %v1431 = vld [vmem:[%s341 + $0x1980] sm:$0xff]
        %v1432 = vld [vmem:[%s341 + $0x1988] sm:$0xf]
        %v1433 = vld [vmem:[%s341 + $0x198c] sm:$0xff]
        %v1434 = vld [vmem:[%s341 + $0x1994] sm:$0xff]
        %v1435 = vld [vmem:[%s341 + $0x199c] sm:$0xf]
        %v1436 = vld [vmem:[%s341 + $0x19a0] sm:$0xff]
        %v1437 = vld [vmem:[%s341 + $0x19a8] sm:$0xff]
        %v1438 = vld [vmem:[%s341 + $0x19b0] sm:$0xf]
        %v1439 = vld [vmem:[%s341 + $0x19b4] sm:$0xff]
        %v1440 = vld [vmem:[%s341 + $0x19bc] sm:$0xff]
        %v1441 = vld [vmem:[%s341 + $0x19c4] sm:$0xf]
        %v1442 = vld [vmem:[%s341 + $0x19c8] sm:$0xff]
        %v1443 = vld [vmem:[%s341 + $0x19d0] sm:$0xff]
        %v1444 = vld [vmem:[%s341 + $0x19d8] sm:$0xf]
        %v1445 = vld [vmem:[%s341 + $0x19dc] sm:$0xff]
        %v1446 = vld [vmem:[%s341 + $0x19e4] sm:$0xff]
        %v1447 = vld [vmem:[%s341 + $0x19ec] sm:$0xf]
        %v1448 = vld [vmem:[%s341 + $0x19f0] sm:$0xff]
        %v1449 = vld [vmem:[%s341 + $0x19f8] sm:$0xff]
        %v1450 = vld [vmem:[%s341 + $0x1a00] sm:$0xf]
        %v1451 = vld [vmem:[%s341 + $0x1a04] sm:$0xff]
        %v1452 = vld [vmem:[%s341 + $0x1a0c] sm:$0xff]
        %v1453 = vld [vmem:[%s341 + $0x1a14] sm:$0xf]
        %v1454 = vld [vmem:[%s341 + $0x1a18] sm:$0xff]
        %v1455 = vld [vmem:[%s341 + $0x1a20] sm:$0xff]
        %v1456 = vld [vmem:[%s341 + $0x1a28] sm:$0xf]
        %v1457 = vld [vmem:[%s341 + $0x1a2c] sm:$0xff]
        %v1458 = vld [vmem:[%s341 + $0x1a34] sm:$0xff]
        %v1459 = vld [vmem:[%s341 + $0x1a3c] sm:$0xf]
        %v1460 = vld [vmem:[%s341 + $0x1a40] sm:$0xff]
        %v1461 = vld [vmem:[%s341 + $0x1a48] sm:$0xff]
        %v1462 = vld [vmem:[%s341 + $0x1a50] sm:$0xf]
        %v1463 = vld [vmem:[%s341 + $0x1a54] sm:$0xff]
        %v1464 = vld [vmem:[%s341 + $0x1a5c] sm:$0xff]
        %v1465 = vld [vmem:[%s341 + $0x1a64] sm:$0xf]
        %v1466 = vld [vmem:[%s341 + $0x1a68] sm:$0xff]
        %v1467 = vld [vmem:[%s341 + $0x1a70] sm:$0xff]
        %v1468 = vld [vmem:[%s341 + $0x1a78] sm:$0xf]
        %v1469 = vld [vmem:[%s341 + $0x1a7c] sm:$0xff]
        %v1470 = vld [vmem:[%s341 + $0x1a84] sm:$0xff]
        %v1471 = vld [vmem:[%s341 + $0x1a8c] sm:$0xf]
        %v1472 = vld [vmem:[%s341 + $0x1a90] sm:$0xff]
        %v1473 = vld [vmem:[%s341 + $0x1a98] sm:$0xff]
        %v1474 = vld [vmem:[%s341 + $0x1aa0] sm:$0xf]
        %v1475 = vld [vmem:[%s341 + $0x1aa4] sm:$0xff]
        %v1476 = vld [vmem:[%s341 + $0x1aac] sm:$0xff]
        %v1477 = vld [vmem:[%s341 + $0x1ab4] sm:$0xf]
        %v1478 = vld [vmem:[%s341 + $0x1ab8] sm:$0xff]
        %v1479 = vld [vmem:[%s341 + $0x1ac0] sm:$0xff]
        %v1480 = vld [vmem:[%s341 + $0x1ac8] sm:$0xf]
        %v1481 = vld [vmem:[%s341 + $0x1acc] sm:$0xff]
        %v1482 = vld [vmem:[%s341 + $0x1ad4] sm:$0xff]
        %v1483 = vld [vmem:[%s341 + $0x1adc] sm:$0xf]
        %v1484 = vld [vmem:[%s341 + $0x1ae0] sm:$0xff]
        %v1485 = vld [vmem:[%s341 + $0x1ae8] sm:$0xff]
        %v1486 = vld [vmem:[%s341 + $0x1af0] sm:$0xf]
        %v1487 = vld [vmem:[%s341 + $0x1af4] sm:$0xff]
        %v1488 = vld [vmem:[%s341 + $0x1afc] sm:$0xff]
        %v1489 = vld [vmem:[%s341 + $0x1b04] sm:$0xf]
        %v1490 = vld [vmem:[%s341 + $0x1b08] sm:$0xff]
        %v1491 = vld [vmem:[%s341 + $0x1b10] sm:$0xff]
        %v1492 = vld [vmem:[%s341 + $0x1b18] sm:$0xf]
        %v1493 = vld [vmem:[%s341 + $0x1b1c] sm:$0xff]
        %v1494 = vld [vmem:[%s341 + $0x1b24] sm:$0xff]
        %v1495 = vld [vmem:[%s341 + $0x1b2c] sm:$0xf]
        %v1496 = vld [vmem:[%s341 + $0x1b30] sm:$0xff]
        %v1497 = vld [vmem:[%s341 + $0x1b38] sm:$0xff]
        %v1498 = vld [vmem:[%s341 + $0x1b40] sm:$0xf]
        %v1499 = vld [vmem:[%s341 + $0x1b44] sm:$0xff]
        %v1500 = vld [vmem:[%s341 + $0x1b4c] sm:$0xff]
        %v1501 = vld [vmem:[%s341 + $0x1b54] sm:$0xf]
        %v1502 = vld [vmem:[%s341 + $0x1b58] sm:$0xff]
        %v1503 = vld [vmem:[%s341 + $0x1b60] sm:$0xff]
        %v1504 = vld [vmem:[%s341 + $0x1b68] sm:$0xf]
        %v1505 = vld [vmem:[%s341 + $0x1b6c] sm:$0xff]
        %v1506 = vld [vmem:[%s341 + $0x1b74] sm:$0xff]
        %v1507 = vld [vmem:[%s341 + $0x1b7c] sm:$0xf]
        %v1508 = vld [vmem:[%s341 + $0x1b80] sm:$0xff]
        %v1509 = vld [vmem:[%s341 + $0x1b88] sm:$0xff]
        %v1510 = vld [vmem:[%s341 + $0x1b90] sm:$0xf]
        %v1511 = vld [vmem:[%s341 + $0x1b94] sm:$0xff]
        %v1512 = vld [vmem:[%s341 + $0x1b9c] sm:$0xff]
        %v1513 = vld [vmem:[%s341 + $0x1ba4] sm:$0xf]
        %v1514 = vld [vmem:[%s341 + $0x1ba8] sm:$0xff]
        %v1515 = vld [vmem:[%s341 + $0x1bb0] sm:$0xff]
        %v1516 = vld [vmem:[%s341 + $0x1bb8] sm:$0xf]
        %v1517 = vld [vmem:[%s341 + $0x1bbc] sm:$0xff]
        %v1518 = vld [vmem:[%s341 + $0x1bc4] sm:$0xff]
        %v1519 = vld [vmem:[%s341 + $0x1bcc] sm:$0xf]
        %v1520 = vld [vmem:[%s341 + $0x1bd0] sm:$0xff]
        %v1521 = vld [vmem:[%s341 + $0x1bd8] sm:$0xff]
        %v1522 = vld [vmem:[%s341 + $0x1be0] sm:$0xf]
        %v1523 = vld [vmem:[%s341 + $0x1be4] sm:$0xff]
        %v1524 = vld [vmem:[%s341 + $0x1bec] sm:$0xff]
        %v1525 = vld [vmem:[%s341 + $0x1bf4] sm:$0xf]
        %v1526 = vld [vmem:[%s341 + $0x1bf8] sm:$0xff]
        %v1527 = vld [vmem:[%s341 + $0x1c00] sm:$0xff]
        %v1528 = vld [vmem:[%s341 + $0x1c08] sm:$0xf]
        %v1529 = vld [vmem:[%s341 + $0x1c0c] sm:$0xff]
        %v1530 = vld [vmem:[%s341 + $0x1c14] sm:$0xff]
        %v1531 = vld [vmem:[%s341 + $0x1c1c] sm:$0xf]
        %v1532 = vld [vmem:[%s341 + $0x1c20] sm:$0xff]
        %v1533 = vld [vmem:[%s341 + $0x1c28] sm:$0xff]
        %v1534 = vld [vmem:[%s341 + $0x1c30] sm:$0xf]
        %v1535 = vld [vmem:[%s341 + $0x1c34] sm:$0xff]
        %v1536 = vld [vmem:[%s341 + $0x1c3c] sm:$0xff]
        %v1537 = vld [vmem:[%s341 + $0x1c44] sm:$0xf]
        %v1538 = vld [vmem:[%s341 + $0x1c48] sm:$0xff]
        %v1539 = vld [vmem:[%s341 + $0x1c50] sm:$0xff]
        %v1540 = vld [vmem:[%s341 + $0x1c58] sm:$0xf]
        %v1541 = vld [vmem:[%s341 + $0x1c5c] sm:$0xff]
        %v1542 = vld [vmem:[%s341 + $0x1c64] sm:$0xff]
        %v1543 = vld [vmem:[%s341 + $0x1c6c] sm:$0xf]
        %v1544 = vld [vmem:[%s341 + $0x1c70] sm:$0xff]
        %v1545 = vld [vmem:[%s341 + $0x1c78] sm:$0xff]
        %v1546 = vld [vmem:[%s341 + $0x1c80] sm:$0xf]
        %v1547 = vld [vmem:[%s341 + $0x1c84] sm:$0xff]
        %v1548 = vld [vmem:[%s341 + $0x1c8c] sm:$0xff]
        %v1549 = vld [vmem:[%s341 + $0x1c94] sm:$0xf]
        %v1550 = vld [vmem:[%s341 + $0x1c98] sm:$0xff]
        %v1551 = vld [vmem:[%s341 + $0x1ca0] sm:$0xff]
        %v1552 = vld [vmem:[%s341 + $0x1ca8] sm:$0xf]
        %v1553 = vld [vmem:[%s341 + $0x1cac] sm:$0xff]
        %v1554 = vld [vmem:[%s341 + $0x1cb4] sm:$0xff]
        %v1555 = vld [vmem:[%s341 + $0x1cbc] sm:$0xf]
        %v1556 = vld [vmem:[%s341 + $0x1cc0] sm:$0xff]
        %v1557 = vld [vmem:[%s341 + $0x1cc8] sm:$0xff]
        %v1558 = vld [vmem:[%s341 + $0x1cd0] sm:$0xf]
        %v1559 = vld [vmem:[%s341 + $0x1cd4] sm:$0xff]
        %v1560 = vld [vmem:[%s341 + $0x1cdc] sm:$0xff]
        %v1561 = vld [vmem:[%s341 + $0x1ce4] sm:$0xf]
        %v1562 = vld [vmem:[%s341 + $0x1ce8] sm:$0xff]
        %v1563 = vld [vmem:[%s341 + $0x1cf0] sm:$0xff]
        %v1564 = vld [vmem:[%s341 + $0x1cf8] sm:$0xf]
        %v1565 = vld [vmem:[%s341 + $0x1cfc] sm:$0xff]
        %v1566 = vld [vmem:[%s341 + $0x1d04] sm:$0xff]
        %v1567 = vld [vmem:[%s341 + $0x1d0c] sm:$0xf]
        %v1568 = vld [vmem:[%s341 + $0x1d10] sm:$0xff]
        %v1569 = vld [vmem:[%s341 + $0x1d18] sm:$0xff]
        %v1570 = vld [vmem:[%s341 + $0x1d20] sm:$0xf]
        %v1571 = vld [vmem:[%s341 + $0x1d24] sm:$0xff]
        %v1572 = vld [vmem:[%s341 + $0x1d2c] sm:$0xff]
        %v1573 = vld [vmem:[%s341 + $0x1d34] sm:$0xf]
        %v1574 = vld [vmem:[%s341 + $0x1d38] sm:$0xff]
        %v1575 = vld [vmem:[%s341 + $0x1d40] sm:$0xff]
        %v1576 = vld [vmem:[%s341 + $0x1d48] sm:$0xf]
        %v1577 = vld [vmem:[%s341 + $0x1d4c] sm:$0xff]
        %v1578 = vld [vmem:[%s341 + $0x1d54] sm:$0xff]
        %v1579 = vld [vmem:[%s341 + $0x1d5c] sm:$0xf]
        %v1580 = vld [vmem:[%s341 + $0x1d60] sm:$0xff]
        %v1581 = vld [vmem:[%s341 + $0x1d68] sm:$0xff]
        %v1582 = vld [vmem:[%s341 + $0x1d70] sm:$0xf]
        %v1583 = vld [vmem:[%s341 + $0x1d74] sm:$0xff]
        %v1584 = vld [vmem:[%s341 + $0x1d7c] sm:$0xff]
        %v1585 = vld [vmem:[%s341 + $0x1d84] sm:$0xf]
        %v1586 = vld [vmem:[%s341 + $0x1d88] sm:$0xff]
        %v1587 = vld [vmem:[%s341 + $0x1d90] sm:$0xff]
        %v1588 = vld [vmem:[%s341 + $0x1d98] sm:$0xf]
        %v1589 = vld [vmem:[%s341 + $0x1d9c] sm:$0xff]
        %v1590 = vld [vmem:[%s341 + $0x1da4] sm:$0xff]
        %v1591 = vld [vmem:[%s341 + $0x1dac] sm:$0xf]
        %v1592 = vld [vmem:[%s341 + $0x1db0] sm:$0xff]
        %v1593 = vld [vmem:[%s341 + $0x1db8] sm:$0xff]
        %v1594 = vld [vmem:[%s341 + $0x1dc0] sm:$0xf]
        %v1595 = vld [vmem:[%s341 + $0x1dc4] sm:$0xff]
        %v1596 = vld [vmem:[%s341 + $0x1dcc] sm:$0xff]
        %v1597 = vld [vmem:[%s341 + $0x1dd4] sm:$0xf]
        %v1598 = vld [vmem:[%s341 + $0x1dd8] sm:$0xff]
        %v1599 = vld [vmem:[%s341 + $0x1de0] sm:$0xff]
        %v1600 = vld [vmem:[%s341 + $0x1de8] sm:$0xf]
        %v1601 = vld [vmem:[%s341 + $0x1dec] sm:$0xff]
        %v1602 = vld [vmem:[%s341 + $0x1df4] sm:$0xff]
        %v1603 = vld [vmem:[%s341 + $0x1dfc] sm:$0xf]
        %v1604 = vld [vmem:[%s341 + $0x1e00] sm:$0xff]
        %v1605 = vld [vmem:[%s341 + $0x1e08] sm:$0xff]
        %v1606 = vld [vmem:[%s341 + $0x1e10] sm:$0xf]
        %v1607 = vld [vmem:[%s341 + $0x1e14] sm:$0xff]
        %v1608 = vld [vmem:[%s341 + $0x1e1c] sm:$0xff]
        %v1609 = vld [vmem:[%s341 + $0x1e24] sm:$0xf]
        %v1610 = vld [vmem:[%s341 + $0x1e28] sm:$0xff]
        %v1611 = vld [vmem:[%s341 + $0x1e30] sm:$0xff]
        %v1612 = vld [vmem:[%s341 + $0x1e38] sm:$0xf]
        %v1613 = vld [vmem:[%s341 + $0x1e3c] sm:$0xff]
        %v1614 = vld [vmem:[%s341 + $0x1e44] sm:$0xff]
        %v1615 = vld [vmem:[%s341 + $0x1e4c] sm:$0xf]
        %v1616 = vld [vmem:[%s341 + $0x1e50] sm:$0xff]
        %v1617 = vld [vmem:[%s341 + $0x1e58] sm:$0xff]
        %v1618 = vld [vmem:[%s341 + $0x1e60] sm:$0xf]
        %v1619 = vld [vmem:[%s341 + $0x1e64] sm:$0xff]
        %v1620 = vld [vmem:[%s341 + $0x1e6c] sm:$0xff]
        %v1621 = vld [vmem:[%s341 + $0x1e74] sm:$0xf]
        %v1622 = vld [vmem:[%s341 + $0x1e78] sm:$0xff]
        %v1623 = vld [vmem:[%s341 + $0x1e80] sm:$0xff]
        %v1624 = vld [vmem:[%s341 + $0x1e88] sm:$0xf]
        %v1625 = vld [vmem:[%s341 + $0x1e8c] sm:$0xff]
        %v1626 = vld [vmem:[%s341 + $0x1e94] sm:$0xff]
        %v1627 = vld [vmem:[%s341 + $0x1e9c] sm:$0xf]
        %v1628 = vld [vmem:[%s341 + $0x1ea0] sm:$0xff]
        %v1629 = vld [vmem:[%s341 + $0x1ea8] sm:$0xff]
        %v1630 = vld [vmem:[%s341 + $0x1eb0] sm:$0xf]
        %v1631 = vld [vmem:[%s341 + $0x1eb4] sm:$0xff]
        %v1632 = vld [vmem:[%s341 + $0x1ebc] sm:$0xff]
        %v1633 = vld [vmem:[%s341 + $0x1ec4] sm:$0xf]
        %v1634 = vld [vmem:[%s341 + $0x1ec8] sm:$0xff]
        %v1635 = vld [vmem:[%s341 + $0x1ed0] sm:$0xff]
        %v1636 = vld [vmem:[%s341 + $0x1ed8] sm:$0xf]
        %v1637 = vld [vmem:[%s341 + $0x1edc] sm:$0xff]
        %v1638 = vld [vmem:[%s341 + $0x1ee4] sm:$0xff]
        %v1639 = vld [vmem:[%s341 + $0x1eec] sm:$0xf]
        %v1640 = vld [vmem:[%s341 + $0x1ef0] sm:$0xff]
        %v1641 = vld [vmem:[%s341 + $0x1ef8] sm:$0xff]
        %v1642 = vld [vmem:[%s341 + $0x1f00] sm:$0xf]
        %v1643 = vld [vmem:[%s341 + $0x1f04] sm:$0xff]
        %v1644 = vld [vmem:[%s341 + $0x1f0c] sm:$0xff]
        %v1645 = vld [vmem:[%s341 + $0x1f14] sm:$0xf]
        %v1646 = vld [vmem:[%s341 + $0x1f18] sm:$0xff]
        %v1647 = vld [vmem:[%s341 + $0x1f20] sm:$0xff]
        %v1648 = vld [vmem:[%s341 + $0x1f28] sm:$0xf]
        %v1649 = vld [vmem:[%s341 + $0x1f2c] sm:$0xff]
        %v1650 = vld [vmem:[%s341 + $0x1f34] sm:$0xff]
        %v1651 = vld [vmem:[%s341 + $0x1f3c] sm:$0xf]
        %v1652 = vld [vmem:[%s341 + $0x1f40] sm:$0xff]
        %v1653 = vld [vmem:[%s341 + $0x1f48] sm:$0xff]
        %v1654 = vld [vmem:[%s341 + $0x1f50] sm:$0xf]
        %v1655 = vld [vmem:[%s341 + $0x1f54] sm:$0xff]
        %v1656 = vld [vmem:[%s341 + $0x1f5c] sm:$0xff]
        %v1657 = vld [vmem:[%s341 + $0x1f64] sm:$0xf]
        %v1658 = vld [vmem:[%s341 + $0x1f68] sm:$0xff]
        %v1659 = vld [vmem:[%s341 + $0x1f70] sm:$0xff]
        %v1660 = vld [vmem:[%s341 + $0x1f78] sm:$0xf]
        %v1661 = vld [vmem:[%s341 + $0x1f7c] sm:$0xff]
        %v1662 = vld [vmem:[%s341 + $0x1f84] sm:$0xff]
        %v1663 = vld [vmem:[%s341 + $0x1f8c] sm:$0xf]
        %v1664 = vld [vmem:[%s341 + $0x1f90] sm:$0xff]
        %v1665 = vld [vmem:[%s341 + $0x1f98] sm:$0xff]
        %v1666 = vld [vmem:[%s341 + $0x1fa0] sm:$0xf]
        %v1667 = vld [vmem:[%s341 + $0x1fa4] sm:$0xff]
        %v1668 = vld [vmem:[%s341 + $0x1fac] sm:$0xff]
        %v1669 = vld [vmem:[%s341 + $0x1fb4] sm:$0xf]
        %v1670 = vld [vmem:[%s341 + $0x1fb8] sm:$0xff]
        %v1671 = vld [vmem:[%s341 + $0x1fc0] sm:$0xff]
        %v1672 = vld [vmem:[%s341 + $0x1fc8] sm:$0xf]
        %v1673 = vld [vmem:[%s341 + $0x1fcc] sm:$0xff]
        %v1674 = vld [vmem:[%s341 + $0x1fd4] sm:$0xff]
        %v1675 = vld [vmem:[%s341 + $0x1fdc] sm:$0xf]
        %v1676 = vld [vmem:[%s341 + $0x1fe0] sm:$0xff]
        %v1677 = vld [vmem:[%s341 + $0x1fe8] sm:$0xff]
        %v1678 = vld [vmem:[%s341 + $0x1ff0] sm:$0xf]
        %v1679 = vld [vmem:[%s341 + $0x1ff4] sm:$0xff]
        %v1680 = vld [vmem:[%s341 + $0x1ffc] sm:$0xff]
        %v1681 = vld [vmem:[%s341 + $0x2004] sm:$0xf]
        %v1682 = vld [vmem:[%s341 + $0x2008] sm:$0xff]
        %v1683 = vld [vmem:[%s341 + $0x2010] sm:$0xff]
        %v1684 = vld [vmem:[%s341 + $0x2018] sm:$0xf]
        %v1685 = vld [vmem:[%s341 + $0x201c] sm:$0xff]
        %v1686 = vld [vmem:[%s341 + $0x2024] sm:$0xff]
        %v1687 = vld [vmem:[%s341 + $0x202c] sm:$0xf]
        %v1688 = vld [vmem:[%s341 + $0x2030] sm:$0xff]
        %v1689 = vld [vmem:[%s341 + $0x2038] sm:$0xff]
        %v1690 = vld [vmem:[%s341 + $0x2040] sm:$0xf]
        %v1691 = vld [vmem:[%s341 + $0x2044] sm:$0xff]
        %v1692 = vld [vmem:[%s341 + $0x204c] sm:$0xff]
        %v1693 = vld [vmem:[%s341 + $0x2054] sm:$0xf]
        %v1694 = vld [vmem:[%s341 + $0x2058] sm:$0xff]
        %v1695 = vld [vmem:[%s341 + $0x2060] sm:$0xff]
        %v1696 = vld [vmem:[%s341 + $0x2068] sm:$0xf]
        %v1697 = vld [vmem:[%s341 + $0x206c] sm:$0xff]
        %v1698 = vld [vmem:[%s341 + $0x2074] sm:$0xff]
        %v1699 = vld [vmem:[%s341 + $0x207c] sm:$0xf]
        %v1700 = vld [vmem:[%s341 + $0x2080] sm:$0xff]
        %v1701 = vld [vmem:[%s341 + $0x2088] sm:$0xff]
        %v1702 = vld [vmem:[%s341 + $0x2090] sm:$0xf]
        %v1703 = vld [vmem:[%s341 + $0x2094] sm:$0xff]
        %v1704 = vld [vmem:[%s341 + $0x209c] sm:$0xff]
        %v1705 = vld [vmem:[%s341 + $0x20a4] sm:$0xf]
        %v1706 = vld [vmem:[%s341 + $0x20a8] sm:$0xff]
        %v1707 = vld [vmem:[%s341 + $0x20b0] sm:$0xff]
        %v1708 = vld [vmem:[%s341 + $0x20b8] sm:$0xf]
        %v1709 = vld [vmem:[%s341 + $0x20bc] sm:$0xff]
        %v1710 = vld [vmem:[%s341 + $0x20c4] sm:$0xff]
        %v1711 = vld [vmem:[%s341 + $0x20cc] sm:$0xf]
        %v1712 = vld [vmem:[%s341 + $0x20d0] sm:$0xff]
        %v1713 = vld [vmem:[%s341 + $0x20d8] sm:$0xff]
        %v1714 = vld [vmem:[%s341 + $0x20e0] sm:$0xf]
        %v1715 = vld [vmem:[%s341 + $0x20e4] sm:$0xff]
        %v1716 = vld [vmem:[%s341 + $0x20ec] sm:$0xff]
        %v1717 = vld [vmem:[%s341 + $0x20f4] sm:$0xf]
        %v1718 = vld [vmem:[%s341 + $0x20f8] sm:$0xff]
        %v1719 = vld [vmem:[%s341 + $0x2100] sm:$0xff]
        %v1720 = vld [vmem:[%s341 + $0x2108] sm:$0xf]
        %v1721 = vld [vmem:[%s341 + $0x210c] sm:$0xff]
        %v1722 = vld [vmem:[%s341 + $0x2114] sm:$0xff]
        %v1723 = vld [vmem:[%s341 + $0x211c] sm:$0xf]
        %v1724 = vld [vmem:[%s341 + $0x2120] sm:$0xff]
        %v1725 = vld [vmem:[%s341 + $0x2128] sm:$0xff]
        %v1726 = vld [vmem:[%s341 + $0x2130] sm:$0xf]
        %v1727 = vld [vmem:[%s341 + $0x2134] sm:$0xff]
        %v1728 = vld [vmem:[%s341 + $0x213c] sm:$0xff]
        %v1729 = vld [vmem:[%s341 + $0x2144] sm:$0xf]
        %v1730 = vld [vmem:[%s341 + $0x2148] sm:$0xff]
        %v1731 = vld [vmem:[%s341 + $0x2150] sm:$0xff]
        %v1732 = vld [vmem:[%s341 + $0x2158] sm:$0xf]
        %v1733 = vld [vmem:[%s341 + $0x215c] sm:$0xff]
        %v1734 = vld [vmem:[%s341 + $0x2164] sm:$0xff]
        %v1735 = vld [vmem:[%s341 + $0x216c] sm:$0xf]
        %v1736 = vld [vmem:[%s341 + $0x2170] sm:$0xff]
        %v1737 = vld [vmem:[%s341 + $0x2178] sm:$0xff]
        %v1738 = vld [vmem:[%s341 + $0x2180] sm:$0xf]
        %v1739 = vld [vmem:[%s341 + $0x2184] sm:$0xff]
        %v1740 = vld [vmem:[%s341 + $0x218c] sm:$0xff]
        %v1741 = vld [vmem:[%s341 + $0x2194] sm:$0xf]
        %v1742 = vld [vmem:[%s341 + $0x2198] sm:$0xff]
        %v1743 = vld [vmem:[%s341 + $0x21a0] sm:$0xff]
        %v1744 = vld [vmem:[%s341 + $0x21a8] sm:$0xf]
        %v1745 = vld [vmem:[%s341 + $0x21ac] sm:$0xff]
        %v1746 = vld [vmem:[%s341 + $0x21b4] sm:$0xff]
        %v1747 = vld [vmem:[%s341 + $0x21bc] sm:$0xf]
        %v1748 = vld [vmem:[%s341 + $0x21c0] sm:$0xff]
        %v1749 = vld [vmem:[%s341 + $0x21c8] sm:$0xff]
        %v1750 = vld [vmem:[%s341 + $0x21d0] sm:$0xf]
        %v1751 = vld [vmem:[%s341 + $0x21d4] sm:$0xff]
        %v1752 = vld [vmem:[%s341 + $0x21dc] sm:$0xff]
        %v1753 = vld [vmem:[%s341 + $0x21e4] sm:$0xf]
        %v1754 = vld [vmem:[%s341 + $0x21e8] sm:$0xff]
        %v1755 = vld [vmem:[%s341 + $0x21f0] sm:$0xff]
        %v1756 = vld [vmem:[%s341 + $0x21f8] sm:$0xf]
        %v1757 = vld [vmem:[%s341 + $0x21fc] sm:$0xff]
        %v1758 = vld [vmem:[%s341 + $0x2204] sm:$0xff]
        %v1759 = vld [vmem:[%s341 + $0x220c] sm:$0xf]
        %v1760 = vld [vmem:[%s341 + $0x2210] sm:$0xff]
        %v1761 = vld [vmem:[%s341 + $0x2218] sm:$0xff]
        %v1762 = vld [vmem:[%s341 + $0x2220] sm:$0xf]
        %v1763 = vld [vmem:[%s341 + $0x2224] sm:$0xff]
        %v1764 = vld [vmem:[%s341 + $0x222c] sm:$0xff]
        %v1765 = vld [vmem:[%s341 + $0x2234] sm:$0xf]
        %v1766 = vld [vmem:[%s341 + $0x2238] sm:$0xff]
        %v1767 = vld [vmem:[%s341 + $0x2240] sm:$0xff]
        %v1768 = vld [vmem:[%s341 + $0x2248] sm:$0xf]
        %v1769 = vld [vmem:[%s341 + $0x224c] sm:$0xff]
        %v1770 = vld [vmem:[%s341 + $0x2254] sm:$0xff]
        %v1771 = vld [vmem:[%s341 + $0x225c] sm:$0xf]
        %v1772 = vld [vmem:[%s341 + $0x2260] sm:$0xff]
        %v1773 = vld [vmem:[%s341 + $0x2268] sm:$0xff]
        %v1774 = vld [vmem:[%s341 + $0x2270] sm:$0xf]
        %v1775 = vld [vmem:[%s341 + $0x2274] sm:$0xff]
        %v1776 = vld [vmem:[%s341 + $0x227c] sm:$0xff]
        %v1777 = vld [vmem:[%s341 + $0x2284] sm:$0xf]
        %v1778 = vld [vmem:[%s341 + $0x2288] sm:$0xff]
        %v1779 = vld [vmem:[%s341 + $0x2290] sm:$0xff]
        %v1780 = vld [vmem:[%s341 + $0x2298] sm:$0xf]
        %v1781 = vld [vmem:[%s341 + $0x229c] sm:$0xff]
        %v1782 = vld [vmem:[%s341 + $0x22a4] sm:$0xff]
        %v1783 = vld [vmem:[%s341 + $0x22ac] sm:$0xf]
        %v1784 = vld [vmem:[%s341 + $0x22b0] sm:$0xff]
        %v1785 = vld [vmem:[%s341 + $0x22b8] sm:$0xff]
        %v1786 = vld [vmem:[%s341 + $0x22c0] sm:$0xf]
        %v1787 = vld [vmem:[%s341 + $0x22c4] sm:$0xff]
        %v1788 = vld [vmem:[%s341 + $0x22cc] sm:$0xff]
        %v1789 = vld [vmem:[%s341 + $0x22d4] sm:$0xf]
        %v1790 = vld [vmem:[%s341 + $0x22d8] sm:$0xff]
        %v1791 = vld [vmem:[%s341 + $0x22e0] sm:$0xff]
        %v1792 = vld [vmem:[%s341 + $0x22e8] sm:$0xf]
        %v1793 = vld [vmem:[%s341 + $0x22ec] sm:$0xff]
        %v1794 = vld [vmem:[%s341 + $0x22f4] sm:$0xff]
        %v1795 = vld [vmem:[%s341 + $0x22fc] sm:$0xf]
        %v1796 = vld [vmem:[%s341 + $0x2300] sm:$0xff]
        %v1797 = vld [vmem:[%s341 + $0x2308] sm:$0xff]
        %v1798 = vld [vmem:[%s341 + $0x2310] sm:$0xf]
        %v1799 = vld [vmem:[%s341 + $0x2314] sm:$0xff]
        %v1800 = vld [vmem:[%s341 + $0x231c] sm:$0xff]
        %v1801 = vld [vmem:[%s341 + $0x2324] sm:$0xf]
        %v1802 = vld [vmem:[%s341 + $0x2328] sm:$0xff]
        %v1803 = vld [vmem:[%s341 + $0x2330] sm:$0xff]
        %v1804 = vld [vmem:[%s341 + $0x2338] sm:$0xf]
        %v1805 = vld [vmem:[%s341 + $0x233c] sm:$0xff]
        %v1806 = vld [vmem:[%s341 + $0x2344] sm:$0xff]
        %v1807 = vld [vmem:[%s341 + $0x234c] sm:$0xf]
        %v1808 = vld [vmem:[%s341 + $0x2350] sm:$0xff]
        %v1809 = vld [vmem:[%s341 + $0x2358] sm:$0xff]
        %v1810 = vld [vmem:[%s341 + $0x2360] sm:$0xf]
        %v1811 = vld [vmem:[%s341 + $0x2364] sm:$0xff]
        %v1812 = vld [vmem:[%s341 + $0x236c] sm:$0xff]
        %v1813 = vld [vmem:[%s341 + $0x2374] sm:$0xf]
        %v1814 = vld [vmem:[%s341 + $0x2378] sm:$0xff]
        %v1815 = vld [vmem:[%s341 + $0x2380] sm:$0xff]
        %v1816 = vld [vmem:[%s341 + $0x2388] sm:$0xf]
        %v1817 = vld [vmem:[%s341 + $0x238c] sm:$0xff]
        %v1818 = vld [vmem:[%s341 + $0x2394] sm:$0xff]
        %v1819 = vld [vmem:[%s341 + $0x239c] sm:$0xf]
        %v1820 = vld [vmem:[%s341 + $0x23a0] sm:$0xff]
        %v1821 = vld [vmem:[%s341 + $0x23a8] sm:$0xff]
        %v1822 = vld [vmem:[%s341 + $0x23b0] sm:$0xf]
        %v1823 = vld [vmem:[%s341 + $0x23b4] sm:$0xff]
        %v1824 = vld [vmem:[%s341 + $0x23bc] sm:$0xff]
        %v1825 = vld [vmem:[%s341 + $0x23c4] sm:$0xf]
        %v1826 = vld [vmem:[%s341 + $0x23c8] sm:$0xff]
        %v1827 = vld [vmem:[%s341 + $0x23d0] sm:$0xff]
        %v1828 = vld [vmem:[%s341 + $0x23d8] sm:$0xf]
        %v1829 = vld [vmem:[%s341 + $0x23dc] sm:$0xff]
        %v1830 = vld [vmem:[%s341 + $0x23e4] sm:$0xff]
        %v1831 = vld [vmem:[%s341 + $0x23ec] sm:$0xf]
        %v1832 = vld [vmem:[%s341 + $0x23f0] sm:$0xff]
        %v1833 = vld [vmem:[%s341 + $0x23f8] sm:$0xff]
        %v1834 = vld [vmem:[%s341 + $0x2400] sm:$0xf]
        %v1835 = vld [vmem:[%s341 + $0x2404] sm:$0xff]
        %v1836 = vld [vmem:[%s341 + $0x240c] sm:$0xff]
        %v1837 = vld [vmem:[%s341 + $0x2414] sm:$0xf]
        %v1838 = vld [vmem:[%s341 + $0x2418] sm:$0xff]
        %v1839 = vld [vmem:[%s341 + $0x2420] sm:$0xff]
        %v1840 = vld [vmem:[%s341 + $0x2428] sm:$0xf]
        %v1841 = vld [vmem:[%s341 + $0x242c] sm:$0xff]
        %v1842 = vld [vmem:[%s341 + $0x2434] sm:$0xff]
        %v1843 = vld [vmem:[%s341 + $0x243c] sm:$0xf]
        %v1844 = vld [vmem:[%s341 + $0x2440] sm:$0xff]
        %v1845 = vld [vmem:[%s341 + $0x2448] sm:$0xff]
        %v1846 = vld [vmem:[%s341 + $0x2450] sm:$0xf]
        %v1847 = vld [vmem:[%s341 + $0x2454] sm:$0xff]
        %v1848 = vld [vmem:[%s341 + $0x245c] sm:$0xff]
        %v1849 = vld [vmem:[%s341 + $0x2464] sm:$0xf]
        %v1850 = vld [vmem:[%s341 + $0x2468] sm:$0xff]
        %v1851 = vld [vmem:[%s341 + $0x2470] sm:$0xff]
        %v1852 = vld [vmem:[%s341 + $0x2478] sm:$0xf]
        %v1853 = vld [vmem:[%s341 + $0x247c] sm:$0xff]
        %v1854 = vld [vmem:[%s341 + $0x2484] sm:$0xff]
        %v1855 = vld [vmem:[%s341 + $0x248c] sm:$0xf]
        %v1856 = vld [vmem:[%s341 + $0x2490] sm:$0xff]
        %v1857 = vld [vmem:[%s341 + $0x2498] sm:$0xff]
        %v1858 = vld [vmem:[%s341 + $0x24a0] sm:$0xf]
        %v1859 = vld [vmem:[%s341 + $0x24a4] sm:$0xff]
        %v1860 = vld [vmem:[%s341 + $0x24ac] sm:$0xff]
        %v1861 = vld [vmem:[%s341 + $0x24b4] sm:$0xf]
        %v1862 = vld [vmem:[%s341 + $0x24b8] sm:$0xff]
        %v1863 = vld [vmem:[%s341 + $0x24c0] sm:$0xff]
        %v1864 = vld [vmem:[%s341 + $0x24c8] sm:$0xf]
        %v1865 = vld [vmem:[%s341 + $0x24cc] sm:$0xff]
        %v1866 = vld [vmem:[%s341 + $0x24d4] sm:$0xff]
        %v1867 = vld [vmem:[%s341 + $0x24dc] sm:$0xf]
        %v1868 = vld [vmem:[%s341 + $0x24e0] sm:$0xff]
        %v1869 = vld [vmem:[%s341 + $0x24e8] sm:$0xff]
        %v1870 = vld [vmem:[%s341 + $0x24f0] sm:$0xf]
        %v1871 = vld [vmem:[%s341 + $0x24f4] sm:$0xff]
        %v1872 = vld [vmem:[%s341 + $0x24fc] sm:$0xff]
        %v1873 = vld [vmem:[%s341 + $0x2504] sm:$0xf]
        %v1874 = vld [vmem:[%s341 + $0x2508] sm:$0xff]
        %v1875 = vld [vmem:[%s341 + $0x2510] sm:$0xff]
        %v1876 = vld [vmem:[%s341 + $0x2518] sm:$0xf]
        %v1877 = vld [vmem:[%s341 + $0x251c] sm:$0xff]
        %v1878 = vld [vmem:[%s341 + $0x2524] sm:$0xff]
        %v1879 = vld [vmem:[%s341 + $0x252c] sm:$0xf]
        %v1880 = vld [vmem:[%s341 + $0x2530] sm:$0xff]
        %v1881 = vld [vmem:[%s341 + $0x2538] sm:$0xff]
        %v1882 = vld [vmem:[%s341 + $0x2540] sm:$0xf]
        %v1883 = vld [vmem:[%s341 + $0x2544] sm:$0xff]
        %v1884 = vld [vmem:[%s341 + $0x254c] sm:$0xff]
        %v1885 = vld [vmem:[%s341 + $0x2554] sm:$0xf]
        %v1886 = vld [vmem:[%s341 + $0x2558] sm:$0xff]
        %v1887 = vld [vmem:[%s341 + $0x2560] sm:$0xff]
        %v1888 = vld [vmem:[%s341 + $0x2568] sm:$0xf]
        %v1889 = vld [vmem:[%s341 + $0x256c] sm:$0xff]
        %v1890 = vld [vmem:[%s341 + $0x2574] sm:$0xff]
        %v1891 = vld [vmem:[%s341 + $0x257c] sm:$0xf]
        %v1892 = vld [vmem:[%s341 + $0x2580] sm:$0xff]
        %v1893 = vld [vmem:[%s341 + $0x2588] sm:$0xff]
        %v1894 = vld [vmem:[%s341 + $0x2590] sm:$0xf]
        %v1895 = vld [vmem:[%s341 + $0x2594] sm:$0xff]
        %v1896 = vld [vmem:[%s341 + $0x259c] sm:$0xff]
        %v1897 = vld [vmem:[%s341 + $0x25a4] sm:$0xf]
        %v1898 = vld [vmem:[%s341 + $0x25a8] sm:$0xff]
        %v1899 = vld [vmem:[%s341 + $0x25b0] sm:$0xff]
        %v1900 = vld [vmem:[%s341 + $0x25b8] sm:$0xf]
        %v1901 = vld [vmem:[%s341 + $0x25bc] sm:$0xff]
        %v1902 = vld [vmem:[%s341 + $0x25c4] sm:$0xff]
        %v1903 = vld [vmem:[%s341 + $0x25cc] sm:$0xf]
        %v1904 = vld [vmem:[%s341 + $0x25d0] sm:$0xff]
        %v1905 = vld [vmem:[%s341 + $0x25d8] sm:$0xff]
        %v1906 = vld [vmem:[%s341 + $0x25e0] sm:$0xf]
        %v1907 = vld [vmem:[%s341 + $0x25e4] sm:$0xff]
        %v1908 = vld [vmem:[%s341 + $0x25ec] sm:$0xff]
        %v1909 = vld [vmem:[%s341 + $0x25f4] sm:$0xf]
        %v1910 = vld [vmem:[%s341 + $0x25f8] sm:$0xff]
        %v1911 = vld [vmem:[%s341 + $0x2600] sm:$0xff]
        %v1912 = vld [vmem:[%s341 + $0x2608] sm:$0xf]
        %v1913 = vld [vmem:[%s341 + $0x260c] sm:$0xff]
        %v1914 = vld [vmem:[%s341 + $0x2614] sm:$0xff]
        %v1915 = vld [vmem:[%s341 + $0x261c] sm:$0xf]
        %v1916 = vld [vmem:[%s341 + $0x2620] sm:$0xff]
        %v1917 = vld [vmem:[%s341 + $0x2628] sm:$0xff]
        %v1918 = vld [vmem:[%s341 + $0x2630] sm:$0xf]
        %v1919 = vld [vmem:[%s341 + $0x2634] sm:$0xff]
        %v1920 = vld [vmem:[%s341 + $0x263c] sm:$0xff]
        %v1921 = vld [vmem:[%s341 + $0x2644] sm:$0xf]
        %v1922 = vld [vmem:[%s341 + $0x2648] sm:$0xff]
        %v1923 = vld [vmem:[%s341 + $0x2650] sm:$0xff]
        %v1924 = vld [vmem:[%s341 + $0x2658] sm:$0xf]
        %v1925 = vld [vmem:[%s341 + $0x265c] sm:$0xff]
        %v1926 = vld [vmem:[%s341 + $0x2664] sm:$0xff]
        %v1927 = vld [vmem:[%s341 + $0x266c] sm:$0xf]
        %v1928 = vld [vmem:[%s341 + $0x2670] sm:$0xff]
        %v1929 = vld [vmem:[%s341 + $0x2678] sm:$0xff]
        %v1930 = vld [vmem:[%s341 + $0x2680] sm:$0xf]
        %v1931 = vld [vmem:[%s341 + $0x2684] sm:$0xff]
        %v1932 = vld [vmem:[%s341 + $0x268c] sm:$0xff]
        %v1933 = vld [vmem:[%s341 + $0x2694] sm:$0xf]
        %v1934 = vld [vmem:[%s341 + $0x2698] sm:$0xff]
        %v1935 = vld [vmem:[%s341 + $0x26a0] sm:$0xff]
        %v1936 = vld [vmem:[%s341 + $0x26a8] sm:$0xf]
        %v1937 = vld [vmem:[%s341 + $0x26ac] sm:$0xff]
        %v1938 = vld [vmem:[%s341 + $0x26b4] sm:$0xff]
        %v1939 = vld [vmem:[%s341 + $0x26bc] sm:$0xf]
        %v1940 = vld [vmem:[%s341 + $0x26c0] sm:$0xff]
        %v1941 = vld [vmem:[%s341 + $0x26c8] sm:$0xff]
        %v1942 = vld [vmem:[%s341 + $0x26d0] sm:$0xf]
        %v1943 = vld [vmem:[%s341 + $0x26d4] sm:$0xff]
        %v1944 = vld [vmem:[%s341 + $0x26dc] sm:$0xff]
        %v1945 = vld [vmem:[%s341 + $0x26e4] sm:$0xf]
        %v1946 = vld [vmem:[%s341 + $0x26e8] sm:$0xff]
        %v1947 = vld [vmem:[%s341 + $0x26f0] sm:$0xff]
        %v1948 = vld [vmem:[%s341 + $0x26f8] sm:$0xf]
        %v1949 = vld [vmem:[%s341 + $0x26fc] sm:$0xff]
        %v1950 = vld [vmem:[%s341 + $0x2704] sm:$0xff]
        %v1951 = vld [vmem:[%s341 + $0x270c] sm:$0xf]
        %v1952 = vld [vmem:[%s341 + $0x2710] sm:$0xff]
        %v1953 = vld [vmem:[%s341 + $0x2718] sm:$0xff]
        %v1954 = vld [vmem:[%s341 + $0x2720] sm:$0xf]
        %v1955 = vld [vmem:[%s341 + $0x2724] sm:$0xff]
        %v1956 = vld [vmem:[%s341 + $0x272c] sm:$0xff]
        %v1957 = vld [vmem:[%s341 + $0x2734] sm:$0xf]
        %v1958 = vld [vmem:[%s341 + $0x2738] sm:$0xff]
        %v1959 = vld [vmem:[%s341 + $0x2740] sm:$0xff]
        %v1960 = vld [vmem:[%s341 + $0x2748] sm:$0xf]
        %v1961 = vld [vmem:[%s341 + $0x274c] sm:$0xff]
        %v1962 = vld [vmem:[%s341 + $0x2754] sm:$0xff]
        %v1963 = vld [vmem:[%s341 + $0x275c] sm:$0xf]
        %v1964 = vld [vmem:[%s341 + $0x2760] sm:$0xff]
        %v1965 = vld [vmem:[%s341 + $0x2768] sm:$0xff]
        %v1966 = vld [vmem:[%s341 + $0x2770] sm:$0xf]
        %v1967 = vld [vmem:[%s341 + $0x2774] sm:$0xff]
        %v1968 = vld [vmem:[%s341 + $0x277c] sm:$0xff]
        %v1969 = vld [vmem:[%s341 + $0x2784] sm:$0xf]
        %v1970 = vld [vmem:[%s341 + $0x2788] sm:$0xff]
        %v1971 = vld [vmem:[%s341 + $0x2790] sm:$0xff]
        %v1972 = vld [vmem:[%s341 + $0x2798] sm:$0xf]
        %v1973 = vld [vmem:[%s341 + $0x279c] sm:$0xff]
        %v1974 = vld [vmem:[%s341 + $0x27a4] sm:$0xff]
        %v1975 = vld [vmem:[%s341 + $0x27ac] sm:$0xf]
        %v1976 = vld [vmem:[%s341 + $0x27b0] sm:$0xff]
        %v1977 = vld [vmem:[%s341 + $0x27b8] sm:$0xff]
        %v1978 = vld [vmem:[%s341 + $0x27c0] sm:$0xf]
        %v1979 = vld [vmem:[%s341 + $0x27c4] sm:$0xff]
        %v1980 = vld [vmem:[%s341 + $0x27cc] sm:$0xff]
        %v1981 = vld [vmem:[%s341 + $0x27d4] sm:$0xf]
        %v1982 = vld [vmem:[%s341 + $0x27d8] sm:$0xff]
        %v1983 = vld [vmem:[%s341 + $0x27e0] sm:$0xff]
        %v1984 = vld [vmem:[%s341 + $0x27e8] sm:$0xf]
        %v1985 = vld [vmem:[%s341 + $0x27ec] sm:$0xff]
        %v1986 = vld [vmem:[%s341 + $0x27f4] sm:$0xff]
        %v1987 = vld [vmem:[%s341 + $0x27fc] sm:$0xf]
        %v2004 = vunpack.c.l.b16 %v436
        %v2005 = vunpack.c.h.b16 %v436
        %v2006 = vunpack.c.l.b16 %v437
        %v2007 = vunpack.c.h.b16 %v437
        %v2008 = vunpack.c.l.b16 %v438
        %v2009 = vunpack.c.h.b16 %v438
        %v2010 = vunpack.c.l.b16 %v439
        %v2011 = vunpack.c.h.b16 %v439
        %v2012 = vunpack.c.l.b16 %v440
        %v2013 = vunpack.c.h.b16 %v440
        %v2014 = vunpack.c.l.b16 %v441
        %v2015 = vunpack.c.h.b16 %v441
        %v2016 = vunpack.c.l.b16 %v442
        %v2017 = vunpack.c.h.b16 %v442
        %v2018 = vunpack.c.l.b16 %v443
        %v2019 = vunpack.c.h.b16 %v443
        %v2020 = vunpack.c.l.b16 %v444
        %v2021 = vunpack.c.h.b16 %v444
        %v2022 = vunpack.c.l.b16 %v445
        %v2023 = vunpack.c.h.b16 %v445
        %v2024 = vunpack.c.l.b16 %v446
        %v2025 = vunpack.c.h.b16 %v446
        %v2026 = vunpack.c.l.b16 %v447
        %v2027 = vunpack.c.h.b16 %v447
        %v2028 = vunpack.c.l.b16 %v448
        %v2029 = vunpack.c.h.b16 %v448
        %v2030 = vunpack.c.l.b16 %v449
        %v2031 = vunpack.c.h.b16 %v449
        %v2032 = vunpack.c.l.b16 %v450
        %v2033 = vunpack.c.h.b16 %v450
        %v2034 = vunpack.c.l.b16 %v451
        %v2035 = vunpack.c.h.b16 %v451
        %v2036 = vpack.c.b16 %v2004, %v2004
        %v2037 = vpack.c.b16 %v2005, %v2005
        %v2038 = vpack.c.b16 %v2006, %v2006
        %v2039 = vpack.c.b16 %v2007, %v2007
        %v2040 = vpack.c.b16 %v2008, %v2008
        %v2041 = vpack.c.b16 %v2009, %v2009
        %v2042 = vpack.c.b16 %v2010, %v2010
        %v2043 = vpack.c.b16 %v2011, %v2011
        %v2044 = vpack.c.b16 %v2012, %v2012
        %v2045 = vpack.c.b16 %v2013, %v2013
        %v2046 = vpack.c.b16 %v2014, %v2014
        %v2047 = vpack.c.b16 %v2015, %v2015
        %v2048 = vpack.c.b16 %v2016, %v2016
        %v2049 = vpack.c.b16 %v2017, %v2017
        %v2050 = vpack.c.b16 %v2018, %v2018
        %v2051 = vpack.c.b16 %v2019, %v2019
        %v2052 = vpack.c.b16 %v2020, %v2020
        %v2053 = vpack.c.b16 %v2021, %v2021
        %v2054 = vpack.c.b16 %v2022, %v2022
        %v2055 = vpack.c.b16 %v2023, %v2023
        %v2056 = vpack.c.b16 %v2024, %v2024
        %v2057 = vpack.c.b16 %v2025, %v2025
        %v2058 = vpack.c.b16 %v2026, %v2026
        %v2059 = vpack.c.b16 %v2027, %v2027
        %v2060 = vpack.c.b16 %v2028, %v2028
        %v2061 = vpack.c.b16 %v2029, %v2029
        %v2062 = vpack.c.b16 %v2030, %v2030
        %v2063 = vpack.c.b16 %v2031, %v2031
        %v2064 = vpack.c.b16 %v2032, %v2032
        %v2065 = vpack.c.b16 %v2033, %v2033
        %v2066 = vpack.c.b16 %v2034, %v2034
        %v2067 = vpack.c.b16 %v2035, %v2035
        %v3636 = vunpack.c.l.b16 %v452
        %v3637 = vunpack.c.h.b16 %v452
        %v3638 = vunpack.c.l.b16 %v453
        %v3639 = vunpack.c.h.b16 %v453
        %v3640 = vunpack.c.l.b16 %v454
        %v3641 = vunpack.c.l.b16 %v455
        %v3642 = vunpack.c.h.b16 %v455
        %v3643 = vunpack.c.l.b16 %v456
        %v3644 = vunpack.c.h.b16 %v456
        %v3645 = vunpack.c.l.b16 %v457
        %v3646 = vunpack.c.l.b16 %v458
        %v3647 = vunpack.c.h.b16 %v458
        %v3648 = vunpack.c.l.b16 %v459
        %v3649 = vunpack.c.h.b16 %v459
        %v3650 = vunpack.c.l.b16 %v460
        %v3651 = vunpack.c.l.b16 %v461
        %v3652 = vunpack.c.h.b16 %v461
        %v3653 = vunpack.c.l.b16 %v462
        %v3654 = vunpack.c.h.b16 %v462
        %v3655 = vunpack.c.l.b16 %v463
        %v3656 = vunpack.c.l.b16 %v464
        %v3657 = vunpack.c.h.b16 %v464
        %v3658 = vunpack.c.l.b16 %v465
        %v3659 = vunpack.c.h.b16 %v465
        %v3660 = vunpack.c.l.b16 %v466
        %v3661 = vunpack.c.l.b16 %v467
        %v3662 = vunpack.c.h.b16 %v467
        %v3663 = vunpack.c.l.b16 %v468
        %v3664 = vunpack.c.h.b16 %v468
        %v3665 = vunpack.c.l.b16 %v469
        %v3666 = vunpack.c.l.b16 %v470
        %v3667 = vunpack.c.h.b16 %v470
        %v3668 = vunpack.c.l.b16 %v471
        %v3669 = vunpack.c.h.b16 %v471
        %v3670 = vunpack.c.l.b16 %v472
        %v3671 = vunpack.c.l.b16 %v473
        %v3672 = vunpack.c.h.b16 %v473
        %v3673 = vunpack.c.l.b16 %v474
        %v3674 = vunpack.c.h.b16 %v474
        %v3675 = vunpack.c.l.b16 %v475
        %v3676 = vunpack.c.l.b16 %v476
        %v3677 = vunpack.c.h.b16 %v476
        %v3678 = vunpack.c.l.b16 %v477
        %v3679 = vunpack.c.h.b16 %v477
        %v3680 = vunpack.c.l.b16 %v478
        %v3681 = vunpack.c.l.b16 %v479
        %v3682 = vunpack.c.h.b16 %v479
        %v3683 = vunpack.c.l.b16 %v480
        %v3684 = vunpack.c.h.b16 %v480
        %v3685 = vunpack.c.l.b16 %v481
        %v3686 = vunpack.c.l.b16 %v482
        %v3687 = vunpack.c.h.b16 %v482
        %v3688 = vunpack.c.l.b16 %v483
        %v3689 = vunpack.c.h.b16 %v483
        %v3690 = vunpack.c.l.b16 %v484
        %v3691 = vunpack.c.l.b16 %v485
        %v3692 = vunpack.c.h.b16 %v485
        %v3693 = vunpack.c.l.b16 %v486
        %v3694 = vunpack.c.h.b16 %v486
        %v3695 = vunpack.c.l.b16 %v487
        %v3696 = vunpack.c.l.b16 %v488
        %v3697 = vunpack.c.h.b16 %v488
        %v3698 = vunpack.c.l.b16 %v489
        %v3699 = vunpack.c.h.b16 %v489
        %v3700 = vunpack.c.l.b16 %v490
        %v3701 = vunpack.c.l.b16 %v491
        %v3702 = vunpack.c.h.b16 %v491
        %v3703 = vunpack.c.l.b16 %v492
        %v3704 = vunpack.c.h.b16 %v492
        %v3705 = vunpack.c.l.b16 %v493
        %v3706 = vunpack.c.l.b16 %v494
        %v3707 = vunpack.c.h.b16 %v494
        %v3708 = vunpack.c.l.b16 %v495
        %v3709 = vunpack.c.h.b16 %v495
        %v3710 = vunpack.c.l.b16 %v496
        %v3711 = vunpack.c.l.b16 %v497
        %v3712 = vunpack.c.h.b16 %v497
        %v3713 = vunpack.c.l.b16 %v498
        %v3714 = vunpack.c.h.b16 %v498
        %v3715 = vunpack.c.l.b16 %v499
        %v3716 = vunpack.c.l.b16 %v500
        %v3717 = vunpack.c.h.b16 %v500
        %v3718 = vunpack.c.l.b16 %v501
        %v3719 = vunpack.c.h.b16 %v501
        %v3720 = vunpack.c.l.b16 %v502
        %v3721 = vunpack.c.l.b16 %v503
        %v3722 = vunpack.c.h.b16 %v503
        %v3723 = vunpack.c.l.b16 %v504
        %v3724 = vunpack.c.h.b16 %v504
        %v3725 = vunpack.c.l.b16 %v505
        %v3726 = vunpack.c.l.b16 %v506
        %v3727 = vunpack.c.h.b16 %v506
        %v3728 = vunpack.c.l.b16 %v507
        %v3729 = vunpack.c.h.b16 %v507
        %v3730 = vunpack.c.l.b16 %v508
        %v3731 = vunpack.c.l.b16 %v509
        %v3732 = vunpack.c.h.b16 %v509
        %v3733 = vunpack.c.l.b16 %v510
        %v3734 = vunpack.c.h.b16 %v510
        %v3735 = vunpack.c.l.b16 %v511
        %v3736 = vunpack.c.l.b16 %v512
        %v3737 = vunpack.c.h.b16 %v512
        %v3738 = vunpack.c.l.b16 %v513
        %v3739 = vunpack.c.h.b16 %v513
        %v3740 = vunpack.c.l.b16 %v514
        %v3741 = vunpack.c.l.b16 %v515
        %v3742 = vunpack.c.h.b16 %v515
        %v3743 = vunpack.c.l.b16 %v516
        %v3744 = vunpack.c.h.b16 %v516
        %v3745 = vunpack.c.l.b16 %v517
        %v3746 = vunpack.c.l.b16 %v518
        %v3747 = vunpack.c.h.b16 %v518
        %v3748 = vunpack.c.l.b16 %v519
        %v3749 = vunpack.c.h.b16 %v519
        %v3750 = vunpack.c.l.b16 %v520
        %v3751 = vunpack.c.l.b16 %v521
        %v3752 = vunpack.c.h.b16 %v521
        %v3753 = vunpack.c.l.b16 %v522
        %v3754 = vunpack.c.h.b16 %v522
        %v3755 = vunpack.c.l.b16 %v523
        %v3756 = vunpack.c.l.b16 %v524
        %v3757 = vunpack.c.h.b16 %v524
        %v3758 = vunpack.c.l.b16 %v525
        %v3759 = vunpack.c.h.b16 %v525
        %v3760 = vunpack.c.l.b16 %v526
        %v3761 = vunpack.c.l.b16 %v527
        %v3762 = vunpack.c.h.b16 %v527
        %v3763 = vunpack.c.l.b16 %v528
        %v3764 = vunpack.c.h.b16 %v528
        %v3765 = vunpack.c.l.b16 %v529
        %v3766 = vunpack.c.l.b16 %v530
        %v3767 = vunpack.c.h.b16 %v530
        %v3768 = vunpack.c.l.b16 %v531
        %v3769 = vunpack.c.h.b16 %v531
        %v3770 = vunpack.c.l.b16 %v532
        %v3771 = vunpack.c.l.b16 %v533
        %v3772 = vunpack.c.h.b16 %v533
        %v3773 = vunpack.c.l.b16 %v534
        %v3774 = vunpack.c.h.b16 %v534
        %v3775 = vunpack.c.l.b16 %v535
        %v3776 = vunpack.c.l.b16 %v536
        %v3777 = vunpack.c.h.b16 %v536
        %v3778 = vunpack.c.l.b16 %v537
        %v3779 = vunpack.c.h.b16 %v537
        %v3780 = vunpack.c.l.b16 %v538
        %v3781 = vunpack.c.l.b16 %v539
        %v3782 = vunpack.c.h.b16 %v539
        %v3783 = vunpack.c.l.b16 %v540
        %v3784 = vunpack.c.h.b16 %v540
        %v3785 = vunpack.c.l.b16 %v541
        %v3786 = vunpack.c.l.b16 %v542
        %v3787 = vunpack.c.h.b16 %v542
        %v3788 = vunpack.c.l.b16 %v543
        %v3789 = vunpack.c.h.b16 %v543
        %v3790 = vunpack.c.l.b16 %v544
        %v3791 = vunpack.c.l.b16 %v545
        %v3792 = vunpack.c.h.b16 %v545
        %v3793 = vunpack.c.l.b16 %v546
        %v3794 = vunpack.c.h.b16 %v546
        %v3795 = vunpack.c.l.b16 %v547
        %v3796 = vunpack.c.l.b16 %v548
        %v3797 = vunpack.c.h.b16 %v548
        %v3798 = vunpack.c.l.b16 %v549
        %v3799 = vunpack.c.h.b16 %v549
        %v3800 = vunpack.c.l.b16 %v550
        %v3801 = vunpack.c.l.b16 %v551
        %v3802 = vunpack.c.h.b16 %v551
        %v3803 = vunpack.c.l.b16 %v552
        %v3804 = vunpack.c.h.b16 %v552
        %v3805 = vunpack.c.l.b16 %v553
        %v3806 = vunpack.c.l.b16 %v554
        %v3807 = vunpack.c.h.b16 %v554
        %v3808 = vunpack.c.l.b16 %v555
        %v3809 = vunpack.c.h.b16 %v555
        %v3810 = vunpack.c.l.b16 %v556
        %v3811 = vunpack.c.l.b16 %v557
        %v3812 = vunpack.c.h.b16 %v557
        %v3813 = vunpack.c.l.b16 %v558
        %v3814 = vunpack.c.h.b16 %v558
        %v3815 = vunpack.c.l.b16 %v559
        %v3816 = vunpack.c.l.b16 %v560
        %v3817 = vunpack.c.h.b16 %v560
        %v3818 = vunpack.c.l.b16 %v561
        %v3819 = vunpack.c.h.b16 %v561
        %v3820 = vunpack.c.l.b16 %v562
        %v3821 = vunpack.c.l.b16 %v563
        %v3822 = vunpack.c.h.b16 %v563
        %v3823 = vunpack.c.l.b16 %v564
        %v3824 = vunpack.c.h.b16 %v564
        %v3825 = vunpack.c.l.b16 %v565
        %v3826 = vunpack.c.l.b16 %v566
        %v3827 = vunpack.c.h.b16 %v566
        %v3828 = vunpack.c.l.b16 %v567
        %v3829 = vunpack.c.h.b16 %v567
        %v3830 = vunpack.c.l.b16 %v568
        %v3831 = vunpack.c.l.b16 %v569
        %v3832 = vunpack.c.h.b16 %v569
        %v3833 = vunpack.c.l.b16 %v570
        %v3834 = vunpack.c.h.b16 %v570
        %v3835 = vunpack.c.l.b16 %v571
        %v3836 = vunpack.c.l.b16 %v572
        %v3837 = vunpack.c.h.b16 %v572
        %v3838 = vunpack.c.l.b16 %v573
        %v3839 = vunpack.c.h.b16 %v573
        %v3840 = vunpack.c.l.b16 %v574
        %v3841 = vunpack.c.l.b16 %v575
        %v3842 = vunpack.c.h.b16 %v575
        %v3843 = vunpack.c.l.b16 %v576
        %v3844 = vunpack.c.h.b16 %v576
        %v3845 = vunpack.c.l.b16 %v577
        %v3846 = vunpack.c.l.b16 %v578
        %v3847 = vunpack.c.h.b16 %v578
        %v3848 = vunpack.c.l.b16 %v579
        %v3849 = vunpack.c.h.b16 %v579
        %v3850 = vunpack.c.l.b16 %v580
        %v3851 = vunpack.c.l.b16 %v581
        %v3852 = vunpack.c.h.b16 %v581
        %v3853 = vunpack.c.l.b16 %v582
        %v3854 = vunpack.c.h.b16 %v582
        %v3855 = vunpack.c.l.b16 %v583
        %v3856 = vunpack.c.l.b16 %v584
        %v3857 = vunpack.c.h.b16 %v584
        %v3858 = vunpack.c.l.b16 %v585
        %v3859 = vunpack.c.h.b16 %v585
        %v3860 = vunpack.c.l.b16 %v586
        %v3861 = vunpack.c.l.b16 %v587
        %v3862 = vunpack.c.h.b16 %v587
        %v3863 = vunpack.c.l.b16 %v588
        %v3864 = vunpack.c.h.b16 %v588
        %v3865 = vunpack.c.l.b16 %v589
        %v3866 = vunpack.c.l.b16 %v590
        %v3867 = vunpack.c.h.b16 %v590
        %v3868 = vunpack.c.l.b16 %v591
        %v3869 = vunpack.c.h.b16 %v591
        %v3870 = vunpack.c.l.b16 %v592
        %v3871 = vunpack.c.l.b16 %v593
        %v3872 = vunpack.c.h.b16 %v593
        %v3873 = vunpack.c.l.b16 %v594
        %v3874 = vunpack.c.h.b16 %v594
        %v3875 = vunpack.c.l.b16 %v595
        %v3876 = vunpack.c.l.b16 %v596
        %v3877 = vunpack.c.h.b16 %v596
        %v3878 = vunpack.c.l.b16 %v597
        %v3879 = vunpack.c.h.b16 %v597
        %v3880 = vunpack.c.l.b16 %v598
        %v3881 = vunpack.c.l.b16 %v599
        %v3882 = vunpack.c.h.b16 %v599
        %v3883 = vunpack.c.l.b16 %v600
        %v3884 = vunpack.c.h.b16 %v600
        %v3885 = vunpack.c.l.b16 %v601
        %v3886 = vunpack.c.l.b16 %v602
        %v3887 = vunpack.c.h.b16 %v602
        %v3888 = vunpack.c.l.b16 %v603
        %v3889 = vunpack.c.h.b16 %v603
        %v3890 = vunpack.c.l.b16 %v604
        %v3891 = vunpack.c.l.b16 %v605
        %v3892 = vunpack.c.h.b16 %v605
        %v3893 = vunpack.c.l.b16 %v606
        %v3894 = vunpack.c.h.b16 %v606
        %v3895 = vunpack.c.l.b16 %v607
        %v3896 = vunpack.c.l.b16 %v608
        %v3897 = vunpack.c.h.b16 %v608
        %v3898 = vunpack.c.l.b16 %v609
        %v3899 = vunpack.c.h.b16 %v609
        %v3900 = vunpack.c.l.b16 %v610
        %v3901 = vunpack.c.l.b16 %v611
        %v3902 = vunpack.c.h.b16 %v611
        %v3903 = vunpack.c.l.b16 %v612
        %v3904 = vunpack.c.h.b16 %v612
        %v3905 = vunpack.c.l.b16 %v613
        %v3906 = vunpack.c.l.b16 %v614
        %v3907 = vunpack.c.h.b16 %v614
        %v3908 = vunpack.c.l.b16 %v615
        %v3909 = vunpack.c.h.b16 %v615
        %v3910 = vunpack.c.l.b16 %v616
        %v3911 = vunpack.c.l.b16 %v617
        %v3912 = vunpack.c.h.b16 %v617
        %v3913 = vunpack.c.l.b16 %v618
        %v3914 = vunpack.c.h.b16 %v618
        %v3915 = vunpack.c.l.b16 %v619
        %v3916 = vunpack.c.l.b16 %v620
        %v3917 = vunpack.c.h.b16 %v620
        %v3918 = vunpack.c.l.b16 %v621
        %v3919 = vunpack.c.h.b16 %v621
        %v3920 = vunpack.c.l.b16 %v622
        %v3921 = vunpack.c.l.b16 %v623
        %v3922 = vunpack.c.h.b16 %v623
        %v3923 = vunpack.c.l.b16 %v624
        %v3924 = vunpack.c.h.b16 %v624
        %v3925 = vunpack.c.l.b16 %v625
        %v3926 = vunpack.c.l.b16 %v626
        %v3927 = vunpack.c.h.b16 %v626
        %v3928 = vunpack.c.l.b16 %v627
        %v3929 = vunpack.c.h.b16 %v627
        %v3930 = vunpack.c.l.b16 %v628
        %v3931 = vunpack.c.l.b16 %v629
        %v3932 = vunpack.c.h.b16 %v629
        %v3933 = vunpack.c.l.b16 %v630
        %v3934 = vunpack.c.h.b16 %v630
        %v3935 = vunpack.c.l.b16 %v631
        %v3936 = vunpack.c.l.b16 %v632
        %v3937 = vunpack.c.h.b16 %v632
        %v3938 = vunpack.c.l.b16 %v633
        %v3939 = vunpack.c.h.b16 %v633
        %v3940 = vunpack.c.l.b16 %v634
        %v3941 = vunpack.c.l.b16 %v635
        %v3942 = vunpack.c.h.b16 %v635
        %v3943 = vunpack.c.l.b16 %v636
        %v3944 = vunpack.c.h.b16 %v636
        %v3945 = vunpack.c.l.b16 %v637
        %v3946 = vunpack.c.l.b16 %v638
        %v3947 = vunpack.c.h.b16 %v638
        %v3948 = vunpack.c.l.b16 %v639
        %v3949 = vunpack.c.h.b16 %v639
        %v3950 = vunpack.c.l.b16 %v640
        %v3951 = vunpack.c.l.b16 %v641
        %v3952 = vunpack.c.h.b16 %v641
        %v3953 = vunpack.c.l.b16 %v642
        %v3954 = vunpack.c.h.b16 %v642
        %v3955 = vunpack.c.l.b16 %v643
        %v3956 = vunpack.c.l.b16 %v644
        %v3957 = vunpack.c.h.b16 %v644
        %v3958 = vunpack.c.l.b16 %v645
        %v3959 = vunpack.c.h.b16 %v645
        %v3960 = vunpack.c.l.b16 %v646
        %v3961 = vunpack.c.l.b16 %v647
        %v3962 = vunpack.c.h.b16 %v647
        %v3963 = vunpack.c.l.b16 %v648
        %v3964 = vunpack.c.h.b16 %v648
        %v3965 = vunpack.c.l.b16 %v649
        %v3966 = vunpack.c.l.b16 %v650
        %v3967 = vunpack.c.h.b16 %v650
        %v3968 = vunpack.c.l.b16 %v651
        %v3969 = vunpack.c.h.b16 %v651
        %v3970 = vunpack.c.l.b16 %v652
        %v3971 = vunpack.c.l.b16 %v653
        %v3972 = vunpack.c.h.b16 %v653
        %v3973 = vunpack.c.l.b16 %v654
        %v3974 = vunpack.c.h.b16 %v654
        %v3975 = vunpack.c.l.b16 %v655
        %v3976 = vunpack.c.l.b16 %v656
        %v3977 = vunpack.c.h.b16 %v656
        %v3978 = vunpack.c.l.b16 %v657
        %v3979 = vunpack.c.h.b16 %v657
        %v3980 = vunpack.c.l.b16 %v658
        %v3981 = vunpack.c.l.b16 %v659
        %v3982 = vunpack.c.h.b16 %v659
        %v3983 = vunpack.c.l.b16 %v660
        %v3984 = vunpack.c.h.b16 %v660
        %v3985 = vunpack.c.l.b16 %v661
        %v3986 = vunpack.c.l.b16 %v662
        %v3987 = vunpack.c.h.b16 %v662
        %v3988 = vunpack.c.l.b16 %v663
        %v3989 = vunpack.c.h.b16 %v663
        %v3990 = vunpack.c.l.b16 %v664
        %v3991 = vunpack.c.l.b16 %v665
        %v3992 = vunpack.c.h.b16 %v665
        %v3993 = vunpack.c.l.b16 %v666
        %v3994 = vunpack.c.h.b16 %v666
        %v3995 = vunpack.c.l.b16 %v667
        %v3996 = vunpack.c.l.b16 %v668
        %v3997 = vunpack.c.h.b16 %v668
        %v3998 = vunpack.c.l.b16 %v669
        %v3999 = vunpack.c.h.b16 %v669
        %v4000 = vunpack.c.l.b16 %v670
        %v4001 = vunpack.c.l.b16 %v671
        %v4002 = vunpack.c.h.b16 %v671
        %v4003 = vunpack.c.l.b16 %v672
        %v4004 = vunpack.c.h.b16 %v672
        %v4005 = vunpack.c.l.b16 %v673
        %v4006 = vunpack.c.l.b16 %v674
        %v4007 = vunpack.c.h.b16 %v674
        %v4008 = vunpack.c.l.b16 %v675
        %v4009 = vunpack.c.h.b16 %v675
        %v4010 = vunpack.c.l.b16 %v676
        %v4011 = vunpack.c.l.b16 %v677
        %v4012 = vunpack.c.h.b16 %v677
        %v4013 = vunpack.c.l.b16 %v678
        %v4014 = vunpack.c.h.b16 %v678
        %v4015 = vunpack.c.l.b16 %v679
        %v4016 = vunpack.c.l.b16 %v680
        %v4017 = vunpack.c.h.b16 %v680
        %v4018 = vunpack.c.l.b16 %v681
        %v4019 = vunpack.c.h.b16 %v681
        %v4020 = vunpack.c.l.b16 %v682
        %v4021 = vunpack.c.l.b16 %v683
        %v4022 = vunpack.c.h.b16 %v683
        %v4023 = vunpack.c.l.b16 %v684
        %v4024 = vunpack.c.h.b16 %v684
        %v4025 = vunpack.c.l.b16 %v685
        %v4026 = vunpack.c.l.b16 %v686
        %v4027 = vunpack.c.h.b16 %v686
        %v4028 = vunpack.c.l.b16 %v687
        %v4029 = vunpack.c.h.b16 %v687
        %v4030 = vunpack.c.l.b16 %v688
        %v4031 = vunpack.c.l.b16 %v689
        %v4032 = vunpack.c.h.b16 %v689
        %v4033 = vunpack.c.l.b16 %v690
        %v4034 = vunpack.c.h.b16 %v690
        %v4035 = vunpack.c.l.b16 %v691
        %v4036 = vunpack.c.l.b16 %v692
        %v4037 = vunpack.c.h.b16 %v692
        %v4038 = vunpack.c.l.b16 %v693
        %v4039 = vunpack.c.h.b16 %v693
        %v4040 = vunpack.c.l.b16 %v694
        %v4041 = vunpack.c.l.b16 %v695
        %v4042 = vunpack.c.h.b16 %v695
        %v4043 = vunpack.c.l.b16 %v696
        %v4044 = vunpack.c.h.b16 %v696
        %v4045 = vunpack.c.l.b16 %v697
        %v4046 = vunpack.c.l.b16 %v698
        %v4047 = vunpack.c.h.b16 %v698
        %v4048 = vunpack.c.l.b16 %v699
        %v4049 = vunpack.c.h.b16 %v699
        %v4050 = vunpack.c.l.b16 %v700
        %v4051 = vunpack.c.l.b16 %v701
        %v4052 = vunpack.c.h.b16 %v701
        %v4053 = vunpack.c.l.b16 %v702
        %v4054 = vunpack.c.h.b16 %v702
        %v4055 = vunpack.c.l.b16 %v703
        %v4056 = vunpack.c.l.b16 %v704
        %v4057 = vunpack.c.h.b16 %v704
        %v4058 = vunpack.c.l.b16 %v705
        %v4059 = vunpack.c.h.b16 %v705
        %v4060 = vunpack.c.l.b16 %v706
        %v4061 = vunpack.c.l.b16 %v707
        %v4062 = vunpack.c.h.b16 %v707
        %v4063 = vunpack.c.l.b16 %v708
        %v4064 = vunpack.c.h.b16 %v708
        %v4065 = vunpack.c.l.b16 %v709
        %v4066 = vunpack.c.l.b16 %v710
        %v4067 = vunpack.c.h.b16 %v710
        %v4068 = vunpack.c.l.b16 %v711
        %v4069 = vunpack.c.h.b16 %v711
        %v4070 = vunpack.c.l.b16 %v712
        %v4071 = vunpack.c.l.b16 %v713
        %v4072 = vunpack.c.h.b16 %v713
        %v4073 = vunpack.c.l.b16 %v714
        %v4074 = vunpack.c.h.b16 %v714
        %v4075 = vunpack.c.l.b16 %v715
        %v4076 = vunpack.c.l.b16 %v716
        %v4077 = vunpack.c.h.b16 %v716
        %v4078 = vunpack.c.l.b16 %v717
        %v4079 = vunpack.c.h.b16 %v717
        %v4080 = vunpack.c.l.b16 %v718
        %v4081 = vunpack.c.l.b16 %v719
        %v4082 = vunpack.c.h.b16 %v719
        %v4083 = vunpack.c.l.b16 %v720
        %v4084 = vunpack.c.h.b16 %v720
        %v4085 = vunpack.c.l.b16 %v721
        %v4086 = vunpack.c.l.b16 %v722
        %v4087 = vunpack.c.h.b16 %v722
        %v4088 = vunpack.c.l.b16 %v723
        %v4089 = vunpack.c.h.b16 %v723
        %v4090 = vunpack.c.l.b16 %v724
        %v4091 = vunpack.c.l.b16 %v725
        %v4092 = vunpack.c.h.b16 %v725
        %v4093 = vunpack.c.l.b16 %v726
        %v4094 = vunpack.c.h.b16 %v726
        %v4095 = vunpack.c.l.b16 %v727
        %v4096 = vunpack.c.l.b16 %v728
        %v4097 = vunpack.c.h.b16 %v728
        %v4098 = vunpack.c.l.b16 %v729
        %v4099 = vunpack.c.h.b16 %v729
        %v4100 = vunpack.c.l.b16 %v730
        %v4101 = vunpack.c.l.b16 %v731
        %v4102 = vunpack.c.h.b16 %v731
        %v4103 = vunpack.c.l.b16 %v732
        %v4104 = vunpack.c.h.b16 %v732
        %v4105 = vunpack.c.l.b16 %v733
        %v4106 = vunpack.c.l.b16 %v734
        %v4107 = vunpack.c.h.b16 %v734
        %v4108 = vunpack.c.l.b16 %v735
        %v4109 = vunpack.c.h.b16 %v735
        %v4110 = vunpack.c.l.b16 %v736
        %v4111 = vunpack.c.l.b16 %v737
        %v4112 = vunpack.c.h.b16 %v737
        %v4113 = vunpack.c.l.b16 %v738
        %v4114 = vunpack.c.h.b16 %v738
        %v4115 = vunpack.c.l.b16 %v739
        %v4116 = vunpack.c.l.b16 %v740
        %v4117 = vunpack.c.h.b16 %v740
        %v4118 = vunpack.c.l.b16 %v741
        %v4119 = vunpack.c.h.b16 %v741
        %v4120 = vunpack.c.l.b16 %v742
        %v4121 = vunpack.c.l.b16 %v743
        %v4122 = vunpack.c.h.b16 %v743
        %v4123 = vunpack.c.l.b16 %v744
        %v4124 = vunpack.c.h.b16 %v744
        %v4125 = vunpack.c.l.b16 %v745
        %v4126 = vunpack.c.l.b16 %v746
        %v4127 = vunpack.c.h.b16 %v746
        %v4128 = vunpack.c.l.b16 %v747
        %v4129 = vunpack.c.h.b16 %v747
        %v4130 = vunpack.c.l.b16 %v748
        %v4131 = vunpack.c.l.b16 %v749
        %v4132 = vunpack.c.h.b16 %v749
        %v4133 = vunpack.c.l.b16 %v750
        %v4134 = vunpack.c.h.b16 %v750
        %v4135 = vunpack.c.l.b16 %v751
        %v4136 = vunpack.c.l.b16 %v752
        %v4137 = vunpack.c.h.b16 %v752
        %v4138 = vunpack.c.l.b16 %v753
        %v4139 = vunpack.c.h.b16 %v753
        %v4140 = vunpack.c.l.b16 %v754
        %v4141 = vunpack.c.l.b16 %v755
        %v4142 = vunpack.c.h.b16 %v755
        %v4143 = vunpack.c.l.b16 %v756
        %v4144 = vunpack.c.h.b16 %v756
        %v4145 = vunpack.c.l.b16 %v757
        %v4146 = vunpack.c.l.b16 %v758
        %v4147 = vunpack.c.h.b16 %v758
        %v4148 = vunpack.c.l.b16 %v759
        %v4149 = vunpack.c.h.b16 %v759
        %v4150 = vunpack.c.l.b16 %v760
        %v4151 = vunpack.c.l.b16 %v761
        %v4152 = vunpack.c.h.b16 %v761
        %v4153 = vunpack.c.l.b16 %v762
        %v4154 = vunpack.c.h.b16 %v762
        %v4155 = vunpack.c.l.b16 %v763
        %v4156 = vunpack.c.l.b16 %v764
        %v4157 = vunpack.c.h.b16 %v764
        %v4158 = vunpack.c.l.b16 %v765
        %v4159 = vunpack.c.h.b16 %v765
        %v4160 = vunpack.c.l.b16 %v766
        %v4161 = vunpack.c.l.b16 %v767
        %v4162 = vunpack.c.h.b16 %v767
        %v4163 = vunpack.c.l.b16 %v768
        %v4164 = vunpack.c.h.b16 %v768
        %v4165 = vunpack.c.l.b16 %v769
        %v4166 = vunpack.c.l.b16 %v770
        %v4167 = vunpack.c.h.b16 %v770
        %v4168 = vunpack.c.l.b16 %v771
        %v4169 = vunpack.c.h.b16 %v771
        %v4170 = vunpack.c.l.b16 %v772
        %v4171 = vunpack.c.l.b16 %v773
        %v4172 = vunpack.c.h.b16 %v773
        %v4173 = vunpack.c.l.b16 %v774
        %v4174 = vunpack.c.h.b16 %v774
        %v4175 = vunpack.c.l.b16 %v775
        %v4176 = vunpack.c.l.b16 %v776
        %v4177 = vunpack.c.h.b16 %v776
        %v4178 = vunpack.c.l.b16 %v777
        %v4179 = vunpack.c.h.b16 %v777
        %v4180 = vunpack.c.l.b16 %v778
        %v4181 = vunpack.c.l.b16 %v779
        %v4182 = vunpack.c.h.b16 %v779
        %v4183 = vunpack.c.l.b16 %v780
        %v4184 = vunpack.c.h.b16 %v780
        %v4185 = vunpack.c.l.b16 %v781
        %v4186 = vunpack.c.l.b16 %v782
        %v4187 = vunpack.c.h.b16 %v782
        %v4188 = vunpack.c.l.b16 %v783
        %v4189 = vunpack.c.h.b16 %v783
        %v4190 = vunpack.c.l.b16 %v784
        %v4191 = vunpack.c.l.b16 %v785
        %v4192 = vunpack.c.h.b16 %v785
        %v4193 = vunpack.c.l.b16 %v786
        %v4194 = vunpack.c.h.b16 %v786
        %v4195 = vunpack.c.l.b16 %v787
        %v4196 = vunpack.c.l.b16 %v788
        %v4197 = vunpack.c.h.b16 %v788
        %v4198 = vunpack.c.l.b16 %v789
        %v4199 = vunpack.c.h.b16 %v789
        %v4200 = vunpack.c.l.b16 %v790
        %v4201 = vunpack.c.l.b16 %v791
        %v4202 = vunpack.c.h.b16 %v791
        %v4203 = vunpack.c.l.b16 %v792
        %v4204 = vunpack.c.h.b16 %v792
        %v4205 = vunpack.c.l.b16 %v793
        %v4206 = vunpack.c.l.b16 %v794
        %v4207 = vunpack.c.h.b16 %v794
        %v4208 = vunpack.c.l.b16 %v795
        %v4209 = vunpack.c.h.b16 %v795
        %v4210 = vunpack.c.l.b16 %v796
        %v4211 = vunpack.c.l.b16 %v797
        %v4212 = vunpack.c.h.b16 %v797
        %v4213 = vunpack.c.l.b16 %v798
        %v4214 = vunpack.c.h.b16 %v798
        %v4215 = vunpack.c.l.b16 %v799
        %v4216 = vunpack.c.l.b16 %v800
        %v4217 = vunpack.c.h.b16 %v800
        %v4218 = vunpack.c.l.b16 %v801
        %v4219 = vunpack.c.h.b16 %v801
        %v4220 = vunpack.c.l.b16 %v802
        %v4221 = vunpack.c.l.b16 %v803
        %v4222 = vunpack.c.h.b16 %v803
        %v4223 = vunpack.c.l.b16 %v804
        %v4224 = vunpack.c.h.b16 %v804
        %v4225 = vunpack.c.l.b16 %v805
        %v4226 = vunpack.c.l.b16 %v806
        %v4227 = vunpack.c.h.b16 %v806
        %v4228 = vunpack.c.l.b16 %v807
        %v4229 = vunpack.c.h.b16 %v807
        %v4230 = vunpack.c.l.b16 %v808
        %v4231 = vunpack.c.l.b16 %v809
        %v4232 = vunpack.c.h.b16 %v809
        %v4233 = vunpack.c.l.b16 %v810
        %v4234 = vunpack.c.h.b16 %v810
        %v4235 = vunpack.c.l.b16 %v811
        %v4236 = vunpack.c.l.b16 %v812
        %v4237 = vunpack.c.h.b16 %v812
        %v4238 = vunpack.c.l.b16 %v813
        %v4239 = vunpack.c.h.b16 %v813
        %v4240 = vunpack.c.l.b16 %v814
        %v4241 = vunpack.c.l.b16 %v815
        %v4242 = vunpack.c.h.b16 %v815
        %v4243 = vunpack.c.l.b16 %v816
        %v4244 = vunpack.c.h.b16 %v816
        %v4245 = vunpack.c.l.b16 %v817
        %v4246 = vunpack.c.l.b16 %v818
        %v4247 = vunpack.c.h.b16 %v818
        %v4248 = vunpack.c.l.b16 %v819
        %v4249 = vunpack.c.h.b16 %v819
        %v4250 = vunpack.c.l.b16 %v820
        %v4251 = vunpack.c.l.b16 %v821
        %v4252 = vunpack.c.h.b16 %v821
        %v4253 = vunpack.c.l.b16 %v822
        %v4254 = vunpack.c.h.b16 %v822
        %v4255 = vunpack.c.l.b16 %v823
        %v4256 = vunpack.c.l.b16 %v824
        %v4257 = vunpack.c.h.b16 %v824
        %v4258 = vunpack.c.l.b16 %v825
        %v4259 = vunpack.c.h.b16 %v825
        %v4260 = vunpack.c.l.b16 %v826
        %v4261 = vunpack.c.l.b16 %v827
        %v4262 = vunpack.c.h.b16 %v827
        %v4263 = vunpack.c.l.b16 %v828
        %v4264 = vunpack.c.h.b16 %v828
        %v4265 = vunpack.c.l.b16 %v829
        %v4266 = vunpack.c.l.b16 %v830
        %v4267 = vunpack.c.h.b16 %v830
        %v4268 = vunpack.c.l.b16 %v831
        %v4269 = vunpack.c.h.b16 %v831
        %v4270 = vunpack.c.l.b16 %v832
        %v4271 = vunpack.c.l.b16 %v833
        %v4272 = vunpack.c.h.b16 %v833
        %v4273 = vunpack.c.l.b16 %v834
        %v4274 = vunpack.c.h.b16 %v834
        %v4275 = vunpack.c.l.b16 %v835
        %v4276 = vunpack.c.l.b16 %v836
        %v4277 = vunpack.c.h.b16 %v836
        %v4278 = vunpack.c.l.b16 %v837
        %v4279 = vunpack.c.h.b16 %v837
        %v4280 = vunpack.c.l.b16 %v838
        %v4281 = vunpack.c.l.b16 %v839
        %v4282 = vunpack.c.h.b16 %v839
        %v4283 = vunpack.c.l.b16 %v840
        %v4284 = vunpack.c.h.b16 %v840
        %v4285 = vunpack.c.l.b16 %v841
        %v4286 = vunpack.c.l.b16 %v842
        %v4287 = vunpack.c.h.b16 %v842
        %v4288 = vunpack.c.l.b16 %v843
        %v4289 = vunpack.c.h.b16 %v843
        %v4290 = vunpack.c.l.b16 %v844
        %v4291 = vunpack.c.l.b16 %v845
        %v4292 = vunpack.c.h.b16 %v845
        %v4293 = vunpack.c.l.b16 %v846
        %v4294 = vunpack.c.h.b16 %v846
        %v4295 = vunpack.c.l.b16 %v847
        %v4296 = vunpack.c.l.b16 %v848
        %v4297 = vunpack.c.h.b16 %v848
        %v4298 = vunpack.c.l.b16 %v849
        %v4299 = vunpack.c.h.b16 %v849
        %v4300 = vunpack.c.l.b16 %v850
        %v4301 = vunpack.c.l.b16 %v851
        %v4302 = vunpack.c.h.b16 %v851
        %v4303 = vunpack.c.l.b16 %v852
        %v4304 = vunpack.c.h.b16 %v852
        %v4305 = vunpack.c.l.b16 %v853
        %v4306 = vunpack.c.l.b16 %v854
        %v4307 = vunpack.c.h.b16 %v854
        %v4308 = vunpack.c.l.b16 %v855
        %v4309 = vunpack.c.h.b16 %v855
        %v4310 = vunpack.c.l.b16 %v856
        %v4311 = vunpack.c.l.b16 %v857
        %v4312 = vunpack.c.h.b16 %v857
        %v4313 = vunpack.c.l.b16 %v858
        %v4314 = vunpack.c.h.b16 %v858
        %v4315 = vunpack.c.l.b16 %v859
        %v4316 = vunpack.c.l.b16 %v860
        %v4317 = vunpack.c.h.b16 %v860
        %v4318 = vunpack.c.l.b16 %v861
        %v4319 = vunpack.c.h.b16 %v861
        %v4320 = vunpack.c.l.b16 %v862
        %v4321 = vunpack.c.l.b16 %v863
        %v4322 = vunpack.c.h.b16 %v863
        %v4323 = vunpack.c.l.b16 %v864
        %v4324 = vunpack.c.h.b16 %v864
        %v4325 = vunpack.c.l.b16 %v865
        %v4326 = vunpack.c.l.b16 %v866
        %v4327 = vunpack.c.h.b16 %v866
        %v4328 = vunpack.c.l.b16 %v867
        %v4329 = vunpack.c.h.b16 %v867
        %v4330 = vunpack.c.l.b16 %v868
        %v4331 = vunpack.c.l.b16 %v869
        %v4332 = vunpack.c.h.b16 %v869
        %v4333 = vunpack.c.l.b16 %v870
        %v4334 = vunpack.c.h.b16 %v870
        %v4335 = vunpack.c.l.b16 %v871
        %v4336 = vunpack.c.l.b16 %v872
        %v4337 = vunpack.c.h.b16 %v872
        %v4338 = vunpack.c.l.b16 %v873
        %v4339 = vunpack.c.h.b16 %v873
        %v4340 = vunpack.c.l.b16 %v874
        %v4341 = vunpack.c.l.b16 %v875
        %v4342 = vunpack.c.h.b16 %v875
        %v4343 = vunpack.c.l.b16 %v876
        %v4344 = vunpack.c.h.b16 %v876
        %v4345 = vunpack.c.l.b16 %v877
        %v4346 = vunpack.c.l.b16 %v878
        %v4347 = vunpack.c.h.b16 %v878
        %v4348 = vunpack.c.l.b16 %v879
        %v4349 = vunpack.c.h.b16 %v879
        %v4350 = vunpack.c.l.b16 %v880
        %v4351 = vunpack.c.l.b16 %v881
        %v4352 = vunpack.c.h.b16 %v881
        %v4353 = vunpack.c.l.b16 %v882
        %v4354 = vunpack.c.h.b16 %v882
        %v4355 = vunpack.c.l.b16 %v883
        %v4356 = vunpack.c.l.b16 %v884
        %v4357 = vunpack.c.h.b16 %v884
        %v4358 = vunpack.c.l.b16 %v885
        %v4359 = vunpack.c.h.b16 %v885
        %v4360 = vunpack.c.l.b16 %v886
        %v4361 = vunpack.c.l.b16 %v887
        %v4362 = vunpack.c.h.b16 %v887
        %v4363 = vunpack.c.l.b16 %v888
        %v4364 = vunpack.c.h.b16 %v888
        %v4365 = vunpack.c.l.b16 %v889
        %v4366 = vunpack.c.l.b16 %v890
        %v4367 = vunpack.c.h.b16 %v890
        %v4368 = vunpack.c.l.b16 %v891
        %v4369 = vunpack.c.h.b16 %v891
        %v4370 = vunpack.c.l.b16 %v892
        %v4371 = vunpack.c.l.b16 %v893
        %v4372 = vunpack.c.h.b16 %v893
        %v4373 = vunpack.c.l.b16 %v894
        %v4374 = vunpack.c.h.b16 %v894
        %v4375 = vunpack.c.l.b16 %v895
        %v4376 = vunpack.c.l.b16 %v896
        %v4377 = vunpack.c.h.b16 %v896
        %v4378 = vunpack.c.l.b16 %v897
        %v4379 = vunpack.c.h.b16 %v897
        %v4380 = vunpack.c.l.b16 %v898
        %v4381 = vunpack.c.l.b16 %v899
        %v4382 = vunpack.c.h.b16 %v899
        %v4383 = vunpack.c.l.b16 %v900
        %v4384 = vunpack.c.h.b16 %v900
        %v4385 = vunpack.c.l.b16 %v901
        %v4386 = vunpack.c.l.b16 %v902
        %v4387 = vunpack.c.h.b16 %v902
        %v4388 = vunpack.c.l.b16 %v903
        %v4389 = vunpack.c.h.b16 %v903
        %v4390 = vunpack.c.l.b16 %v904
        %v4391 = vunpack.c.l.b16 %v905
        %v4392 = vunpack.c.h.b16 %v905
        %v4393 = vunpack.c.l.b16 %v906
        %v4394 = vunpack.c.h.b16 %v906
        %v4395 = vunpack.c.l.b16 %v907
        %v4396 = vunpack.c.l.b16 %v908
        %v4397 = vunpack.c.h.b16 %v908
        %v4398 = vunpack.c.l.b16 %v909
        %v4399 = vunpack.c.h.b16 %v909
        %v4400 = vunpack.c.l.b16 %v910
        %v4401 = vunpack.c.l.b16 %v911
        %v4402 = vunpack.c.h.b16 %v911
        %v4403 = vunpack.c.l.b16 %v912
        %v4404 = vunpack.c.h.b16 %v912
        %v4405 = vunpack.c.l.b16 %v913
        %v4406 = vunpack.c.l.b16 %v914
        %v4407 = vunpack.c.h.b16 %v914
        %v4408 = vunpack.c.l.b16 %v915
        %v4409 = vunpack.c.h.b16 %v915
        %v4410 = vunpack.c.l.b16 %v916
        %v4411 = vunpack.c.l.b16 %v917
        %v4412 = vunpack.c.h.b16 %v917
        %v4413 = vunpack.c.l.b16 %v918
        %v4414 = vunpack.c.h.b16 %v918
        %v4415 = vunpack.c.l.b16 %v919
        %v4416 = vunpack.c.l.b16 %v920
        %v4417 = vunpack.c.h.b16 %v920
        %v4418 = vunpack.c.l.b16 %v921
        %v4419 = vunpack.c.h.b16 %v921
        %v4420 = vunpack.c.l.b16 %v922
        %v4421 = vunpack.c.l.b16 %v923
        %v4422 = vunpack.c.h.b16 %v923
        %v4423 = vunpack.c.l.b16 %v924
        %v4424 = vunpack.c.h.b16 %v924
        %v4425 = vunpack.c.l.b16 %v925
        %v4426 = vunpack.c.l.b16 %v926
        %v4427 = vunpack.c.h.b16 %v926
        %v4428 = vunpack.c.l.b16 %v927
        %v4429 = vunpack.c.h.b16 %v927
        %v4430 = vunpack.c.l.b16 %v928
        %v4431 = vunpack.c.l.b16 %v929
        %v4432 = vunpack.c.h.b16 %v929
        %v4433 = vunpack.c.l.b16 %v930
        %v4434 = vunpack.c.h.b16 %v930
        %v4435 = vunpack.c.l.b16 %v931
        %v4436 = vunpack.c.l.b16 %v932
        %v4437 = vunpack.c.h.b16 %v932
        %v4438 = vunpack.c.l.b16 %v933
        %v4439 = vunpack.c.h.b16 %v933
        %v4440 = vunpack.c.l.b16 %v934
        %v4441 = vunpack.c.l.b16 %v935
        %v4442 = vunpack.c.h.b16 %v935
        %v4443 = vunpack.c.l.b16 %v936
        %v4444 = vunpack.c.h.b16 %v936
        %v4445 = vunpack.c.l.b16 %v937
        %v4446 = vunpack.c.l.b16 %v938
        %v4447 = vunpack.c.h.b16 %v938
        %v4448 = vunpack.c.l.b16 %v939
        %v4449 = vunpack.c.h.b16 %v939
        %v4450 = vunpack.c.l.b16 %v940
        %v4451 = vunpack.c.l.b16 %v941
        %v4452 = vunpack.c.h.b16 %v941
        %v4453 = vunpack.c.l.b16 %v942
        %v4454 = vunpack.c.h.b16 %v942
        %v4455 = vunpack.c.l.b16 %v943
        %v4456 = vunpack.c.l.b16 %v944
        %v4457 = vunpack.c.h.b16 %v944
        %v4458 = vunpack.c.l.b16 %v945
        %v4459 = vunpack.c.h.b16 %v945
        %v4460 = vunpack.c.l.b16 %v946
        %v4461 = vunpack.c.l.b16 %v947
        %v4462 = vunpack.c.h.b16 %v947
        %v4463 = vunpack.c.l.b16 %v948
        %v4464 = vunpack.c.h.b16 %v948
        %v4465 = vunpack.c.l.b16 %v949
        %v4466 = vunpack.c.l.b16 %v950
        %v4467 = vunpack.c.h.b16 %v950
        %v4468 = vunpack.c.l.b16 %v951
        %v4469 = vunpack.c.h.b16 %v951
        %v4470 = vunpack.c.l.b16 %v952
        %v4471 = vunpack.c.l.b16 %v953
        %v4472 = vunpack.c.h.b16 %v953
        %v4473 = vunpack.c.l.b16 %v954
        %v4474 = vunpack.c.h.b16 %v954
        %v4475 = vunpack.c.l.b16 %v955
        %v4476 = vunpack.c.l.b16 %v956
        %v4477 = vunpack.c.h.b16 %v956
        %v4478 = vunpack.c.l.b16 %v957
        %v4479 = vunpack.c.h.b16 %v957
        %v4480 = vunpack.c.l.b16 %v958
        %v4481 = vunpack.c.l.b16 %v959
        %v4482 = vunpack.c.h.b16 %v959
        %v4483 = vunpack.c.l.b16 %v960
        %v4484 = vunpack.c.h.b16 %v960
        %v4485 = vunpack.c.l.b16 %v961
        %v4486 = vunpack.c.l.b16 %v962
        %v4487 = vunpack.c.h.b16 %v962
        %v4488 = vunpack.c.l.b16 %v963
        %v4489 = vunpack.c.h.b16 %v963
        %v4490 = vunpack.c.l.b16 %v964
        %v4491 = vunpack.c.l.b16 %v965
        %v4492 = vunpack.c.h.b16 %v965
        %v4493 = vunpack.c.l.b16 %v966
        %v4494 = vunpack.c.h.b16 %v966
        %v4495 = vunpack.c.l.b16 %v967
        %v4496 = vunpack.c.l.b16 %v968
        %v4497 = vunpack.c.h.b16 %v968
        %v4498 = vunpack.c.l.b16 %v969
        %v4499 = vunpack.c.h.b16 %v969
        %v4500 = vunpack.c.l.b16 %v970
        %v4501 = vunpack.c.l.b16 %v971
        %v4502 = vunpack.c.h.b16 %v971
        %v4503 = vunpack.c.l.b16 %v972
        %v4504 = vunpack.c.h.b16 %v972
        %v4505 = vunpack.c.l.b16 %v973
        %v4506 = vunpack.c.l.b16 %v974
        %v4507 = vunpack.c.h.b16 %v974
        %v4508 = vunpack.c.l.b16 %v975
        %v4509 = vunpack.c.h.b16 %v975
        %v4510 = vunpack.c.l.b16 %v976
        %v4511 = vunpack.c.l.b16 %v977
        %v4512 = vunpack.c.h.b16 %v977
        %v4513 = vunpack.c.l.b16 %v978
        %v4514 = vunpack.c.h.b16 %v978
        %v4515 = vunpack.c.l.b16 %v979
        %v4516 = vunpack.c.l.b16 %v980
        %v4517 = vunpack.c.h.b16 %v980
        %v4518 = vunpack.c.l.b16 %v981
        %v4519 = vunpack.c.h.b16 %v981
        %v4520 = vunpack.c.l.b16 %v982
        %v4521 = vunpack.c.l.b16 %v983
        %v4522 = vunpack.c.h.b16 %v983
        %v4523 = vunpack.c.l.b16 %v984
        %v4524 = vunpack.c.h.b16 %v984
        %v4525 = vunpack.c.l.b16 %v985
        %v4526 = vunpack.c.l.b16 %v986
        %v4527 = vunpack.c.h.b16 %v986
        %v4528 = vunpack.c.l.b16 %v987
        %v4529 = vunpack.c.h.b16 %v987
        %v4530 = vunpack.c.l.b16 %v988
        %v4531 = vunpack.c.l.b16 %v989
        %v4532 = vunpack.c.h.b16 %v989
        %v4533 = vunpack.c.l.b16 %v990
        %v4534 = vunpack.c.h.b16 %v990
        %v4535 = vunpack.c.l.b16 %v991
        %v4536 = vunpack.c.l.b16 %v992
        %v4537 = vunpack.c.h.b16 %v992
        %v4538 = vunpack.c.l.b16 %v993
        %v4539 = vunpack.c.h.b16 %v993
        %v4540 = vunpack.c.l.b16 %v994
        %v4541 = vunpack.c.l.b16 %v995
        %v4542 = vunpack.c.h.b16 %v995
        %v4543 = vunpack.c.l.b16 %v996
        %v4544 = vunpack.c.h.b16 %v996
        %v4545 = vunpack.c.l.b16 %v997
        %v4546 = vunpack.c.l.b16 %v998
        %v4547 = vunpack.c.h.b16 %v998
        %v4548 = vunpack.c.l.b16 %v999
        %v4549 = vunpack.c.h.b16 %v999
        %v4550 = vunpack.c.l.b16 %v1000
        %v4551 = vunpack.c.l.b16 %v1001
        %v4552 = vunpack.c.h.b16 %v1001
        %v4553 = vunpack.c.l.b16 %v1002
        %v4554 = vunpack.c.h.b16 %v1002
        %v4555 = vunpack.c.l.b16 %v1003
        %v4556 = vunpack.c.l.b16 %v1004
        %v4557 = vunpack.c.h.b16 %v1004
        %v4558 = vunpack.c.l.b16 %v1005
        %v4559 = vunpack.c.h.b16 %v1005
        %v4560 = vunpack.c.l.b16 %v1006
        %v4561 = vunpack.c.l.b16 %v1007
        %v4562 = vunpack.c.h.b16 %v1007
        %v4563 = vunpack.c.l.b16 %v1008
        %v4564 = vunpack.c.h.b16 %v1008
        %v4565 = vunpack.c.l.b16 %v1009
        %v4566 = vunpack.c.l.b16 %v1010
        %v4567 = vunpack.c.h.b16 %v1010
        %v4568 = vunpack.c.l.b16 %v1011
        %v4569 = vunpack.c.h.b16 %v1011
        %v4570 = vunpack.c.l.b16 %v1012
        %v4571 = vunpack.c.l.b16 %v1013
        %v4572 = vunpack.c.h.b16 %v1013
        %v4573 = vunpack.c.l.b16 %v1014
        %v4574 = vunpack.c.h.b16 %v1014
        %v4575 = vunpack.c.l.b16 %v1015
        %v4576 = vunpack.c.l.b16 %v1016
        %v4577 = vunpack.c.h.b16 %v1016
        %v4578 = vunpack.c.l.b16 %v1017
        %v4579 = vunpack.c.h.b16 %v1017
        %v4580 = vunpack.c.l.b16 %v1018
        %v4581 = vunpack.c.l.b16 %v1019
        %v4582 = vunpack.c.h.b16 %v1019
        %v4583 = vunpack.c.l.b16 %v1020
        %v4584 = vunpack.c.h.b16 %v1020
        %v4585 = vunpack.c.l.b16 %v1021
        %v4586 = vunpack.c.l.b16 %v1022
        %v4587 = vunpack.c.h.b16 %v1022
        %v4588 = vunpack.c.l.b16 %v1023
        %v4589 = vunpack.c.h.b16 %v1023
        %v4590 = vunpack.c.l.b16 %v1024
        %v4591 = vunpack.c.l.b16 %v1025
        %v4592 = vunpack.c.h.b16 %v1025
        %v4593 = vunpack.c.l.b16 %v1026
        %v4594 = vunpack.c.h.b16 %v1026
        %v4595 = vunpack.c.l.b16 %v1027
        %v4596 = vunpack.c.l.b16 %v1028
        %v4597 = vunpack.c.h.b16 %v1028
        %v4598 = vunpack.c.l.b16 %v1029
        %v4599 = vunpack.c.h.b16 %v1029
        %v4600 = vunpack.c.l.b16 %v1030
        %v4601 = vunpack.c.l.b16 %v1031
        %v4602 = vunpack.c.h.b16 %v1031
        %v4603 = vunpack.c.l.b16 %v1032
        %v4604 = vunpack.c.h.b16 %v1032
        %v4605 = vunpack.c.l.b16 %v1033
        %v4606 = vunpack.c.l.b16 %v1034
        %v4607 = vunpack.c.h.b16 %v1034
        %v4608 = vunpack.c.l.b16 %v1035
        %v4609 = vunpack.c.h.b16 %v1035
        %v4610 = vunpack.c.l.b16 %v1036
        %v4611 = vunpack.c.l.b16 %v1037
        %v4612 = vunpack.c.h.b16 %v1037
        %v4613 = vunpack.c.l.b16 %v1038
        %v4614 = vunpack.c.h.b16 %v1038
        %v4615 = vunpack.c.l.b16 %v1039
        %v4616 = vunpack.c.l.b16 %v1040
        %v4617 = vunpack.c.h.b16 %v1040
        %v4618 = vunpack.c.l.b16 %v1041
        %v4619 = vunpack.c.h.b16 %v1041
        %v4620 = vunpack.c.l.b16 %v1042
        %v4621 = vunpack.c.l.b16 %v1043
        %v4622 = vunpack.c.h.b16 %v1043
        %v4623 = vunpack.c.l.b16 %v1044
        %v4624 = vunpack.c.h.b16 %v1044
        %v4625 = vunpack.c.l.b16 %v1045
        %v4626 = vunpack.c.l.b16 %v1046
        %v4627 = vunpack.c.h.b16 %v1046
        %v4628 = vunpack.c.l.b16 %v1047
        %v4629 = vunpack.c.h.b16 %v1047
        %v4630 = vunpack.c.l.b16 %v1048
        %v4631 = vunpack.c.l.b16 %v1049
        %v4632 = vunpack.c.h.b16 %v1049
        %v4633 = vunpack.c.l.b16 %v1050
        %v4634 = vunpack.c.h.b16 %v1050
        %v4635 = vunpack.c.l.b16 %v1051
        %v4636 = vunpack.c.l.b16 %v1052
        %v4637 = vunpack.c.h.b16 %v1052
        %v4638 = vunpack.c.l.b16 %v1053
        %v4639 = vunpack.c.h.b16 %v1053
        %v4640 = vunpack.c.l.b16 %v1054
        %v4641 = vunpack.c.l.b16 %v1055
        %v4642 = vunpack.c.h.b16 %v1055
        %v4643 = vunpack.c.l.b16 %v1056
        %v4644 = vunpack.c.h.b16 %v1056
        %v4645 = vunpack.c.l.b16 %v1057
        %v4646 = vunpack.c.l.b16 %v1058
        %v4647 = vunpack.c.h.b16 %v1058
        %v4648 = vunpack.c.l.b16 %v1059
        %v4649 = vunpack.c.h.b16 %v1059
        %v4650 = vunpack.c.l.b16 %v1060
        %v4651 = vunpack.c.l.b16 %v1061
        %v4652 = vunpack.c.h.b16 %v1061
        %v4653 = vunpack.c.l.b16 %v1062
        %v4654 = vunpack.c.h.b16 %v1062
        %v4655 = vunpack.c.l.b16 %v1063
        %v4656 = vunpack.c.l.b16 %v1064
        %v4657 = vunpack.c.h.b16 %v1064
        %v4658 = vunpack.c.l.b16 %v1065
        %v4659 = vunpack.c.h.b16 %v1065
        %v4660 = vunpack.c.l.b16 %v1066
        %v4661 = vunpack.c.l.b16 %v1067
        %v4662 = vunpack.c.h.b16 %v1067
        %v4663 = vunpack.c.l.b16 %v1068
        %v4664 = vunpack.c.h.b16 %v1068
        %v4665 = vunpack.c.l.b16 %v1069
        %v4666 = vunpack.c.l.b16 %v1070
        %v4667 = vunpack.c.h.b16 %v1070
        %v4668 = vunpack.c.l.b16 %v1071
        %v4669 = vunpack.c.h.b16 %v1071
        %v4670 = vunpack.c.l.b16 %v1072
        %v4671 = vunpack.c.l.b16 %v1073
        %v4672 = vunpack.c.h.b16 %v1073
        %v4673 = vunpack.c.l.b16 %v1074
        %v4674 = vunpack.c.h.b16 %v1074
        %v4675 = vunpack.c.l.b16 %v1075
        %v4676 = vunpack.c.l.b16 %v1076
        %v4677 = vunpack.c.h.b16 %v1076
        %v4678 = vunpack.c.l.b16 %v1077
        %v4679 = vunpack.c.h.b16 %v1077
        %v4680 = vunpack.c.l.b16 %v1078
        %v4681 = vunpack.c.l.b16 %v1079
        %v4682 = vunpack.c.h.b16 %v1079
        %v4683 = vunpack.c.l.b16 %v1080
        %v4684 = vunpack.c.h.b16 %v1080
        %v4685 = vunpack.c.l.b16 %v1081
        %v4686 = vunpack.c.l.b16 %v1082
        %v4687 = vunpack.c.h.b16 %v1082
        %v4688 = vunpack.c.l.b16 %v1083
        %v4689 = vunpack.c.h.b16 %v1083
        %v4690 = vunpack.c.l.b16 %v1084
        %v4691 = vunpack.c.l.b16 %v1085
        %v4692 = vunpack.c.h.b16 %v1085
        %v4693 = vunpack.c.l.b16 %v1086
        %v4694 = vunpack.c.h.b16 %v1086
        %v4695 = vunpack.c.l.b16 %v1087
        %v4696 = vunpack.c.l.b16 %v1088
        %v4697 = vunpack.c.h.b16 %v1088
        %v4698 = vunpack.c.l.b16 %v1089
        %v4699 = vunpack.c.h.b16 %v1089
        %v4700 = vunpack.c.l.b16 %v1090
        %v4701 = vunpack.c.l.b16 %v1091
        %v4702 = vunpack.c.h.b16 %v1091
        %v4703 = vunpack.c.l.b16 %v1092
        %v4704 = vunpack.c.h.b16 %v1092
        %v4705 = vunpack.c.l.b16 %v1093
        %v4706 = vunpack.c.l.b16 %v1094
        %v4707 = vunpack.c.h.b16 %v1094
        %v4708 = vunpack.c.l.b16 %v1095
        %v4709 = vunpack.c.h.b16 %v1095
        %v4710 = vunpack.c.l.b16 %v1096
        %v4711 = vunpack.c.l.b16 %v1097
        %v4712 = vunpack.c.h.b16 %v1097
        %v4713 = vunpack.c.l.b16 %v1098
        %v4714 = vunpack.c.h.b16 %v1098
        %v4715 = vunpack.c.l.b16 %v1099
        %v4716 = vunpack.c.l.b16 %v1100
        %v4717 = vunpack.c.h.b16 %v1100
        %v4718 = vunpack.c.l.b16 %v1101
        %v4719 = vunpack.c.h.b16 %v1101
        %v4720 = vunpack.c.l.b16 %v1102
        %v4721 = vunpack.c.l.b16 %v1103
        %v4722 = vunpack.c.h.b16 %v1103
        %v4723 = vunpack.c.l.b16 %v1104
        %v4724 = vunpack.c.h.b16 %v1104
        %v4725 = vunpack.c.l.b16 %v1105
        %v4726 = vunpack.c.l.b16 %v1106
        %v4727 = vunpack.c.h.b16 %v1106
        %v4728 = vunpack.c.l.b16 %v1107
        %v4729 = vunpack.c.h.b16 %v1107
        %v4730 = vunpack.c.l.b16 %v1108
        %v4731 = vunpack.c.l.b16 %v1109
        %v4732 = vunpack.c.h.b16 %v1109
        %v4733 = vunpack.c.l.b16 %v1110
        %v4734 = vunpack.c.h.b16 %v1110
        %v4735 = vunpack.c.l.b16 %v1111
        %v4736 = vunpack.c.l.b16 %v1112
        %v4737 = vunpack.c.h.b16 %v1112
        %v4738 = vunpack.c.l.b16 %v1113
        %v4739 = vunpack.c.h.b16 %v1113
        %v4740 = vunpack.c.l.b16 %v1114
        %v4741 = vunpack.c.l.b16 %v1115
        %v4742 = vunpack.c.h.b16 %v1115
        %v4743 = vunpack.c.l.b16 %v1116
        %v4744 = vunpack.c.h.b16 %v1116
        %v4745 = vunpack.c.l.b16 %v1117
        %v4746 = vunpack.c.l.b16 %v1118
        %v4747 = vunpack.c.h.b16 %v1118
        %v4748 = vunpack.c.l.b16 %v1119
        %v4749 = vunpack.c.h.b16 %v1119
        %v4750 = vunpack.c.l.b16 %v1120
        %v4751 = vunpack.c.l.b16 %v1121
        %v4752 = vunpack.c.h.b16 %v1121
        %v4753 = vunpack.c.l.b16 %v1122
        %v4754 = vunpack.c.h.b16 %v1122
        %v4755 = vunpack.c.l.b16 %v1123
        %v4756 = vunpack.c.l.b16 %v1124
        %v4757 = vunpack.c.h.b16 %v1124
        %v4758 = vunpack.c.l.b16 %v1125
        %v4759 = vunpack.c.h.b16 %v1125
        %v4760 = vunpack.c.l.b16 %v1126
        %v4761 = vunpack.c.l.b16 %v1127
        %v4762 = vunpack.c.h.b16 %v1127
        %v4763 = vunpack.c.l.b16 %v1128
        %v4764 = vunpack.c.h.b16 %v1128
        %v4765 = vunpack.c.l.b16 %v1129
        %v4766 = vunpack.c.l.b16 %v1130
        %v4767 = vunpack.c.h.b16 %v1130
        %v4768 = vunpack.c.l.b16 %v1131
        %v4769 = vunpack.c.h.b16 %v1131
        %v4770 = vunpack.c.l.b16 %v1132
        %v4771 = vunpack.c.l.b16 %v1133
        %v4772 = vunpack.c.h.b16 %v1133
        %v4773 = vunpack.c.l.b16 %v1134
        %v4774 = vunpack.c.h.b16 %v1134
        %v4775 = vunpack.c.l.b16 %v1135
        %v4776 = vunpack.c.l.b16 %v1136
        %v4777 = vunpack.c.h.b16 %v1136
        %v4778 = vunpack.c.l.b16 %v1137
        %v4779 = vunpack.c.h.b16 %v1137
        %v4780 = vunpack.c.l.b16 %v1138
        %v4781 = vunpack.c.l.b16 %v1139
        %v4782 = vunpack.c.h.b16 %v1139
        %v4783 = vunpack.c.l.b16 %v1140
        %v4784 = vunpack.c.h.b16 %v1140
        %v4785 = vunpack.c.l.b16 %v1141
        %v4786 = vunpack.c.l.b16 %v1142
        %v4787 = vunpack.c.h.b16 %v1142
        %v4788 = vunpack.c.l.b16 %v1143
        %v4789 = vunpack.c.h.b16 %v1143
        %v4790 = vunpack.c.l.b16 %v1144
        %v4791 = vunpack.c.l.b16 %v1145
        %v4792 = vunpack.c.h.b16 %v1145
        %v4793 = vunpack.c.l.b16 %v1146
        %v4794 = vunpack.c.h.b16 %v1146
        %v4795 = vunpack.c.l.b16 %v1147
        %v4796 = vunpack.c.l.b16 %v1148
        %v4797 = vunpack.c.h.b16 %v1148
        %v4798 = vunpack.c.l.b16 %v1149
        %v4799 = vunpack.c.h.b16 %v1149
        %v4800 = vunpack.c.l.b16 %v1150
        %v4801 = vunpack.c.l.b16 %v1151
        %v4802 = vunpack.c.h.b16 %v1151
        %v4803 = vunpack.c.l.b16 %v1152
        %v4804 = vunpack.c.h.b16 %v1152
        %v4805 = vunpack.c.l.b16 %v1153
        %v4806 = vunpack.c.l.b16 %v1154
        %v4807 = vunpack.c.h.b16 %v1154
        %v4808 = vunpack.c.l.b16 %v1155
        %v4809 = vunpack.c.h.b16 %v1155
        %v4810 = vunpack.c.l.b16 %v1156
        %v4811 = vunpack.c.l.b16 %v1157
        %v4812 = vunpack.c.h.b16 %v1157
        %v4813 = vunpack.c.l.b16 %v1158
        %v4814 = vunpack.c.h.b16 %v1158
        %v4815 = vunpack.c.l.b16 %v1159
        %v4816 = vunpack.c.l.b16 %v1160
        %v4817 = vunpack.c.h.b16 %v1160
        %v4818 = vunpack.c.l.b16 %v1161
        %v4819 = vunpack.c.h.b16 %v1161
        %v4820 = vunpack.c.l.b16 %v1162
        %v4821 = vunpack.c.l.b16 %v1163
        %v4822 = vunpack.c.h.b16 %v1163
        %v4823 = vunpack.c.l.b16 %v1164
        %v4824 = vunpack.c.h.b16 %v1164
        %v4825 = vunpack.c.l.b16 %v1165
        %v4826 = vunpack.c.l.b16 %v1166
        %v4827 = vunpack.c.h.b16 %v1166
        %v4828 = vunpack.c.l.b16 %v1167
        %v4829 = vunpack.c.h.b16 %v1167
        %v4830 = vunpack.c.l.b16 %v1168
        %v4831 = vunpack.c.l.b16 %v1169
        %v4832 = vunpack.c.h.b16 %v1169
        %v4833 = vunpack.c.l.b16 %v1170
        %v4834 = vunpack.c.h.b16 %v1170
        %v4835 = vunpack.c.l.b16 %v1171
        %v4836 = vunpack.c.l.b16 %v1172
        %v4837 = vunpack.c.h.b16 %v1172
        %v4838 = vunpack.c.l.b16 %v1173
        %v4839 = vunpack.c.h.b16 %v1173
        %v4840 = vunpack.c.l.b16 %v1174
        %v4841 = vunpack.c.l.b16 %v1175
        %v4842 = vunpack.c.h.b16 %v1175
        %v4843 = vunpack.c.l.b16 %v1176
        %v4844 = vunpack.c.h.b16 %v1176
        %v4845 = vunpack.c.l.b16 %v1177
        %v4846 = vunpack.c.l.b16 %v1178
        %v4847 = vunpack.c.h.b16 %v1178
        %v4848 = vunpack.c.l.b16 %v1179
        %v4849 = vunpack.c.h.b16 %v1179
        %v4850 = vunpack.c.l.b16 %v1180
        %v4851 = vunpack.c.l.b16 %v1181
        %v4852 = vunpack.c.h.b16 %v1181
        %v4853 = vunpack.c.l.b16 %v1182
        %v4854 = vunpack.c.h.b16 %v1182
        %v4855 = vunpack.c.l.b16 %v1183
        %v4856 = vunpack.c.l.b16 %v1184
        %v4857 = vunpack.c.h.b16 %v1184
        %v4858 = vunpack.c.l.b16 %v1185
        %v4859 = vunpack.c.h.b16 %v1185
        %v4860 = vunpack.c.l.b16 %v1186
        %v4861 = vunpack.c.l.b16 %v1187
        %v4862 = vunpack.c.h.b16 %v1187
        %v4863 = vunpack.c.l.b16 %v1188
        %v4864 = vunpack.c.h.b16 %v1188
        %v4865 = vunpack.c.l.b16 %v1189
        %v4866 = vunpack.c.l.b16 %v1190
        %v4867 = vunpack.c.h.b16 %v1190
        %v4868 = vunpack.c.l.b16 %v1191
        %v4869 = vunpack.c.h.b16 %v1191
        %v4870 = vunpack.c.l.b16 %v1192
        %v4871 = vunpack.c.l.b16 %v1193
        %v4872 = vunpack.c.h.b16 %v1193
        %v4873 = vunpack.c.l.b16 %v1194
        %v4874 = vunpack.c.h.b16 %v1194
        %v4875 = vunpack.c.l.b16 %v1195
        %v4876 = vunpack.c.l.b16 %v1196
        %v4877 = vunpack.c.h.b16 %v1196
        %v4878 = vunpack.c.l.b16 %v1197
        %v4879 = vunpack.c.h.b16 %v1197
        %v4880 = vunpack.c.l.b16 %v1198
        %v4881 = vunpack.c.l.b16 %v1199
        %v4882 = vunpack.c.h.b16 %v1199
        %v4883 = vunpack.c.l.b16 %v1200
        %v4884 = vunpack.c.h.b16 %v1200
        %v4885 = vunpack.c.l.b16 %v1201
        %v4886 = vunpack.c.l.b16 %v1202
        %v4887 = vunpack.c.h.b16 %v1202
        %v4888 = vunpack.c.l.b16 %v1203
        %v4889 = vunpack.c.h.b16 %v1203
        %v4890 = vunpack.c.l.b16 %v1204
        %v4891 = vunpack.c.l.b16 %v1205
        %v4892 = vunpack.c.h.b16 %v1205
        %v4893 = vunpack.c.l.b16 %v1206
        %v4894 = vunpack.c.h.b16 %v1206
        %v4895 = vunpack.c.l.b16 %v1207
        %v4896 = vunpack.c.l.b16 %v1208
        %v4897 = vunpack.c.h.b16 %v1208
        %v4898 = vunpack.c.l.b16 %v1209
        %v4899 = vunpack.c.h.b16 %v1209
        %v4900 = vunpack.c.l.b16 %v1210
        %v4901 = vunpack.c.l.b16 %v1211
        %v4902 = vunpack.c.h.b16 %v1211
        %v4903 = vunpack.c.l.b16 %v1212
        %v4904 = vunpack.c.h.b16 %v1212
        %v4905 = vunpack.c.l.b16 %v1213
        %v4906 = vunpack.c.l.b16 %v1214
        %v4907 = vunpack.c.h.b16 %v1214
        %v4908 = vunpack.c.l.b16 %v1215
        %v4909 = vunpack.c.h.b16 %v1215
        %v4910 = vunpack.c.l.b16 %v1216
        %v4911 = vunpack.c.l.b16 %v1217
        %v4912 = vunpack.c.h.b16 %v1217
        %v4913 = vunpack.c.l.b16 %v1218
        %v4914 = vunpack.c.h.b16 %v1218
        %v4915 = vunpack.c.l.b16 %v1219
        %v4916 = vunpack.c.l.b16 %v1220
        %v4917 = vunpack.c.h.b16 %v1220
        %v4918 = vunpack.c.l.b16 %v1221
        %v4919 = vunpack.c.h.b16 %v1221
        %v4920 = vunpack.c.l.b16 %v1222
        %v4921 = vunpack.c.l.b16 %v1223
        %v4922 = vunpack.c.h.b16 %v1223
        %v4923 = vunpack.c.l.b16 %v1224
        %v4924 = vunpack.c.h.b16 %v1224
        %v4925 = vunpack.c.l.b16 %v1225
        %v4926 = vunpack.c.l.b16 %v1226
        %v4927 = vunpack.c.h.b16 %v1226
        %v4928 = vunpack.c.l.b16 %v1227
        %v4929 = vunpack.c.h.b16 %v1227
        %v4930 = vunpack.c.l.b16 %v1228
        %v4931 = vunpack.c.l.b16 %v1229
        %v4932 = vunpack.c.h.b16 %v1229
        %v4933 = vunpack.c.l.b16 %v1230
        %v4934 = vunpack.c.h.b16 %v1230
        %v4935 = vunpack.c.l.b16 %v1231
        %v4936 = vunpack.c.l.b16 %v1232
        %v4937 = vunpack.c.h.b16 %v1232
        %v4938 = vunpack.c.l.b16 %v1233
        %v4939 = vunpack.c.h.b16 %v1233
        %v4940 = vunpack.c.l.b16 %v1234
        %v4941 = vunpack.c.l.b16 %v1235
        %v4942 = vunpack.c.h.b16 %v1235
        %v4943 = vunpack.c.l.b16 %v1236
        %v4944 = vunpack.c.h.b16 %v1236
        %v4945 = vunpack.c.l.b16 %v1237
        %v4946 = vunpack.c.l.b16 %v1238
        %v4947 = vunpack.c.h.b16 %v1238
        %v4948 = vunpack.c.l.b16 %v1239
        %v4949 = vunpack.c.h.b16 %v1239
        %v4950 = vunpack.c.l.b16 %v1240
        %v4951 = vunpack.c.l.b16 %v1241
        %v4952 = vunpack.c.h.b16 %v1241
        %v4953 = vunpack.c.l.b16 %v1242
        %v4954 = vunpack.c.h.b16 %v1242
        %v4955 = vunpack.c.l.b16 %v1243
        %v4956 = vunpack.c.l.b16 %v1244
        %v4957 = vunpack.c.h.b16 %v1244
        %v4958 = vunpack.c.l.b16 %v1245
        %v4959 = vunpack.c.h.b16 %v1245
        %v4960 = vunpack.c.l.b16 %v1246
        %v4961 = vunpack.c.l.b16 %v1247
        %v4962 = vunpack.c.h.b16 %v1247
        %v4963 = vunpack.c.l.b16 %v1248
        %v4964 = vunpack.c.h.b16 %v1248
        %v4965 = vunpack.c.l.b16 %v1249
        %v4966 = vunpack.c.l.b16 %v1250
        %v4967 = vunpack.c.h.b16 %v1250
        %v4968 = vunpack.c.l.b16 %v1251
        %v4969 = vunpack.c.h.b16 %v1251
        %v4970 = vunpack.c.l.b16 %v1252
        %v4971 = vunpack.c.l.b16 %v1253
        %v4972 = vunpack.c.h.b16 %v1253
        %v4973 = vunpack.c.l.b16 %v1254
        %v4974 = vunpack.c.h.b16 %v1254
        %v4975 = vunpack.c.l.b16 %v1255
        %v4976 = vunpack.c.l.b16 %v1256
        %v4977 = vunpack.c.h.b16 %v1256
        %v4978 = vunpack.c.l.b16 %v1257
        %v4979 = vunpack.c.h.b16 %v1257
        %v4980 = vunpack.c.l.b16 %v1258
        %v4981 = vunpack.c.l.b16 %v1259
        %v4982 = vunpack.c.h.b16 %v1259
        %v4983 = vunpack.c.l.b16 %v1260
        %v4984 = vunpack.c.h.b16 %v1260
        %v4985 = vunpack.c.l.b16 %v1261
        %v4986 = vunpack.c.l.b16 %v1262
        %v4987 = vunpack.c.h.b16 %v1262
        %v4988 = vunpack.c.l.b16 %v1263
        %v4989 = vunpack.c.h.b16 %v1263
        %v4990 = vunpack.c.l.b16 %v1264
        %v4991 = vunpack.c.l.b16 %v1265
        %v4992 = vunpack.c.h.b16 %v1265
        %v4993 = vunpack.c.l.b16 %v1266
        %v4994 = vunpack.c.h.b16 %v1266
        %v4995 = vunpack.c.l.b16 %v1267
        %v4996 = vunpack.c.l.b16 %v1268
        %v4997 = vunpack.c.h.b16 %v1268
        %v4998 = vunpack.c.l.b16 %v1269
        %v4999 = vunpack.c.h.b16 %v1269
        %v5000 = vunpack.c.l.b16 %v1270
        %v5001 = vunpack.c.l.b16 %v1271
        %v5002 = vunpack.c.h.b16 %v1271
        %v5003 = vunpack.c.l.b16 %v1272
        %v5004 = vunpack.c.h.b16 %v1272
        %v5005 = vunpack.c.l.b16 %v1273
        %v5006 = vunpack.c.l.b16 %v1274
        %v5007 = vunpack.c.h.b16 %v1274
        %v5008 = vunpack.c.l.b16 %v1275
        %v5009 = vunpack.c.h.b16 %v1275
        %v5010 = vunpack.c.l.b16 %v1276
        %v5011 = vunpack.c.l.b16 %v1277
        %v5012 = vunpack.c.h.b16 %v1277
        %v5013 = vunpack.c.l.b16 %v1278
        %v5014 = vunpack.c.h.b16 %v1278
        %v5015 = vunpack.c.l.b16 %v1279
        %v5016 = vunpack.c.l.b16 %v1280
        %v5017 = vunpack.c.h.b16 %v1280
        %v5018 = vunpack.c.l.b16 %v1281
        %v5019 = vunpack.c.h.b16 %v1281
        %v5020 = vunpack.c.l.b16 %v1282
        %v5021 = vunpack.c.l.b16 %v1283
        %v5022 = vunpack.c.h.b16 %v1283
        %v5023 = vunpack.c.l.b16 %v1284
        %v5024 = vunpack.c.h.b16 %v1284
        %v5025 = vunpack.c.l.b16 %v1285
        %v5026 = vunpack.c.l.b16 %v1286
        %v5027 = vunpack.c.h.b16 %v1286
        %v5028 = vunpack.c.l.b16 %v1287
        %v5029 = vunpack.c.h.b16 %v1287
        %v5030 = vunpack.c.l.b16 %v1288
        %v5031 = vunpack.c.l.b16 %v1289
        %v5032 = vunpack.c.h.b16 %v1289
        %v5033 = vunpack.c.l.b16 %v1290
        %v5034 = vunpack.c.h.b16 %v1290
        %v5035 = vunpack.c.l.b16 %v1291
        %v5036 = vunpack.c.l.b16 %v1292
        %v5037 = vunpack.c.h.b16 %v1292
        %v5038 = vunpack.c.l.b16 %v1293
        %v5039 = vunpack.c.h.b16 %v1293
        %v5040 = vunpack.c.l.b16 %v1294
        %v5041 = vunpack.c.l.b16 %v1295
        %v5042 = vunpack.c.h.b16 %v1295
        %v5043 = vunpack.c.l.b16 %v1296
        %v5044 = vunpack.c.h.b16 %v1296
        %v5045 = vunpack.c.l.b16 %v1297
        %v5046 = vunpack.c.l.b16 %v1298
        %v5047 = vunpack.c.h.b16 %v1298
        %v5048 = vunpack.c.l.b16 %v1299
        %v5049 = vunpack.c.h.b16 %v1299
        %v5050 = vunpack.c.l.b16 %v1300
        %v5051 = vunpack.c.l.b16 %v1301
        %v5052 = vunpack.c.h.b16 %v1301
        %v5053 = vunpack.c.l.b16 %v1302
        %v5054 = vunpack.c.h.b16 %v1302
        %v5055 = vunpack.c.l.b16 %v1303
        %v5056 = vunpack.c.l.b16 %v1304
        %v5057 = vunpack.c.h.b16 %v1304
        %v5058 = vunpack.c.l.b16 %v1305
        %v5059 = vunpack.c.h.b16 %v1305
        %v5060 = vunpack.c.l.b16 %v1306
        %v5061 = vunpack.c.l.b16 %v1307
        %v5062 = vunpack.c.h.b16 %v1307
        %v5063 = vunpack.c.l.b16 %v1308
        %v5064 = vunpack.c.h.b16 %v1308
        %v5065 = vunpack.c.l.b16 %v1309
        %v5066 = vunpack.c.l.b16 %v1310
        %v5067 = vunpack.c.h.b16 %v1310
        %v5068 = vunpack.c.l.b16 %v1311
        %v5069 = vunpack.c.h.b16 %v1311
        %v5070 = vunpack.c.l.b16 %v1312
        %v5071 = vunpack.c.l.b16 %v1313
        %v5072 = vunpack.c.h.b16 %v1313
        %v5073 = vunpack.c.l.b16 %v1314
        %v5074 = vunpack.c.h.b16 %v1314
        %v5075 = vunpack.c.l.b16 %v1315
        %v5076 = vunpack.c.l.b16 %v1316
        %v5077 = vunpack.c.h.b16 %v1316
        %v5078 = vunpack.c.l.b16 %v1317
        %v5079 = vunpack.c.h.b16 %v1317
        %v5080 = vunpack.c.l.b16 %v1318
        %v5081 = vunpack.c.l.b16 %v1319
        %v5082 = vunpack.c.h.b16 %v1319
        %v5083 = vunpack.c.l.b16 %v1320
        %v5084 = vunpack.c.h.b16 %v1320
        %v5085 = vunpack.c.l.b16 %v1321
        %v5086 = vunpack.c.l.b16 %v1322
        %v5087 = vunpack.c.h.b16 %v1322
        %v5088 = vunpack.c.l.b16 %v1323
        %v5089 = vunpack.c.h.b16 %v1323
        %v5090 = vunpack.c.l.b16 %v1324
        %v5091 = vunpack.c.l.b16 %v1325
        %v5092 = vunpack.c.h.b16 %v1325
        %v5093 = vunpack.c.l.b16 %v1326
        %v5094 = vunpack.c.h.b16 %v1326
        %v5095 = vunpack.c.l.b16 %v1327
        %v5096 = vunpack.c.l.b16 %v1328
        %v5097 = vunpack.c.h.b16 %v1328
        %v5098 = vunpack.c.l.b16 %v1329
        %v5099 = vunpack.c.h.b16 %v1329
        %v5100 = vunpack.c.l.b16 %v1330
        %v5101 = vunpack.c.l.b16 %v1331
        %v5102 = vunpack.c.h.b16 %v1331
        %v5103 = vunpack.c.l.b16 %v1332
        %v5104 = vunpack.c.h.b16 %v1332
        %v5105 = vunpack.c.l.b16 %v1333
        %v5106 = vunpack.c.l.b16 %v1334
        %v5107 = vunpack.c.h.b16 %v1334
        %v5108 = vunpack.c.l.b16 %v1335
        %v5109 = vunpack.c.h.b16 %v1335
        %v5110 = vunpack.c.l.b16 %v1336
        %v5111 = vunpack.c.l.b16 %v1337
        %v5112 = vunpack.c.h.b16 %v1337
        %v5113 = vunpack.c.l.b16 %v1338
        %v5114 = vunpack.c.h.b16 %v1338
        %v5115 = vunpack.c.l.b16 %v1339
        %v5116 = vunpack.c.l.b16 %v1340
        %v5117 = vunpack.c.h.b16 %v1340
        %v5118 = vunpack.c.l.b16 %v1341
        %v5119 = vunpack.c.h.b16 %v1341
        %v5120 = vunpack.c.l.b16 %v1342
        %v5121 = vunpack.c.l.b16 %v1343
        %v5122 = vunpack.c.h.b16 %v1343
        %v5123 = vunpack.c.l.b16 %v1344
        %v5124 = vunpack.c.h.b16 %v1344
        %v5125 = vunpack.c.l.b16 %v1345
        %v5126 = vunpack.c.l.b16 %v1346
        %v5127 = vunpack.c.h.b16 %v1346
        %v5128 = vunpack.c.l.b16 %v1347
        %v5129 = vunpack.c.h.b16 %v1347
        %v5130 = vunpack.c.l.b16 %v1348
        %v5131 = vunpack.c.l.b16 %v1349
        %v5132 = vunpack.c.h.b16 %v1349
        %v5133 = vunpack.c.l.b16 %v1350
        %v5134 = vunpack.c.h.b16 %v1350
        %v5135 = vunpack.c.l.b16 %v1351
        %v5136 = vunpack.c.l.b16 %v1352
        %v5137 = vunpack.c.h.b16 %v1352
        %v5138 = vunpack.c.l.b16 %v1353
        %v5139 = vunpack.c.h.b16 %v1353
        %v5140 = vunpack.c.l.b16 %v1354
        %v5141 = vunpack.c.l.b16 %v1355
        %v5142 = vunpack.c.h.b16 %v1355
        %v5143 = vunpack.c.l.b16 %v1356
        %v5144 = vunpack.c.h.b16 %v1356
        %v5145 = vunpack.c.l.b16 %v1357
        %v5146 = vunpack.c.l.b16 %v1358
        %v5147 = vunpack.c.h.b16 %v1358
        %v5148 = vunpack.c.l.b16 %v1359
        %v5149 = vunpack.c.h.b16 %v1359
        %v5150 = vunpack.c.l.b16 %v1360
        %v5151 = vunpack.c.l.b16 %v1361
        %v5152 = vunpack.c.h.b16 %v1361
        %v5153 = vunpack.c.l.b16 %v1362
        %v5154 = vunpack.c.h.b16 %v1362
        %v5155 = vunpack.c.l.b16 %v1363
        %v5156 = vunpack.c.l.b16 %v1364
        %v5157 = vunpack.c.h.b16 %v1364
        %v5158 = vunpack.c.l.b16 %v1365
        %v5159 = vunpack.c.h.b16 %v1365
        %v5160 = vunpack.c.l.b16 %v1366
        %v5161 = vunpack.c.l.b16 %v1367
        %v5162 = vunpack.c.h.b16 %v1367
        %v5163 = vunpack.c.l.b16 %v1368
        %v5164 = vunpack.c.h.b16 %v1368
        %v5165 = vunpack.c.l.b16 %v1369
        %v5166 = vunpack.c.l.b16 %v1370
        %v5167 = vunpack.c.h.b16 %v1370
        %v5168 = vunpack.c.l.b16 %v1371
        %v5169 = vunpack.c.h.b16 %v1371
        %v5170 = vunpack.c.l.b16 %v1372
        %v5171 = vunpack.c.l.b16 %v1373
        %v5172 = vunpack.c.h.b16 %v1373
        %v5173 = vunpack.c.l.b16 %v1374
        %v5174 = vunpack.c.h.b16 %v1374
        %v5175 = vunpack.c.l.b16 %v1375
        %v5176 = vunpack.c.l.b16 %v1376
        %v5177 = vunpack.c.h.b16 %v1376
        %v5178 = vunpack.c.l.b16 %v1377
        %v5179 = vunpack.c.h.b16 %v1377
        %v5180 = vunpack.c.l.b16 %v1378
        %v5181 = vunpack.c.l.b16 %v1379
        %v5182 = vunpack.c.h.b16 %v1379
        %v5183 = vunpack.c.l.b16 %v1380
        %v5184 = vunpack.c.h.b16 %v1380
        %v5185 = vunpack.c.l.b16 %v1381
        %v5186 = vunpack.c.l.b16 %v1382
        %v5187 = vunpack.c.h.b16 %v1382
        %v5188 = vunpack.c.l.b16 %v1383
        %v5189 = vunpack.c.h.b16 %v1383
        %v5190 = vunpack.c.l.b16 %v1384
        %v5191 = vunpack.c.l.b16 %v1385
        %v5192 = vunpack.c.h.b16 %v1385
        %v5193 = vunpack.c.l.b16 %v1386
        %v5194 = vunpack.c.h.b16 %v1386
        %v5195 = vunpack.c.l.b16 %v1387
        %v5196 = vunpack.c.l.b16 %v1388
        %v5197 = vunpack.c.h.b16 %v1388
        %v5198 = vunpack.c.l.b16 %v1389
        %v5199 = vunpack.c.h.b16 %v1389
        %v5200 = vunpack.c.l.b16 %v1390
        %v5201 = vunpack.c.l.b16 %v1391
        %v5202 = vunpack.c.h.b16 %v1391
        %v5203 = vunpack.c.l.b16 %v1392
        %v5204 = vunpack.c.h.b16 %v1392
        %v5205 = vunpack.c.l.b16 %v1393
        %v5206 = vunpack.c.l.b16 %v1394
        %v5207 = vunpack.c.h.b16 %v1394
        %v5208 = vunpack.c.l.b16 %v1395
        %v5209 = vunpack.c.h.b16 %v1395
        %v5210 = vunpack.c.l.b16 %v1396
        %v5211 = vunpack.c.l.b16 %v1397
        %v5212 = vunpack.c.h.b16 %v1397
        %v5213 = vunpack.c.l.b16 %v1398
        %v5214 = vunpack.c.h.b16 %v1398
        %v5215 = vunpack.c.l.b16 %v1399
        %v5216 = vunpack.c.l.b16 %v1400
        %v5217 = vunpack.c.h.b16 %v1400
        %v5218 = vunpack.c.l.b16 %v1401
        %v5219 = vunpack.c.h.b16 %v1401
        %v5220 = vunpack.c.l.b16 %v1402
        %v5221 = vunpack.c.l.b16 %v1403
        %v5222 = vunpack.c.h.b16 %v1403
        %v5223 = vunpack.c.l.b16 %v1404
        %v5224 = vunpack.c.h.b16 %v1404
        %v5225 = vunpack.c.l.b16 %v1405
        %v5226 = vunpack.c.l.b16 %v1406
        %v5227 = vunpack.c.h.b16 %v1406
        %v5228 = vunpack.c.l.b16 %v1407
        %v5229 = vunpack.c.h.b16 %v1407
        %v5230 = vunpack.c.l.b16 %v1408
        %v5231 = vunpack.c.l.b16 %v1409
        %v5232 = vunpack.c.h.b16 %v1409
        %v5233 = vunpack.c.l.b16 %v1410
        %v5234 = vunpack.c.h.b16 %v1410
        %v5235 = vunpack.c.l.b16 %v1411
        %v5236 = vunpack.c.l.b16 %v1412
        %v5237 = vunpack.c.h.b16 %v1412
        %v5238 = vunpack.c.l.b16 %v1413
        %v5239 = vunpack.c.h.b16 %v1413
        %v5240 = vunpack.c.l.b16 %v1414
        %v5241 = vunpack.c.l.b16 %v1415
        %v5242 = vunpack.c.h.b16 %v1415
        %v5243 = vunpack.c.l.b16 %v1416
        %v5244 = vunpack.c.h.b16 %v1416
        %v5245 = vunpack.c.l.b16 %v1417
        %v5246 = vunpack.c.l.b16 %v1418
        %v5247 = vunpack.c.h.b16 %v1418
        %v5248 = vunpack.c.l.b16 %v1419
        %v5249 = vunpack.c.h.b16 %v1419
        %v5250 = vunpack.c.l.b16 %v1420
        %v5251 = vunpack.c.l.b16 %v1421
        %v5252 = vunpack.c.h.b16 %v1421
        %v5253 = vunpack.c.l.b16 %v1422
        %v5254 = vunpack.c.h.b16 %v1422
        %v5255 = vunpack.c.l.b16 %v1423
        %v5256 = vunpack.c.l.b16 %v1424
        %v5257 = vunpack.c.h.b16 %v1424
        %v5258 = vunpack.c.l.b16 %v1425
        %v5259 = vunpack.c.h.b16 %v1425
        %v5260 = vunpack.c.l.b16 %v1426
        %v5261 = vunpack.c.l.b16 %v1427
        %v5262 = vunpack.c.h.b16 %v1427
        %v5263 = vunpack.c.l.b16 %v1428
        %v5264 = vunpack.c.h.b16 %v1428
        %v5265 = vunpack.c.l.b16 %v1429
        %v5266 = vunpack.c.l.b16 %v1430
        %v5267 = vunpack.c.h.b16 %v1430
        %v5268 = vunpack.c.l.b16 %v1431
        %v5269 = vunpack.c.h.b16 %v1431
        %v5270 = vunpack.c.l.b16 %v1432
        %v5271 = vunpack.c.l.b16 %v1433
        %v5272 = vunpack.c.h.b16 %v1433
        %v5273 = vunpack.c.l.b16 %v1434
        %v5274 = vunpack.c.h.b16 %v1434
        %v5275 = vunpack.c.l.b16 %v1435
        %v5276 = vunpack.c.l.b16 %v1436
        %v5277 = vunpack.c.h.b16 %v1436
        %v5278 = vunpack.c.l.b16 %v1437
        %v5279 = vunpack.c.h.b16 %v1437
        %v5280 = vunpack.c.l.b16 %v1438
        %v5281 = vunpack.c.l.b16 %v1439
        %v5282 = vunpack.c.h.b16 %v1439
        %v5283 = vunpack.c.l.b16 %v1440
        %v5284 = vunpack.c.h.b16 %v1440
        %v5285 = vunpack.c.l.b16 %v1441
        %v5286 = vunpack.c.l.b16 %v1442
        %v5287 = vunpack.c.h.b16 %v1442
        %v5288 = vunpack.c.l.b16 %v1443
        %v5289 = vunpack.c.h.b16 %v1443
        %v5290 = vunpack.c.l.b16 %v1444
        %v5291 = vunpack.c.l.b16 %v1445
        %v5292 = vunpack.c.h.b16 %v1445
        %v5293 = vunpack.c.l.b16 %v1446
        %v5294 = vunpack.c.h.b16 %v1446
        %v5295 = vunpack.c.l.b16 %v1447
        %v5296 = vunpack.c.l.b16 %v1448
        %v5297 = vunpack.c.h.b16 %v1448
        %v5298 = vunpack.c.l.b16 %v1449
        %v5299 = vunpack.c.h.b16 %v1449
        %v5300 = vunpack.c.l.b16 %v1450
        %v5301 = vunpack.c.l.b16 %v1451
        %v5302 = vunpack.c.h.b16 %v1451
        %v5303 = vunpack.c.l.b16 %v1452
        %v5304 = vunpack.c.h.b16 %v1452
        %v5305 = vunpack.c.l.b16 %v1453
        %v5306 = vunpack.c.l.b16 %v1454
        %v5307 = vunpack.c.h.b16 %v1454
        %v5308 = vunpack.c.l.b16 %v1455
        %v5309 = vunpack.c.h.b16 %v1455
        %v5310 = vunpack.c.l.b16 %v1456
        %v5311 = vunpack.c.l.b16 %v1457
        %v5312 = vunpack.c.h.b16 %v1457
        %v5313 = vunpack.c.l.b16 %v1458
        %v5314 = vunpack.c.h.b16 %v1458
        %v5315 = vunpack.c.l.b16 %v1459
        %v5316 = vunpack.c.l.b16 %v1460
        %v5317 = vunpack.c.h.b16 %v1460
        %v5318 = vunpack.c.l.b16 %v1461
        %v5319 = vunpack.c.h.b16 %v1461
        %v5320 = vunpack.c.l.b16 %v1462
        %v5321 = vunpack.c.l.b16 %v1463
        %v5322 = vunpack.c.h.b16 %v1463
        %v5323 = vunpack.c.l.b16 %v1464
        %v5324 = vunpack.c.h.b16 %v1464
        %v5325 = vunpack.c.l.b16 %v1465
        %v5326 = vunpack.c.l.b16 %v1466
        %v5327 = vunpack.c.h.b16 %v1466
        %v5328 = vunpack.c.l.b16 %v1467
        %v5329 = vunpack.c.h.b16 %v1467
        %v5330 = vunpack.c.l.b16 %v1468
        %v5331 = vunpack.c.l.b16 %v1469
        %v5332 = vunpack.c.h.b16 %v1469
        %v5333 = vunpack.c.l.b16 %v1470
        %v5334 = vunpack.c.h.b16 %v1470
        %v5335 = vunpack.c.l.b16 %v1471
        %v5336 = vunpack.c.l.b16 %v1472
        %v5337 = vunpack.c.h.b16 %v1472
        %v5338 = vunpack.c.l.b16 %v1473
        %v5339 = vunpack.c.h.b16 %v1473
        %v5340 = vunpack.c.l.b16 %v1474
        %v5341 = vunpack.c.l.b16 %v1475
        %v5342 = vunpack.c.h.b16 %v1475
        %v5343 = vunpack.c.l.b16 %v1476
        %v5344 = vunpack.c.h.b16 %v1476
        %v5345 = vunpack.c.l.b16 %v1477
        %v5346 = vunpack.c.l.b16 %v1478
        %v5347 = vunpack.c.h.b16 %v1478
        %v5348 = vunpack.c.l.b16 %v1479
        %v5349 = vunpack.c.h.b16 %v1479
        %v5350 = vunpack.c.l.b16 %v1480
        %v5351 = vunpack.c.l.b16 %v1481
        %v5352 = vunpack.c.h.b16 %v1481
        %v5353 = vunpack.c.l.b16 %v1482
        %v5354 = vunpack.c.h.b16 %v1482
        %v5355 = vunpack.c.l.b16 %v1483
        %v5356 = vunpack.c.l.b16 %v1484
        %v5357 = vunpack.c.h.b16 %v1484
        %v5358 = vunpack.c.l.b16 %v1485
        %v5359 = vunpack.c.h.b16 %v1485
        %v5360 = vunpack.c.l.b16 %v1486
        %v5361 = vunpack.c.l.b16 %v1487
        %v5362 = vunpack.c.h.b16 %v1487
        %v5363 = vunpack.c.l.b16 %v1488
        %v5364 = vunpack.c.h.b16 %v1488
        %v5365 = vunpack.c.l.b16 %v1489
        %v5366 = vunpack.c.l.b16 %v1490
        %v5367 = vunpack.c.h.b16 %v1490
        %v5368 = vunpack.c.l.b16 %v1491
        %v5369 = vunpack.c.h.b16 %v1491
        %v5370 = vunpack.c.l.b16 %v1492
        %v5371 = vunpack.c.l.b16 %v1493
        %v5372 = vunpack.c.h.b16 %v1493
        %v5373 = vunpack.c.l.b16 %v1494
        %v5374 = vunpack.c.h.b16 %v1494
        %v5375 = vunpack.c.l.b16 %v1495
        %v5376 = vunpack.c.l.b16 %v1496
        %v5377 = vunpack.c.h.b16 %v1496
        %v5378 = vunpack.c.l.b16 %v1497
        %v5379 = vunpack.c.h.b16 %v1497
        %v5380 = vunpack.c.l.b16 %v1498
        %v5381 = vunpack.c.l.b16 %v1499
        %v5382 = vunpack.c.h.b16 %v1499
        %v5383 = vunpack.c.l.b16 %v1500
        %v5384 = vunpack.c.h.b16 %v1500
        %v5385 = vunpack.c.l.b16 %v1501
        %v5386 = vunpack.c.l.b16 %v1502
        %v5387 = vunpack.c.h.b16 %v1502
        %v5388 = vunpack.c.l.b16 %v1503
        %v5389 = vunpack.c.h.b16 %v1503
        %v5390 = vunpack.c.l.b16 %v1504
        %v5391 = vunpack.c.l.b16 %v1505
        %v5392 = vunpack.c.h.b16 %v1505
        %v5393 = vunpack.c.l.b16 %v1506
        %v5394 = vunpack.c.h.b16 %v1506
        %v5395 = vunpack.c.l.b16 %v1507
        %v5396 = vunpack.c.l.b16 %v1508
        %v5397 = vunpack.c.h.b16 %v1508
        %v5398 = vunpack.c.l.b16 %v1509
        %v5399 = vunpack.c.h.b16 %v1509
        %v5400 = vunpack.c.l.b16 %v1510
        %v5401 = vunpack.c.l.b16 %v1511
        %v5402 = vunpack.c.h.b16 %v1511
        %v5403 = vunpack.c.l.b16 %v1512
        %v5404 = vunpack.c.h.b16 %v1512
        %v5405 = vunpack.c.l.b16 %v1513
        %v5406 = vunpack.c.l.b16 %v1514
        %v5407 = vunpack.c.h.b16 %v1514
        %v5408 = vunpack.c.l.b16 %v1515
        %v5409 = vunpack.c.h.b16 %v1515
        %v5410 = vunpack.c.l.b16 %v1516
        %v5411 = vunpack.c.l.b16 %v1517
        %v5412 = vunpack.c.h.b16 %v1517
        %v5413 = vunpack.c.l.b16 %v1518
        %v5414 = vunpack.c.h.b16 %v1518
        %v5415 = vunpack.c.l.b16 %v1519
        %v5416 = vunpack.c.l.b16 %v1520
        %v5417 = vunpack.c.h.b16 %v1520
        %v5418 = vunpack.c.l.b16 %v1521
        %v5419 = vunpack.c.h.b16 %v1521
        %v5420 = vunpack.c.l.b16 %v1522
        %v5421 = vunpack.c.l.b16 %v1523
        %v5422 = vunpack.c.h.b16 %v1523
        %v5423 = vunpack.c.l.b16 %v1524
        %v5424 = vunpack.c.h.b16 %v1524
        %v5425 = vunpack.c.l.b16 %v1525
        %v5426 = vunpack.c.l.b16 %v1526
        %v5427 = vunpack.c.h.b16 %v1526
        %v5428 = vunpack.c.l.b16 %v1527
        %v5429 = vunpack.c.h.b16 %v1527
        %v5430 = vunpack.c.l.b16 %v1528
        %v5431 = vunpack.c.l.b16 %v1529
        %v5432 = vunpack.c.h.b16 %v1529
        %v5433 = vunpack.c.l.b16 %v1530
        %v5434 = vunpack.c.h.b16 %v1530
        %v5435 = vunpack.c.l.b16 %v1531
        %v5436 = vunpack.c.l.b16 %v1532
        %v5437 = vunpack.c.h.b16 %v1532
        %v5438 = vunpack.c.l.b16 %v1533
        %v5439 = vunpack.c.h.b16 %v1533
        %v5440 = vunpack.c.l.b16 %v1534
        %v5441 = vunpack.c.l.b16 %v1535
        %v5442 = vunpack.c.h.b16 %v1535
        %v5443 = vunpack.c.l.b16 %v1536
        %v5444 = vunpack.c.h.b16 %v1536
        %v5445 = vunpack.c.l.b16 %v1537
        %v5446 = vunpack.c.l.b16 %v1538
        %v5447 = vunpack.c.h.b16 %v1538
        %v5448 = vunpack.c.l.b16 %v1539
        %v5449 = vunpack.c.h.b16 %v1539
        %v5450 = vunpack.c.l.b16 %v1540
        %v5451 = vunpack.c.l.b16 %v1541
        %v5452 = vunpack.c.h.b16 %v1541
        %v5453 = vunpack.c.l.b16 %v1542
        %v5454 = vunpack.c.h.b16 %v1542
        %v5455 = vunpack.c.l.b16 %v1543
        %v5456 = vunpack.c.l.b16 %v1544
        %v5457 = vunpack.c.h.b16 %v1544
        %v5458 = vunpack.c.l.b16 %v1545
        %v5459 = vunpack.c.h.b16 %v1545
        %v5460 = vunpack.c.l.b16 %v1546
        %v5461 = vunpack.c.l.b16 %v1547
        %v5462 = vunpack.c.h.b16 %v1547
        %v5463 = vunpack.c.l.b16 %v1548
        %v5464 = vunpack.c.h.b16 %v1548
        %v5465 = vunpack.c.l.b16 %v1549
        %v5466 = vunpack.c.l.b16 %v1550
        %v5467 = vunpack.c.h.b16 %v1550
        %v5468 = vunpack.c.l.b16 %v1551
        %v5469 = vunpack.c.h.b16 %v1551
        %v5470 = vunpack.c.l.b16 %v1552
        %v5471 = vunpack.c.l.b16 %v1553
        %v5472 = vunpack.c.h.b16 %v1553
        %v5473 = vunpack.c.l.b16 %v1554
        %v5474 = vunpack.c.h.b16 %v1554
        %v5475 = vunpack.c.l.b16 %v1555
        %v5476 = vunpack.c.l.b16 %v1556
        %v5477 = vunpack.c.h.b16 %v1556
        %v5478 = vunpack.c.l.b16 %v1557
        %v5479 = vunpack.c.h.b16 %v1557
        %v5480 = vunpack.c.l.b16 %v1558
        %v5481 = vunpack.c.l.b16 %v1559
        %v5482 = vunpack.c.h.b16 %v1559
        %v5483 = vunpack.c.l.b16 %v1560
        %v5484 = vunpack.c.h.b16 %v1560
        %v5485 = vunpack.c.l.b16 %v1561
        %v5486 = vunpack.c.l.b16 %v1562
        %v5487 = vunpack.c.h.b16 %v1562
        %v5488 = vunpack.c.l.b16 %v1563
        %v5489 = vunpack.c.h.b16 %v1563
        %v5490 = vunpack.c.l.b16 %v1564
        %v5491 = vunpack.c.l.b16 %v1565
        %v5492 = vunpack.c.h.b16 %v1565
        %v5493 = vunpack.c.l.b16 %v1566
        %v5494 = vunpack.c.h.b16 %v1566
        %v5495 = vunpack.c.l.b16 %v1567
        %v5496 = vunpack.c.l.b16 %v1568
        %v5497 = vunpack.c.h.b16 %v1568
        %v5498 = vunpack.c.l.b16 %v1569
        %v5499 = vunpack.c.h.b16 %v1569
        %v5500 = vunpack.c.l.b16 %v1570
        %v5501 = vunpack.c.l.b16 %v1571
        %v5502 = vunpack.c.h.b16 %v1571
        %v5503 = vunpack.c.l.b16 %v1572
        %v5504 = vunpack.c.h.b16 %v1572
        %v5505 = vunpack.c.l.b16 %v1573
        %v5506 = vunpack.c.l.b16 %v1574
        %v5507 = vunpack.c.h.b16 %v1574
        %v5508 = vunpack.c.l.b16 %v1575
        %v5509 = vunpack.c.h.b16 %v1575
        %v5510 = vunpack.c.l.b16 %v1576
        %v5511 = vunpack.c.l.b16 %v1577
        %v5512 = vunpack.c.h.b16 %v1577
        %v5513 = vunpack.c.l.b16 %v1578
        %v5514 = vunpack.c.h.b16 %v1578
        %v5515 = vunpack.c.l.b16 %v1579
        %v5516 = vunpack.c.l.b16 %v1580
        %v5517 = vunpack.c.h.b16 %v1580
        %v5518 = vunpack.c.l.b16 %v1581
        %v5519 = vunpack.c.h.b16 %v1581
        %v5520 = vunpack.c.l.b16 %v1582
        %v5521 = vunpack.c.l.b16 %v1583
        %v5522 = vunpack.c.h.b16 %v1583
        %v5523 = vunpack.c.l.b16 %v1584
        %v5524 = vunpack.c.h.b16 %v1584
        %v5525 = vunpack.c.l.b16 %v1585
        %v5526 = vunpack.c.l.b16 %v1586
        %v5527 = vunpack.c.h.b16 %v1586
        %v5528 = vunpack.c.l.b16 %v1587
        %v5529 = vunpack.c.h.b16 %v1587
        %v5530 = vunpack.c.l.b16 %v1588
        %v5531 = vunpack.c.l.b16 %v1589
        %v5532 = vunpack.c.h.b16 %v1589
        %v5533 = vunpack.c.l.b16 %v1590
        %v5534 = vunpack.c.h.b16 %v1590
        %v5535 = vunpack.c.l.b16 %v1591
        %v5536 = vunpack.c.l.b16 %v1592
        %v5537 = vunpack.c.h.b16 %v1592
        %v5538 = vunpack.c.l.b16 %v1593
        %v5539 = vunpack.c.h.b16 %v1593
        %v5540 = vunpack.c.l.b16 %v1594
        %v5541 = vunpack.c.l.b16 %v1595
        %v5542 = vunpack.c.h.b16 %v1595
        %v5543 = vunpack.c.l.b16 %v1596
        %v5544 = vunpack.c.h.b16 %v1596
        %v5545 = vunpack.c.l.b16 %v1597
        %v5546 = vunpack.c.l.b16 %v1598
        %v5547 = vunpack.c.h.b16 %v1598
        %v5548 = vunpack.c.l.b16 %v1599
        %v5549 = vunpack.c.h.b16 %v1599
        %v5550 = vunpack.c.l.b16 %v1600
        %v5551 = vunpack.c.l.b16 %v1601
        %v5552 = vunpack.c.h.b16 %v1601
        %v5553 = vunpack.c.l.b16 %v1602
        %v5554 = vunpack.c.h.b16 %v1602
        %v5555 = vunpack.c.l.b16 %v1603
        %v5556 = vunpack.c.l.b16 %v1604
        %v5557 = vunpack.c.h.b16 %v1604
        %v5558 = vunpack.c.l.b16 %v1605
        %v5559 = vunpack.c.h.b16 %v1605
        %v5560 = vunpack.c.l.b16 %v1606
        %v5561 = vunpack.c.l.b16 %v1607
        %v5562 = vunpack.c.h.b16 %v1607
        %v5563 = vunpack.c.l.b16 %v1608
        %v5564 = vunpack.c.h.b16 %v1608
        %v5565 = vunpack.c.l.b16 %v1609
        %v5566 = vunpack.c.l.b16 %v1610
        %v5567 = vunpack.c.h.b16 %v1610
        %v5568 = vunpack.c.l.b16 %v1611
        %v5569 = vunpack.c.h.b16 %v1611
        %v5570 = vunpack.c.l.b16 %v1612
        %v5571 = vunpack.c.l.b16 %v1613
        %v5572 = vunpack.c.h.b16 %v1613
        %v5573 = vunpack.c.l.b16 %v1614
        %v5574 = vunpack.c.h.b16 %v1614
        %v5575 = vunpack.c.l.b16 %v1615
        %v5576 = vunpack.c.l.b16 %v1616
        %v5577 = vunpack.c.h.b16 %v1616
        %v5578 = vunpack.c.l.b16 %v1617
        %v5579 = vunpack.c.h.b16 %v1617
        %v5580 = vunpack.c.l.b16 %v1618
        %v5581 = vunpack.c.l.b16 %v1619
        %v5582 = vunpack.c.h.b16 %v1619
        %v5583 = vunpack.c.l.b16 %v1620
        %v5584 = vunpack.c.h.b16 %v1620
        %v5585 = vunpack.c.l.b16 %v1621
        %v5586 = vunpack.c.l.b16 %v1622
        %v5587 = vunpack.c.h.b16 %v1622
        %v5588 = vunpack.c.l.b16 %v1623
        %v5589 = vunpack.c.h.b16 %v1623
        %v5590 = vunpack.c.l.b16 %v1624
        %v5591 = vunpack.c.l.b16 %v1625
        %v5592 = vunpack.c.h.b16 %v1625
        %v5593 = vunpack.c.l.b16 %v1626
        %v5594 = vunpack.c.h.b16 %v1626
        %v5595 = vunpack.c.l.b16 %v1627
        %v5596 = vunpack.c.l.b16 %v1628
        %v5597 = vunpack.c.h.b16 %v1628
        %v5598 = vunpack.c.l.b16 %v1629
        %v5599 = vunpack.c.h.b16 %v1629
        %v5600 = vunpack.c.l.b16 %v1630
        %v5601 = vunpack.c.l.b16 %v1631
        %v5602 = vunpack.c.h.b16 %v1631
        %v5603 = vunpack.c.l.b16 %v1632
        %v5604 = vunpack.c.h.b16 %v1632
        %v5605 = vunpack.c.l.b16 %v1633
        %v5606 = vunpack.c.l.b16 %v1634
        %v5607 = vunpack.c.h.b16 %v1634
        %v5608 = vunpack.c.l.b16 %v1635
        %v5609 = vunpack.c.h.b16 %v1635
        %v5610 = vunpack.c.l.b16 %v1636
        %v5611 = vunpack.c.l.b16 %v1637
        %v5612 = vunpack.c.h.b16 %v1637
        %v5613 = vunpack.c.l.b16 %v1638
        %v5614 = vunpack.c.h.b16 %v1638
        %v5615 = vunpack.c.l.b16 %v1639
        %v5616 = vunpack.c.l.b16 %v1640
        %v5617 = vunpack.c.h.b16 %v1640
        %v5618 = vunpack.c.l.b16 %v1641
        %v5619 = vunpack.c.h.b16 %v1641
        %v5620 = vunpack.c.l.b16 %v1642
        %v5621 = vunpack.c.l.b16 %v1643
        %v5622 = vunpack.c.h.b16 %v1643
        %v5623 = vunpack.c.l.b16 %v1644
        %v5624 = vunpack.c.h.b16 %v1644
        %v5625 = vunpack.c.l.b16 %v1645
        %v5626 = vunpack.c.l.b16 %v1646
        %v5627 = vunpack.c.h.b16 %v1646
        %v5628 = vunpack.c.l.b16 %v1647
        %v5629 = vunpack.c.h.b16 %v1647
        %v5630 = vunpack.c.l.b16 %v1648
        %v5631 = vunpack.c.l.b16 %v1649
        %v5632 = vunpack.c.h.b16 %v1649
        %v5633 = vunpack.c.l.b16 %v1650
        %v5634 = vunpack.c.h.b16 %v1650
        %v5635 = vunpack.c.l.b16 %v1651
        %v5636 = vunpack.c.l.b16 %v1652
        %v5637 = vunpack.c.h.b16 %v1652
        %v5638 = vunpack.c.l.b16 %v1653
        %v5639 = vunpack.c.h.b16 %v1653
        %v5640 = vunpack.c.l.b16 %v1654
        %v5641 = vunpack.c.l.b16 %v1655
        %v5642 = vunpack.c.h.b16 %v1655
        %v5643 = vunpack.c.l.b16 %v1656
        %v5644 = vunpack.c.h.b16 %v1656
        %v5645 = vunpack.c.l.b16 %v1657
        %v5646 = vunpack.c.l.b16 %v1658
        %v5647 = vunpack.c.h.b16 %v1658
        %v5648 = vunpack.c.l.b16 %v1659
        %v5649 = vunpack.c.h.b16 %v1659
        %v5650 = vunpack.c.l.b16 %v1660
        %v5651 = vunpack.c.l.b16 %v1661
        %v5652 = vunpack.c.h.b16 %v1661
        %v5653 = vunpack.c.l.b16 %v1662
        %v5654 = vunpack.c.h.b16 %v1662
        %v5655 = vunpack.c.l.b16 %v1663
        %v5656 = vunpack.c.l.b16 %v1664
        %v5657 = vunpack.c.h.b16 %v1664
        %v5658 = vunpack.c.l.b16 %v1665
        %v5659 = vunpack.c.h.b16 %v1665
        %v5660 = vunpack.c.l.b16 %v1666
        %v5661 = vunpack.c.l.b16 %v1667
        %v5662 = vunpack.c.h.b16 %v1667
        %v5663 = vunpack.c.l.b16 %v1668
        %v5664 = vunpack.c.h.b16 %v1668
        %v5665 = vunpack.c.l.b16 %v1669
        %v5666 = vunpack.c.l.b16 %v1670
        %v5667 = vunpack.c.h.b16 %v1670
        %v5668 = vunpack.c.l.b16 %v1671
        %v5669 = vunpack.c.h.b16 %v1671
        %v5670 = vunpack.c.l.b16 %v1672
        %v5671 = vunpack.c.l.b16 %v1673
        %v5672 = vunpack.c.h.b16 %v1673
        %v5673 = vunpack.c.l.b16 %v1674
        %v5674 = vunpack.c.h.b16 %v1674
        %v5675 = vunpack.c.l.b16 %v1675
        %v5676 = vunpack.c.l.b16 %v1676
        %v5677 = vunpack.c.h.b16 %v1676
        %v5678 = vunpack.c.l.b16 %v1677
        %v5679 = vunpack.c.h.b16 %v1677
        %v5680 = vunpack.c.l.b16 %v1678
        %v5681 = vunpack.c.l.b16 %v1679
        %v5682 = vunpack.c.h.b16 %v1679
        %v5683 = vunpack.c.l.b16 %v1680
        %v5684 = vunpack.c.h.b16 %v1680
        %v5685 = vunpack.c.l.b16 %v1681
        %v5686 = vunpack.c.l.b16 %v1682
        %v5687 = vunpack.c.h.b16 %v1682
        %v5688 = vunpack.c.l.b16 %v1683
        %v5689 = vunpack.c.h.b16 %v1683
        %v5690 = vunpack.c.l.b16 %v1684
        %v5691 = vunpack.c.l.b16 %v1685
        %v5692 = vunpack.c.h.b16 %v1685
        %v5693 = vunpack.c.l.b16 %v1686
        %v5694 = vunpack.c.h.b16 %v1686
        %v5695 = vunpack.c.l.b16 %v1687
        %v5696 = vunpack.c.l.b16 %v1688
        %v5697 = vunpack.c.h.b16 %v1688
        %v5698 = vunpack.c.l.b16 %v1689
        %v5699 = vunpack.c.h.b16 %v1689
        %v5700 = vunpack.c.l.b16 %v1690
        %v5701 = vunpack.c.l.b16 %v1691
        %v5702 = vunpack.c.h.b16 %v1691
        %v5703 = vunpack.c.l.b16 %v1692
        %v5704 = vunpack.c.h.b16 %v1692
        %v5705 = vunpack.c.l.b16 %v1693
        %v5706 = vunpack.c.l.b16 %v1694
        %v5707 = vunpack.c.h.b16 %v1694
        %v5708 = vunpack.c.l.b16 %v1695
        %v5709 = vunpack.c.h.b16 %v1695
        %v5710 = vunpack.c.l.b16 %v1696
        %v5711 = vunpack.c.l.b16 %v1697
        %v5712 = vunpack.c.h.b16 %v1697
        %v5713 = vunpack.c.l.b16 %v1698
        %v5714 = vunpack.c.h.b16 %v1698
        %v5715 = vunpack.c.l.b16 %v1699
        %v5716 = vunpack.c.l.b16 %v1700
        %v5717 = vunpack.c.h.b16 %v1700
        %v5718 = vunpack.c.l.b16 %v1701
        %v5719 = vunpack.c.h.b16 %v1701
        %v5720 = vunpack.c.l.b16 %v1702
        %v5721 = vunpack.c.l.b16 %v1703
        %v5722 = vunpack.c.h.b16 %v1703
        %v5723 = vunpack.c.l.b16 %v1704
        %v5724 = vunpack.c.h.b16 %v1704
        %v5725 = vunpack.c.l.b16 %v1705
        %v5726 = vunpack.c.l.b16 %v1706
        %v5727 = vunpack.c.h.b16 %v1706
        %v5728 = vunpack.c.l.b16 %v1707
        %v5729 = vunpack.c.h.b16 %v1707
        %v5730 = vunpack.c.l.b16 %v1708
        %v5731 = vunpack.c.l.b16 %v1709
        %v5732 = vunpack.c.h.b16 %v1709
        %v5733 = vunpack.c.l.b16 %v1710
        %v5734 = vunpack.c.h.b16 %v1710
        %v5735 = vunpack.c.l.b16 %v1711
        %v5736 = vunpack.c.l.b16 %v1712
        %v5737 = vunpack.c.h.b16 %v1712
        %v5738 = vunpack.c.l.b16 %v1713
        %v5739 = vunpack.c.h.b16 %v1713
        %v5740 = vunpack.c.l.b16 %v1714
        %v5741 = vunpack.c.l.b16 %v1715
        %v5742 = vunpack.c.h.b16 %v1715
        %v5743 = vunpack.c.l.b16 %v1716
        %v5744 = vunpack.c.h.b16 %v1716
        %v5745 = vunpack.c.l.b16 %v1717
        %v5746 = vunpack.c.l.b16 %v1718
        %v5747 = vunpack.c.h.b16 %v1718
        %v5748 = vunpack.c.l.b16 %v1719
        %v5749 = vunpack.c.h.b16 %v1719
        %v5750 = vunpack.c.l.b16 %v1720
        %v5751 = vunpack.c.l.b16 %v1721
        %v5752 = vunpack.c.h.b16 %v1721
        %v5753 = vunpack.c.l.b16 %v1722
        %v5754 = vunpack.c.h.b16 %v1722
        %v5755 = vunpack.c.l.b16 %v1723
        %v5756 = vunpack.c.l.b16 %v1724
        %v5757 = vunpack.c.h.b16 %v1724
        %v5758 = vunpack.c.l.b16 %v1725
        %v5759 = vunpack.c.h.b16 %v1725
        %v5760 = vunpack.c.l.b16 %v1726
        %v5761 = vunpack.c.l.b16 %v1727
        %v5762 = vunpack.c.h.b16 %v1727
        %v5763 = vunpack.c.l.b16 %v1728
        %v5764 = vunpack.c.h.b16 %v1728
        %v5765 = vunpack.c.l.b16 %v1729
        %v5766 = vunpack.c.l.b16 %v1730
        %v5767 = vunpack.c.h.b16 %v1730
        %v5768 = vunpack.c.l.b16 %v1731
        %v5769 = vunpack.c.h.b16 %v1731
        %v5770 = vunpack.c.l.b16 %v1732
        %v5771 = vunpack.c.l.b16 %v1733
        %v5772 = vunpack.c.h.b16 %v1733
        %v5773 = vunpack.c.l.b16 %v1734
        %v5774 = vunpack.c.h.b16 %v1734
        %v5775 = vunpack.c.l.b16 %v1735
        %v5776 = vunpack.c.l.b16 %v1736
        %v5777 = vunpack.c.h.b16 %v1736
        %v5778 = vunpack.c.l.b16 %v1737
        %v5779 = vunpack.c.h.b16 %v1737
        %v5780 = vunpack.c.l.b16 %v1738
        %v5781 = vunpack.c.l.b16 %v1739
        %v5782 = vunpack.c.h.b16 %v1739
        %v5783 = vunpack.c.l.b16 %v1740
        %v5784 = vunpack.c.h.b16 %v1740
        %v5785 = vunpack.c.l.b16 %v1741
        %v5786 = vunpack.c.l.b16 %v1742
        %v5787 = vunpack.c.h.b16 %v1742
        %v5788 = vunpack.c.l.b16 %v1743
        %v5789 = vunpack.c.h.b16 %v1743
        %v5790 = vunpack.c.l.b16 %v1744
        %v5791 = vunpack.c.l.b16 %v1745
        %v5792 = vunpack.c.h.b16 %v1745
        %v5793 = vunpack.c.l.b16 %v1746
        %v5794 = vunpack.c.h.b16 %v1746
        %v5795 = vunpack.c.l.b16 %v1747
        %v5796 = vunpack.c.l.b16 %v1748
        %v5797 = vunpack.c.h.b16 %v1748
        %v5798 = vunpack.c.l.b16 %v1749
        %v5799 = vunpack.c.h.b16 %v1749
        %v5800 = vunpack.c.l.b16 %v1750
        %v5801 = vunpack.c.l.b16 %v1751
        %v5802 = vunpack.c.h.b16 %v1751
        %v5803 = vunpack.c.l.b16 %v1752
        %v5804 = vunpack.c.h.b16 %v1752
        %v5805 = vunpack.c.l.b16 %v1753
        %v5806 = vunpack.c.l.b16 %v1754
        %v5807 = vunpack.c.h.b16 %v1754
        %v5808 = vunpack.c.l.b16 %v1755
        %v5809 = vunpack.c.h.b16 %v1755
        %v5810 = vunpack.c.l.b16 %v1756
        %v5811 = vunpack.c.l.b16 %v1757
        %v5812 = vunpack.c.h.b16 %v1757
        %v5813 = vunpack.c.l.b16 %v1758
        %v5814 = vunpack.c.h.b16 %v1758
        %v5815 = vunpack.c.l.b16 %v1759
        %v5816 = vunpack.c.l.b16 %v1760
        %v5817 = vunpack.c.h.b16 %v1760
        %v5818 = vunpack.c.l.b16 %v1761
        %v5819 = vunpack.c.h.b16 %v1761
        %v5820 = vunpack.c.l.b16 %v1762
        %v5821 = vunpack.c.l.b16 %v1763
        %v5822 = vunpack.c.h.b16 %v1763
        %v5823 = vunpack.c.l.b16 %v1764
        %v5824 = vunpack.c.h.b16 %v1764
        %v5825 = vunpack.c.l.b16 %v1765
        %v5826 = vunpack.c.l.b16 %v1766
        %v5827 = vunpack.c.h.b16 %v1766
        %v5828 = vunpack.c.l.b16 %v1767
        %v5829 = vunpack.c.h.b16 %v1767
        %v5830 = vunpack.c.l.b16 %v1768
        %v5831 = vunpack.c.l.b16 %v1769
        %v5832 = vunpack.c.h.b16 %v1769
        %v5833 = vunpack.c.l.b16 %v1770
        %v5834 = vunpack.c.h.b16 %v1770
        %v5835 = vunpack.c.l.b16 %v1771
        %v5836 = vunpack.c.l.b16 %v1772
        %v5837 = vunpack.c.h.b16 %v1772
        %v5838 = vunpack.c.l.b16 %v1773
        %v5839 = vunpack.c.h.b16 %v1773
        %v5840 = vunpack.c.l.b16 %v1774
        %v5841 = vunpack.c.l.b16 %v1775
        %v5842 = vunpack.c.h.b16 %v1775
        %v5843 = vunpack.c.l.b16 %v1776
        %v5844 = vunpack.c.h.b16 %v1776
        %v5845 = vunpack.c.l.b16 %v1777
        %v5846 = vunpack.c.l.b16 %v1778
        %v5847 = vunpack.c.h.b16 %v1778
        %v5848 = vunpack.c.l.b16 %v1779
        %v5849 = vunpack.c.h.b16 %v1779
        %v5850 = vunpack.c.l.b16 %v1780
        %v5851 = vunpack.c.l.b16 %v1781
        %v5852 = vunpack.c.h.b16 %v1781
        %v5853 = vunpack.c.l.b16 %v1782
        %v5854 = vunpack.c.h.b16 %v1782
        %v5855 = vunpack.c.l.b16 %v1783
        %v5856 = vunpack.c.l.b16 %v1784
        %v5857 = vunpack.c.h.b16 %v1784
        %v5858 = vunpack.c.l.b16 %v1785
        %v5859 = vunpack.c.h.b16 %v1785
        %v5860 = vunpack.c.l.b16 %v1786
        %v5861 = vunpack.c.l.b16 %v1787
        %v5862 = vunpack.c.h.b16 %v1787
        %v5863 = vunpack.c.l.b16 %v1788
        %v5864 = vunpack.c.h.b16 %v1788
        %v5865 = vunpack.c.l.b16 %v1789
        %v5866 = vunpack.c.l.b16 %v1790
        %v5867 = vunpack.c.h.b16 %v1790
        %v5868 = vunpack.c.l.b16 %v1791
        %v5869 = vunpack.c.h.b16 %v1791
        %v5870 = vunpack.c.l.b16 %v1792
        %v5871 = vunpack.c.l.b16 %v1793
        %v5872 = vunpack.c.h.b16 %v1793
        %v5873 = vunpack.c.l.b16 %v1794
        %v5874 = vunpack.c.h.b16 %v1794
        %v5875 = vunpack.c.l.b16 %v1795
        %v5876 = vunpack.c.l.b16 %v1796
        %v5877 = vunpack.c.h.b16 %v1796
        %v5878 = vunpack.c.l.b16 %v1797
        %v5879 = vunpack.c.h.b16 %v1797
        %v5880 = vunpack.c.l.b16 %v1798
        %v5881 = vunpack.c.l.b16 %v1799
        %v5882 = vunpack.c.h.b16 %v1799
        %v5883 = vunpack.c.l.b16 %v1800
        %v5884 = vunpack.c.h.b16 %v1800
        %v5885 = vunpack.c.l.b16 %v1801
        %v5886 = vunpack.c.l.b16 %v1802
        %v5887 = vunpack.c.h.b16 %v1802
        %v5888 = vunpack.c.l.b16 %v1803
        %v5889 = vunpack.c.h.b16 %v1803
        %v5890 = vunpack.c.l.b16 %v1804
        %v5891 = vunpack.c.l.b16 %v1805
        %v5892 = vunpack.c.h.b16 %v1805
        %v5893 = vunpack.c.l.b16 %v1806
        %v5894 = vunpack.c.h.b16 %v1806
        %v5895 = vunpack.c.l.b16 %v1807
        %v5896 = vunpack.c.l.b16 %v1808
        %v5897 = vunpack.c.h.b16 %v1808
        %v5898 = vunpack.c.l.b16 %v1809
        %v5899 = vunpack.c.h.b16 %v1809
        %v5900 = vunpack.c.l.b16 %v1810
        %v5901 = vunpack.c.l.b16 %v1811
        %v5902 = vunpack.c.h.b16 %v1811
        %v5903 = vunpack.c.l.b16 %v1812
        %v5904 = vunpack.c.h.b16 %v1812
        %v5905 = vunpack.c.l.b16 %v1813
        %v5906 = vunpack.c.l.b16 %v1814
        %v5907 = vunpack.c.h.b16 %v1814
        %v5908 = vunpack.c.l.b16 %v1815
        %v5909 = vunpack.c.h.b16 %v1815
        %v5910 = vunpack.c.l.b16 %v1816
        %v5911 = vunpack.c.l.b16 %v1817
        %v5912 = vunpack.c.h.b16 %v1817
        %v5913 = vunpack.c.l.b16 %v1818
        %v5914 = vunpack.c.h.b16 %v1818
        %v5915 = vunpack.c.l.b16 %v1819
        %v5916 = vunpack.c.l.b16 %v1820
        %v5917 = vunpack.c.h.b16 %v1820
        %v5918 = vunpack.c.l.b16 %v1821
        %v5919 = vunpack.c.h.b16 %v1821
        %v5920 = vunpack.c.l.b16 %v1822
        %v5921 = vunpack.c.l.b16 %v1823
        %v5922 = vunpack.c.h.b16 %v1823
        %v5923 = vunpack.c.l.b16 %v1824
        %v5924 = vunpack.c.h.b16 %v1824
        %v5925 = vunpack.c.l.b16 %v1825
        %v5926 = vunpack.c.l.b16 %v1826
        %v5927 = vunpack.c.h.b16 %v1826
        %v5928 = vunpack.c.l.b16 %v1827
        %v5929 = vunpack.c.h.b16 %v1827
        %v5930 = vunpack.c.l.b16 %v1828
        %v5931 = vunpack.c.l.b16 %v1829
        %v5932 = vunpack.c.h.b16 %v1829
        %v5933 = vunpack.c.l.b16 %v1830
        %v5934 = vunpack.c.h.b16 %v1830
        %v5935 = vunpack.c.l.b16 %v1831
        %v5936 = vunpack.c.l.b16 %v1832
        %v5937 = vunpack.c.h.b16 %v1832
        %v5938 = vunpack.c.l.b16 %v1833
        %v5939 = vunpack.c.h.b16 %v1833
        %v5940 = vunpack.c.l.b16 %v1834
        %v5941 = vunpack.c.l.b16 %v1835
        %v5942 = vunpack.c.h.b16 %v1835
        %v5943 = vunpack.c.l.b16 %v1836
        %v5944 = vunpack.c.h.b16 %v1836
        %v5945 = vunpack.c.l.b16 %v1837
        %v5946 = vunpack.c.l.b16 %v1838
        %v5947 = vunpack.c.h.b16 %v1838
        %v5948 = vunpack.c.l.b16 %v1839
        %v5949 = vunpack.c.h.b16 %v1839
        %v5950 = vunpack.c.l.b16 %v1840
        %v5951 = vunpack.c.l.b16 %v1841
        %v5952 = vunpack.c.h.b16 %v1841
        %v5953 = vunpack.c.l.b16 %v1842
        %v5954 = vunpack.c.h.b16 %v1842
        %v5955 = vunpack.c.l.b16 %v1843
        %v5956 = vunpack.c.l.b16 %v1844
        %v5957 = vunpack.c.h.b16 %v1844
        %v5958 = vunpack.c.l.b16 %v1845
        %v5959 = vunpack.c.h.b16 %v1845
        %v5960 = vunpack.c.l.b16 %v1846
        %v5961 = vunpack.c.l.b16 %v1847
        %v5962 = vunpack.c.h.b16 %v1847
        %v5963 = vunpack.c.l.b16 %v1848
        %v5964 = vunpack.c.h.b16 %v1848
        %v5965 = vunpack.c.l.b16 %v1849
        %v5966 = vunpack.c.l.b16 %v1850
        %v5967 = vunpack.c.h.b16 %v1850
        %v5968 = vunpack.c.l.b16 %v1851
        %v5969 = vunpack.c.h.b16 %v1851
        %v5970 = vunpack.c.l.b16 %v1852
        %v5971 = vunpack.c.l.b16 %v1853
        %v5972 = vunpack.c.h.b16 %v1853
        %v5973 = vunpack.c.l.b16 %v1854
        %v5974 = vunpack.c.h.b16 %v1854
        %v5975 = vunpack.c.l.b16 %v1855
        %v5976 = vunpack.c.l.b16 %v1856
        %v5977 = vunpack.c.h.b16 %v1856
        %v5978 = vunpack.c.l.b16 %v1857
        %v5979 = vunpack.c.h.b16 %v1857
        %v5980 = vunpack.c.l.b16 %v1858
        %v5981 = vunpack.c.l.b16 %v1859
        %v5982 = vunpack.c.h.b16 %v1859
        %v5983 = vunpack.c.l.b16 %v1860
        %v5984 = vunpack.c.h.b16 %v1860
        %v5985 = vunpack.c.l.b16 %v1861
        %v5986 = vunpack.c.l.b16 %v1862
        %v5987 = vunpack.c.h.b16 %v1862
        %v5988 = vunpack.c.l.b16 %v1863
        %v5989 = vunpack.c.h.b16 %v1863
        %v5990 = vunpack.c.l.b16 %v1864
        %v5991 = vunpack.c.l.b16 %v1865
        %v5992 = vunpack.c.h.b16 %v1865
        %v5993 = vunpack.c.l.b16 %v1866
        %v5994 = vunpack.c.h.b16 %v1866
        %v5995 = vunpack.c.l.b16 %v1867
        %v5996 = vunpack.c.l.b16 %v1868
        %v5997 = vunpack.c.h.b16 %v1868
        %v5998 = vunpack.c.l.b16 %v1869
        %v5999 = vunpack.c.h.b16 %v1869
        %v6000 = vunpack.c.l.b16 %v1870
        %v6001 = vunpack.c.l.b16 %v1871
        %v6002 = vunpack.c.h.b16 %v1871
        %v6003 = vunpack.c.l.b16 %v1872
        %v6004 = vunpack.c.h.b16 %v1872
        %v6005 = vunpack.c.l.b16 %v1873
        %v6006 = vunpack.c.l.b16 %v1874
        %v6007 = vunpack.c.h.b16 %v1874
        %v6008 = vunpack.c.l.b16 %v1875
        %v6009 = vunpack.c.h.b16 %v1875
        %v6010 = vunpack.c.l.b16 %v1876
        %v6011 = vunpack.c.l.b16 %v1877
        %v6012 = vunpack.c.h.b16 %v1877
        %v6013 = vunpack.c.l.b16 %v1878
        %v6014 = vunpack.c.h.b16 %v1878
        %v6015 = vunpack.c.l.b16 %v1879
        %v6016 = vunpack.c.l.b16 %v1880
        %v6017 = vunpack.c.h.b16 %v1880
        %v6018 = vunpack.c.l.b16 %v1881
        %v6019 = vunpack.c.h.b16 %v1881
        %v6020 = vunpack.c.l.b16 %v1882
        %v6021 = vunpack.c.l.b16 %v1883
        %v6022 = vunpack.c.h.b16 %v1883
        %v6023 = vunpack.c.l.b16 %v1884
        %v6024 = vunpack.c.h.b16 %v1884
        %v6025 = vunpack.c.l.b16 %v1885
        %v6026 = vunpack.c.l.b16 %v1886
        %v6027 = vunpack.c.h.b16 %v1886
        %v6028 = vunpack.c.l.b16 %v1887
        %v6029 = vunpack.c.h.b16 %v1887
        %v6030 = vunpack.c.l.b16 %v1888
        %v6031 = vunpack.c.l.b16 %v1889
        %v6032 = vunpack.c.h.b16 %v1889
        %v6033 = vunpack.c.l.b16 %v1890
        %v6034 = vunpack.c.h.b16 %v1890
        %v6035 = vunpack.c.l.b16 %v1891
        %v6036 = vunpack.c.l.b16 %v1892
        %v6037 = vunpack.c.h.b16 %v1892
        %v6038 = vunpack.c.l.b16 %v1893
        %v6039 = vunpack.c.h.b16 %v1893
        %v6040 = vunpack.c.l.b16 %v1894
        %v6041 = vunpack.c.l.b16 %v1895
        %v6042 = vunpack.c.h.b16 %v1895
        %v6043 = vunpack.c.l.b16 %v1896
        %v6044 = vunpack.c.h.b16 %v1896
        %v6045 = vunpack.c.l.b16 %v1897
        %v6046 = vunpack.c.l.b16 %v1898
        %v6047 = vunpack.c.h.b16 %v1898
        %v6048 = vunpack.c.l.b16 %v1899
        %v6049 = vunpack.c.h.b16 %v1899
        %v6050 = vunpack.c.l.b16 %v1900
        %v6051 = vunpack.c.l.b16 %v1901
        %v6052 = vunpack.c.h.b16 %v1901
        %v6053 = vunpack.c.l.b16 %v1902
        %v6054 = vunpack.c.h.b16 %v1902
        %v6055 = vunpack.c.l.b16 %v1903
        %v6056 = vunpack.c.l.b16 %v1904
        %v6057 = vunpack.c.h.b16 %v1904
        %v6058 = vunpack.c.l.b16 %v1905
        %v6059 = vunpack.c.h.b16 %v1905
        %v6060 = vunpack.c.l.b16 %v1906
        %v6061 = vunpack.c.l.b16 %v1907
        %v6062 = vunpack.c.h.b16 %v1907
        %v6063 = vunpack.c.l.b16 %v1908
        %v6064 = vunpack.c.h.b16 %v1908
        %v6065 = vunpack.c.l.b16 %v1909
        %v6066 = vunpack.c.l.b16 %v1910
        %v6067 = vunpack.c.h.b16 %v1910
        %v6068 = vunpack.c.l.b16 %v1911
        %v6069 = vunpack.c.h.b16 %v1911
        %v6070 = vunpack.c.l.b16 %v1912
        %v6071 = vunpack.c.l.b16 %v1913
        %v6072 = vunpack.c.h.b16 %v1913
        %v6073 = vunpack.c.l.b16 %v1914
        %v6074 = vunpack.c.h.b16 %v1914
        %v6075 = vunpack.c.l.b16 %v1915
        %v6076 = vunpack.c.l.b16 %v1916
        %v6077 = vunpack.c.h.b16 %v1916
        %v6078 = vunpack.c.l.b16 %v1917
        %v6079 = vunpack.c.h.b16 %v1917
        %v6080 = vunpack.c.l.b16 %v1918
        %v6081 = vunpack.c.l.b16 %v1919
        %v6082 = vunpack.c.h.b16 %v1919
        %v6083 = vunpack.c.l.b16 %v1920
        %v6084 = vunpack.c.h.b16 %v1920
        %v6085 = vunpack.c.l.b16 %v1921
        %v6086 = vunpack.c.l.b16 %v1922
        %v6087 = vunpack.c.h.b16 %v1922
        %v6088 = vunpack.c.l.b16 %v1923
        %v6089 = vunpack.c.h.b16 %v1923
        %v6090 = vunpack.c.l.b16 %v1924
        %v6091 = vunpack.c.l.b16 %v1925
        %v6092 = vunpack.c.h.b16 %v1925
        %v6093 = vunpack.c.l.b16 %v1926
        %v6094 = vunpack.c.h.b16 %v1926
        %v6095 = vunpack.c.l.b16 %v1927
        %v6096 = vunpack.c.l.b16 %v1928
        %v6097 = vunpack.c.h.b16 %v1928
        %v6098 = vunpack.c.l.b16 %v1929
        %v6099 = vunpack.c.h.b16 %v1929
        %v6100 = vunpack.c.l.b16 %v1930
        %v6101 = vunpack.c.l.b16 %v1931
        %v6102 = vunpack.c.h.b16 %v1931
        %v6103 = vunpack.c.l.b16 %v1932
        %v6104 = vunpack.c.h.b16 %v1932
        %v6105 = vunpack.c.l.b16 %v1933
        %v6106 = vunpack.c.l.b16 %v1934
        %v6107 = vunpack.c.h.b16 %v1934
        %v6108 = vunpack.c.l.b16 %v1935
        %v6109 = vunpack.c.h.b16 %v1935
        %v6110 = vunpack.c.l.b16 %v1936
        %v6111 = vunpack.c.l.b16 %v1937
        %v6112 = vunpack.c.h.b16 %v1937
        %v6113 = vunpack.c.l.b16 %v1938
        %v6114 = vunpack.c.h.b16 %v1938
        %v6115 = vunpack.c.l.b16 %v1939
        %v6116 = vunpack.c.l.b16 %v1940
        %v6117 = vunpack.c.h.b16 %v1940
        %v6118 = vunpack.c.l.b16 %v1941
        %v6119 = vunpack.c.h.b16 %v1941
        %v6120 = vunpack.c.l.b16 %v1942
        %v6121 = vunpack.c.l.b16 %v1943
        %v6122 = vunpack.c.h.b16 %v1943
        %v6123 = vunpack.c.l.b16 %v1944
        %v6124 = vunpack.c.h.b16 %v1944
        %v6125 = vunpack.c.l.b16 %v1945
        %v6126 = vunpack.c.l.b16 %v1946
        %v6127 = vunpack.c.h.b16 %v1946
        %v6128 = vunpack.c.l.b16 %v1947
        %v6129 = vunpack.c.h.b16 %v1947
        %v6130 = vunpack.c.l.b16 %v1948
        %v6131 = vunpack.c.l.b16 %v1949
        %v6132 = vunpack.c.h.b16 %v1949
        %v6133 = vunpack.c.l.b16 %v1950
        %v6134 = vunpack.c.h.b16 %v1950
        %v6135 = vunpack.c.l.b16 %v1951
        %v6136 = vunpack.c.l.b16 %v1952
        %v6137 = vunpack.c.h.b16 %v1952
        %v6138 = vunpack.c.l.b16 %v1953
        %v6139 = vunpack.c.h.b16 %v1953
        %v6140 = vunpack.c.l.b16 %v1954
        %v6141 = vunpack.c.l.b16 %v1955
        %v6142 = vunpack.c.h.b16 %v1955
        %v6143 = vunpack.c.l.b16 %v1956
        %v6144 = vunpack.c.h.b16 %v1956
        %v6145 = vunpack.c.l.b16 %v1957
        %v6146 = vunpack.c.l.b16 %v1958
        %v6147 = vunpack.c.h.b16 %v1958
        %v6148 = vunpack.c.l.b16 %v1959
        %v6149 = vunpack.c.h.b16 %v1959
        %v6150 = vunpack.c.l.b16 %v1960
        %v6151 = vunpack.c.l.b16 %v1961
        %v6152 = vunpack.c.h.b16 %v1961
        %v6153 = vunpack.c.l.b16 %v1962
        %v6154 = vunpack.c.h.b16 %v1962
        %v6155 = vunpack.c.l.b16 %v1963
        %v6156 = vunpack.c.l.b16 %v1964
        %v6157 = vunpack.c.h.b16 %v1964
        %v6158 = vunpack.c.l.b16 %v1965
        %v6159 = vunpack.c.h.b16 %v1965
        %v6160 = vunpack.c.l.b16 %v1966
        %v6161 = vunpack.c.l.b16 %v1967
        %v6162 = vunpack.c.h.b16 %v1967
        %v6163 = vunpack.c.l.b16 %v1968
        %v6164 = vunpack.c.h.b16 %v1968
        %v6165 = vunpack.c.l.b16 %v1969
        %v6166 = vunpack.c.l.b16 %v1970
        %v6167 = vunpack.c.h.b16 %v1970
        %v6168 = vunpack.c.l.b16 %v1971
        %v6169 = vunpack.c.h.b16 %v1971
        %v6170 = vunpack.c.l.b16 %v1972
        %v6171 = vunpack.c.l.b16 %v1973
        %v6172 = vunpack.c.h.b16 %v1973
        %v6173 = vunpack.c.l.b16 %v1974
        %v6174 = vunpack.c.h.b16 %v1974
        %v6175 = vunpack.c.l.b16 %v1975
        %v6176 = vunpack.c.l.b16 %v1976
        %v6177 = vunpack.c.h.b16 %v1976
        %v6178 = vunpack.c.l.b16 %v1977
        %v6179 = vunpack.c.h.b16 %v1977
        %v6180 = vunpack.c.l.b16 %v1978
        %v6181 = vunpack.c.l.b16 %v1979
        %v6182 = vunpack.c.h.b16 %v1979
        %v6183 = vunpack.c.l.b16 %v1980
        %v6184 = vunpack.c.h.b16 %v1980
        %v6185 = vunpack.c.l.b16 %v1981
        %v6186 = vunpack.c.l.b16 %v1982
        %v6187 = vunpack.c.h.b16 %v1982
        %v6188 = vunpack.c.l.b16 %v1983
        %v6189 = vunpack.c.h.b16 %v1983
        %v6190 = vunpack.c.l.b16 %v1984
        %v6191 = vunpack.c.l.b16 %v1985
        %v6192 = vunpack.c.h.b16 %v1985
        %v6193 = vunpack.c.l.b16 %v1986
        %v6194 = vunpack.c.h.b16 %v1986
        %v6195 = vunpack.c.l.b16 %v1987
        %v6196 = vpack.c.b16 %v3641, %v3636
        %v6197 = vpack.c.b16 %v3642, %v3637
        %v6198 = vpack.c.b16 %v3643, %v3638
        %v6199 = vpack.c.b16 %v3644, %v3639
        %v6200 = vpack.c.b16 %v3645, %v3640
        %v6201 = vpack.c.b16 %v3651, %v3646
        %v6202 = vpack.c.b16 %v3652, %v3647
        %v6203 = vpack.c.b16 %v3653, %v3648
        %v6204 = vpack.c.b16 %v3654, %v3649
        %v6205 = vpack.c.b16 %v3655, %v3650
        %v6206 = vpack.c.b16 %v3661, %v3656
        %v6207 = vpack.c.b16 %v3662, %v3657
        %v6208 = vpack.c.b16 %v3663, %v3658
        %v6209 = vpack.c.b16 %v3664, %v3659
        %v6210 = vpack.c.b16 %v3665, %v3660
        %v6211 = vpack.c.b16 %v3671, %v3666
        %v6212 = vpack.c.b16 %v3672, %v3667
        %v6213 = vpack.c.b16 %v3673, %v3668
        %v6214 = vpack.c.b16 %v3674, %v3669
        %v6215 = vpack.c.b16 %v3675, %v3670
        %v6216 = vpack.c.b16 %v3681, %v3676
        %v6217 = vpack.c.b16 %v3682, %v3677
        %v6218 = vpack.c.b16 %v3683, %v3678
        %v6219 = vpack.c.b16 %v3684, %v3679
        %v6220 = vpack.c.b16 %v3685, %v3680
        %v6221 = vpack.c.b16 %v3691, %v3686
        %v6222 = vpack.c.b16 %v3692, %v3687
        %v6223 = vpack.c.b16 %v3693, %v3688
        %v6224 = vpack.c.b16 %v3694, %v3689
        %v6225 = vpack.c.b16 %v3695, %v3690
        %v6226 = vpack.c.b16 %v3701, %v3696
        %v6227 = vpack.c.b16 %v3702, %v3697
        %v6228 = vpack.c.b16 %v3703, %v3698
        %v6229 = vpack.c.b16 %v3704, %v3699
        %v6230 = vpack.c.b16 %v3705, %v3700
        %v6231 = vpack.c.b16 %v3711, %v3706
        %v6232 = vpack.c.b16 %v3712, %v3707
        %v6233 = vpack.c.b16 %v3713, %v3708
        %v6234 = vpack.c.b16 %v3714, %v3709
        %v6235 = vpack.c.b16 %v3715, %v3710
        %v6236 = vpack.c.b16 %v3721, %v3716
        %v6237 = vpack.c.b16 %v3722, %v3717
        %v6238 = vpack.c.b16 %v3723, %v3718
        %v6239 = vpack.c.b16 %v3724, %v3719
        %v6240 = vpack.c.b16 %v3725, %v3720
        %v6241 = vpack.c.b16 %v3731, %v3726
        %v6242 = vpack.c.b16 %v3732, %v3727
        %v6243 = vpack.c.b16 %v3733, %v3728
        %v6244 = vpack.c.b16 %v3734, %v3729
        %v6245 = vpack.c.b16 %v3735, %v3730
        %v6246 = vpack.c.b16 %v3741, %v3736
        %v6247 = vpack.c.b16 %v3742, %v3737
        %v6248 = vpack.c.b16 %v3743, %v3738
        %v6249 = vpack.c.b16 %v3744, %v3739
        %v6250 = vpack.c.b16 %v3745, %v3740
        %v6251 = vpack.c.b16 %v3751, %v3746
        %v6252 = vpack.c.b16 %v3752, %v3747
        %v6253 = vpack.c.b16 %v3753, %v3748
        %v6254 = vpack.c.b16 %v3754, %v3749
        %v6255 = vpack.c.b16 %v3755, %v3750
        %v6256 = vpack.c.b16 %v3761, %v3756
        %v6257 = vpack.c.b16 %v3762, %v3757
        %v6258 = vpack.c.b16 %v3763, %v3758
        %v6259 = vpack.c.b16 %v3764, %v3759
        %v6260 = vpack.c.b16 %v3765, %v3760
        %v6261 = vpack.c.b16 %v3771, %v3766
        %v6262 = vpack.c.b16 %v3772, %v3767
        %v6263 = vpack.c.b16 %v3773, %v3768
        %v6264 = vpack.c.b16 %v3774, %v3769
        %v6265 = vpack.c.b16 %v3775, %v3770
        %v6266 = vpack.c.b16 %v3781, %v3776
        %v6267 = vpack.c.b16 %v3782, %v3777
        %v6268 = vpack.c.b16 %v3783, %v3778
        %v6269 = vpack.c.b16 %v3784, %v3779
        %v6270 = vpack.c.b16 %v3785, %v3780
        %v6271 = vpack.c.b16 %v3791, %v3786
        %v6272 = vpack.c.b16 %v3792, %v3787
        %v6273 = vpack.c.b16 %v3793, %v3788
        %v6274 = vpack.c.b16 %v3794, %v3789
        %v6275 = vpack.c.b16 %v3795, %v3790
        %v6276 = vpack.c.b16 %v3801, %v3796
        %v6277 = vpack.c.b16 %v3802, %v3797
        %v6278 = vpack.c.b16 %v3803, %v3798
        %v6279 = vpack.c.b16 %v3804, %v3799
        %v6280 = vpack.c.b16 %v3805, %v3800
        %v6281 = vpack.c.b16 %v3811, %v3806
        %v6282 = vpack.c.b16 %v3812, %v3807
        %v6283 = vpack.c.b16 %v3813, %v3808
        %v6284 = vpack.c.b16 %v3814, %v3809
        %v6285 = vpack.c.b16 %v3815, %v3810
        %v6286 = vpack.c.b16 %v3821, %v3816
        %v6287 = vpack.c.b16 %v3822, %v3817
        %v6288 = vpack.c.b16 %v3823, %v3818
        %v6289 = vpack.c.b16 %v3824, %v3819
        %v6290 = vpack.c.b16 %v3825, %v3820
        %v6291 = vpack.c.b16 %v3831, %v3826
        %v6292 = vpack.c.b16 %v3832, %v3827
        %v6293 = vpack.c.b16 %v3833, %v3828
        %v6294 = vpack.c.b16 %v3834, %v3829
        %v6295 = vpack.c.b16 %v3835, %v3830
        %v6296 = vpack.c.b16 %v3841, %v3836
        %v6297 = vpack.c.b16 %v3842, %v3837
        %v6298 = vpack.c.b16 %v3843, %v3838
        %v6299 = vpack.c.b16 %v3844, %v3839
        %v6300 = vpack.c.b16 %v3845, %v3840
        %v6301 = vpack.c.b16 %v3851, %v3846
        %v6302 = vpack.c.b16 %v3852, %v3847
        %v6303 = vpack.c.b16 %v3853, %v3848
        %v6304 = vpack.c.b16 %v3854, %v3849
        %v6305 = vpack.c.b16 %v3855, %v3850
        %v6306 = vpack.c.b16 %v3861, %v3856
        %v6307 = vpack.c.b16 %v3862, %v3857
        %v6308 = vpack.c.b16 %v3863, %v3858
        %v6309 = vpack.c.b16 %v3864, %v3859
        %v6310 = vpack.c.b16 %v3865, %v3860
        %v6311 = vpack.c.b16 %v3871, %v3866
        %v6312 = vpack.c.b16 %v3872, %v3867
        %v6313 = vpack.c.b16 %v3873, %v3868
        %v6314 = vpack.c.b16 %v3874, %v3869
        %v6315 = vpack.c.b16 %v3875, %v3870
        %v6316 = vpack.c.b16 %v3881, %v3876
        %v6317 = vpack.c.b16 %v3882, %v3877
        %v6318 = vpack.c.b16 %v3883, %v3878
        %v6319 = vpack.c.b16 %v3884, %v3879
        %v6320 = vpack.c.b16 %v3885, %v3880
        %v6321 = vpack.c.b16 %v3891, %v3886
        %v6322 = vpack.c.b16 %v3892, %v3887
        %v6323 = vpack.c.b16 %v3893, %v3888
        %v6324 = vpack.c.b16 %v3894, %v3889
        %v6325 = vpack.c.b16 %v3895, %v3890
        %v6326 = vpack.c.b16 %v3901, %v3896
        %v6327 = vpack.c.b16 %v3902, %v3897
        %v6328 = vpack.c.b16 %v3903, %v3898
        %v6329 = vpack.c.b16 %v3904, %v3899
        %v6330 = vpack.c.b16 %v3905, %v3900
        %v6331 = vpack.c.b16 %v3911, %v3906
        %v6332 = vpack.c.b16 %v3912, %v3907
        %v6333 = vpack.c.b16 %v3913, %v3908
        %v6334 = vpack.c.b16 %v3914, %v3909
        %v6335 = vpack.c.b16 %v3915, %v3910
        %v6336 = vpack.c.b16 %v3921, %v3916
        %v6337 = vpack.c.b16 %v3922, %v3917
        %v6338 = vpack.c.b16 %v3923, %v3918
        %v6339 = vpack.c.b16 %v3924, %v3919
        %v6340 = vpack.c.b16 %v3925, %v3920
        %v6341 = vpack.c.b16 %v3931, %v3926
        %v6342 = vpack.c.b16 %v3932, %v3927
        %v6343 = vpack.c.b16 %v3933, %v3928
        %v6344 = vpack.c.b16 %v3934, %v3929
        %v6345 = vpack.c.b16 %v3935, %v3930
        %v6346 = vpack.c.b16 %v3941, %v3936
        %v6347 = vpack.c.b16 %v3942, %v3937
        %v6348 = vpack.c.b16 %v3943, %v3938
        %v6349 = vpack.c.b16 %v3944, %v3939
        %v6350 = vpack.c.b16 %v3945, %v3940
        %v6351 = vpack.c.b16 %v3951, %v3946
        %v6352 = vpack.c.b16 %v3952, %v3947
        %v6353 = vpack.c.b16 %v3953, %v3948
        %v6354 = vpack.c.b16 %v3954, %v3949
        %v6355 = vpack.c.b16 %v3955, %v3950
        %v6356 = vpack.c.b16 %v3961, %v3956
        %v6357 = vpack.c.b16 %v3962, %v3957
        %v6358 = vpack.c.b16 %v3963, %v3958
        %v6359 = vpack.c.b16 %v3964, %v3959
        %v6360 = vpack.c.b16 %v3965, %v3960
        %v6361 = vpack.c.b16 %v3971, %v3966
        %v6362 = vpack.c.b16 %v3972, %v3967
        %v6363 = vpack.c.b16 %v3973, %v3968
        %v6364 = vpack.c.b16 %v3974, %v3969
        %v6365 = vpack.c.b16 %v3975, %v3970
        %v6366 = vpack.c.b16 %v3981, %v3976
        %v6367 = vpack.c.b16 %v3982, %v3977
        %v6368 = vpack.c.b16 %v3983, %v3978
        %v6369 = vpack.c.b16 %v3984, %v3979
        %v6370 = vpack.c.b16 %v3985, %v3980
        %v6371 = vpack.c.b16 %v3991, %v3986
        %v6372 = vpack.c.b16 %v3992, %v3987
        %v6373 = vpack.c.b16 %v3993, %v3988
        %v6374 = vpack.c.b16 %v3994, %v3989
        %v6375 = vpack.c.b16 %v3995, %v3990
        %v6376 = vpack.c.b16 %v4001, %v3996
        %v6377 = vpack.c.b16 %v4002, %v3997
        %v6378 = vpack.c.b16 %v4003, %v3998
        %v6379 = vpack.c.b16 %v4004, %v3999
        %v6380 = vpack.c.b16 %v4005, %v4000
        %v6381 = vpack.c.b16 %v4011, %v4006
        %v6382 = vpack.c.b16 %v4012, %v4007
        %v6383 = vpack.c.b16 %v4013, %v4008
        %v6384 = vpack.c.b16 %v4014, %v4009
        %v6385 = vpack.c.b16 %v4015, %v4010
        %v6386 = vpack.c.b16 %v4021, %v4016
        %v6387 = vpack.c.b16 %v4022, %v4017
        %v6388 = vpack.c.b16 %v4023, %v4018
        %v6389 = vpack.c.b16 %v4024, %v4019
        %v6390 = vpack.c.b16 %v4025, %v4020
        %v6391 = vpack.c.b16 %v4031, %v4026
        %v6392 = vpack.c.b16 %v4032, %v4027
        %v6393 = vpack.c.b16 %v4033, %v4028
        %v6394 = vpack.c.b16 %v4034, %v4029
        %v6395 = vpack.c.b16 %v4035, %v4030
        %v6396 = vpack.c.b16 %v4041, %v4036
        %v6397 = vpack.c.b16 %v4042, %v4037
        %v6398 = vpack.c.b16 %v4043, %v4038
        %v6399 = vpack.c.b16 %v4044, %v4039
        %v6400 = vpack.c.b16 %v4045, %v4040
        %v6401 = vpack.c.b16 %v4051, %v4046
        %v6402 = vpack.c.b16 %v4052, %v4047
        %v6403 = vpack.c.b16 %v4053, %v4048
        %v6404 = vpack.c.b16 %v4054, %v4049
        %v6405 = vpack.c.b16 %v4055, %v4050
        %v6406 = vpack.c.b16 %v4061, %v4056
        %v6407 = vpack.c.b16 %v4062, %v4057
        %v6408 = vpack.c.b16 %v4063, %v4058
        %v6409 = vpack.c.b16 %v4064, %v4059
        %v6410 = vpack.c.b16 %v4065, %v4060
        %v6411 = vpack.c.b16 %v4071, %v4066
        %v6412 = vpack.c.b16 %v4072, %v4067
        %v6413 = vpack.c.b16 %v4073, %v4068
        %v6414 = vpack.c.b16 %v4074, %v4069
        %v6415 = vpack.c.b16 %v4075, %v4070
        %v6416 = vpack.c.b16 %v4081, %v4076
        %v6417 = vpack.c.b16 %v4082, %v4077
        %v6418 = vpack.c.b16 %v4083, %v4078
        %v6419 = vpack.c.b16 %v4084, %v4079
        %v6420 = vpack.c.b16 %v4085, %v4080
        %v6421 = vpack.c.b16 %v4091, %v4086
        %v6422 = vpack.c.b16 %v4092, %v4087
        %v6423 = vpack.c.b16 %v4093, %v4088
        %v6424 = vpack.c.b16 %v4094, %v4089
        %v6425 = vpack.c.b16 %v4095, %v4090
        %v6426 = vpack.c.b16 %v4101, %v4096
        %v6427 = vpack.c.b16 %v4102, %v4097
        %v6428 = vpack.c.b16 %v4103, %v4098
        %v6429 = vpack.c.b16 %v4104, %v4099
        %v6430 = vpack.c.b16 %v4105, %v4100
        %v6431 = vpack.c.b16 %v4111, %v4106
        %v6432 = vpack.c.b16 %v4112, %v4107
        %v6433 = vpack.c.b16 %v4113, %v4108
        %v6434 = vpack.c.b16 %v4114, %v4109
        %v6435 = vpack.c.b16 %v4115, %v4110
        %v6436 = vpack.c.b16 %v4121, %v4116
        %v6437 = vpack.c.b16 %v4122, %v4117
        %v6438 = vpack.c.b16 %v4123, %v4118
        %v6439 = vpack.c.b16 %v4124, %v4119
        %v6440 = vpack.c.b16 %v4125, %v4120
        %v6441 = vpack.c.b16 %v4131, %v4126
        %v6442 = vpack.c.b16 %v4132, %v4127
        %v6443 = vpack.c.b16 %v4133, %v4128
        %v6444 = vpack.c.b16 %v4134, %v4129
        %v6445 = vpack.c.b16 %v4135, %v4130
        %v6446 = vpack.c.b16 %v4141, %v4136
        %v6447 = vpack.c.b16 %v4142, %v4137
        %v6448 = vpack.c.b16 %v4143, %v4138
        %v6449 = vpack.c.b16 %v4144, %v4139
        %v6450 = vpack.c.b16 %v4145, %v4140
        %v6451 = vpack.c.b16 %v4151, %v4146
        %v6452 = vpack.c.b16 %v4152, %v4147
        %v6453 = vpack.c.b16 %v4153, %v4148
        %v6454 = vpack.c.b16 %v4154, %v4149
        %v6455 = vpack.c.b16 %v4155, %v4150
        %v6456 = vpack.c.b16 %v4161, %v4156
        %v6457 = vpack.c.b16 %v4162, %v4157
        %v6458 = vpack.c.b16 %v4163, %v4158
        %v6459 = vpack.c.b16 %v4164, %v4159
        %v6460 = vpack.c.b16 %v4165, %v4160
        %v6461 = vpack.c.b16 %v4171, %v4166
        %v6462 = vpack.c.b16 %v4172, %v4167
        %v6463 = vpack.c.b16 %v4173, %v4168
        %v6464 = vpack.c.b16 %v4174, %v4169
        %v6465 = vpack.c.b16 %v4175, %v4170
        %v6466 = vpack.c.b16 %v4181, %v4176
        %v6467 = vpack.c.b16 %v4182, %v4177
        %v6468 = vpack.c.b16 %v4183, %v4178
        %v6469 = vpack.c.b16 %v4184, %v4179
        %v6470 = vpack.c.b16 %v4185, %v4180
        %v6471 = vpack.c.b16 %v4191, %v4186
        %v6472 = vpack.c.b16 %v4192, %v4187
        %v6473 = vpack.c.b16 %v4193, %v4188
        %v6474 = vpack.c.b16 %v4194, %v4189
        %v6475 = vpack.c.b16 %v4195, %v4190
        %v6476 = vpack.c.b16 %v4201, %v4196
        %v6477 = vpack.c.b16 %v4202, %v4197
        %v6478 = vpack.c.b16 %v4203, %v4198
        %v6479 = vpack.c.b16 %v4204, %v4199
        %v6480 = vpack.c.b16 %v4205, %v4200
        %v6481 = vpack.c.b16 %v4211, %v4206
        %v6482 = vpack.c.b16 %v4212, %v4207
        %v6483 = vpack.c.b16 %v4213, %v4208
        %v6484 = vpack.c.b16 %v4214, %v4209
        %v6485 = vpack.c.b16 %v4215, %v4210
        %v6486 = vpack.c.b16 %v4221, %v4216
        %v6487 = vpack.c.b16 %v4222, %v4217
        %v6488 = vpack.c.b16 %v4223, %v4218
        %v6489 = vpack.c.b16 %v4224, %v4219
        %v6490 = vpack.c.b16 %v4225, %v4220
        %v6491 = vpack.c.b16 %v4231, %v4226
        %v6492 = vpack.c.b16 %v4232, %v4227
        %v6493 = vpack.c.b16 %v4233, %v4228
        %v6494 = vpack.c.b16 %v4234, %v4229
        %v6495 = vpack.c.b16 %v4235, %v4230
        %v6496 = vpack.c.b16 %v4241, %v4236
        %v6497 = vpack.c.b16 %v4242, %v4237
        %v6498 = vpack.c.b16 %v4243, %v4238
        %v6499 = vpack.c.b16 %v4244, %v4239
        %v6500 = vpack.c.b16 %v4245, %v4240
        %v6501 = vpack.c.b16 %v4251, %v4246
        %v6502 = vpack.c.b16 %v4252, %v4247
        %v6503 = vpack.c.b16 %v4253, %v4248
        %v6504 = vpack.c.b16 %v4254, %v4249
        %v6505 = vpack.c.b16 %v4255, %v4250
        %v6506 = vpack.c.b16 %v4261, %v4256
        %v6507 = vpack.c.b16 %v4262, %v4257
        %v6508 = vpack.c.b16 %v4263, %v4258
        %v6509 = vpack.c.b16 %v4264, %v4259
        %v6510 = vpack.c.b16 %v4265, %v4260
        %v6511 = vpack.c.b16 %v4271, %v4266
        %v6512 = vpack.c.b16 %v4272, %v4267
        %v6513 = vpack.c.b16 %v4273, %v4268
        %v6514 = vpack.c.b16 %v4274, %v4269
        %v6515 = vpack.c.b16 %v4275, %v4270
        %v6516 = vpack.c.b16 %v4281, %v4276
        %v6517 = vpack.c.b16 %v4282, %v4277
        %v6518 = vpack.c.b16 %v4283, %v4278
        %v6519 = vpack.c.b16 %v4284, %v4279
        %v6520 = vpack.c.b16 %v4285, %v4280
        %v6521 = vpack.c.b16 %v4291, %v4286
        %v6522 = vpack.c.b16 %v4292, %v4287
        %v6523 = vpack.c.b16 %v4293, %v4288
        %v6524 = vpack.c.b16 %v4294, %v4289
        %v6525 = vpack.c.b16 %v4295, %v4290
        %v6526 = vpack.c.b16 %v4301, %v4296
        %v6527 = vpack.c.b16 %v4302, %v4297
        %v6528 = vpack.c.b16 %v4303, %v4298
        %v6529 = vpack.c.b16 %v4304, %v4299
        %v6530 = vpack.c.b16 %v4305, %v4300
        %v6531 = vpack.c.b16 %v4311, %v4306
        %v6532 = vpack.c.b16 %v4312, %v4307
        %v6533 = vpack.c.b16 %v4313, %v4308
        %v6534 = vpack.c.b16 %v4314, %v4309
        %v6535 = vpack.c.b16 %v4315, %v4310
        %v6536 = vpack.c.b16 %v4321, %v4316
        %v6537 = vpack.c.b16 %v4322, %v4317
        %v6538 = vpack.c.b16 %v4323, %v4318
        %v6539 = vpack.c.b16 %v4324, %v4319
        %v6540 = vpack.c.b16 %v4325, %v4320
        %v6541 = vpack.c.b16 %v4331, %v4326
        %v6542 = vpack.c.b16 %v4332, %v4327
        %v6543 = vpack.c.b16 %v4333, %v4328
        %v6544 = vpack.c.b16 %v4334, %v4329
        %v6545 = vpack.c.b16 %v4335, %v4330
        %v6546 = vpack.c.b16 %v4341, %v4336
        %v6547 = vpack.c.b16 %v4342, %v4337
        %v6548 = vpack.c.b16 %v4343, %v4338
        %v6549 = vpack.c.b16 %v4344, %v4339
        %v6550 = vpack.c.b16 %v4345, %v4340
        %v6551 = vpack.c.b16 %v4351, %v4346
        %v6552 = vpack.c.b16 %v4352, %v4347
        %v6553 = vpack.c.b16 %v4353, %v4348
        %v6554 = vpack.c.b16 %v4354, %v4349
        %v6555 = vpack.c.b16 %v4355, %v4350
        %v6556 = vpack.c.b16 %v4361, %v4356
        %v6557 = vpack.c.b16 %v4362, %v4357
        %v6558 = vpack.c.b16 %v4363, %v4358
        %v6559 = vpack.c.b16 %v4364, %v4359
        %v6560 = vpack.c.b16 %v4365, %v4360
        %v6561 = vpack.c.b16 %v4371, %v4366
        %v6562 = vpack.c.b16 %v4372, %v4367
        %v6563 = vpack.c.b16 %v4373, %v4368
        %v6564 = vpack.c.b16 %v4374, %v4369
        %v6565 = vpack.c.b16 %v4375, %v4370
        %v6566 = vpack.c.b16 %v4381, %v4376
        %v6567 = vpack.c.b16 %v4382, %v4377
        %v6568 = vpack.c.b16 %v4383, %v4378
        %v6569 = vpack.c.b16 %v4384, %v4379
        %v6570 = vpack.c.b16 %v4385, %v4380
        %v6571 = vpack.c.b16 %v4391, %v4386
        %v6572 = vpack.c.b16 %v4392, %v4387
        %v6573 = vpack.c.b16 %v4393, %v4388
        %v6574 = vpack.c.b16 %v4394, %v4389
        %v6575 = vpack.c.b16 %v4395, %v4390
        %v6576 = vpack.c.b16 %v4401, %v4396
        %v6577 = vpack.c.b16 %v4402, %v4397
        %v6578 = vpack.c.b16 %v4403, %v4398
        %v6579 = vpack.c.b16 %v4404, %v4399
        %v6580 = vpack.c.b16 %v4405, %v4400
        %v6581 = vpack.c.b16 %v4411, %v4406
        %v6582 = vpack.c.b16 %v4412, %v4407
        %v6583 = vpack.c.b16 %v4413, %v4408
        %v6584 = vpack.c.b16 %v4414, %v4409
        %v6585 = vpack.c.b16 %v4415, %v4410
        %v6586 = vpack.c.b16 %v4421, %v4416
        %v6587 = vpack.c.b16 %v4422, %v4417
        %v6588 = vpack.c.b16 %v4423, %v4418
        %v6589 = vpack.c.b16 %v4424, %v4419
        %v6590 = vpack.c.b16 %v4425, %v4420
        %v6591 = vpack.c.b16 %v4431, %v4426
        %v6592 = vpack.c.b16 %v4432, %v4427
        %v6593 = vpack.c.b16 %v4433, %v4428
        %v6594 = vpack.c.b16 %v4434, %v4429
        %v6595 = vpack.c.b16 %v4435, %v4430
        %v6596 = vpack.c.b16 %v4441, %v4436
        %v6597 = vpack.c.b16 %v4442, %v4437
        %v6598 = vpack.c.b16 %v4443, %v4438
        %v6599 = vpack.c.b16 %v4444, %v4439
        %v6600 = vpack.c.b16 %v4445, %v4440
        %v6601 = vpack.c.b16 %v4451, %v4446
        %v6602 = vpack.c.b16 %v4452, %v4447
        %v6603 = vpack.c.b16 %v4453, %v4448
        %v6604 = vpack.c.b16 %v4454, %v4449
        %v6605 = vpack.c.b16 %v4455, %v4450
        %v6606 = vpack.c.b16 %v4461, %v4456
        %v6607 = vpack.c.b16 %v4462, %v4457
        %v6608 = vpack.c.b16 %v4463, %v4458
        %v6609 = vpack.c.b16 %v4464, %v4459
        %v6610 = vpack.c.b16 %v4465, %v4460
        %v6611 = vpack.c.b16 %v4471, %v4466
        %v6612 = vpack.c.b16 %v4472, %v4467
        %v6613 = vpack.c.b16 %v4473, %v4468
        %v6614 = vpack.c.b16 %v4474, %v4469
        %v6615 = vpack.c.b16 %v4475, %v4470
        %v6616 = vpack.c.b16 %v4481, %v4476
        %v6617 = vpack.c.b16 %v4482, %v4477
        %v6618 = vpack.c.b16 %v4483, %v4478
        %v6619 = vpack.c.b16 %v4484, %v4479
        %v6620 = vpack.c.b16 %v4485, %v4480
        %v6621 = vpack.c.b16 %v4491, %v4486
        %v6622 = vpack.c.b16 %v4492, %v4487
        %v6623 = vpack.c.b16 %v4493, %v4488
        %v6624 = vpack.c.b16 %v4494, %v4489
        %v6625 = vpack.c.b16 %v4495, %v4490
        %v6626 = vpack.c.b16 %v4501, %v4496
        %v6627 = vpack.c.b16 %v4502, %v4497
        %v6628 = vpack.c.b16 %v4503, %v4498
        %v6629 = vpack.c.b16 %v4504, %v4499
        %v6630 = vpack.c.b16 %v4505, %v4500
        %v6631 = vpack.c.b16 %v4511, %v4506
        %v6632 = vpack.c.b16 %v4512, %v4507
        %v6633 = vpack.c.b16 %v4513, %v4508
        %v6634 = vpack.c.b16 %v4514, %v4509
        %v6635 = vpack.c.b16 %v4515, %v4510
        %v6636 = vpack.c.b16 %v4521, %v4516
        %v6637 = vpack.c.b16 %v4522, %v4517
        %v6638 = vpack.c.b16 %v4523, %v4518
        %v6639 = vpack.c.b16 %v4524, %v4519
        %v6640 = vpack.c.b16 %v4525, %v4520
        %v6641 = vpack.c.b16 %v4531, %v4526
        %v6642 = vpack.c.b16 %v4532, %v4527
        %v6643 = vpack.c.b16 %v4533, %v4528
        %v6644 = vpack.c.b16 %v4534, %v4529
        %v6645 = vpack.c.b16 %v4535, %v4530
        %v6646 = vpack.c.b16 %v4541, %v4536
        %v6647 = vpack.c.b16 %v4542, %v4537
        %v6648 = vpack.c.b16 %v4543, %v4538
        %v6649 = vpack.c.b16 %v4544, %v4539
        %v6650 = vpack.c.b16 %v4545, %v4540
        %v6651 = vpack.c.b16 %v4551, %v4546
        %v6652 = vpack.c.b16 %v4552, %v4547
        %v6653 = vpack.c.b16 %v4553, %v4548
        %v6654 = vpack.c.b16 %v4554, %v4549
        %v6655 = vpack.c.b16 %v4555, %v4550
        %v6656 = vpack.c.b16 %v4561, %v4556
        %v6657 = vpack.c.b16 %v4562, %v4557
        %v6658 = vpack.c.b16 %v4563, %v4558
        %v6659 = vpack.c.b16 %v4564, %v4559
        %v6660 = vpack.c.b16 %v4565, %v4560
        %v6661 = vpack.c.b16 %v4571, %v4566
        %v6662 = vpack.c.b16 %v4572, %v4567
        %v6663 = vpack.c.b16 %v4573, %v4568
        %v6664 = vpack.c.b16 %v4574, %v4569
        %v6665 = vpack.c.b16 %v4575, %v4570
        %v6666 = vpack.c.b16 %v4581, %v4576
        %v6667 = vpack.c.b16 %v4582, %v4577
        %v6668 = vpack.c.b16 %v4583, %v4578
        %v6669 = vpack.c.b16 %v4584, %v4579
        %v6670 = vpack.c.b16 %v4585, %v4580
        %v6671 = vpack.c.b16 %v4591, %v4586
        %v6672 = vpack.c.b16 %v4592, %v4587
        %v6673 = vpack.c.b16 %v4593, %v4588
        %v6674 = vpack.c.b16 %v4594, %v4589
        %v6675 = vpack.c.b16 %v4595, %v4590
        %v6676 = vpack.c.b16 %v4601, %v4596
        %v6677 = vpack.c.b16 %v4602, %v4597
        %v6678 = vpack.c.b16 %v4603, %v4598
        %v6679 = vpack.c.b16 %v4604, %v4599
        %v6680 = vpack.c.b16 %v4605, %v4600
        %v6681 = vpack.c.b16 %v4611, %v4606
        %v6682 = vpack.c.b16 %v4612, %v4607
        %v6683 = vpack.c.b16 %v4613, %v4608
        %v6684 = vpack.c.b16 %v4614, %v4609
        %v6685 = vpack.c.b16 %v4615, %v4610
        %v6686 = vpack.c.b16 %v4621, %v4616
        %v6687 = vpack.c.b16 %v4622, %v4617
        %v6688 = vpack.c.b16 %v4623, %v4618
        %v6689 = vpack.c.b16 %v4624, %v4619
        %v6690 = vpack.c.b16 %v4625, %v4620
        %v6691 = vpack.c.b16 %v4631, %v4626
        %v6692 = vpack.c.b16 %v4632, %v4627
        %v6693 = vpack.c.b16 %v4633, %v4628
        %v6694 = vpack.c.b16 %v4634, %v4629
        %v6695 = vpack.c.b16 %v4635, %v4630
        %v6696 = vpack.c.b16 %v4641, %v4636
        %v6697 = vpack.c.b16 %v4642, %v4637
        %v6698 = vpack.c.b16 %v4643, %v4638
        %v6699 = vpack.c.b16 %v4644, %v4639
        %v6700 = vpack.c.b16 %v4645, %v4640
        %v6701 = vpack.c.b16 %v4651, %v4646
        %v6702 = vpack.c.b16 %v4652, %v4647
        %v6703 = vpack.c.b16 %v4653, %v4648
        %v6704 = vpack.c.b16 %v4654, %v4649
        %v6705 = vpack.c.b16 %v4655, %v4650
        %v6706 = vpack.c.b16 %v4661, %v4656
        %v6707 = vpack.c.b16 %v4662, %v4657
        %v6708 = vpack.c.b16 %v4663, %v4658
        %v6709 = vpack.c.b16 %v4664, %v4659
        %v6710 = vpack.c.b16 %v4665, %v4660
        %v6711 = vpack.c.b16 %v4671, %v4666
        %v6712 = vpack.c.b16 %v4672, %v4667
        %v6713 = vpack.c.b16 %v4673, %v4668
        %v6714 = vpack.c.b16 %v4674, %v4669
        %v6715 = vpack.c.b16 %v4675, %v4670
        %v6716 = vpack.c.b16 %v4681, %v4676
        %v6717 = vpack.c.b16 %v4682, %v4677
        %v6718 = vpack.c.b16 %v4683, %v4678
        %v6719 = vpack.c.b16 %v4684, %v4679
        %v6720 = vpack.c.b16 %v4685, %v4680
        %v6721 = vpack.c.b16 %v4691, %v4686
        %v6722 = vpack.c.b16 %v4692, %v4687
        %v6723 = vpack.c.b16 %v4693, %v4688
        %v6724 = vpack.c.b16 %v4694, %v4689
        %v6725 = vpack.c.b16 %v4695, %v4690
        %v6726 = vpack.c.b16 %v4701, %v4696
        %v6727 = vpack.c.b16 %v4702, %v4697
        %v6728 = vpack.c.b16 %v4703, %v4698
        %v6729 = vpack.c.b16 %v4704, %v4699
        %v6730 = vpack.c.b16 %v4705, %v4700
        %v6731 = vpack.c.b16 %v4711, %v4706
        %v6732 = vpack.c.b16 %v4712, %v4707
        %v6733 = vpack.c.b16 %v4713, %v4708
        %v6734 = vpack.c.b16 %v4714, %v4709
        %v6735 = vpack.c.b16 %v4715, %v4710
        %v6736 = vpack.c.b16 %v4721, %v4716
        %v6737 = vpack.c.b16 %v4722, %v4717
        %v6738 = vpack.c.b16 %v4723, %v4718
        %v6739 = vpack.c.b16 %v4724, %v4719
        %v6740 = vpack.c.b16 %v4725, %v4720
        %v6741 = vpack.c.b16 %v4731, %v4726
        %v6742 = vpack.c.b16 %v4732, %v4727
        %v6743 = vpack.c.b16 %v4733, %v4728
        %v6744 = vpack.c.b16 %v4734, %v4729
        %v6745 = vpack.c.b16 %v4735, %v4730
        %v6746 = vpack.c.b16 %v4741, %v4736
        %v6747 = vpack.c.b16 %v4742, %v4737
        %v6748 = vpack.c.b16 %v4743, %v4738
        %v6749 = vpack.c.b16 %v4744, %v4739
        %v6750 = vpack.c.b16 %v4745, %v4740
        %v6751 = vpack.c.b16 %v4751, %v4746
        %v6752 = vpack.c.b16 %v4752, %v4747
        %v6753 = vpack.c.b16 %v4753, %v4748
        %v6754 = vpack.c.b16 %v4754, %v4749
        %v6755 = vpack.c.b16 %v4755, %v4750
        %v6756 = vpack.c.b16 %v4761, %v4756
        %v6757 = vpack.c.b16 %v4762, %v4757
        %v6758 = vpack.c.b16 %v4763, %v4758
        %v6759 = vpack.c.b16 %v4764, %v4759
        %v6760 = vpack.c.b16 %v4765, %v4760
        %v6761 = vpack.c.b16 %v4771, %v4766
        %v6762 = vpack.c.b16 %v4772, %v4767
        %v6763 = vpack.c.b16 %v4773, %v4768
        %v6764 = vpack.c.b16 %v4774, %v4769
        %v6765 = vpack.c.b16 %v4775, %v4770
        %v6766 = vpack.c.b16 %v4781, %v4776
        %v6767 = vpack.c.b16 %v4782, %v4777
        %v6768 = vpack.c.b16 %v4783, %v4778
        %v6769 = vpack.c.b16 %v4784, %v4779
        %v6770 = vpack.c.b16 %v4785, %v4780
        %v6771 = vpack.c.b16 %v4791, %v4786
        %v6772 = vpack.c.b16 %v4792, %v4787
        %v6773 = vpack.c.b16 %v4793, %v4788
        %v6774 = vpack.c.b16 %v4794, %v4789
        %v6775 = vpack.c.b16 %v4795, %v4790
        %v6776 = vpack.c.b16 %v4801, %v4796
        %v6777 = vpack.c.b16 %v4802, %v4797
        %v6778 = vpack.c.b16 %v4803, %v4798
        %v6779 = vpack.c.b16 %v4804, %v4799
        %v6780 = vpack.c.b16 %v4805, %v4800
        %v6781 = vpack.c.b16 %v4811, %v4806
        %v6782 = vpack.c.b16 %v4812, %v4807
        %v6783 = vpack.c.b16 %v4813, %v4808
        %v6784 = vpack.c.b16 %v4814, %v4809
        %v6785 = vpack.c.b16 %v4815, %v4810
        %v6786 = vpack.c.b16 %v4821, %v4816
        %v6787 = vpack.c.b16 %v4822, %v4817
        %v6788 = vpack.c.b16 %v4823, %v4818
        %v6789 = vpack.c.b16 %v4824, %v4819
        %v6790 = vpack.c.b16 %v4825, %v4820
        %v6791 = vpack.c.b16 %v4831, %v4826
        %v6792 = vpack.c.b16 %v4832, %v4827
        %v6793 = vpack.c.b16 %v4833, %v4828
        %v6794 = vpack.c.b16 %v4834, %v4829
        %v6795 = vpack.c.b16 %v4835, %v4830
        %v6796 = vpack.c.b16 %v4841, %v4836
        %v6797 = vpack.c.b16 %v4842, %v4837
        %v6798 = vpack.c.b16 %v4843, %v4838
        %v6799 = vpack.c.b16 %v4844, %v4839
        %v6800 = vpack.c.b16 %v4845, %v4840
        %v6801 = vpack.c.b16 %v4851, %v4846
        %v6802 = vpack.c.b16 %v4852, %v4847
        %v6803 = vpack.c.b16 %v4853, %v4848
        %v6804 = vpack.c.b16 %v4854, %v4849
        %v6805 = vpack.c.b16 %v4855, %v4850
        %v6806 = vpack.c.b16 %v4861, %v4856
        %v6807 = vpack.c.b16 %v4862, %v4857
        %v6808 = vpack.c.b16 %v4863, %v4858
        %v6809 = vpack.c.b16 %v4864, %v4859
        %v6810 = vpack.c.b16 %v4865, %v4860
        %v6811 = vpack.c.b16 %v4871, %v4866
        %v6812 = vpack.c.b16 %v4872, %v4867
        %v6813 = vpack.c.b16 %v4873, %v4868
        %v6814 = vpack.c.b16 %v4874, %v4869
        %v6815 = vpack.c.b16 %v4875, %v4870
        %v6816 = vpack.c.b16 %v4881, %v4876
        %v6817 = vpack.c.b16 %v4882, %v4877
        %v6818 = vpack.c.b16 %v4883, %v4878
        %v6819 = vpack.c.b16 %v4884, %v4879
        %v6820 = vpack.c.b16 %v4885, %v4880
        %v6821 = vpack.c.b16 %v4891, %v4886
        %v6822 = vpack.c.b16 %v4892, %v4887
        %v6823 = vpack.c.b16 %v4893, %v4888
        %v6824 = vpack.c.b16 %v4894, %v4889
        %v6825 = vpack.c.b16 %v4895, %v4890
        %v6826 = vpack.c.b16 %v4901, %v4896
        %v6827 = vpack.c.b16 %v4902, %v4897
        %v6828 = vpack.c.b16 %v4903, %v4898
        %v6829 = vpack.c.b16 %v4904, %v4899
        %v6830 = vpack.c.b16 %v4905, %v4900
        %v6831 = vpack.c.b16 %v4911, %v4906
        %v6832 = vpack.c.b16 %v4912, %v4907
        %v6833 = vpack.c.b16 %v4913, %v4908
        %v6834 = vpack.c.b16 %v4914, %v4909
        %v6835 = vpack.c.b16 %v4915, %v4910
        %v6836 = vpack.c.b16 %v4921, %v4916
        %v6837 = vpack.c.b16 %v4922, %v4917
        %v6838 = vpack.c.b16 %v4923, %v4918
        %v6839 = vpack.c.b16 %v4924, %v4919
        %v6840 = vpack.c.b16 %v4925, %v4920
        %v6841 = vpack.c.b16 %v4931, %v4926
        %v6842 = vpack.c.b16 %v4932, %v4927
        %v6843 = vpack.c.b16 %v4933, %v4928
        %v6844 = vpack.c.b16 %v4934, %v4929
        %v6845 = vpack.c.b16 %v4935, %v4930
        %v6846 = vpack.c.b16 %v4941, %v4936
        %v6847 = vpack.c.b16 %v4942, %v4937
        %v6848 = vpack.c.b16 %v4943, %v4938
        %v6849 = vpack.c.b16 %v4944, %v4939
        %v6850 = vpack.c.b16 %v4945, %v4940
        %v6851 = vpack.c.b16 %v4951, %v4946
        %v6852 = vpack.c.b16 %v4952, %v4947
        %v6853 = vpack.c.b16 %v4953, %v4948
        %v6854 = vpack.c.b16 %v4954, %v4949
        %v6855 = vpack.c.b16 %v4955, %v4950
        %v6856 = vpack.c.b16 %v4961, %v4956
        %v6857 = vpack.c.b16 %v4962, %v4957
        %v6858 = vpack.c.b16 %v4963, %v4958
        %v6859 = vpack.c.b16 %v4964, %v4959
        %v6860 = vpack.c.b16 %v4965, %v4960
        %v6861 = vpack.c.b16 %v4971, %v4966
        %v6862 = vpack.c.b16 %v4972, %v4967
        %v6863 = vpack.c.b16 %v4973, %v4968
        %v6864 = vpack.c.b16 %v4974, %v4969
        %v6865 = vpack.c.b16 %v4975, %v4970
        %v6866 = vpack.c.b16 %v4981, %v4976
        %v6867 = vpack.c.b16 %v4982, %v4977
        %v6868 = vpack.c.b16 %v4983, %v4978
        %v6869 = vpack.c.b16 %v4984, %v4979
        %v6870 = vpack.c.b16 %v4985, %v4980
        %v6871 = vpack.c.b16 %v4991, %v4986
        %v6872 = vpack.c.b16 %v4992, %v4987
        %v6873 = vpack.c.b16 %v4993, %v4988
        %v6874 = vpack.c.b16 %v4994, %v4989
        %v6875 = vpack.c.b16 %v4995, %v4990
        %v6876 = vpack.c.b16 %v5001, %v4996
        %v6877 = vpack.c.b16 %v5002, %v4997
        %v6878 = vpack.c.b16 %v5003, %v4998
        %v6879 = vpack.c.b16 %v5004, %v4999
        %v6880 = vpack.c.b16 %v5005, %v5000
        %v6881 = vpack.c.b16 %v5011, %v5006
        %v6882 = vpack.c.b16 %v5012, %v5007
        %v6883 = vpack.c.b16 %v5013, %v5008
        %v6884 = vpack.c.b16 %v5014, %v5009
        %v6885 = vpack.c.b16 %v5015, %v5010
        %v6886 = vpack.c.b16 %v5021, %v5016
        %v6887 = vpack.c.b16 %v5022, %v5017
        %v6888 = vpack.c.b16 %v5023, %v5018
        %v6889 = vpack.c.b16 %v5024, %v5019
        %v6890 = vpack.c.b16 %v5025, %v5020
        %v6891 = vpack.c.b16 %v5031, %v5026
        %v6892 = vpack.c.b16 %v5032, %v5027
        %v6893 = vpack.c.b16 %v5033, %v5028
        %v6894 = vpack.c.b16 %v5034, %v5029
        %v6895 = vpack.c.b16 %v5035, %v5030
        %v6896 = vpack.c.b16 %v5041, %v5036
        %v6897 = vpack.c.b16 %v5042, %v5037
        %v6898 = vpack.c.b16 %v5043, %v5038
        %v6899 = vpack.c.b16 %v5044, %v5039
        %v6900 = vpack.c.b16 %v5045, %v5040
        %v6901 = vpack.c.b16 %v5051, %v5046
        %v6902 = vpack.c.b16 %v5052, %v5047
        %v6903 = vpack.c.b16 %v5053, %v5048
        %v6904 = vpack.c.b16 %v5054, %v5049
        %v6905 = vpack.c.b16 %v5055, %v5050
        %v6906 = vpack.c.b16 %v5061, %v5056
        %v6907 = vpack.c.b16 %v5062, %v5057
        %v6908 = vpack.c.b16 %v5063, %v5058
        %v6909 = vpack.c.b16 %v5064, %v5059
        %v6910 = vpack.c.b16 %v5065, %v5060
        %v6911 = vpack.c.b16 %v5071, %v5066
        %v6912 = vpack.c.b16 %v5072, %v5067
        %v6913 = vpack.c.b16 %v5073, %v5068
        %v6914 = vpack.c.b16 %v5074, %v5069
        %v6915 = vpack.c.b16 %v5075, %v5070
        %v6916 = vpack.c.b16 %v5081, %v5076
        %v6917 = vpack.c.b16 %v5082, %v5077
        %v6918 = vpack.c.b16 %v5083, %v5078
        %v6919 = vpack.c.b16 %v5084, %v5079
        %v6920 = vpack.c.b16 %v5085, %v5080
        %v6921 = vpack.c.b16 %v5091, %v5086
        %v6922 = vpack.c.b16 %v5092, %v5087
        %v6923 = vpack.c.b16 %v5093, %v5088
        %v6924 = vpack.c.b16 %v5094, %v5089
        %v6925 = vpack.c.b16 %v5095, %v5090
        %v6926 = vpack.c.b16 %v5101, %v5096
        %v6927 = vpack.c.b16 %v5102, %v5097
        %v6928 = vpack.c.b16 %v5103, %v5098
        %v6929 = vpack.c.b16 %v5104, %v5099
        %v6930 = vpack.c.b16 %v5105, %v5100
        %v6931 = vpack.c.b16 %v5111, %v5106
        %v6932 = vpack.c.b16 %v5112, %v5107
        %v6933 = vpack.c.b16 %v5113, %v5108
        %v6934 = vpack.c.b16 %v5114, %v5109
        %v6935 = vpack.c.b16 %v5115, %v5110
        %v6936 = vpack.c.b16 %v5121, %v5116
        %v6937 = vpack.c.b16 %v5122, %v5117
        %v6938 = vpack.c.b16 %v5123, %v5118
        %v6939 = vpack.c.b16 %v5124, %v5119
        %v6940 = vpack.c.b16 %v5125, %v5120
        %v6941 = vpack.c.b16 %v5131, %v5126
        %v6942 = vpack.c.b16 %v5132, %v5127
        %v6943 = vpack.c.b16 %v5133, %v5128
        %v6944 = vpack.c.b16 %v5134, %v5129
        %v6945 = vpack.c.b16 %v5135, %v5130
        %v6946 = vpack.c.b16 %v5141, %v5136
        %v6947 = vpack.c.b16 %v5142, %v5137
        %v6948 = vpack.c.b16 %v5143, %v5138
        %v6949 = vpack.c.b16 %v5144, %v5139
        %v6950 = vpack.c.b16 %v5145, %v5140
        %v6951 = vpack.c.b16 %v5151, %v5146
        %v6952 = vpack.c.b16 %v5152, %v5147
        %v6953 = vpack.c.b16 %v5153, %v5148
        %v6954 = vpack.c.b16 %v5154, %v5149
        %v6955 = vpack.c.b16 %v5155, %v5150
        %v6956 = vpack.c.b16 %v5161, %v5156
        %v6957 = vpack.c.b16 %v5162, %v5157
        %v6958 = vpack.c.b16 %v5163, %v5158
        %v6959 = vpack.c.b16 %v5164, %v5159
        %v6960 = vpack.c.b16 %v5165, %v5160
        %v6961 = vpack.c.b16 %v5171, %v5166
        %v6962 = vpack.c.b16 %v5172, %v5167
        %v6963 = vpack.c.b16 %v5173, %v5168
        %v6964 = vpack.c.b16 %v5174, %v5169
        %v6965 = vpack.c.b16 %v5175, %v5170
        %v6966 = vpack.c.b16 %v5181, %v5176
        %v6967 = vpack.c.b16 %v5182, %v5177
        %v6968 = vpack.c.b16 %v5183, %v5178
        %v6969 = vpack.c.b16 %v5184, %v5179
        %v6970 = vpack.c.b16 %v5185, %v5180
        %v6971 = vpack.c.b16 %v5191, %v5186
        %v6972 = vpack.c.b16 %v5192, %v5187
        %v6973 = vpack.c.b16 %v5193, %v5188
        %v6974 = vpack.c.b16 %v5194, %v5189
        %v6975 = vpack.c.b16 %v5195, %v5190
        %v6976 = vpack.c.b16 %v5201, %v5196
        %v6977 = vpack.c.b16 %v5202, %v5197
        %v6978 = vpack.c.b16 %v5203, %v5198
        %v6979 = vpack.c.b16 %v5204, %v5199
        %v6980 = vpack.c.b16 %v5205, %v5200
        %v6981 = vpack.c.b16 %v5211, %v5206
        %v6982 = vpack.c.b16 %v5212, %v5207
        %v6983 = vpack.c.b16 %v5213, %v5208
        %v6984 = vpack.c.b16 %v5214, %v5209
        %v6985 = vpack.c.b16 %v5215, %v5210
        %v6986 = vpack.c.b16 %v5221, %v5216
        %v6987 = vpack.c.b16 %v5222, %v5217
        %v6988 = vpack.c.b16 %v5223, %v5218
        %v6989 = vpack.c.b16 %v5224, %v5219
        %v6990 = vpack.c.b16 %v5225, %v5220
        %v6991 = vpack.c.b16 %v5231, %v5226
        %v6992 = vpack.c.b16 %v5232, %v5227
        %v6993 = vpack.c.b16 %v5233, %v5228
        %v6994 = vpack.c.b16 %v5234, %v5229
        %v6995 = vpack.c.b16 %v5235, %v5230
        %v6996 = vpack.c.b16 %v5241, %v5236
        %v6997 = vpack.c.b16 %v5242, %v5237
        %v6998 = vpack.c.b16 %v5243, %v5238
        %v6999 = vpack.c.b16 %v5244, %v5239
        %v7000 = vpack.c.b16 %v5245, %v5240
        %v7001 = vpack.c.b16 %v5251, %v5246
        %v7002 = vpack.c.b16 %v5252, %v5247
        %v7003 = vpack.c.b16 %v5253, %v5248
        %v7004 = vpack.c.b16 %v5254, %v5249
        %v7005 = vpack.c.b16 %v5255, %v5250
        %v7006 = vpack.c.b16 %v5261, %v5256
        %v7007 = vpack.c.b16 %v5262, %v5257
        %v7008 = vpack.c.b16 %v5263, %v5258
        %v7009 = vpack.c.b16 %v5264, %v5259
        %v7010 = vpack.c.b16 %v5265, %v5260
        %v7011 = vpack.c.b16 %v5271, %v5266
        %v7012 = vpack.c.b16 %v5272, %v5267
        %v7013 = vpack.c.b16 %v5273, %v5268
        %v7014 = vpack.c.b16 %v5274, %v5269
        %v7015 = vpack.c.b16 %v5275, %v5270
        %v7016 = vpack.c.b16 %v5281, %v5276
        %v7017 = vpack.c.b16 %v5282, %v5277
        %v7018 = vpack.c.b16 %v5283, %v5278
        %v7019 = vpack.c.b16 %v5284, %v5279
        %v7020 = vpack.c.b16 %v5285, %v5280
        %v7021 = vpack.c.b16 %v5291, %v5286
        %v7022 = vpack.c.b16 %v5292, %v5287
        %v7023 = vpack.c.b16 %v5293, %v5288
        %v7024 = vpack.c.b16 %v5294, %v5289
        %v7025 = vpack.c.b16 %v5295, %v5290
        %v7026 = vpack.c.b16 %v5301, %v5296
        %v7027 = vpack.c.b16 %v5302, %v5297
        %v7028 = vpack.c.b16 %v5303, %v5298
        %v7029 = vpack.c.b16 %v5304, %v5299
        %v7030 = vpack.c.b16 %v5305, %v5300
        %v7031 = vpack.c.b16 %v5311, %v5306
        %v7032 = vpack.c.b16 %v5312, %v5307
        %v7033 = vpack.c.b16 %v5313, %v5308
        %v7034 = vpack.c.b16 %v5314, %v5309
        %v7035 = vpack.c.b16 %v5315, %v5310
        %v7036 = vpack.c.b16 %v5321, %v5316
        %v7037 = vpack.c.b16 %v5322, %v5317
        %v7038 = vpack.c.b16 %v5323, %v5318
        %v7039 = vpack.c.b16 %v5324, %v5319
        %v7040 = vpack.c.b16 %v5325, %v5320
        %v7041 = vpack.c.b16 %v5331, %v5326
        %v7042 = vpack.c.b16 %v5332, %v5327
        %v7043 = vpack.c.b16 %v5333, %v5328
        %v7044 = vpack.c.b16 %v5334, %v5329
        %v7045 = vpack.c.b16 %v5335, %v5330
        %v7046 = vpack.c.b16 %v5341, %v5336
        %v7047 = vpack.c.b16 %v5342, %v5337
        %v7048 = vpack.c.b16 %v5343, %v5338
        %v7049 = vpack.c.b16 %v5344, %v5339
        %v7050 = vpack.c.b16 %v5345, %v5340
        %v7051 = vpack.c.b16 %v5351, %v5346
        %v7052 = vpack.c.b16 %v5352, %v5347
        %v7053 = vpack.c.b16 %v5353, %v5348
        %v7054 = vpack.c.b16 %v5354, %v5349
        %v7055 = vpack.c.b16 %v5355, %v5350
        %v7056 = vpack.c.b16 %v5361, %v5356
        %v7057 = vpack.c.b16 %v5362, %v5357
        %v7058 = vpack.c.b16 %v5363, %v5358
        %v7059 = vpack.c.b16 %v5364, %v5359
        %v7060 = vpack.c.b16 %v5365, %v5360
        %v7061 = vpack.c.b16 %v5371, %v5366
        %v7062 = vpack.c.b16 %v5372, %v5367
        %v7063 = vpack.c.b16 %v5373, %v5368
        %v7064 = vpack.c.b16 %v5374, %v5369
        %v7065 = vpack.c.b16 %v5375, %v5370
        %v7066 = vpack.c.b16 %v5381, %v5376
        %v7067 = vpack.c.b16 %v5382, %v5377
        %v7068 = vpack.c.b16 %v5383, %v5378
        %v7069 = vpack.c.b16 %v5384, %v5379
        %v7070 = vpack.c.b16 %v5385, %v5380
        %v7071 = vpack.c.b16 %v5391, %v5386
        %v7072 = vpack.c.b16 %v5392, %v5387
        %v7073 = vpack.c.b16 %v5393, %v5388
        %v7074 = vpack.c.b16 %v5394, %v5389
        %v7075 = vpack.c.b16 %v5395, %v5390
        %v7076 = vpack.c.b16 %v5401, %v5396
        %v7077 = vpack.c.b16 %v5402, %v5397
        %v7078 = vpack.c.b16 %v5403, %v5398
        %v7079 = vpack.c.b16 %v5404, %v5399
        %v7080 = vpack.c.b16 %v5405, %v5400
        %v7081 = vpack.c.b16 %v5411, %v5406
        %v7082 = vpack.c.b16 %v5412, %v5407
        %v7083 = vpack.c.b16 %v5413, %v5408
        %v7084 = vpack.c.b16 %v5414, %v5409
        %v7085 = vpack.c.b16 %v5415, %v5410
        %v7086 = vpack.c.b16 %v5421, %v5416
        %v7087 = vpack.c.b16 %v5422, %v5417
        %v7088 = vpack.c.b16 %v5423, %v5418
        %v7089 = vpack.c.b16 %v5424, %v5419
        %v7090 = vpack.c.b16 %v5425, %v5420
        %v7091 = vpack.c.b16 %v5431, %v5426
        %v7092 = vpack.c.b16 %v5432, %v5427
        %v7093 = vpack.c.b16 %v5433, %v5428
        %v7094 = vpack.c.b16 %v5434, %v5429
        %v7095 = vpack.c.b16 %v5435, %v5430
        %v7096 = vpack.c.b16 %v5441, %v5436
        %v7097 = vpack.c.b16 %v5442, %v5437
        %v7098 = vpack.c.b16 %v5443, %v5438
        %v7099 = vpack.c.b16 %v5444, %v5439
        %v7100 = vpack.c.b16 %v5445, %v5440
        %v7101 = vpack.c.b16 %v5451, %v5446
        %v7102 = vpack.c.b16 %v5452, %v5447
        %v7103 = vpack.c.b16 %v5453, %v5448
        %v7104 = vpack.c.b16 %v5454, %v5449
        %v7105 = vpack.c.b16 %v5455, %v5450
        %v7106 = vpack.c.b16 %v5461, %v5456
        %v7107 = vpack.c.b16 %v5462, %v5457
        %v7108 = vpack.c.b16 %v5463, %v5458
        %v7109 = vpack.c.b16 %v5464, %v5459
        %v7110 = vpack.c.b16 %v5465, %v5460
        %v7111 = vpack.c.b16 %v5471, %v5466
        %v7112 = vpack.c.b16 %v5472, %v5467
        %v7113 = vpack.c.b16 %v5473, %v5468
        %v7114 = vpack.c.b16 %v5474, %v5469
        %v7115 = vpack.c.b16 %v5475, %v5470
        %v7116 = vpack.c.b16 %v5481, %v5476
        %v7117 = vpack.c.b16 %v5482, %v5477
        %v7118 = vpack.c.b16 %v5483, %v5478
        %v7119 = vpack.c.b16 %v5484, %v5479
        %v7120 = vpack.c.b16 %v5485, %v5480
        %v7121 = vpack.c.b16 %v5491, %v5486
        %v7122 = vpack.c.b16 %v5492, %v5487
        %v7123 = vpack.c.b16 %v5493, %v5488
        %v7124 = vpack.c.b16 %v5494, %v5489
        %v7125 = vpack.c.b16 %v5495, %v5490
        %v7126 = vpack.c.b16 %v5501, %v5496
        %v7127 = vpack.c.b16 %v5502, %v5497
        %v7128 = vpack.c.b16 %v5503, %v5498
        %v7129 = vpack.c.b16 %v5504, %v5499
        %v7130 = vpack.c.b16 %v5505, %v5500
        %v7131 = vpack.c.b16 %v5511, %v5506
        %v7132 = vpack.c.b16 %v5512, %v5507
        %v7133 = vpack.c.b16 %v5513, %v5508
        %v7134 = vpack.c.b16 %v5514, %v5509
        %v7135 = vpack.c.b16 %v5515, %v5510
        %v7136 = vpack.c.b16 %v5521, %v5516
        %v7137 = vpack.c.b16 %v5522, %v5517
        %v7138 = vpack.c.b16 %v5523, %v5518
        %v7139 = vpack.c.b16 %v5524, %v5519
        %v7140 = vpack.c.b16 %v5525, %v5520
        %v7141 = vpack.c.b16 %v5531, %v5526
        %v7142 = vpack.c.b16 %v5532, %v5527
        %v7143 = vpack.c.b16 %v5533, %v5528
        %v7144 = vpack.c.b16 %v5534, %v5529
        %v7145 = vpack.c.b16 %v5535, %v5530
        %v7146 = vpack.c.b16 %v5541, %v5536
        %v7147 = vpack.c.b16 %v5542, %v5537
        %v7148 = vpack.c.b16 %v5543, %v5538
        %v7149 = vpack.c.b16 %v5544, %v5539
        %v7150 = vpack.c.b16 %v5545, %v5540
        %v7151 = vpack.c.b16 %v5551, %v5546
        %v7152 = vpack.c.b16 %v5552, %v5547
        %v7153 = vpack.c.b16 %v5553, %v5548
        %v7154 = vpack.c.b16 %v5554, %v5549
        %v7155 = vpack.c.b16 %v5555, %v5550
        %v7156 = vpack.c.b16 %v5561, %v5556
        %v7157 = vpack.c.b16 %v5562, %v5557
        %v7158 = vpack.c.b16 %v5563, %v5558
        %v7159 = vpack.c.b16 %v5564, %v5559
        %v7160 = vpack.c.b16 %v5565, %v5560
        %v7161 = vpack.c.b16 %v5571, %v5566
        %v7162 = vpack.c.b16 %v5572, %v5567
        %v7163 = vpack.c.b16 %v5573, %v5568
        %v7164 = vpack.c.b16 %v5574, %v5569
        %v7165 = vpack.c.b16 %v5575, %v5570
        %v7166 = vpack.c.b16 %v5581, %v5576
        %v7167 = vpack.c.b16 %v5582, %v5577
        %v7168 = vpack.c.b16 %v5583, %v5578
        %v7169 = vpack.c.b16 %v5584, %v5579
        %v7170 = vpack.c.b16 %v5585, %v5580
        %v7171 = vpack.c.b16 %v5591, %v5586
        %v7172 = vpack.c.b16 %v5592, %v5587
        %v7173 = vpack.c.b16 %v5593, %v5588
        %v7174 = vpack.c.b16 %v5594, %v5589
        %v7175 = vpack.c.b16 %v5595, %v5590
        %v7176 = vpack.c.b16 %v5601, %v5596
        %v7177 = vpack.c.b16 %v5602, %v5597
        %v7178 = vpack.c.b16 %v5603, %v5598
        %v7179 = vpack.c.b16 %v5604, %v5599
        %v7180 = vpack.c.b16 %v5605, %v5600
        %v7181 = vpack.c.b16 %v5611, %v5606
        %v7182 = vpack.c.b16 %v5612, %v5607
        %v7183 = vpack.c.b16 %v5613, %v5608
        %v7184 = vpack.c.b16 %v5614, %v5609
        %v7185 = vpack.c.b16 %v5615, %v5610
        %v7186 = vpack.c.b16 %v5621, %v5616
        %v7187 = vpack.c.b16 %v5622, %v5617
        %v7188 = vpack.c.b16 %v5623, %v5618
        %v7189 = vpack.c.b16 %v5624, %v5619
        %v7190 = vpack.c.b16 %v5625, %v5620
        %v7191 = vpack.c.b16 %v5631, %v5626
        %v7192 = vpack.c.b16 %v5632, %v5627
        %v7193 = vpack.c.b16 %v5633, %v5628
        %v7194 = vpack.c.b16 %v5634, %v5629
        %v7195 = vpack.c.b16 %v5635, %v5630
        %v7196 = vpack.c.b16 %v5641, %v5636
        %v7197 = vpack.c.b16 %v5642, %v5637
        %v7198 = vpack.c.b16 %v5643, %v5638
        %v7199 = vpack.c.b16 %v5644, %v5639
        %v7200 = vpack.c.b16 %v5645, %v5640
        %v7201 = vpack.c.b16 %v5651, %v5646
        %v7202 = vpack.c.b16 %v5652, %v5647
        %v7203 = vpack.c.b16 %v5653, %v5648
        %v7204 = vpack.c.b16 %v5654, %v5649
        %v7205 = vpack.c.b16 %v5655, %v5650
        %v7206 = vpack.c.b16 %v5661, %v5656
        %v7207 = vpack.c.b16 %v5662, %v5657
        %v7208 = vpack.c.b16 %v5663, %v5658
        %v7209 = vpack.c.b16 %v5664, %v5659
        %v7210 = vpack.c.b16 %v5665, %v5660
        %v7211 = vpack.c.b16 %v5671, %v5666
        %v7212 = vpack.c.b16 %v5672, %v5667
        %v7213 = vpack.c.b16 %v5673, %v5668
        %v7214 = vpack.c.b16 %v5674, %v5669
        %v7215 = vpack.c.b16 %v5675, %v5670
        %v7216 = vpack.c.b16 %v5681, %v5676
        %v7217 = vpack.c.b16 %v5682, %v5677
        %v7218 = vpack.c.b16 %v5683, %v5678
        %v7219 = vpack.c.b16 %v5684, %v5679
        %v7220 = vpack.c.b16 %v5685, %v5680
        %v7221 = vpack.c.b16 %v5691, %v5686
        %v7222 = vpack.c.b16 %v5692, %v5687
        %v7223 = vpack.c.b16 %v5693, %v5688
        %v7224 = vpack.c.b16 %v5694, %v5689
        %v7225 = vpack.c.b16 %v5695, %v5690
        %v7226 = vpack.c.b16 %v5701, %v5696
        %v7227 = vpack.c.b16 %v5702, %v5697
        %v7228 = vpack.c.b16 %v5703, %v5698
        %v7229 = vpack.c.b16 %v5704, %v5699
        %v7230 = vpack.c.b16 %v5705, %v5700
        %v7231 = vpack.c.b16 %v5711, %v5706
        %v7232 = vpack.c.b16 %v5712, %v5707
        %v7233 = vpack.c.b16 %v5713, %v5708
        %v7234 = vpack.c.b16 %v5714, %v5709
        %v7235 = vpack.c.b16 %v5715, %v5710
        %v7236 = vpack.c.b16 %v5721, %v5716
        %v7237 = vpack.c.b16 %v5722, %v5717
        %v7238 = vpack.c.b16 %v5723, %v5718
        %v7239 = vpack.c.b16 %v5724, %v5719
        %v7240 = vpack.c.b16 %v5725, %v5720
        %v7241 = vpack.c.b16 %v5731, %v5726
        %v7242 = vpack.c.b16 %v5732, %v5727
        %v7243 = vpack.c.b16 %v5733, %v5728
        %v7244 = vpack.c.b16 %v5734, %v5729
        %v7245 = vpack.c.b16 %v5735, %v5730
        %v7246 = vpack.c.b16 %v5741, %v5736
        %v7247 = vpack.c.b16 %v5742, %v5737
        %v7248 = vpack.c.b16 %v5743, %v5738
        %v7249 = vpack.c.b16 %v5744, %v5739
        %v7250 = vpack.c.b16 %v5745, %v5740
        %v7251 = vpack.c.b16 %v5751, %v5746
        %v7252 = vpack.c.b16 %v5752, %v5747
        %v7253 = vpack.c.b16 %v5753, %v5748
        %v7254 = vpack.c.b16 %v5754, %v5749
        %v7255 = vpack.c.b16 %v5755, %v5750
        %v7256 = vpack.c.b16 %v5761, %v5756
        %v7257 = vpack.c.b16 %v5762, %v5757
        %v7258 = vpack.c.b16 %v5763, %v5758
        %v7259 = vpack.c.b16 %v5764, %v5759
        %v7260 = vpack.c.b16 %v5765, %v5760
        %v7261 = vpack.c.b16 %v5771, %v5766
        %v7262 = vpack.c.b16 %v5772, %v5767
        %v7263 = vpack.c.b16 %v5773, %v5768
        %v7264 = vpack.c.b16 %v5774, %v5769
        %v7265 = vpack.c.b16 %v5775, %v5770
        %v7266 = vpack.c.b16 %v5781, %v5776
        %v7267 = vpack.c.b16 %v5782, %v5777
        %v7268 = vpack.c.b16 %v5783, %v5778
        %v7269 = vpack.c.b16 %v5784, %v5779
        %v7270 = vpack.c.b16 %v5785, %v5780
        %v7271 = vpack.c.b16 %v5791, %v5786
        %v7272 = vpack.c.b16 %v5792, %v5787
        %v7273 = vpack.c.b16 %v5793, %v5788
        %v7274 = vpack.c.b16 %v5794, %v5789
        %v7275 = vpack.c.b16 %v5795, %v5790
        %v7276 = vpack.c.b16 %v5801, %v5796
        %v7277 = vpack.c.b16 %v5802, %v5797
        %v7278 = vpack.c.b16 %v5803, %v5798
        %v7279 = vpack.c.b16 %v5804, %v5799
        %v7280 = vpack.c.b16 %v5805, %v5800
        %v7281 = vpack.c.b16 %v5811, %v5806
        %v7282 = vpack.c.b16 %v5812, %v5807
        %v7283 = vpack.c.b16 %v5813, %v5808
        %v7284 = vpack.c.b16 %v5814, %v5809
        %v7285 = vpack.c.b16 %v5815, %v5810
        %v7286 = vpack.c.b16 %v5821, %v5816
        %v7287 = vpack.c.b16 %v5822, %v5817
        %v7288 = vpack.c.b16 %v5823, %v5818
        %v7289 = vpack.c.b16 %v5824, %v5819
        %v7290 = vpack.c.b16 %v5825, %v5820
        %v7291 = vpack.c.b16 %v5831, %v5826
        %v7292 = vpack.c.b16 %v5832, %v5827
        %v7293 = vpack.c.b16 %v5833, %v5828
        %v7294 = vpack.c.b16 %v5834, %v5829
        %v7295 = vpack.c.b16 %v5835, %v5830
        %v7296 = vpack.c.b16 %v5841, %v5836
        %v7297 = vpack.c.b16 %v5842, %v5837
        %v7298 = vpack.c.b16 %v5843, %v5838
        %v7299 = vpack.c.b16 %v5844, %v5839
        %v7300 = vpack.c.b16 %v5845, %v5840
        %v7301 = vpack.c.b16 %v5851, %v5846
        %v7302 = vpack.c.b16 %v5852, %v5847
        %v7303 = vpack.c.b16 %v5853, %v5848
        %v7304 = vpack.c.b16 %v5854, %v5849
        %v7305 = vpack.c.b16 %v5855, %v5850
        %v7306 = vpack.c.b16 %v5861, %v5856
        %v7307 = vpack.c.b16 %v5862, %v5857
        %v7308 = vpack.c.b16 %v5863, %v5858
        %v7309 = vpack.c.b16 %v5864, %v5859
        %v7310 = vpack.c.b16 %v5865, %v5860
        %v7311 = vpack.c.b16 %v5871, %v5866
        %v7312 = vpack.c.b16 %v5872, %v5867
        %v7313 = vpack.c.b16 %v5873, %v5868
        %v7314 = vpack.c.b16 %v5874, %v5869
        %v7315 = vpack.c.b16 %v5875, %v5870
        %v7316 = vpack.c.b16 %v5881, %v5876
        %v7317 = vpack.c.b16 %v5882, %v5877
        %v7318 = vpack.c.b16 %v5883, %v5878
        %v7319 = vpack.c.b16 %v5884, %v5879
        %v7320 = vpack.c.b16 %v5885, %v5880
        %v7321 = vpack.c.b16 %v5891, %v5886
        %v7322 = vpack.c.b16 %v5892, %v5887
        %v7323 = vpack.c.b16 %v5893, %v5888
        %v7324 = vpack.c.b16 %v5894, %v5889
        %v7325 = vpack.c.b16 %v5895, %v5890
        %v7326 = vpack.c.b16 %v5901, %v5896
        %v7327 = vpack.c.b16 %v5902, %v5897
        %v7328 = vpack.c.b16 %v5903, %v5898
        %v7329 = vpack.c.b16 %v5904, %v5899
        %v7330 = vpack.c.b16 %v5905, %v5900
        %v7331 = vpack.c.b16 %v5911, %v5906
        %v7332 = vpack.c.b16 %v5912, %v5907
        %v7333 = vpack.c.b16 %v5913, %v5908
        %v7334 = vpack.c.b16 %v5914, %v5909
        %v7335 = vpack.c.b16 %v5915, %v5910
        %v7336 = vpack.c.b16 %v5921, %v5916
        %v7337 = vpack.c.b16 %v5922, %v5917
        %v7338 = vpack.c.b16 %v5923, %v5918
        %v7339 = vpack.c.b16 %v5924, %v5919
        %v7340 = vpack.c.b16 %v5925, %v5920
        %v7341 = vpack.c.b16 %v5931, %v5926
        %v7342 = vpack.c.b16 %v5932, %v5927
        %v7343 = vpack.c.b16 %v5933, %v5928
        %v7344 = vpack.c.b16 %v5934, %v5929
        %v7345 = vpack.c.b16 %v5935, %v5930
        %v7346 = vpack.c.b16 %v5941, %v5936
        %v7347 = vpack.c.b16 %v5942, %v5937
        %v7348 = vpack.c.b16 %v5943, %v5938
        %v7349 = vpack.c.b16 %v5944, %v5939
        %v7350 = vpack.c.b16 %v5945, %v5940
        %v7351 = vpack.c.b16 %v5951, %v5946
        %v7352 = vpack.c.b16 %v5952, %v5947
        %v7353 = vpack.c.b16 %v5953, %v5948
        %v7354 = vpack.c.b16 %v5954, %v5949
        %v7355 = vpack.c.b16 %v5955, %v5950
        %v7356 = vpack.c.b16 %v5961, %v5956
        %v7357 = vpack.c.b16 %v5962, %v5957
        %v7358 = vpack.c.b16 %v5963, %v5958
        %v7359 = vpack.c.b16 %v5964, %v5959
        %v7360 = vpack.c.b16 %v5965, %v5960
        %v7361 = vpack.c.b16 %v5971, %v5966
        %v7362 = vpack.c.b16 %v5972, %v5967
        %v7363 = vpack.c.b16 %v5973, %v5968
        %v7364 = vpack.c.b16 %v5974, %v5969
        %v7365 = vpack.c.b16 %v5975, %v5970
        %v7366 = vpack.c.b16 %v5981, %v5976
        %v7367 = vpack.c.b16 %v5982, %v5977
        %v7368 = vpack.c.b16 %v5983, %v5978
        %v7369 = vpack.c.b16 %v5984, %v5979
        %v7370 = vpack.c.b16 %v5985, %v5980
        %v7371 = vpack.c.b16 %v5991, %v5986
        %v7372 = vpack.c.b16 %v5992, %v5987
        %v7373 = vpack.c.b16 %v5993, %v5988
        %v7374 = vpack.c.b16 %v5994, %v5989
        %v7375 = vpack.c.b16 %v5995, %v5990
        %v7376 = vpack.c.b16 %v6001, %v5996
        %v7377 = vpack.c.b16 %v6002, %v5997
        %v7378 = vpack.c.b16 %v6003, %v5998
        %v7379 = vpack.c.b16 %v6004, %v5999
        %v7380 = vpack.c.b16 %v6005, %v6000
        %v7381 = vpack.c.b16 %v6011, %v6006
        %v7382 = vpack.c.b16 %v6012, %v6007
        %v7383 = vpack.c.b16 %v6013, %v6008
        %v7384 = vpack.c.b16 %v6014, %v6009
        %v7385 = vpack.c.b16 %v6015, %v6010
        %v7386 = vpack.c.b16 %v6021, %v6016
        %v7387 = vpack.c.b16 %v6022, %v6017
        %v7388 = vpack.c.b16 %v6023, %v6018
        %v7389 = vpack.c.b16 %v6024, %v6019
        %v7390 = vpack.c.b16 %v6025, %v6020
        %v7391 = vpack.c.b16 %v6031, %v6026
        %v7392 = vpack.c.b16 %v6032, %v6027
        %v7393 = vpack.c.b16 %v6033, %v6028
        %v7394 = vpack.c.b16 %v6034, %v6029
        %v7395 = vpack.c.b16 %v6035, %v6030
        %v7396 = vpack.c.b16 %v6041, %v6036
        %v7397 = vpack.c.b16 %v6042, %v6037
        %v7398 = vpack.c.b16 %v6043, %v6038
        %v7399 = vpack.c.b16 %v6044, %v6039
        %v7400 = vpack.c.b16 %v6045, %v6040
        %v7401 = vpack.c.b16 %v6051, %v6046
        %v7402 = vpack.c.b16 %v6052, %v6047
        %v7403 = vpack.c.b16 %v6053, %v6048
        %v7404 = vpack.c.b16 %v6054, %v6049
        %v7405 = vpack.c.b16 %v6055, %v6050
        %v7406 = vpack.c.b16 %v6061, %v6056
        %v7407 = vpack.c.b16 %v6062, %v6057
        %v7408 = vpack.c.b16 %v6063, %v6058
        %v7409 = vpack.c.b16 %v6064, %v6059
        %v7410 = vpack.c.b16 %v6065, %v6060
        %v7411 = vpack.c.b16 %v6071, %v6066
        %v7412 = vpack.c.b16 %v6072, %v6067
        %v7413 = vpack.c.b16 %v6073, %v6068
        %v7414 = vpack.c.b16 %v6074, %v6069
        %v7415 = vpack.c.b16 %v6075, %v6070
        %v7416 = vpack.c.b16 %v6081, %v6076
        %v7417 = vpack.c.b16 %v6082, %v6077
        %v7418 = vpack.c.b16 %v6083, %v6078
        %v7419 = vpack.c.b16 %v6084, %v6079
        %v7420 = vpack.c.b16 %v6085, %v6080
        %v7421 = vpack.c.b16 %v6091, %v6086
        %v7422 = vpack.c.b16 %v6092, %v6087
        %v7423 = vpack.c.b16 %v6093, %v6088
        %v7424 = vpack.c.b16 %v6094, %v6089
        %v7425 = vpack.c.b16 %v6095, %v6090
        %v7426 = vpack.c.b16 %v6101, %v6096
        %v7427 = vpack.c.b16 %v6102, %v6097
        %v7428 = vpack.c.b16 %v6103, %v6098
        %v7429 = vpack.c.b16 %v6104, %v6099
        %v7430 = vpack.c.b16 %v6105, %v6100
        %v7431 = vpack.c.b16 %v6111, %v6106
        %v7432 = vpack.c.b16 %v6112, %v6107
        %v7433 = vpack.c.b16 %v6113, %v6108
        %v7434 = vpack.c.b16 %v6114, %v6109
        %v7435 = vpack.c.b16 %v6115, %v6110
        %v7436 = vpack.c.b16 %v6121, %v6116
        %v7437 = vpack.c.b16 %v6122, %v6117
        %v7438 = vpack.c.b16 %v6123, %v6118
        %v7439 = vpack.c.b16 %v6124, %v6119
        %v7440 = vpack.c.b16 %v6125, %v6120
        %v7441 = vpack.c.b16 %v6131, %v6126
        %v7442 = vpack.c.b16 %v6132, %v6127
        %v7443 = vpack.c.b16 %v6133, %v6128
        %v7444 = vpack.c.b16 %v6134, %v6129
        %v7445 = vpack.c.b16 %v6135, %v6130
        %v7446 = vpack.c.b16 %v6141, %v6136
        %v7447 = vpack.c.b16 %v6142, %v6137
        %v7448 = vpack.c.b16 %v6143, %v6138
        %v7449 = vpack.c.b16 %v6144, %v6139
        %v7450 = vpack.c.b16 %v6145, %v6140
        %v7451 = vpack.c.b16 %v6151, %v6146
        %v7452 = vpack.c.b16 %v6152, %v6147
        %v7453 = vpack.c.b16 %v6153, %v6148
        %v7454 = vpack.c.b16 %v6154, %v6149
        %v7455 = vpack.c.b16 %v6155, %v6150
        %v7456 = vpack.c.b16 %v6161, %v6156
        %v7457 = vpack.c.b16 %v6162, %v6157
        %v7458 = vpack.c.b16 %v6163, %v6158
        %v7459 = vpack.c.b16 %v6164, %v6159
        %v7460 = vpack.c.b16 %v6165, %v6160
        %v7461 = vpack.c.b16 %v6171, %v6166
        %v7462 = vpack.c.b16 %v6172, %v6167
        %v7463 = vpack.c.b16 %v6173, %v6168
        %v7464 = vpack.c.b16 %v6174, %v6169
        %v7465 = vpack.c.b16 %v6175, %v6170
        %v7466 = vpack.c.b16 %v6181, %v6176
        %v7467 = vpack.c.b16 %v6182, %v6177
        %v7468 = vpack.c.b16 %v6183, %v6178
        %v7469 = vpack.c.b16 %v6184, %v6179
        %v7470 = vpack.c.b16 %v6185, %v6180
        %v7471 = vpack.c.b16 %v6191, %v6186
        %v7472 = vpack.c.b16 %v6192, %v6187
        %v7473 = vpack.c.b16 %v6193, %v6188
        %v7474 = vpack.c.b16 %v6194, %v6189
        %v7475 = vpack.c.b16 %v6195, %v6190
        %8756 = vmatpush.bf16.msra.mxu0 %v6231
        %8757 = vmatpush.bf16.msra.mxu0 %v6226
        %8758 = vmatpush.bf16.msra.mxu0 %v6221
        %8759 = vmatpush.bf16.msra.mxu0 %v6216
        %8760 = vmatpush.bf16.msra.mxu0 %v6211
        %8761 = vmatpush.bf16.msra.mxu0 %v6206
        %8762 = vmatpush.bf16.msra.mxu0 %v6201
        %8763 = vmatpush.bf16.msra.mxu0 %v6196
        %8764 = vmatmul.bf16.gmra.mxu0 %v2036
        %v8765 = vpop.f32.mrf.mxu0
        %v8766 = vadd.f32 0.0, %v8765
        %v8767 = vpop.f32.mrf.mxu0
        %8768 = vdwg.mxu0
        %8769 = vmatpush.bf16.msra.mxu0 %v6271
        %8770 = vmatpush.bf16.msra.mxu0 %v6266
        %8771 = vmatpush.bf16.msra.mxu0 %v6261
        %8772 = vmatpush.bf16.msra.mxu0 %v6256
        %8773 = vmatpush.bf16.msra.mxu0 %v6251
        %8774 = vmatpush.bf16.msra.mxu0 %v6246
        %8775 = vmatpush.bf16.msra.mxu0 %v6241
        %8776 = vmatpush.bf16.msra.mxu0 %v6236
        %8777 = vmatmul.bf16.gmra.mxu0 %v2037
        %v8778 = vpop.f32.mrf.mxu0
        %v8779 = vadd.f32 %v8766, %v8778
        %v8780 = vpop.f32.mrf.mxu0
        %8781 = vdwg.mxu0
        %8782 = vmatpush.bf16.msra.mxu0 %v6311
        %8783 = vmatpush.bf16.msra.mxu0 %v6306
        %8784 = vmatpush.bf16.msra.mxu0 %v6301
        %8785 = vmatpush.bf16.msra.mxu0 %v6296
        %8786 = vmatpush.bf16.msra.mxu0 %v6291
        %8787 = vmatpush.bf16.msra.mxu0 %v6286
        %8788 = vmatpush.bf16.msra.mxu0 %v6281
        %8789 = vmatpush.bf16.msra.mxu0 %v6276
        %8790 = vmatmul.bf16.gmra.mxu0 %v2038
        %v8791 = vpop.f32.mrf.mxu0
        %v8792 = vadd.f32 %v8779, %v8791
        %v8793 = vpop.f32.mrf.mxu0
        %8794 = vdwg.mxu0
        %8795 = vmatpush.bf16.msra.mxu0 %v6351
        %8796 = vmatpush.bf16.msra.mxu0 %v6346
        %8797 = vmatpush.bf16.msra.mxu0 %v6341
        %8798 = vmatpush.bf16.msra.mxu0 %v6336
        %8799 = vmatpush.bf16.msra.mxu0 %v6331
        %8800 = vmatpush.bf16.msra.mxu0 %v6326
        %8801 = vmatpush.bf16.msra.mxu0 %v6321
        %8802 = vmatpush.bf16.msra.mxu0 %v6316
        %8803 = vmatmul.bf16.gmra.mxu0 %v2039
        %v8804 = vpop.f32.mrf.mxu0
        %v8805 = vadd.f32 %v8792, %v8804
        %v8806 = vpop.f32.mrf.mxu0
        %8807 = vdwg.mxu0
        %8808 = vmatpush.bf16.msra.mxu0 %v6391
        %8809 = vmatpush.bf16.msra.mxu0 %v6386
        %8810 = vmatpush.bf16.msra.mxu0 %v6381
        %8811 = vmatpush.bf16.msra.mxu0 %v6376
        %8812 = vmatpush.bf16.msra.mxu0 %v6371
        %8813 = vmatpush.bf16.msra.mxu0 %v6366
        %8814 = vmatpush.bf16.msra.mxu0 %v6361
        %8815 = vmatpush.bf16.msra.mxu0 %v6356
        %8816 = vmatmul.bf16.gmra.mxu0 %v2040
        %v8817 = vpop.f32.mrf.mxu0
        %v8818 = vadd.f32 %v8805, %v8817
        %v8819 = vpop.f32.mrf.mxu0
        %8820 = vdwg.mxu0
        %8821 = vmatpush.bf16.msra.mxu0 %v6431
        %8822 = vmatpush.bf16.msra.mxu0 %v6426
        %8823 = vmatpush.bf16.msra.mxu0 %v6421
        %8824 = vmatpush.bf16.msra.mxu0 %v6416
        %8825 = vmatpush.bf16.msra.mxu0 %v6411
        %8826 = vmatpush.bf16.msra.mxu0 %v6406
        %8827 = vmatpush.bf16.msra.mxu0 %v6401
        %8828 = vmatpush.bf16.msra.mxu0 %v6396
        %8829 = vmatmul.bf16.gmra.mxu0 %v2041
        %v8830 = vpop.f32.mrf.mxu0
        %v8831 = vadd.f32 %v8818, %v8830
        %v8832 = vpop.f32.mrf.mxu0
        %8833 = vdwg.mxu0
        %8834 = vmatpush.bf16.msra.mxu0 %v6471
        %8835 = vmatpush.bf16.msra.mxu0 %v6466
        %8836 = vmatpush.bf16.msra.mxu0 %v6461
        %8837 = vmatpush.bf16.msra.mxu0 %v6456
        %8838 = vmatpush.bf16.msra.mxu0 %v6451
        %8839 = vmatpush.bf16.msra.mxu0 %v6446
        %8840 = vmatpush.bf16.msra.mxu0 %v6441
        %8841 = vmatpush.bf16.msra.mxu0 %v6436
        %8842 = vmatmul.bf16.gmra.mxu0 %v2042
        %v8843 = vpop.f32.mrf.mxu0
        %v8844 = vadd.f32 %v8831, %v8843
        %v8845 = vpop.f32.mrf.mxu0
        %8846 = vdwg.mxu0
        %8847 = vmatpush.bf16.msra.mxu0 %v6511
        %8848 = vmatpush.bf16.msra.mxu0 %v6506
        %8849 = vmatpush.bf16.msra.mxu0 %v6501
        %8850 = vmatpush.bf16.msra.mxu0 %v6496
        %8851 = vmatpush.bf16.msra.mxu0 %v6491
        %8852 = vmatpush.bf16.msra.mxu0 %v6486
        %8853 = vmatpush.bf16.msra.mxu0 %v6481
        %8854 = vmatpush.bf16.msra.mxu0 %v6476
        %8855 = vmatmul.bf16.gmra.mxu0 %v2043
        %v8856 = vpop.f32.mrf.mxu0
        %v8857 = vadd.f32 %v8844, %v8856
        %v8858 = vpop.f32.mrf.mxu0
        %8859 = vdwg.mxu0
        %8860 = vmatpush.bf16.msra.mxu0 %v6551
        %8861 = vmatpush.bf16.msra.mxu0 %v6546
        %8862 = vmatpush.bf16.msra.mxu0 %v6541
        %8863 = vmatpush.bf16.msra.mxu0 %v6536
        %8864 = vmatpush.bf16.msra.mxu0 %v6531
        %8865 = vmatpush.bf16.msra.mxu0 %v6526
        %8866 = vmatpush.bf16.msra.mxu0 %v6521
        %8867 = vmatpush.bf16.msra.mxu0 %v6516
        %8868 = vmatmul.bf16.gmra.mxu0 %v2044
        %v8869 = vpop.f32.mrf.mxu0
        %v8870 = vadd.f32 %v8857, %v8869
        %v8871 = vpop.f32.mrf.mxu0
        %8872 = vdwg.mxu0
        %8873 = vmatpush.bf16.msra.mxu0 %v6591
        %8874 = vmatpush.bf16.msra.mxu0 %v6586
        %8875 = vmatpush.bf16.msra.mxu0 %v6581
        %8876 = vmatpush.bf16.msra.mxu0 %v6576
        %8877 = vmatpush.bf16.msra.mxu0 %v6571
        %8878 = vmatpush.bf16.msra.mxu0 %v6566
        %8879 = vmatpush.bf16.msra.mxu0 %v6561
        %8880 = vmatpush.bf16.msra.mxu0 %v6556
        %8881 = vmatmul.bf16.gmra.mxu0 %v2045
        %v8882 = vpop.f32.mrf.mxu0
        %v8883 = vadd.f32 %v8870, %v8882
        %v8884 = vpop.f32.mrf.mxu0
        %8885 = vdwg.mxu0
        %8886 = vmatpush.bf16.msra.mxu0 %v6631
        %8887 = vmatpush.bf16.msra.mxu0 %v6626
        %8888 = vmatpush.bf16.msra.mxu0 %v6621
        %8889 = vmatpush.bf16.msra.mxu0 %v6616
        %8890 = vmatpush.bf16.msra.mxu0 %v6611
        %8891 = vmatpush.bf16.msra.mxu0 %v6606
        %8892 = vmatpush.bf16.msra.mxu0 %v6601
        %8893 = vmatpush.bf16.msra.mxu0 %v6596
        %8894 = vmatmul.bf16.gmra.mxu0 %v2046
        %v8895 = vpop.f32.mrf.mxu0
        %v8896 = vadd.f32 %v8883, %v8895
        %v8897 = vpop.f32.mrf.mxu0
        %8898 = vdwg.mxu0
        %8899 = vmatpush.bf16.msra.mxu0 %v6671
        %8900 = vmatpush.bf16.msra.mxu0 %v6666
        %8901 = vmatpush.bf16.msra.mxu0 %v6661
        %8902 = vmatpush.bf16.msra.mxu0 %v6656
        %8903 = vmatpush.bf16.msra.mxu0 %v6651
        %8904 = vmatpush.bf16.msra.mxu0 %v6646
        %8905 = vmatpush.bf16.msra.mxu0 %v6641
        %8906 = vmatpush.bf16.msra.mxu0 %v6636
        %8907 = vmatmul.bf16.gmra.mxu0 %v2047
        %v8908 = vpop.f32.mrf.mxu0
        %v8909 = vadd.f32 %v8896, %v8908
        %v8910 = vpop.f32.mrf.mxu0
        %8911 = vdwg.mxu0
        %8912 = vmatpush.bf16.msra.mxu0 %v6711
        %8913 = vmatpush.bf16.msra.mxu0 %v6706
        %8914 = vmatpush.bf16.msra.mxu0 %v6701
        %8915 = vmatpush.bf16.msra.mxu0 %v6696
        %8916 = vmatpush.bf16.msra.mxu0 %v6691
        %8917 = vmatpush.bf16.msra.mxu0 %v6686
        %8918 = vmatpush.bf16.msra.mxu0 %v6681
        %8919 = vmatpush.bf16.msra.mxu0 %v6676
        %8920 = vmatmul.bf16.gmra.mxu0 %v2048
        %v8921 = vpop.f32.mrf.mxu0
        %v8922 = vadd.f32 %v8909, %v8921
        %v8923 = vpop.f32.mrf.mxu0
        %8924 = vdwg.mxu0
        %8925 = vmatpush.bf16.msra.mxu0 %v6751
        %8926 = vmatpush.bf16.msra.mxu0 %v6746
        %8927 = vmatpush.bf16.msra.mxu0 %v6741
        %8928 = vmatpush.bf16.msra.mxu0 %v6736
        %8929 = vmatpush.bf16.msra.mxu0 %v6731
        %8930 = vmatpush.bf16.msra.mxu0 %v6726
        %8931 = vmatpush.bf16.msra.mxu0 %v6721
        %8932 = vmatpush.bf16.msra.mxu0 %v6716
        %8933 = vmatmul.bf16.gmra.mxu0 %v2049
        %v8934 = vpop.f32.mrf.mxu0
        %v8935 = vadd.f32 %v8922, %v8934
        %v8936 = vpop.f32.mrf.mxu0
        %8937 = vdwg.mxu0
        %8938 = vmatpush.bf16.msra.mxu0 %v6791
        %8939 = vmatpush.bf16.msra.mxu0 %v6786
        %8940 = vmatpush.bf16.msra.mxu0 %v6781
        %8941 = vmatpush.bf16.msra.mxu0 %v6776
        %8942 = vmatpush.bf16.msra.mxu0 %v6771
        %8943 = vmatpush.bf16.msra.mxu0 %v6766
        %8944 = vmatpush.bf16.msra.mxu0 %v6761
        %8945 = vmatpush.bf16.msra.mxu0 %v6756
        %8946 = vmatmul.bf16.gmra.mxu0 %v2050
        %v8947 = vpop.f32.mrf.mxu0
        %v8948 = vadd.f32 %v8935, %v8947
        %v8949 = vpop.f32.mrf.mxu0
        %8950 = vdwg.mxu0
        %8951 = vmatpush.bf16.msra.mxu0 %v6831
        %8952 = vmatpush.bf16.msra.mxu0 %v6826
        %8953 = vmatpush.bf16.msra.mxu0 %v6821
        %8954 = vmatpush.bf16.msra.mxu0 %v6816
        %8955 = vmatpush.bf16.msra.mxu0 %v6811
        %8956 = vmatpush.bf16.msra.mxu0 %v6806
        %8957 = vmatpush.bf16.msra.mxu0 %v6801
        %8958 = vmatpush.bf16.msra.mxu0 %v6796
        %8959 = vmatmul.bf16.gmra.mxu0 %v2051
        %v8960 = vpop.f32.mrf.mxu0
        %v8961 = vadd.f32 %v8948, %v8960
        %v8962 = vpop.f32.mrf.mxu0
        %8963 = vdwg.mxu0
        %8964 = vmatpush.bf16.msra.mxu0 %v6871
        %8965 = vmatpush.bf16.msra.mxu0 %v6866
        %8966 = vmatpush.bf16.msra.mxu0 %v6861
        %8967 = vmatpush.bf16.msra.mxu0 %v6856
        %8968 = vmatpush.bf16.msra.mxu0 %v6851
        %8969 = vmatpush.bf16.msra.mxu0 %v6846
        %8970 = vmatpush.bf16.msra.mxu0 %v6841
        %8971 = vmatpush.bf16.msra.mxu0 %v6836
        %8972 = vmatmul.bf16.gmra.mxu0 %v2052
        %v8973 = vpop.f32.mrf.mxu0
        %v8974 = vadd.f32 %v8961, %v8973
        %v8975 = vpop.f32.mrf.mxu0
        %8976 = vdwg.mxu0
        %8977 = vmatpush.bf16.msra.mxu0 %v6911
        %8978 = vmatpush.bf16.msra.mxu0 %v6906
        %8979 = vmatpush.bf16.msra.mxu0 %v6901
        %8980 = vmatpush.bf16.msra.mxu0 %v6896
        %8981 = vmatpush.bf16.msra.mxu0 %v6891
        %8982 = vmatpush.bf16.msra.mxu0 %v6886
        %8983 = vmatpush.bf16.msra.mxu0 %v6881
        %8984 = vmatpush.bf16.msra.mxu0 %v6876
        %8985 = vmatmul.bf16.gmra.mxu0 %v2053
        %v8986 = vpop.f32.mrf.mxu0
        %v8987 = vadd.f32 %v8974, %v8986
        %v8988 = vpop.f32.mrf.mxu0
        %8989 = vdwg.mxu0
        %8990 = vmatpush.bf16.msra.mxu0 %v6951
        %8991 = vmatpush.bf16.msra.mxu0 %v6946
        %8992 = vmatpush.bf16.msra.mxu0 %v6941
        %8993 = vmatpush.bf16.msra.mxu0 %v6936
        %8994 = vmatpush.bf16.msra.mxu0 %v6931
        %8995 = vmatpush.bf16.msra.mxu0 %v6926
        %8996 = vmatpush.bf16.msra.mxu0 %v6921
        %8997 = vmatpush.bf16.msra.mxu0 %v6916
        %8998 = vmatmul.bf16.gmra.mxu0 %v2054
        %v8999 = vpop.f32.mrf.mxu0
        %v9000 = vadd.f32 %v8987, %v8999
        %v9001 = vpop.f32.mrf.mxu0
        %9002 = vdwg.mxu0
        %9003 = vmatpush.bf16.msra.mxu0 %v6991
        %9004 = vmatpush.bf16.msra.mxu0 %v6986
        %9005 = vmatpush.bf16.msra.mxu0 %v6981
        %9006 = vmatpush.bf16.msra.mxu0 %v6976
        %9007 = vmatpush.bf16.msra.mxu0 %v6971
        %9008 = vmatpush.bf16.msra.mxu0 %v6966
        %9009 = vmatpush.bf16.msra.mxu0 %v6961
        %9010 = vmatpush.bf16.msra.mxu0 %v6956
        %9011 = vmatmul.bf16.gmra.mxu0 %v2055
        %v9012 = vpop.f32.mrf.mxu0
        %v9013 = vadd.f32 %v9000, %v9012
        %v9014 = vpop.f32.mrf.mxu0
        %9015 = vdwg.mxu0
        %9016 = vmatpush.bf16.msra.mxu0 %v7031
        %9017 = vmatpush.bf16.msra.mxu0 %v7026
        %9018 = vmatpush.bf16.msra.mxu0 %v7021
        %9019 = vmatpush.bf16.msra.mxu0 %v7016
        %9020 = vmatpush.bf16.msra.mxu0 %v7011
        %9021 = vmatpush.bf16.msra.mxu0 %v7006
        %9022 = vmatpush.bf16.msra.mxu0 %v7001
        %9023 = vmatpush.bf16.msra.mxu0 %v6996
        %9024 = vmatmul.bf16.gmra.mxu0 %v2056
        %v9025 = vpop.f32.mrf.mxu0
        %v9026 = vadd.f32 %v9013, %v9025
        %v9027 = vpop.f32.mrf.mxu0
        %9028 = vdwg.mxu0
        %9029 = vmatpush.bf16.msra.mxu0 %v7071
        %9030 = vmatpush.bf16.msra.mxu0 %v7066
        %9031 = vmatpush.bf16.msra.mxu0 %v7061
        %9032 = vmatpush.bf16.msra.mxu0 %v7056
        %9033 = vmatpush.bf16.msra.mxu0 %v7051
        %9034 = vmatpush.bf16.msra.mxu0 %v7046
        %9035 = vmatpush.bf16.msra.mxu0 %v7041
        %9036 = vmatpush.bf16.msra.mxu0 %v7036
        %9037 = vmatmul.bf16.gmra.mxu0 %v2057
        %v9038 = vpop.f32.mrf.mxu0
        %v9039 = vadd.f32 %v9026, %v9038
        %v9040 = vpop.f32.mrf.mxu0
        %9041 = vdwg.mxu0
        %9042 = vmatpush.bf16.msra.mxu0 %v7111
        %9043 = vmatpush.bf16.msra.mxu0 %v7106
        %9044 = vmatpush.bf16.msra.mxu0 %v7101
        %9045 = vmatpush.bf16.msra.mxu0 %v7096
        %9046 = vmatpush.bf16.msra.mxu0 %v7091
        %9047 = vmatpush.bf16.msra.mxu0 %v7086
        %9048 = vmatpush.bf16.msra.mxu0 %v7081
        %9049 = vmatpush.bf16.msra.mxu0 %v7076
        %9050 = vmatmul.bf16.gmra.mxu0 %v2058
        %v9051 = vpop.f32.mrf.mxu0
        %v9052 = vadd.f32 %v9039, %v9051
        %v9053 = vpop.f32.mrf.mxu0
        %9054 = vdwg.mxu0
        %9055 = vmatpush.bf16.msra.mxu0 %v7151
        %9056 = vmatpush.bf16.msra.mxu0 %v7146
        %9057 = vmatpush.bf16.msra.mxu0 %v7141
        %9058 = vmatpush.bf16.msra.mxu0 %v7136
        %9059 = vmatpush.bf16.msra.mxu0 %v7131
        %9060 = vmatpush.bf16.msra.mxu0 %v7126
        %9061 = vmatpush.bf16.msra.mxu0 %v7121
        %9062 = vmatpush.bf16.msra.mxu0 %v7116
        %9063 = vmatmul.bf16.gmra.mxu0 %v2059
        %v9064 = vpop.f32.mrf.mxu0
        %v9065 = vadd.f32 %v9052, %v9064
        %v9066 = vpop.f32.mrf.mxu0
        %9067 = vdwg.mxu0
        %9068 = vmatpush.bf16.msra.mxu0 %v7191
        %9069 = vmatpush.bf16.msra.mxu0 %v7186
        %9070 = vmatpush.bf16.msra.mxu0 %v7181
        %9071 = vmatpush.bf16.msra.mxu0 %v7176
        %9072 = vmatpush.bf16.msra.mxu0 %v7171
        %9073 = vmatpush.bf16.msra.mxu0 %v7166
        %9074 = vmatpush.bf16.msra.mxu0 %v7161
        %9075 = vmatpush.bf16.msra.mxu0 %v7156
        %9076 = vmatmul.bf16.gmra.mxu0 %v2060
        %v9077 = vpop.f32.mrf.mxu0
        %v9078 = vadd.f32 %v9065, %v9077
        %v9079 = vpop.f32.mrf.mxu0
        %9080 = vdwg.mxu0
        %9081 = vmatpush.bf16.msra.mxu0 %v7231
        %9082 = vmatpush.bf16.msra.mxu0 %v7226
        %9083 = vmatpush.bf16.msra.mxu0 %v7221
        %9084 = vmatpush.bf16.msra.mxu0 %v7216
        %9085 = vmatpush.bf16.msra.mxu0 %v7211
        %9086 = vmatpush.bf16.msra.mxu0 %v7206
        %9087 = vmatpush.bf16.msra.mxu0 %v7201
        %9088 = vmatpush.bf16.msra.mxu0 %v7196
        %9089 = vmatmul.bf16.gmra.mxu0 %v2061
        %v9090 = vpop.f32.mrf.mxu0
        %v9091 = vadd.f32 %v9078, %v9090
        %v9092 = vpop.f32.mrf.mxu0
        %9093 = vdwg.mxu0
        %9094 = vmatpush.bf16.msra.mxu0 %v7271
        %9095 = vmatpush.bf16.msra.mxu0 %v7266
        %9096 = vmatpush.bf16.msra.mxu0 %v7261
        %9097 = vmatpush.bf16.msra.mxu0 %v7256
        %9098 = vmatpush.bf16.msra.mxu0 %v7251
        %9099 = vmatpush.bf16.msra.mxu0 %v7246
        %9100 = vmatpush.bf16.msra.mxu0 %v7241
        %9101 = vmatpush.bf16.msra.mxu0 %v7236
        %9102 = vmatmul.bf16.gmra.mxu0 %v2062
        %v9103 = vpop.f32.mrf.mxu0
        %v9104 = vadd.f32 %v9091, %v9103
        %v9105 = vpop.f32.mrf.mxu0
        %9106 = vdwg.mxu0
        %9107 = vmatpush.bf16.msra.mxu0 %v7311
        %9108 = vmatpush.bf16.msra.mxu0 %v7306
        %9109 = vmatpush.bf16.msra.mxu0 %v7301
        %9110 = vmatpush.bf16.msra.mxu0 %v7296
        %9111 = vmatpush.bf16.msra.mxu0 %v7291
        %9112 = vmatpush.bf16.msra.mxu0 %v7286
        %9113 = vmatpush.bf16.msra.mxu0 %v7281
        %9114 = vmatpush.bf16.msra.mxu0 %v7276
        %9115 = vmatmul.bf16.gmra.mxu0 %v2063
        %v9116 = vpop.f32.mrf.mxu0
        %v9117 = vadd.f32 %v9104, %v9116
        %v9118 = vpop.f32.mrf.mxu0
        %9119 = vdwg.mxu0
        %9120 = vmatpush.bf16.msra.mxu0 %v7351
        %9121 = vmatpush.bf16.msra.mxu0 %v7346
        %9122 = vmatpush.bf16.msra.mxu0 %v7341
        %9123 = vmatpush.bf16.msra.mxu0 %v7336
        %9124 = vmatpush.bf16.msra.mxu0 %v7331
        %9125 = vmatpush.bf16.msra.mxu0 %v7326
        %9126 = vmatpush.bf16.msra.mxu0 %v7321
        %9127 = vmatpush.bf16.msra.mxu0 %v7316
        %9128 = vmatmul.bf16.gmra.mxu0 %v2064
        %v9129 = vpop.f32.mrf.mxu0
        %v9130 = vadd.f32 %v9117, %v9129
        %v9131 = vpop.f32.mrf.mxu0
        %9132 = vdwg.mxu0
        %9133 = vmatpush.bf16.msra.mxu0 %v7391
        %9134 = vmatpush.bf16.msra.mxu0 %v7386
        %9135 = vmatpush.bf16.msra.mxu0 %v7381
        %9136 = vmatpush.bf16.msra.mxu0 %v7376
        %9137 = vmatpush.bf16.msra.mxu0 %v7371
        %9138 = vmatpush.bf16.msra.mxu0 %v7366
        %9139 = vmatpush.bf16.msra.mxu0 %v7361
        %9140 = vmatpush.bf16.msra.mxu0 %v7356
        %9141 = vmatmul.bf16.gmra.mxu0 %v2065
        %v9142 = vpop.f32.mrf.mxu0
        %v9143 = vadd.f32 %v9130, %v9142
        %v9144 = vpop.f32.mrf.mxu0
        %9145 = vdwg.mxu0
        %9146 = vmatpush.bf16.msra.mxu0 %v7431
        %9147 = vmatpush.bf16.msra.mxu0 %v7426
        %9148 = vmatpush.bf16.msra.mxu0 %v7421
        %9149 = vmatpush.bf16.msra.mxu0 %v7416
        %9150 = vmatpush.bf16.msra.mxu0 %v7411
        %9151 = vmatpush.bf16.msra.mxu0 %v7406
        %9152 = vmatpush.bf16.msra.mxu0 %v7401
        %9153 = vmatpush.bf16.msra.mxu0 %v7396
        %9154 = vmatmul.bf16.gmra.mxu0 %v2066
        %v9155 = vpop.f32.mrf.mxu0
        %v9156 = vadd.f32 %v9143, %v9155
        %v9157 = vpop.f32.mrf.mxu0
        %9158 = vdwg.mxu0
        %9159 = vmatpush.bf16.msra.mxu0 %v7471
        %9160 = vmatpush.bf16.msra.mxu0 %v7466
        %9161 = vmatpush.bf16.msra.mxu0 %v7461
        %9162 = vmatpush.bf16.msra.mxu0 %v7456
        %9163 = vmatpush.bf16.msra.mxu0 %v7451
        %9164 = vmatpush.bf16.msra.mxu0 %v7446
        %9165 = vmatpush.bf16.msra.mxu0 %v7441
        %9166 = vmatpush.bf16.msra.mxu0 %v7436
        %9167 = vmatmul.bf16.gmra.mxu0 %v2067
        %v9168 = vpop.f32.mrf.mxu0
        %v9169 = vadd.f32 %v9156, %v9168
        %v9170 = vpop.f32.mrf.mxu0
        %9171 = vdwg.mxu0
        %9172 = vmatpush.bf16.msra.mxu0 %v6232
        %9173 = vmatpush.bf16.msra.mxu0 %v6227
        %9174 = vmatpush.bf16.msra.mxu0 %v6222
        %9175 = vmatpush.bf16.msra.mxu0 %v6217
        %9176 = vmatpush.bf16.msra.mxu0 %v6212
        %9177 = vmatpush.bf16.msra.mxu0 %v6207
        %9178 = vmatpush.bf16.msra.mxu0 %v6202
        %9179 = vmatpush.bf16.msra.mxu0 %v6197
        %9180 = vmatmul.bf16.gmra.mxu0 %v2036
        %v9181 = vpop.f32.mrf.mxu0
        %v9182 = vadd.f32 0.0, %v9181
        %v9183 = vpop.f32.mrf.mxu0
        %9184 = vdwg.mxu0
        %9185 = vmatpush.bf16.msra.mxu0 %v6272
        %9186 = vmatpush.bf16.msra.mxu0 %v6267
        %9187 = vmatpush.bf16.msra.mxu0 %v6262
        %9188 = vmatpush.bf16.msra.mxu0 %v6257
        %9189 = vmatpush.bf16.msra.mxu0 %v6252
        %9190 = vmatpush.bf16.msra.mxu0 %v6247
        %9191 = vmatpush.bf16.msra.mxu0 %v6242
        %9192 = vmatpush.bf16.msra.mxu0 %v6237
        %9193 = vmatmul.bf16.gmra.mxu0 %v2037
        %v9194 = vpop.f32.mrf.mxu0
        %v9195 = vadd.f32 %v9182, %v9194
        %v9196 = vpop.f32.mrf.mxu0
        %9197 = vdwg.mxu0
        %9198 = vmatpush.bf16.msra.mxu0 %v6312
        %9199 = vmatpush.bf16.msra.mxu0 %v6307
        %9200 = vmatpush.bf16.msra.mxu0 %v6302
        %9201 = vmatpush.bf16.msra.mxu0 %v6297
        %9202 = vmatpush.bf16.msra.mxu0 %v6292
        %9203 = vmatpush.bf16.msra.mxu0 %v6287
        %9204 = vmatpush.bf16.msra.mxu0 %v6282
        %9205 = vmatpush.bf16.msra.mxu0 %v6277
        %9206 = vmatmul.bf16.gmra.mxu0 %v2038
        %v9207 = vpop.f32.mrf.mxu0
        %v9208 = vadd.f32 %v9195, %v9207
        %v9209 = vpop.f32.mrf.mxu0
        %9210 = vdwg.mxu0
        %9211 = vmatpush.bf16.msra.mxu0 %v6352
        %9212 = vmatpush.bf16.msra.mxu0 %v6347
        %9213 = vmatpush.bf16.msra.mxu0 %v6342
        %9214 = vmatpush.bf16.msra.mxu0 %v6337
        %9215 = vmatpush.bf16.msra.mxu0 %v6332
        %9216 = vmatpush.bf16.msra.mxu0 %v6327
        %9217 = vmatpush.bf16.msra.mxu0 %v6322
        %9218 = vmatpush.bf16.msra.mxu0 %v6317
        %9219 = vmatmul.bf16.gmra.mxu0 %v2039
        %v9220 = vpop.f32.mrf.mxu0
        %v9221 = vadd.f32 %v9208, %v9220
        %v9222 = vpop.f32.mrf.mxu0
        %9223 = vdwg.mxu0
        %9224 = vmatpush.bf16.msra.mxu0 %v6392
        %9225 = vmatpush.bf16.msra.mxu0 %v6387
        %9226 = vmatpush.bf16.msra.mxu0 %v6382
        %9227 = vmatpush.bf16.msra.mxu0 %v6377
        %9228 = vmatpush.bf16.msra.mxu0 %v6372
        %9229 = vmatpush.bf16.msra.mxu0 %v6367
        %9230 = vmatpush.bf16.msra.mxu0 %v6362
        %9231 = vmatpush.bf16.msra.mxu0 %v6357
        %9232 = vmatmul.bf16.gmra.mxu0 %v2040
        %v9233 = vpop.f32.mrf.mxu0
        %v9234 = vadd.f32 %v9221, %v9233
        %v9235 = vpop.f32.mrf.mxu0
        %9236 = vdwg.mxu0
        %9237 = vmatpush.bf16.msra.mxu0 %v6432
        %9238 = vmatpush.bf16.msra.mxu0 %v6427
        %9239 = vmatpush.bf16.msra.mxu0 %v6422
        %9240 = vmatpush.bf16.msra.mxu0 %v6417
        %9241 = vmatpush.bf16.msra.mxu0 %v6412
        %9242 = vmatpush.bf16.msra.mxu0 %v6407
        %9243 = vmatpush.bf16.msra.mxu0 %v6402
        %9244 = vmatpush.bf16.msra.mxu0 %v6397
        %9245 = vmatmul.bf16.gmra.mxu0 %v2041
        %v9246 = vpop.f32.mrf.mxu0
        %v9247 = vadd.f32 %v9234, %v9246
        %v9248 = vpop.f32.mrf.mxu0
        %9249 = vdwg.mxu0
        %9250 = vmatpush.bf16.msra.mxu0 %v6472
        %9251 = vmatpush.bf16.msra.mxu0 %v6467
        %9252 = vmatpush.bf16.msra.mxu0 %v6462
        %9253 = vmatpush.bf16.msra.mxu0 %v6457
        %9254 = vmatpush.bf16.msra.mxu0 %v6452
        %9255 = vmatpush.bf16.msra.mxu0 %v6447
        %9256 = vmatpush.bf16.msra.mxu0 %v6442
        %9257 = vmatpush.bf16.msra.mxu0 %v6437
        %9258 = vmatmul.bf16.gmra.mxu0 %v2042
        %v9259 = vpop.f32.mrf.mxu0
        %v9260 = vadd.f32 %v9247, %v9259
        %v9261 = vpop.f32.mrf.mxu0
        %9262 = vdwg.mxu0
        %9263 = vmatpush.bf16.msra.mxu0 %v6512
        %9264 = vmatpush.bf16.msra.mxu0 %v6507
        %9265 = vmatpush.bf16.msra.mxu0 %v6502
        %9266 = vmatpush.bf16.msra.mxu0 %v6497
        %9267 = vmatpush.bf16.msra.mxu0 %v6492
        %9268 = vmatpush.bf16.msra.mxu0 %v6487
        %9269 = vmatpush.bf16.msra.mxu0 %v6482
        %9270 = vmatpush.bf16.msra.mxu0 %v6477
        %9271 = vmatmul.bf16.gmra.mxu0 %v2043
        %v9272 = vpop.f32.mrf.mxu0
        %v9273 = vadd.f32 %v9260, %v9272
        %v9274 = vpop.f32.mrf.mxu0
        %9275 = vdwg.mxu0
        %9276 = vmatpush.bf16.msra.mxu0 %v6552
        %9277 = vmatpush.bf16.msra.mxu0 %v6547
        %9278 = vmatpush.bf16.msra.mxu0 %v6542
        %9279 = vmatpush.bf16.msra.mxu0 %v6537
        %9280 = vmatpush.bf16.msra.mxu0 %v6532
        %9281 = vmatpush.bf16.msra.mxu0 %v6527
        %9282 = vmatpush.bf16.msra.mxu0 %v6522
        %9283 = vmatpush.bf16.msra.mxu0 %v6517
        %9284 = vmatmul.bf16.gmra.mxu0 %v2044
        %v9285 = vpop.f32.mrf.mxu0
        %v9286 = vadd.f32 %v9273, %v9285
        %v9287 = vpop.f32.mrf.mxu0
        %9288 = vdwg.mxu0
        %9289 = vmatpush.bf16.msra.mxu0 %v6592
        %9290 = vmatpush.bf16.msra.mxu0 %v6587
        %9291 = vmatpush.bf16.msra.mxu0 %v6582
        %9292 = vmatpush.bf16.msra.mxu0 %v6577
        %9293 = vmatpush.bf16.msra.mxu0 %v6572
        %9294 = vmatpush.bf16.msra.mxu0 %v6567
        %9295 = vmatpush.bf16.msra.mxu0 %v6562
        %9296 = vmatpush.bf16.msra.mxu0 %v6557
        %9297 = vmatmul.bf16.gmra.mxu0 %v2045
        %v9298 = vpop.f32.mrf.mxu0
        %v9299 = vadd.f32 %v9286, %v9298
        %v9300 = vpop.f32.mrf.mxu0
        %9301 = vdwg.mxu0
        %9302 = vmatpush.bf16.msra.mxu0 %v6632
        %9303 = vmatpush.bf16.msra.mxu0 %v6627
        %9304 = vmatpush.bf16.msra.mxu0 %v6622
        %9305 = vmatpush.bf16.msra.mxu0 %v6617
        %9306 = vmatpush.bf16.msra.mxu0 %v6612
        %9307 = vmatpush.bf16.msra.mxu0 %v6607
        %9308 = vmatpush.bf16.msra.mxu0 %v6602
        %9309 = vmatpush.bf16.msra.mxu0 %v6597
        %9310 = vmatmul.bf16.gmra.mxu0 %v2046
        %v9311 = vpop.f32.mrf.mxu0
        %v9312 = vadd.f32 %v9299, %v9311
        %v9313 = vpop.f32.mrf.mxu0
        %9314 = vdwg.mxu0
        %9315 = vmatpush.bf16.msra.mxu0 %v6672
        %9316 = vmatpush.bf16.msra.mxu0 %v6667
        %9317 = vmatpush.bf16.msra.mxu0 %v6662
        %9318 = vmatpush.bf16.msra.mxu0 %v6657
        %9319 = vmatpush.bf16.msra.mxu0 %v6652
        %9320 = vmatpush.bf16.msra.mxu0 %v6647
        %9321 = vmatpush.bf16.msra.mxu0 %v6642
        %9322 = vmatpush.bf16.msra.mxu0 %v6637
        %9323 = vmatmul.bf16.gmra.mxu0 %v2047
        %v9324 = vpop.f32.mrf.mxu0
        %v9325 = vadd.f32 %v9312, %v9324
        %v9326 = vpop.f32.mrf.mxu0
        %9327 = vdwg.mxu0
        %9328 = vmatpush.bf16.msra.mxu0 %v6712
        %9329 = vmatpush.bf16.msra.mxu0 %v6707
        %9330 = vmatpush.bf16.msra.mxu0 %v6702
        %9331 = vmatpush.bf16.msra.mxu0 %v6697
        %9332 = vmatpush.bf16.msra.mxu0 %v6692
        %9333 = vmatpush.bf16.msra.mxu0 %v6687
        %9334 = vmatpush.bf16.msra.mxu0 %v6682
        %9335 = vmatpush.bf16.msra.mxu0 %v6677
        %9336 = vmatmul.bf16.gmra.mxu0 %v2048
        %v9337 = vpop.f32.mrf.mxu0
        %v9338 = vadd.f32 %v9325, %v9337
        %v9339 = vpop.f32.mrf.mxu0
        %9340 = vdwg.mxu0
        %9341 = vmatpush.bf16.msra.mxu0 %v6752
        %9342 = vmatpush.bf16.msra.mxu0 %v6747
        %9343 = vmatpush.bf16.msra.mxu0 %v6742
        %9344 = vmatpush.bf16.msra.mxu0 %v6737
        %9345 = vmatpush.bf16.msra.mxu0 %v6732
        %9346 = vmatpush.bf16.msra.mxu0 %v6727
        %9347 = vmatpush.bf16.msra.mxu0 %v6722
        %9348 = vmatpush.bf16.msra.mxu0 %v6717
        %9349 = vmatmul.bf16.gmra.mxu0 %v2049
        %v9350 = vpop.f32.mrf.mxu0
        %v9351 = vadd.f32 %v9338, %v9350
        %v9352 = vpop.f32.mrf.mxu0
        %9353 = vdwg.mxu0
        %9354 = vmatpush.bf16.msra.mxu0 %v6792
        %9355 = vmatpush.bf16.msra.mxu0 %v6787
        %9356 = vmatpush.bf16.msra.mxu0 %v6782
        %9357 = vmatpush.bf16.msra.mxu0 %v6777
        %9358 = vmatpush.bf16.msra.mxu0 %v6772
        %9359 = vmatpush.bf16.msra.mxu0 %v6767
        %9360 = vmatpush.bf16.msra.mxu0 %v6762
        %9361 = vmatpush.bf16.msra.mxu0 %v6757
        %9362 = vmatmul.bf16.gmra.mxu0 %v2050
        %v9363 = vpop.f32.mrf.mxu0
        %v9364 = vadd.f32 %v9351, %v9363
        %v9365 = vpop.f32.mrf.mxu0
        %9366 = vdwg.mxu0
        %9367 = vmatpush.bf16.msra.mxu0 %v6832
        %9368 = vmatpush.bf16.msra.mxu0 %v6827
        %9369 = vmatpush.bf16.msra.mxu0 %v6822
        %9370 = vmatpush.bf16.msra.mxu0 %v6817
        %9371 = vmatpush.bf16.msra.mxu0 %v6812
        %9372 = vmatpush.bf16.msra.mxu0 %v6807
        %9373 = vmatpush.bf16.msra.mxu0 %v6802
        %9374 = vmatpush.bf16.msra.mxu0 %v6797
        %9375 = vmatmul.bf16.gmra.mxu0 %v2051
        %v9376 = vpop.f32.mrf.mxu0
        %v9377 = vadd.f32 %v9364, %v9376
        %v9378 = vpop.f32.mrf.mxu0
        %9379 = vdwg.mxu0
        %9380 = vmatpush.bf16.msra.mxu0 %v6872
        %9381 = vmatpush.bf16.msra.mxu0 %v6867
        %9382 = vmatpush.bf16.msra.mxu0 %v6862
        %9383 = vmatpush.bf16.msra.mxu0 %v6857
        %9384 = vmatpush.bf16.msra.mxu0 %v6852
        %9385 = vmatpush.bf16.msra.mxu0 %v6847
        %9386 = vmatpush.bf16.msra.mxu0 %v6842
        %9387 = vmatpush.bf16.msra.mxu0 %v6837
        %9388 = vmatmul.bf16.gmra.mxu0 %v2052
        %v9389 = vpop.f32.mrf.mxu0
        %v9390 = vadd.f32 %v9377, %v9389
        %v9391 = vpop.f32.mrf.mxu0
        %9392 = vdwg.mxu0
        %9393 = vmatpush.bf16.msra.mxu0 %v6912
        %9394 = vmatpush.bf16.msra.mxu0 %v6907
        %9395 = vmatpush.bf16.msra.mxu0 %v6902
        %9396 = vmatpush.bf16.msra.mxu0 %v6897
        %9397 = vmatpush.bf16.msra.mxu0 %v6892
        %9398 = vmatpush.bf16.msra.mxu0 %v6887
        %9399 = vmatpush.bf16.msra.mxu0 %v6882
        %9400 = vmatpush.bf16.msra.mxu0 %v6877
        %9401 = vmatmul.bf16.gmra.mxu0 %v2053
        %v9402 = vpop.f32.mrf.mxu0
        %v9403 = vadd.f32 %v9390, %v9402
        %v9404 = vpop.f32.mrf.mxu0
        %9405 = vdwg.mxu0
        %9406 = vmatpush.bf16.msra.mxu0 %v6952
        %9407 = vmatpush.bf16.msra.mxu0 %v6947
        %9408 = vmatpush.bf16.msra.mxu0 %v6942
        %9409 = vmatpush.bf16.msra.mxu0 %v6937
        %9410 = vmatpush.bf16.msra.mxu0 %v6932
        %9411 = vmatpush.bf16.msra.mxu0 %v6927
        %9412 = vmatpush.bf16.msra.mxu0 %v6922
        %9413 = vmatpush.bf16.msra.mxu0 %v6917
        %9414 = vmatmul.bf16.gmra.mxu0 %v2054
        %v9415 = vpop.f32.mrf.mxu0
        %v9416 = vadd.f32 %v9403, %v9415
        %v9417 = vpop.f32.mrf.mxu0
        %9418 = vdwg.mxu0
        %9419 = vmatpush.bf16.msra.mxu0 %v6992
        %9420 = vmatpush.bf16.msra.mxu0 %v6987
        %9421 = vmatpush.bf16.msra.mxu0 %v6982
        %9422 = vmatpush.bf16.msra.mxu0 %v6977
        %9423 = vmatpush.bf16.msra.mxu0 %v6972
        %9424 = vmatpush.bf16.msra.mxu0 %v6967
        %9425 = vmatpush.bf16.msra.mxu0 %v6962
        %9426 = vmatpush.bf16.msra.mxu0 %v6957
        %9427 = vmatmul.bf16.gmra.mxu0 %v2055
        %v9428 = vpop.f32.mrf.mxu0
        %v9429 = vadd.f32 %v9416, %v9428
        %v9430 = vpop.f32.mrf.mxu0
        %9431 = vdwg.mxu0
        %9432 = vmatpush.bf16.msra.mxu0 %v7032
        %9433 = vmatpush.bf16.msra.mxu0 %v7027
        %9434 = vmatpush.bf16.msra.mxu0 %v7022
        %9435 = vmatpush.bf16.msra.mxu0 %v7017
        %9436 = vmatpush.bf16.msra.mxu0 %v7012
        %9437 = vmatpush.bf16.msra.mxu0 %v7007
        %9438 = vmatpush.bf16.msra.mxu0 %v7002
        %9439 = vmatpush.bf16.msra.mxu0 %v6997
        %9440 = vmatmul.bf16.gmra.mxu0 %v2056
        %v9441 = vpop.f32.mrf.mxu0
        %v9442 = vadd.f32 %v9429, %v9441
        %v9443 = vpop.f32.mrf.mxu0
        %9444 = vdwg.mxu0
        %9445 = vmatpush.bf16.msra.mxu0 %v7072
        %9446 = vmatpush.bf16.msra.mxu0 %v7067
        %9447 = vmatpush.bf16.msra.mxu0 %v7062
        %9448 = vmatpush.bf16.msra.mxu0 %v7057
        %9449 = vmatpush.bf16.msra.mxu0 %v7052
        %9450 = vmatpush.bf16.msra.mxu0 %v7047
        %9451 = vmatpush.bf16.msra.mxu0 %v7042
        %9452 = vmatpush.bf16.msra.mxu0 %v7037
        %9453 = vmatmul.bf16.gmra.mxu0 %v2057
        %v9454 = vpop.f32.mrf.mxu0
        %v9455 = vadd.f32 %v9442, %v9454
        %v9456 = vpop.f32.mrf.mxu0
        %9457 = vdwg.mxu0
        %9458 = vmatpush.bf16.msra.mxu0 %v7112
        %9459 = vmatpush.bf16.msra.mxu0 %v7107
        %9460 = vmatpush.bf16.msra.mxu0 %v7102
        %9461 = vmatpush.bf16.msra.mxu0 %v7097
        %9462 = vmatpush.bf16.msra.mxu0 %v7092
        %9463 = vmatpush.bf16.msra.mxu0 %v7087
        %9464 = vmatpush.bf16.msra.mxu0 %v7082
        %9465 = vmatpush.bf16.msra.mxu0 %v7077
        %9466 = vmatmul.bf16.gmra.mxu0 %v2058
        %v9467 = vpop.f32.mrf.mxu0
        %v9468 = vadd.f32 %v9455, %v9467
        %v9469 = vpop.f32.mrf.mxu0
        %9470 = vdwg.mxu0
        %9471 = vmatpush.bf16.msra.mxu0 %v7152
        %9472 = vmatpush.bf16.msra.mxu0 %v7147
        %9473 = vmatpush.bf16.msra.mxu0 %v7142
        %9474 = vmatpush.bf16.msra.mxu0 %v7137
        %9475 = vmatpush.bf16.msra.mxu0 %v7132
        %9476 = vmatpush.bf16.msra.mxu0 %v7127
        %9477 = vmatpush.bf16.msra.mxu0 %v7122
        %9478 = vmatpush.bf16.msra.mxu0 %v7117
        %9479 = vmatmul.bf16.gmra.mxu0 %v2059
        %v9480 = vpop.f32.mrf.mxu0
        %v9481 = vadd.f32 %v9468, %v9480
        %v9482 = vpop.f32.mrf.mxu0
        %9483 = vdwg.mxu0
        %9484 = vmatpush.bf16.msra.mxu0 %v7192
        %9485 = vmatpush.bf16.msra.mxu0 %v7187
        %9486 = vmatpush.bf16.msra.mxu0 %v7182
        %9487 = vmatpush.bf16.msra.mxu0 %v7177
        %9488 = vmatpush.bf16.msra.mxu0 %v7172
        %9489 = vmatpush.bf16.msra.mxu0 %v7167
        %9490 = vmatpush.bf16.msra.mxu0 %v7162
        %9491 = vmatpush.bf16.msra.mxu0 %v7157
        %9492 = vmatmul.bf16.gmra.mxu0 %v2060
        %v9493 = vpop.f32.mrf.mxu0
        %v9494 = vadd.f32 %v9481, %v9493
        %v9495 = vpop.f32.mrf.mxu0
        %9496 = vdwg.mxu0
        %9497 = vmatpush.bf16.msra.mxu0 %v7232
        %9498 = vmatpush.bf16.msra.mxu0 %v7227
        %9499 = vmatpush.bf16.msra.mxu0 %v7222
        %9500 = vmatpush.bf16.msra.mxu0 %v7217
        %9501 = vmatpush.bf16.msra.mxu0 %v7212
        %9502 = vmatpush.bf16.msra.mxu0 %v7207
        %9503 = vmatpush.bf16.msra.mxu0 %v7202
        %9504 = vmatpush.bf16.msra.mxu0 %v7197
        %9505 = vmatmul.bf16.gmra.mxu0 %v2061
        %v9506 = vpop.f32.mrf.mxu0
        %v9507 = vadd.f32 %v9494, %v9506
        %v9508 = vpop.f32.mrf.mxu0
        %9509 = vdwg.mxu0
        %9510 = vmatpush.bf16.msra.mxu0 %v7272
        %9511 = vmatpush.bf16.msra.mxu0 %v7267
        %9512 = vmatpush.bf16.msra.mxu0 %v7262
        %9513 = vmatpush.bf16.msra.mxu0 %v7257
        %9514 = vmatpush.bf16.msra.mxu0 %v7252
        %9515 = vmatpush.bf16.msra.mxu0 %v7247
        %9516 = vmatpush.bf16.msra.mxu0 %v7242
        %9517 = vmatpush.bf16.msra.mxu0 %v7237
        %9518 = vmatmul.bf16.gmra.mxu0 %v2062
        %v9519 = vpop.f32.mrf.mxu0
        %v9520 = vadd.f32 %v9507, %v9519
        %v9521 = vpop.f32.mrf.mxu0
        %9522 = vdwg.mxu0
        %9523 = vmatpush.bf16.msra.mxu0 %v7312
        %9524 = vmatpush.bf16.msra.mxu0 %v7307
        %9525 = vmatpush.bf16.msra.mxu0 %v7302
        %9526 = vmatpush.bf16.msra.mxu0 %v7297
        %9527 = vmatpush.bf16.msra.mxu0 %v7292
        %9528 = vmatpush.bf16.msra.mxu0 %v7287
        %9529 = vmatpush.bf16.msra.mxu0 %v7282
        %9530 = vmatpush.bf16.msra.mxu0 %v7277
        %9531 = vmatmul.bf16.gmra.mxu0 %v2063
        %v9532 = vpop.f32.mrf.mxu0
        %v9533 = vadd.f32 %v9520, %v9532
        %v9534 = vpop.f32.mrf.mxu0
        %9535 = vdwg.mxu0
        %9536 = vmatpush.bf16.msra.mxu0 %v7352
        %9537 = vmatpush.bf16.msra.mxu0 %v7347
        %9538 = vmatpush.bf16.msra.mxu0 %v7342
        %9539 = vmatpush.bf16.msra.mxu0 %v7337
        %9540 = vmatpush.bf16.msra.mxu0 %v7332
        %9541 = vmatpush.bf16.msra.mxu0 %v7327
        %9542 = vmatpush.bf16.msra.mxu0 %v7322
        %9543 = vmatpush.bf16.msra.mxu0 %v7317
        %9544 = vmatmul.bf16.gmra.mxu0 %v2064
        %v9545 = vpop.f32.mrf.mxu0
        %v9546 = vadd.f32 %v9533, %v9545
        %v9547 = vpop.f32.mrf.mxu0
        %9548 = vdwg.mxu0
        %9549 = vmatpush.bf16.msra.mxu0 %v7392
        %9550 = vmatpush.bf16.msra.mxu0 %v7387
        %9551 = vmatpush.bf16.msra.mxu0 %v7382
        %9552 = vmatpush.bf16.msra.mxu0 %v7377
        %9553 = vmatpush.bf16.msra.mxu0 %v7372
        %9554 = vmatpush.bf16.msra.mxu0 %v7367
        %9555 = vmatpush.bf16.msra.mxu0 %v7362
        %9556 = vmatpush.bf16.msra.mxu0 %v7357
        %9557 = vmatmul.bf16.gmra.mxu0 %v2065
        %v9558 = vpop.f32.mrf.mxu0
        %v9559 = vadd.f32 %v9546, %v9558
        %v9560 = vpop.f32.mrf.mxu0
        %9561 = vdwg.mxu0
        %9562 = vmatpush.bf16.msra.mxu0 %v7432
        %9563 = vmatpush.bf16.msra.mxu0 %v7427
        %9564 = vmatpush.bf16.msra.mxu0 %v7422
        %9565 = vmatpush.bf16.msra.mxu0 %v7417
        %9566 = vmatpush.bf16.msra.mxu0 %v7412
        %9567 = vmatpush.bf16.msra.mxu0 %v7407
        %9568 = vmatpush.bf16.msra.mxu0 %v7402
        %9569 = vmatpush.bf16.msra.mxu0 %v7397
        %9570 = vmatmul.bf16.gmra.mxu0 %v2066
        %v9571 = vpop.f32.mrf.mxu0
        %v9572 = vadd.f32 %v9559, %v9571
        %v9573 = vpop.f32.mrf.mxu0
        %9574 = vdwg.mxu0
        %9575 = vmatpush.bf16.msra.mxu0 %v7472
        %9576 = vmatpush.bf16.msra.mxu0 %v7467
        %9577 = vmatpush.bf16.msra.mxu0 %v7462
        %9578 = vmatpush.bf16.msra.mxu0 %v7457
        %9579 = vmatpush.bf16.msra.mxu0 %v7452
        %9580 = vmatpush.bf16.msra.mxu0 %v7447
        %9581 = vmatpush.bf16.msra.mxu0 %v7442
        %9582 = vmatpush.bf16.msra.mxu0 %v7437
        %9583 = vmatmul.bf16.gmra.mxu0 %v2067
        %v9584 = vpop.f32.mrf.mxu0
        %v9585 = vadd.f32 %v9572, %v9584
        %v9586 = vpop.f32.mrf.mxu0
        %9587 = vdwg.mxu0
        %9588 = vmatpush.bf16.msra.mxu0 %v6233
        %9589 = vmatpush.bf16.msra.mxu0 %v6228
        %9590 = vmatpush.bf16.msra.mxu0 %v6223
        %9591 = vmatpush.bf16.msra.mxu0 %v6218
        %9592 = vmatpush.bf16.msra.mxu0 %v6213
        %9593 = vmatpush.bf16.msra.mxu0 %v6208
        %9594 = vmatpush.bf16.msra.mxu0 %v6203
        %9595 = vmatpush.bf16.msra.mxu0 %v6198
        %9596 = vmatmul.bf16.gmra.mxu0 %v2036
        %v9597 = vpop.f32.mrf.mxu0
        %v9598 = vadd.f32 0.0, %v9597
        %v9599 = vpop.f32.mrf.mxu0
        %9600 = vdwg.mxu0
        %9601 = vmatpush.bf16.msra.mxu0 %v6273
        %9602 = vmatpush.bf16.msra.mxu0 %v6268
        %9603 = vmatpush.bf16.msra.mxu0 %v6263
        %9604 = vmatpush.bf16.msra.mxu0 %v6258
        %9605 = vmatpush.bf16.msra.mxu0 %v6253
        %9606 = vmatpush.bf16.msra.mxu0 %v6248
        %9607 = vmatpush.bf16.msra.mxu0 %v6243
        %9608 = vmatpush.bf16.msra.mxu0 %v6238
        %9609 = vmatmul.bf16.gmra.mxu0 %v2037
        %v9610 = vpop.f32.mrf.mxu0
        %v9611 = vadd.f32 %v9598, %v9610
        %v9612 = vpop.f32.mrf.mxu0
        %9613 = vdwg.mxu0
        %9614 = vmatpush.bf16.msra.mxu0 %v6313
        %9615 = vmatpush.bf16.msra.mxu0 %v6308
        %9616 = vmatpush.bf16.msra.mxu0 %v6303
        %9617 = vmatpush.bf16.msra.mxu0 %v6298
        %9618 = vmatpush.bf16.msra.mxu0 %v6293
        %9619 = vmatpush.bf16.msra.mxu0 %v6288
        %9620 = vmatpush.bf16.msra.mxu0 %v6283
        %9621 = vmatpush.bf16.msra.mxu0 %v6278
        %9622 = vmatmul.bf16.gmra.mxu0 %v2038
        %v9623 = vpop.f32.mrf.mxu0
        %v9624 = vadd.f32 %v9611, %v9623
        %v9625 = vpop.f32.mrf.mxu0
        %9626 = vdwg.mxu0
        %9627 = vmatpush.bf16.msra.mxu0 %v6353
        %9628 = vmatpush.bf16.msra.mxu0 %v6348
        %9629 = vmatpush.bf16.msra.mxu0 %v6343
        %9630 = vmatpush.bf16.msra.mxu0 %v6338
        %9631 = vmatpush.bf16.msra.mxu0 %v6333
        %9632 = vmatpush.bf16.msra.mxu0 %v6328
        %9633 = vmatpush.bf16.msra.mxu0 %v6323
        %9634 = vmatpush.bf16.msra.mxu0 %v6318
        %9635 = vmatmul.bf16.gmra.mxu0 %v2039
        %v9636 = vpop.f32.mrf.mxu0
        %v9637 = vadd.f32 %v9624, %v9636
        %v9638 = vpop.f32.mrf.mxu0
        %9639 = vdwg.mxu0
        %9640 = vmatpush.bf16.msra.mxu0 %v6393
        %9641 = vmatpush.bf16.msra.mxu0 %v6388
        %9642 = vmatpush.bf16.msra.mxu0 %v6383
        %9643 = vmatpush.bf16.msra.mxu0 %v6378
        %9644 = vmatpush.bf16.msra.mxu0 %v6373
        %9645 = vmatpush.bf16.msra.mxu0 %v6368
        %9646 = vmatpush.bf16.msra.mxu0 %v6363
        %9647 = vmatpush.bf16.msra.mxu0 %v6358
        %9648 = vmatmul.bf16.gmra.mxu0 %v2040
        %v9649 = vpop.f32.mrf.mxu0
        %v9650 = vadd.f32 %v9637, %v9649
        %v9651 = vpop.f32.mrf.mxu0
        %9652 = vdwg.mxu0
        %9653 = vmatpush.bf16.msra.mxu0 %v6433
        %9654 = vmatpush.bf16.msra.mxu0 %v6428
        %9655 = vmatpush.bf16.msra.mxu0 %v6423
        %9656 = vmatpush.bf16.msra.mxu0 %v6418
        %9657 = vmatpush.bf16.msra.mxu0 %v6413
        %9658 = vmatpush.bf16.msra.mxu0 %v6408
        %9659 = vmatpush.bf16.msra.mxu0 %v6403
        %9660 = vmatpush.bf16.msra.mxu0 %v6398
        %9661 = vmatmul.bf16.gmra.mxu0 %v2041
        %v9662 = vpop.f32.mrf.mxu0
        %v9663 = vadd.f32 %v9650, %v9662
        %v9664 = vpop.f32.mrf.mxu0
        %9665 = vdwg.mxu0
        %9666 = vmatpush.bf16.msra.mxu0 %v6473
        %9667 = vmatpush.bf16.msra.mxu0 %v6468
        %9668 = vmatpush.bf16.msra.mxu0 %v6463
        %9669 = vmatpush.bf16.msra.mxu0 %v6458
        %9670 = vmatpush.bf16.msra.mxu0 %v6453
        %9671 = vmatpush.bf16.msra.mxu0 %v6448
        %9672 = vmatpush.bf16.msra.mxu0 %v6443
        %9673 = vmatpush.bf16.msra.mxu0 %v6438
        %9674 = vmatmul.bf16.gmra.mxu0 %v2042
        %v9675 = vpop.f32.mrf.mxu0
        %v9676 = vadd.f32 %v9663, %v9675
        %v9677 = vpop.f32.mrf.mxu0
        %9678 = vdwg.mxu0
        %9679 = vmatpush.bf16.msra.mxu0 %v6513
        %9680 = vmatpush.bf16.msra.mxu0 %v6508
        %9681 = vmatpush.bf16.msra.mxu0 %v6503
        %9682 = vmatpush.bf16.msra.mxu0 %v6498
        %9683 = vmatpush.bf16.msra.mxu0 %v6493
        %9684 = vmatpush.bf16.msra.mxu0 %v6488
        %9685 = vmatpush.bf16.msra.mxu0 %v6483
        %9686 = vmatpush.bf16.msra.mxu0 %v6478
        %9687 = vmatmul.bf16.gmra.mxu0 %v2043
        %v9688 = vpop.f32.mrf.mxu0
        %v9689 = vadd.f32 %v9676, %v9688
        %v9690 = vpop.f32.mrf.mxu0
        %9691 = vdwg.mxu0
        %9692 = vmatpush.bf16.msra.mxu0 %v6553
        %9693 = vmatpush.bf16.msra.mxu0 %v6548
        %9694 = vmatpush.bf16.msra.mxu0 %v6543
        %9695 = vmatpush.bf16.msra.mxu0 %v6538
        %9696 = vmatpush.bf16.msra.mxu0 %v6533
        %9697 = vmatpush.bf16.msra.mxu0 %v6528
        %9698 = vmatpush.bf16.msra.mxu0 %v6523
        %9699 = vmatpush.bf16.msra.mxu0 %v6518
        %9700 = vmatmul.bf16.gmra.mxu0 %v2044
        %v9701 = vpop.f32.mrf.mxu0
        %v9702 = vadd.f32 %v9689, %v9701
        %v9703 = vpop.f32.mrf.mxu0
        %9704 = vdwg.mxu0
        %9705 = vmatpush.bf16.msra.mxu0 %v6593
        %9706 = vmatpush.bf16.msra.mxu0 %v6588
        %9707 = vmatpush.bf16.msra.mxu0 %v6583
        %9708 = vmatpush.bf16.msra.mxu0 %v6578
        %9709 = vmatpush.bf16.msra.mxu0 %v6573
        %9710 = vmatpush.bf16.msra.mxu0 %v6568
        %9711 = vmatpush.bf16.msra.mxu0 %v6563
        %9712 = vmatpush.bf16.msra.mxu0 %v6558
        %9713 = vmatmul.bf16.gmra.mxu0 %v2045
        %v9714 = vpop.f32.mrf.mxu0
        %v9715 = vadd.f32 %v9702, %v9714
        %v9716 = vpop.f32.mrf.mxu0
        %9717 = vdwg.mxu0
        %9718 = vmatpush.bf16.msra.mxu0 %v6633
        %9719 = vmatpush.bf16.msra.mxu0 %v6628
        %9720 = vmatpush.bf16.msra.mxu0 %v6623
        %9721 = vmatpush.bf16.msra.mxu0 %v6618
        %9722 = vmatpush.bf16.msra.mxu0 %v6613
        %9723 = vmatpush.bf16.msra.mxu0 %v6608
        %9724 = vmatpush.bf16.msra.mxu0 %v6603
        %9725 = vmatpush.bf16.msra.mxu0 %v6598
        %9726 = vmatmul.bf16.gmra.mxu0 %v2046
        %v9727 = vpop.f32.mrf.mxu0
        %v9728 = vadd.f32 %v9715, %v9727
        %v9729 = vpop.f32.mrf.mxu0
        %9730 = vdwg.mxu0
        %9731 = vmatpush.bf16.msra.mxu0 %v6673
        %9732 = vmatpush.bf16.msra.mxu0 %v6668
        %9733 = vmatpush.bf16.msra.mxu0 %v6663
        %9734 = vmatpush.bf16.msra.mxu0 %v6658
        %9735 = vmatpush.bf16.msra.mxu0 %v6653
        %9736 = vmatpush.bf16.msra.mxu0 %v6648
        %9737 = vmatpush.bf16.msra.mxu0 %v6643
        %9738 = vmatpush.bf16.msra.mxu0 %v6638
        %9739 = vmatmul.bf16.gmra.mxu0 %v2047
        %v9740 = vpop.f32.mrf.mxu0
        %v9741 = vadd.f32 %v9728, %v9740
        %v9742 = vpop.f32.mrf.mxu0
        %9743 = vdwg.mxu0
        %9744 = vmatpush.bf16.msra.mxu0 %v6713
        %9745 = vmatpush.bf16.msra.mxu0 %v6708
        %9746 = vmatpush.bf16.msra.mxu0 %v6703
        %9747 = vmatpush.bf16.msra.mxu0 %v6698
        %9748 = vmatpush.bf16.msra.mxu0 %v6693
        %9749 = vmatpush.bf16.msra.mxu0 %v6688
        %9750 = vmatpush.bf16.msra.mxu0 %v6683
        %9751 = vmatpush.bf16.msra.mxu0 %v6678
        %9752 = vmatmul.bf16.gmra.mxu0 %v2048
        %v9753 = vpop.f32.mrf.mxu0
        %v9754 = vadd.f32 %v9741, %v9753
        %v9755 = vpop.f32.mrf.mxu0
        %9756 = vdwg.mxu0
        %9757 = vmatpush.bf16.msra.mxu0 %v6753
        %9758 = vmatpush.bf16.msra.mxu0 %v6748
        %9759 = vmatpush.bf16.msra.mxu0 %v6743
        %9760 = vmatpush.bf16.msra.mxu0 %v6738
        %9761 = vmatpush.bf16.msra.mxu0 %v6733
        %9762 = vmatpush.bf16.msra.mxu0 %v6728
        %9763 = vmatpush.bf16.msra.mxu0 %v6723
        %9764 = vmatpush.bf16.msra.mxu0 %v6718
        %9765 = vmatmul.bf16.gmra.mxu0 %v2049
        %v9766 = vpop.f32.mrf.mxu0
        %v9767 = vadd.f32 %v9754, %v9766
        %v9768 = vpop.f32.mrf.mxu0
        %9769 = vdwg.mxu0
        %9770 = vmatpush.bf16.msra.mxu0 %v6793
        %9771 = vmatpush.bf16.msra.mxu0 %v6788
        %9772 = vmatpush.bf16.msra.mxu0 %v6783
        %9773 = vmatpush.bf16.msra.mxu0 %v6778
        %9774 = vmatpush.bf16.msra.mxu0 %v6773
        %9775 = vmatpush.bf16.msra.mxu0 %v6768
        %9776 = vmatpush.bf16.msra.mxu0 %v6763
        %9777 = vmatpush.bf16.msra.mxu0 %v6758
        %9778 = vmatmul.bf16.gmra.mxu0 %v2050
        %v9779 = vpop.f32.mrf.mxu0
        %v9780 = vadd.f32 %v9767, %v9779
        %v9781 = vpop.f32.mrf.mxu0
        %9782 = vdwg.mxu0
        %9783 = vmatpush.bf16.msra.mxu0 %v6833
        %9784 = vmatpush.bf16.msra.mxu0 %v6828
        %9785 = vmatpush.bf16.msra.mxu0 %v6823
        %9786 = vmatpush.bf16.msra.mxu0 %v6818
        %9787 = vmatpush.bf16.msra.mxu0 %v6813
        %9788 = vmatpush.bf16.msra.mxu0 %v6808
        %9789 = vmatpush.bf16.msra.mxu0 %v6803
        %9790 = vmatpush.bf16.msra.mxu0 %v6798
        %9791 = vmatmul.bf16.gmra.mxu0 %v2051
        %v9792 = vpop.f32.mrf.mxu0
        %v9793 = vadd.f32 %v9780, %v9792
        %v9794 = vpop.f32.mrf.mxu0
        %9795 = vdwg.mxu0
        %9796 = vmatpush.bf16.msra.mxu0 %v6873
        %9797 = vmatpush.bf16.msra.mxu0 %v6868
        %9798 = vmatpush.bf16.msra.mxu0 %v6863
        %9799 = vmatpush.bf16.msra.mxu0 %v6858
        %9800 = vmatpush.bf16.msra.mxu0 %v6853
        %9801 = vmatpush.bf16.msra.mxu0 %v6848
        %9802 = vmatpush.bf16.msra.mxu0 %v6843
        %9803 = vmatpush.bf16.msra.mxu0 %v6838
        %9804 = vmatmul.bf16.gmra.mxu0 %v2052
        %v9805 = vpop.f32.mrf.mxu0
        %v9806 = vadd.f32 %v9793, %v9805
        %v9807 = vpop.f32.mrf.mxu0
        %9808 = vdwg.mxu0
        %9809 = vmatpush.bf16.msra.mxu0 %v6913
        %9810 = vmatpush.bf16.msra.mxu0 %v6908
        %9811 = vmatpush.bf16.msra.mxu0 %v6903
        %9812 = vmatpush.bf16.msra.mxu0 %v6898
        %9813 = vmatpush.bf16.msra.mxu0 %v6893
        %9814 = vmatpush.bf16.msra.mxu0 %v6888
        %9815 = vmatpush.bf16.msra.mxu0 %v6883
        %9816 = vmatpush.bf16.msra.mxu0 %v6878
        %9817 = vmatmul.bf16.gmra.mxu0 %v2053
        %v9818 = vpop.f32.mrf.mxu0
        %v9819 = vadd.f32 %v9806, %v9818
        %v9820 = vpop.f32.mrf.mxu0
        %9821 = vdwg.mxu0
        %9822 = vmatpush.bf16.msra.mxu0 %v6953
        %9823 = vmatpush.bf16.msra.mxu0 %v6948
        %9824 = vmatpush.bf16.msra.mxu0 %v6943
        %9825 = vmatpush.bf16.msra.mxu0 %v6938
        %9826 = vmatpush.bf16.msra.mxu0 %v6933
        %9827 = vmatpush.bf16.msra.mxu0 %v6928
        %9828 = vmatpush.bf16.msra.mxu0 %v6923
        %9829 = vmatpush.bf16.msra.mxu0 %v6918
        %9830 = vmatmul.bf16.gmra.mxu0 %v2054
        %v9831 = vpop.f32.mrf.mxu0
        %v9832 = vadd.f32 %v9819, %v9831
        %v9833 = vpop.f32.mrf.mxu0
        %9834 = vdwg.mxu0
        %9835 = vmatpush.bf16.msra.mxu0 %v6993
        %9836 = vmatpush.bf16.msra.mxu0 %v6988
        %9837 = vmatpush.bf16.msra.mxu0 %v6983
        %9838 = vmatpush.bf16.msra.mxu0 %v6978
        %9839 = vmatpush.bf16.msra.mxu0 %v6973
        %9840 = vmatpush.bf16.msra.mxu0 %v6968
        %9841 = vmatpush.bf16.msra.mxu0 %v6963
        %9842 = vmatpush.bf16.msra.mxu0 %v6958
        %9843 = vmatmul.bf16.gmra.mxu0 %v2055
        %v9844 = vpop.f32.mrf.mxu0
        %v9845 = vadd.f32 %v9832, %v9844
        %v9846 = vpop.f32.mrf.mxu0
        %9847 = vdwg.mxu0
        %9848 = vmatpush.bf16.msra.mxu0 %v7033
        %9849 = vmatpush.bf16.msra.mxu0 %v7028
        %9850 = vmatpush.bf16.msra.mxu0 %v7023
        %9851 = vmatpush.bf16.msra.mxu0 %v7018
        %9852 = vmatpush.bf16.msra.mxu0 %v7013
        %9853 = vmatpush.bf16.msra.mxu0 %v7008
        %9854 = vmatpush.bf16.msra.mxu0 %v7003
        %9855 = vmatpush.bf16.msra.mxu0 %v6998
        %9856 = vmatmul.bf16.gmra.mxu0 %v2056
        %v9857 = vpop.f32.mrf.mxu0
        %v9858 = vadd.f32 %v9845, %v9857
        %v9859 = vpop.f32.mrf.mxu0
        %9860 = vdwg.mxu0
        %9861 = vmatpush.bf16.msra.mxu0 %v7073
        %9862 = vmatpush.bf16.msra.mxu0 %v7068
        %9863 = vmatpush.bf16.msra.mxu0 %v7063
        %9864 = vmatpush.bf16.msra.mxu0 %v7058
        %9865 = vmatpush.bf16.msra.mxu0 %v7053
        %9866 = vmatpush.bf16.msra.mxu0 %v7048
        %9867 = vmatpush.bf16.msra.mxu0 %v7043
        %9868 = vmatpush.bf16.msra.mxu0 %v7038
        %9869 = vmatmul.bf16.gmra.mxu0 %v2057
        %v9870 = vpop.f32.mrf.mxu0
        %v9871 = vadd.f32 %v9858, %v9870
        %v9872 = vpop.f32.mrf.mxu0
        %9873 = vdwg.mxu0
        %9874 = vmatpush.bf16.msra.mxu0 %v7113
        %9875 = vmatpush.bf16.msra.mxu0 %v7108
        %9876 = vmatpush.bf16.msra.mxu0 %v7103
        %9877 = vmatpush.bf16.msra.mxu0 %v7098
        %9878 = vmatpush.bf16.msra.mxu0 %v7093
        %9879 = vmatpush.bf16.msra.mxu0 %v7088
        %9880 = vmatpush.bf16.msra.mxu0 %v7083
        %9881 = vmatpush.bf16.msra.mxu0 %v7078
        %9882 = vmatmul.bf16.gmra.mxu0 %v2058
        %v9883 = vpop.f32.mrf.mxu0
        %v9884 = vadd.f32 %v9871, %v9883
        %v9885 = vpop.f32.mrf.mxu0
        %9886 = vdwg.mxu0
        %9887 = vmatpush.bf16.msra.mxu0 %v7153
        %9888 = vmatpush.bf16.msra.mxu0 %v7148
        %9889 = vmatpush.bf16.msra.mxu0 %v7143
        %9890 = vmatpush.bf16.msra.mxu0 %v7138
        %9891 = vmatpush.bf16.msra.mxu0 %v7133
        %9892 = vmatpush.bf16.msra.mxu0 %v7128
        %9893 = vmatpush.bf16.msra.mxu0 %v7123
        %9894 = vmatpush.bf16.msra.mxu0 %v7118
        %9895 = vmatmul.bf16.gmra.mxu0 %v2059
        %v9896 = vpop.f32.mrf.mxu0
        %v9897 = vadd.f32 %v9884, %v9896
        %v9898 = vpop.f32.mrf.mxu0
        %9899 = vdwg.mxu0
        %9900 = vmatpush.bf16.msra.mxu0 %v7193
        %9901 = vmatpush.bf16.msra.mxu0 %v7188
        %9902 = vmatpush.bf16.msra.mxu0 %v7183
        %9903 = vmatpush.bf16.msra.mxu0 %v7178
        %9904 = vmatpush.bf16.msra.mxu0 %v7173
        %9905 = vmatpush.bf16.msra.mxu0 %v7168
        %9906 = vmatpush.bf16.msra.mxu0 %v7163
        %9907 = vmatpush.bf16.msra.mxu0 %v7158
        %9908 = vmatmul.bf16.gmra.mxu0 %v2060
        %v9909 = vpop.f32.mrf.mxu0
        %v9910 = vadd.f32 %v9897, %v9909
        %v9911 = vpop.f32.mrf.mxu0
        %9912 = vdwg.mxu0
        %9913 = vmatpush.bf16.msra.mxu0 %v7233
        %9914 = vmatpush.bf16.msra.mxu0 %v7228
        %9915 = vmatpush.bf16.msra.mxu0 %v7223
        %9916 = vmatpush.bf16.msra.mxu0 %v7218
        %9917 = vmatpush.bf16.msra.mxu0 %v7213
        %9918 = vmatpush.bf16.msra.mxu0 %v7208
        %9919 = vmatpush.bf16.msra.mxu0 %v7203
        %9920 = vmatpush.bf16.msra.mxu0 %v7198
        %9921 = vmatmul.bf16.gmra.mxu0 %v2061
        %v9922 = vpop.f32.mrf.mxu0
        %v9923 = vadd.f32 %v9910, %v9922
        %v9924 = vpop.f32.mrf.mxu0
        %9925 = vdwg.mxu0
        %9926 = vmatpush.bf16.msra.mxu0 %v7273
        %9927 = vmatpush.bf16.msra.mxu0 %v7268
        %9928 = vmatpush.bf16.msra.mxu0 %v7263
        %9929 = vmatpush.bf16.msra.mxu0 %v7258
        %9930 = vmatpush.bf16.msra.mxu0 %v7253
        %9931 = vmatpush.bf16.msra.mxu0 %v7248
        %9932 = vmatpush.bf16.msra.mxu0 %v7243
        %9933 = vmatpush.bf16.msra.mxu0 %v7238
        %9934 = vmatmul.bf16.gmra.mxu0 %v2062
        %v9935 = vpop.f32.mrf.mxu0
        %v9936 = vadd.f32 %v9923, %v9935
        %v9937 = vpop.f32.mrf.mxu0
        %9938 = vdwg.mxu0
        %9939 = vmatpush.bf16.msra.mxu0 %v7313
        %9940 = vmatpush.bf16.msra.mxu0 %v7308
        %9941 = vmatpush.bf16.msra.mxu0 %v7303
        %9942 = vmatpush.bf16.msra.mxu0 %v7298
        %9943 = vmatpush.bf16.msra.mxu0 %v7293
        %9944 = vmatpush.bf16.msra.mxu0 %v7288
        %9945 = vmatpush.bf16.msra.mxu0 %v7283
        %9946 = vmatpush.bf16.msra.mxu0 %v7278
        %9947 = vmatmul.bf16.gmra.mxu0 %v2063
        %v9948 = vpop.f32.mrf.mxu0
        %v9949 = vadd.f32 %v9936, %v9948
        %v9950 = vpop.f32.mrf.mxu0
        %9951 = vdwg.mxu0
        %9952 = vmatpush.bf16.msra.mxu0 %v7353
        %9953 = vmatpush.bf16.msra.mxu0 %v7348
        %9954 = vmatpush.bf16.msra.mxu0 %v7343
        %9955 = vmatpush.bf16.msra.mxu0 %v7338
        %9956 = vmatpush.bf16.msra.mxu0 %v7333
        %9957 = vmatpush.bf16.msra.mxu0 %v7328
        %9958 = vmatpush.bf16.msra.mxu0 %v7323
        %9959 = vmatpush.bf16.msra.mxu0 %v7318
        %9960 = vmatmul.bf16.gmra.mxu0 %v2064
        %v9961 = vpop.f32.mrf.mxu0
        %v9962 = vadd.f32 %v9949, %v9961
        %v9963 = vpop.f32.mrf.mxu0
        %9964 = vdwg.mxu0
        %9965 = vmatpush.bf16.msra.mxu0 %v7393
        %9966 = vmatpush.bf16.msra.mxu0 %v7388
        %9967 = vmatpush.bf16.msra.mxu0 %v7383
        %9968 = vmatpush.bf16.msra.mxu0 %v7378
        %9969 = vmatpush.bf16.msra.mxu0 %v7373
        %9970 = vmatpush.bf16.msra.mxu0 %v7368
        %9971 = vmatpush.bf16.msra.mxu0 %v7363
        %9972 = vmatpush.bf16.msra.mxu0 %v7358
        %9973 = vmatmul.bf16.gmra.mxu0 %v2065
        %v9974 = vpop.f32.mrf.mxu0
        %v9975 = vadd.f32 %v9962, %v9974
        %v9976 = vpop.f32.mrf.mxu0
        %9977 = vdwg.mxu0
        %9978 = vmatpush.bf16.msra.mxu0 %v7433
        %9979 = vmatpush.bf16.msra.mxu0 %v7428
        %9980 = vmatpush.bf16.msra.mxu0 %v7423
        %9981 = vmatpush.bf16.msra.mxu0 %v7418
        %9982 = vmatpush.bf16.msra.mxu0 %v7413
        %9983 = vmatpush.bf16.msra.mxu0 %v7408
        %9984 = vmatpush.bf16.msra.mxu0 %v7403
        %9985 = vmatpush.bf16.msra.mxu0 %v7398
        %9986 = vmatmul.bf16.gmra.mxu0 %v2066
        %v9987 = vpop.f32.mrf.mxu0
        %v9988 = vadd.f32 %v9975, %v9987
        %v9989 = vpop.f32.mrf.mxu0
        %9990 = vdwg.mxu0
        %9991 = vmatpush.bf16.msra.mxu0 %v7473
        %9992 = vmatpush.bf16.msra.mxu0 %v7468
        %9993 = vmatpush.bf16.msra.mxu0 %v7463
        %9994 = vmatpush.bf16.msra.mxu0 %v7458
        %9995 = vmatpush.bf16.msra.mxu0 %v7453
        %9996 = vmatpush.bf16.msra.mxu0 %v7448
        %9997 = vmatpush.bf16.msra.mxu0 %v7443
        %9998 = vmatpush.bf16.msra.mxu0 %v7438
        %9999 = vmatmul.bf16.gmra.mxu0 %v2067
        %v10000 = vpop.f32.mrf.mxu0
        %v10001 = vadd.f32 %v9988, %v10000
        %v10002 = vpop.f32.mrf.mxu0
        %10003 = vdwg.mxu0
        %10004 = vmatpush.bf16.msra.mxu0 %v6234
        %10005 = vmatpush.bf16.msra.mxu0 %v6229
        %10006 = vmatpush.bf16.msra.mxu0 %v6224
        %10007 = vmatpush.bf16.msra.mxu0 %v6219
        %10008 = vmatpush.bf16.msra.mxu0 %v6214
        %10009 = vmatpush.bf16.msra.mxu0 %v6209
        %10010 = vmatpush.bf16.msra.mxu0 %v6204
        %10011 = vmatpush.bf16.msra.mxu0 %v6199
        %10012 = vmatmul.bf16.gmra.mxu0 %v2036
        %v10013 = vpop.f32.mrf.mxu0
        %v10014 = vadd.f32 0.0, %v10013
        %v10015 = vpop.f32.mrf.mxu0
        %10016 = vdwg.mxu0
        %10017 = vmatpush.bf16.msra.mxu0 %v6274
        %10018 = vmatpush.bf16.msra.mxu0 %v6269
        %10019 = vmatpush.bf16.msra.mxu0 %v6264
        %10020 = vmatpush.bf16.msra.mxu0 %v6259
        %10021 = vmatpush.bf16.msra.mxu0 %v6254
        %10022 = vmatpush.bf16.msra.mxu0 %v6249
        %10023 = vmatpush.bf16.msra.mxu0 %v6244
        %10024 = vmatpush.bf16.msra.mxu0 %v6239
        %10025 = vmatmul.bf16.gmra.mxu0 %v2037
        %v10026 = vpop.f32.mrf.mxu0
        %v10027 = vadd.f32 %v10014, %v10026
        %v10028 = vpop.f32.mrf.mxu0
        %10029 = vdwg.mxu0
        %10030 = vmatpush.bf16.msra.mxu0 %v6314
        %10031 = vmatpush.bf16.msra.mxu0 %v6309
        %10032 = vmatpush.bf16.msra.mxu0 %v6304
        %10033 = vmatpush.bf16.msra.mxu0 %v6299
        %10034 = vmatpush.bf16.msra.mxu0 %v6294
        %10035 = vmatpush.bf16.msra.mxu0 %v6289
        %10036 = vmatpush.bf16.msra.mxu0 %v6284
        %10037 = vmatpush.bf16.msra.mxu0 %v6279
        %10038 = vmatmul.bf16.gmra.mxu0 %v2038
        %v10039 = vpop.f32.mrf.mxu0
        %v10040 = vadd.f32 %v10027, %v10039
        %v10041 = vpop.f32.mrf.mxu0
        %10042 = vdwg.mxu0
        %10043 = vmatpush.bf16.msra.mxu0 %v6354
        %10044 = vmatpush.bf16.msra.mxu0 %v6349
        %10045 = vmatpush.bf16.msra.mxu0 %v6344
        %10046 = vmatpush.bf16.msra.mxu0 %v6339
        %10047 = vmatpush.bf16.msra.mxu0 %v6334
        %10048 = vmatpush.bf16.msra.mxu0 %v6329
        %10049 = vmatpush.bf16.msra.mxu0 %v6324
        %10050 = vmatpush.bf16.msra.mxu0 %v6319
        %10051 = vmatmul.bf16.gmra.mxu0 %v2039
        %v10052 = vpop.f32.mrf.mxu0
        %v10053 = vadd.f32 %v10040, %v10052
        %v10054 = vpop.f32.mrf.mxu0
        %10055 = vdwg.mxu0
        %10056 = vmatpush.bf16.msra.mxu0 %v6394
        %10057 = vmatpush.bf16.msra.mxu0 %v6389
        %10058 = vmatpush.bf16.msra.mxu0 %v6384
        %10059 = vmatpush.bf16.msra.mxu0 %v6379
        %10060 = vmatpush.bf16.msra.mxu0 %v6374
        %10061 = vmatpush.bf16.msra.mxu0 %v6369
        %10062 = vmatpush.bf16.msra.mxu0 %v6364
        %10063 = vmatpush.bf16.msra.mxu0 %v6359
        %10064 = vmatmul.bf16.gmra.mxu0 %v2040
        %v10065 = vpop.f32.mrf.mxu0
        %v10066 = vadd.f32 %v10053, %v10065
        %v10067 = vpop.f32.mrf.mxu0
        %10068 = vdwg.mxu0
        %10069 = vmatpush.bf16.msra.mxu0 %v6434
        %10070 = vmatpush.bf16.msra.mxu0 %v6429
        %10071 = vmatpush.bf16.msra.mxu0 %v6424
        %10072 = vmatpush.bf16.msra.mxu0 %v6419
        %10073 = vmatpush.bf16.msra.mxu0 %v6414
        %10074 = vmatpush.bf16.msra.mxu0 %v6409
        %10075 = vmatpush.bf16.msra.mxu0 %v6404
        %10076 = vmatpush.bf16.msra.mxu0 %v6399
        %10077 = vmatmul.bf16.gmra.mxu0 %v2041
        %v10078 = vpop.f32.mrf.mxu0
        %v10079 = vadd.f32 %v10066, %v10078
        %v10080 = vpop.f32.mrf.mxu0
        %10081 = vdwg.mxu0
        %10082 = vmatpush.bf16.msra.mxu0 %v6474
        %10083 = vmatpush.bf16.msra.mxu0 %v6469
        %10084 = vmatpush.bf16.msra.mxu0 %v6464
        %10085 = vmatpush.bf16.msra.mxu0 %v6459
        %10086 = vmatpush.bf16.msra.mxu0 %v6454
        %10087 = vmatpush.bf16.msra.mxu0 %v6449
        %10088 = vmatpush.bf16.msra.mxu0 %v6444
        %10089 = vmatpush.bf16.msra.mxu0 %v6439
        %10090 = vmatmul.bf16.gmra.mxu0 %v2042
        %v10091 = vpop.f32.mrf.mxu0
        %v10092 = vadd.f32 %v10079, %v10091
        %v10093 = vpop.f32.mrf.mxu0
        %10094 = vdwg.mxu0
        %10095 = vmatpush.bf16.msra.mxu0 %v6514
        %10096 = vmatpush.bf16.msra.mxu0 %v6509
        %10097 = vmatpush.bf16.msra.mxu0 %v6504
        %10098 = vmatpush.bf16.msra.mxu0 %v6499
        %10099 = vmatpush.bf16.msra.mxu0 %v6494
        %10100 = vmatpush.bf16.msra.mxu0 %v6489
        %10101 = vmatpush.bf16.msra.mxu0 %v6484
        %10102 = vmatpush.bf16.msra.mxu0 %v6479
        %10103 = vmatmul.bf16.gmra.mxu0 %v2043
        %v10104 = vpop.f32.mrf.mxu0
        %v10105 = vadd.f32 %v10092, %v10104
        %v10106 = vpop.f32.mrf.mxu0
        %10107 = vdwg.mxu0
        %10108 = vmatpush.bf16.msra.mxu0 %v6554
        %10109 = vmatpush.bf16.msra.mxu0 %v6549
        %10110 = vmatpush.bf16.msra.mxu0 %v6544
        %10111 = vmatpush.bf16.msra.mxu0 %v6539
        %10112 = vmatpush.bf16.msra.mxu0 %v6534
        %10113 = vmatpush.bf16.msra.mxu0 %v6529
        %10114 = vmatpush.bf16.msra.mxu0 %v6524
        %10115 = vmatpush.bf16.msra.mxu0 %v6519
        %10116 = vmatmul.bf16.gmra.mxu0 %v2044
        %v10117 = vpop.f32.mrf.mxu0
        %v10118 = vadd.f32 %v10105, %v10117
        %v10119 = vpop.f32.mrf.mxu0
        %10120 = vdwg.mxu0
        %10121 = vmatpush.bf16.msra.mxu0 %v6594
        %10122 = vmatpush.bf16.msra.mxu0 %v6589
        %10123 = vmatpush.bf16.msra.mxu0 %v6584
        %10124 = vmatpush.bf16.msra.mxu0 %v6579
        %10125 = vmatpush.bf16.msra.mxu0 %v6574
        %10126 = vmatpush.bf16.msra.mxu0 %v6569
        %10127 = vmatpush.bf16.msra.mxu0 %v6564
        %10128 = vmatpush.bf16.msra.mxu0 %v6559
        %10129 = vmatmul.bf16.gmra.mxu0 %v2045
        %v10130 = vpop.f32.mrf.mxu0
        %v10131 = vadd.f32 %v10118, %v10130
        %v10132 = vpop.f32.mrf.mxu0
        %10133 = vdwg.mxu0
        %10134 = vmatpush.bf16.msra.mxu0 %v6634
        %10135 = vmatpush.bf16.msra.mxu0 %v6629
        %10136 = vmatpush.bf16.msra.mxu0 %v6624
        %10137 = vmatpush.bf16.msra.mxu0 %v6619
        %10138 = vmatpush.bf16.msra.mxu0 %v6614
        %10139 = vmatpush.bf16.msra.mxu0 %v6609
        %10140 = vmatpush.bf16.msra.mxu0 %v6604
        %10141 = vmatpush.bf16.msra.mxu0 %v6599
        %10142 = vmatmul.bf16.gmra.mxu0 %v2046
        %v10143 = vpop.f32.mrf.mxu0
        %v10144 = vadd.f32 %v10131, %v10143
        %v10145 = vpop.f32.mrf.mxu0
        %10146 = vdwg.mxu0
        %10147 = vmatpush.bf16.msra.mxu0 %v6674
        %10148 = vmatpush.bf16.msra.mxu0 %v6669
        %10149 = vmatpush.bf16.msra.mxu0 %v6664
        %10150 = vmatpush.bf16.msra.mxu0 %v6659
        %10151 = vmatpush.bf16.msra.mxu0 %v6654
        %10152 = vmatpush.bf16.msra.mxu0 %v6649
        %10153 = vmatpush.bf16.msra.mxu0 %v6644
        %10154 = vmatpush.bf16.msra.mxu0 %v6639
        %10155 = vmatmul.bf16.gmra.mxu0 %v2047
        %v10156 = vpop.f32.mrf.mxu0
        %v10157 = vadd.f32 %v10144, %v10156
        %v10158 = vpop.f32.mrf.mxu0
        %10159 = vdwg.mxu0
        %10160 = vmatpush.bf16.msra.mxu0 %v6714
        %10161 = vmatpush.bf16.msra.mxu0 %v6709
        %10162 = vmatpush.bf16.msra.mxu0 %v6704
        %10163 = vmatpush.bf16.msra.mxu0 %v6699
        %10164 = vmatpush.bf16.msra.mxu0 %v6694
        %10165 = vmatpush.bf16.msra.mxu0 %v6689
        %10166 = vmatpush.bf16.msra.mxu0 %v6684
        %10167 = vmatpush.bf16.msra.mxu0 %v6679
        %10168 = vmatmul.bf16.gmra.mxu0 %v2048
        %v10169 = vpop.f32.mrf.mxu0
        %v10170 = vadd.f32 %v10157, %v10169
        %v10171 = vpop.f32.mrf.mxu0
        %10172 = vdwg.mxu0
        %10173 = vmatpush.bf16.msra.mxu0 %v6754
        %10174 = vmatpush.bf16.msra.mxu0 %v6749
        %10175 = vmatpush.bf16.msra.mxu0 %v6744
        %10176 = vmatpush.bf16.msra.mxu0 %v6739
        %10177 = vmatpush.bf16.msra.mxu0 %v6734
        %10178 = vmatpush.bf16.msra.mxu0 %v6729
        %10179 = vmatpush.bf16.msra.mxu0 %v6724
        %10180 = vmatpush.bf16.msra.mxu0 %v6719
        %10181 = vmatmul.bf16.gmra.mxu0 %v2049
        %v10182 = vpop.f32.mrf.mxu0
        %v10183 = vadd.f32 %v10170, %v10182
        %v10184 = vpop.f32.mrf.mxu0
        %10185 = vdwg.mxu0
        %10186 = vmatpush.bf16.msra.mxu0 %v6794
        %10187 = vmatpush.bf16.msra.mxu0 %v6789
        %10188 = vmatpush.bf16.msra.mxu0 %v6784
        %10189 = vmatpush.bf16.msra.mxu0 %v6779
        %10190 = vmatpush.bf16.msra.mxu0 %v6774
        %10191 = vmatpush.bf16.msra.mxu0 %v6769
        %10192 = vmatpush.bf16.msra.mxu0 %v6764
        %10193 = vmatpush.bf16.msra.mxu0 %v6759
        %10194 = vmatmul.bf16.gmra.mxu0 %v2050
        %v10195 = vpop.f32.mrf.mxu0
        %v10196 = vadd.f32 %v10183, %v10195
        %v10197 = vpop.f32.mrf.mxu0
        %10198 = vdwg.mxu0
        %10199 = vmatpush.bf16.msra.mxu0 %v6834
        %10200 = vmatpush.bf16.msra.mxu0 %v6829
        %10201 = vmatpush.bf16.msra.mxu0 %v6824
        %10202 = vmatpush.bf16.msra.mxu0 %v6819
        %10203 = vmatpush.bf16.msra.mxu0 %v6814
        %10204 = vmatpush.bf16.msra.mxu0 %v6809
        %10205 = vmatpush.bf16.msra.mxu0 %v6804
        %10206 = vmatpush.bf16.msra.mxu0 %v6799
        %10207 = vmatmul.bf16.gmra.mxu0 %v2051
        %v10208 = vpop.f32.mrf.mxu0
        %v10209 = vadd.f32 %v10196, %v10208
        %v10210 = vpop.f32.mrf.mxu0
        %10211 = vdwg.mxu0
        %10212 = vmatpush.bf16.msra.mxu0 %v6874
        %10213 = vmatpush.bf16.msra.mxu0 %v6869
        %10214 = vmatpush.bf16.msra.mxu0 %v6864
        %10215 = vmatpush.bf16.msra.mxu0 %v6859
        %10216 = vmatpush.bf16.msra.mxu0 %v6854
        %10217 = vmatpush.bf16.msra.mxu0 %v6849
        %10218 = vmatpush.bf16.msra.mxu0 %v6844
        %10219 = vmatpush.bf16.msra.mxu0 %v6839
        %10220 = vmatmul.bf16.gmra.mxu0 %v2052
        %v10221 = vpop.f32.mrf.mxu0
        %v10222 = vadd.f32 %v10209, %v10221
        %v10223 = vpop.f32.mrf.mxu0
        %10224 = vdwg.mxu0
        %10225 = vmatpush.bf16.msra.mxu0 %v6914
        %10226 = vmatpush.bf16.msra.mxu0 %v6909
        %10227 = vmatpush.bf16.msra.mxu0 %v6904
        %10228 = vmatpush.bf16.msra.mxu0 %v6899
        %10229 = vmatpush.bf16.msra.mxu0 %v6894
        %10230 = vmatpush.bf16.msra.mxu0 %v6889
        %10231 = vmatpush.bf16.msra.mxu0 %v6884
        %10232 = vmatpush.bf16.msra.mxu0 %v6879
        %10233 = vmatmul.bf16.gmra.mxu0 %v2053
        %v10234 = vpop.f32.mrf.mxu0
        %v10235 = vadd.f32 %v10222, %v10234
        %v10236 = vpop.f32.mrf.mxu0
        %10237 = vdwg.mxu0
        %10238 = vmatpush.bf16.msra.mxu0 %v6954
        %10239 = vmatpush.bf16.msra.mxu0 %v6949
        %10240 = vmatpush.bf16.msra.mxu0 %v6944
        %10241 = vmatpush.bf16.msra.mxu0 %v6939
        %10242 = vmatpush.bf16.msra.mxu0 %v6934
        %10243 = vmatpush.bf16.msra.mxu0 %v6929
        %10244 = vmatpush.bf16.msra.mxu0 %v6924
        %10245 = vmatpush.bf16.msra.mxu0 %v6919
        %10246 = vmatmul.bf16.gmra.mxu0 %v2054
        %v10247 = vpop.f32.mrf.mxu0
        %v10248 = vadd.f32 %v10235, %v10247
        %v10249 = vpop.f32.mrf.mxu0
        %10250 = vdwg.mxu0
        %10251 = vmatpush.bf16.msra.mxu0 %v6994
        %10252 = vmatpush.bf16.msra.mxu0 %v6989
        %10253 = vmatpush.bf16.msra.mxu0 %v6984
        %10254 = vmatpush.bf16.msra.mxu0 %v6979
        %10255 = vmatpush.bf16.msra.mxu0 %v6974
        %10256 = vmatpush.bf16.msra.mxu0 %v6969
        %10257 = vmatpush.bf16.msra.mxu0 %v6964
        %10258 = vmatpush.bf16.msra.mxu0 %v6959
        %10259 = vmatmul.bf16.gmra.mxu0 %v2055
        %v10260 = vpop.f32.mrf.mxu0
        %v10261 = vadd.f32 %v10248, %v10260
        %v10262 = vpop.f32.mrf.mxu0
        %10263 = vdwg.mxu0
        %10264 = vmatpush.bf16.msra.mxu0 %v7034
        %10265 = vmatpush.bf16.msra.mxu0 %v7029
        %10266 = vmatpush.bf16.msra.mxu0 %v7024
        %10267 = vmatpush.bf16.msra.mxu0 %v7019
        %10268 = vmatpush.bf16.msra.mxu0 %v7014
        %10269 = vmatpush.bf16.msra.mxu0 %v7009
        %10270 = vmatpush.bf16.msra.mxu0 %v7004
        %10271 = vmatpush.bf16.msra.mxu0 %v6999
        %10272 = vmatmul.bf16.gmra.mxu0 %v2056
        %v10273 = vpop.f32.mrf.mxu0
        %v10274 = vadd.f32 %v10261, %v10273
        %v10275 = vpop.f32.mrf.mxu0
        %10276 = vdwg.mxu0
        %10277 = vmatpush.bf16.msra.mxu0 %v7074
        %10278 = vmatpush.bf16.msra.mxu0 %v7069
        %10279 = vmatpush.bf16.msra.mxu0 %v7064
        %10280 = vmatpush.bf16.msra.mxu0 %v7059
        %10281 = vmatpush.bf16.msra.mxu0 %v7054
        %10282 = vmatpush.bf16.msra.mxu0 %v7049
        %10283 = vmatpush.bf16.msra.mxu0 %v7044
        %10284 = vmatpush.bf16.msra.mxu0 %v7039
        %10285 = vmatmul.bf16.gmra.mxu0 %v2057
        %v10286 = vpop.f32.mrf.mxu0
        %v10287 = vadd.f32 %v10274, %v10286
        %v10288 = vpop.f32.mrf.mxu0
        %10289 = vdwg.mxu0
        %10290 = vmatpush.bf16.msra.mxu0 %v7114
        %10291 = vmatpush.bf16.msra.mxu0 %v7109
        %10292 = vmatpush.bf16.msra.mxu0 %v7104
        %10293 = vmatpush.bf16.msra.mxu0 %v7099
        %10294 = vmatpush.bf16.msra.mxu0 %v7094
        %10295 = vmatpush.bf16.msra.mxu0 %v7089
        %10296 = vmatpush.bf16.msra.mxu0 %v7084
        %10297 = vmatpush.bf16.msra.mxu0 %v7079
        %10298 = vmatmul.bf16.gmra.mxu0 %v2058
        %v10299 = vpop.f32.mrf.mxu0
        %v10300 = vadd.f32 %v10287, %v10299
        %v10301 = vpop.f32.mrf.mxu0
        %10302 = vdwg.mxu0
        %10303 = vmatpush.bf16.msra.mxu0 %v7154
        %10304 = vmatpush.bf16.msra.mxu0 %v7149
        %10305 = vmatpush.bf16.msra.mxu0 %v7144
        %10306 = vmatpush.bf16.msra.mxu0 %v7139
        %10307 = vmatpush.bf16.msra.mxu0 %v7134
        %10308 = vmatpush.bf16.msra.mxu0 %v7129
        %10309 = vmatpush.bf16.msra.mxu0 %v7124
        %10310 = vmatpush.bf16.msra.mxu0 %v7119
        %10311 = vmatmul.bf16.gmra.mxu0 %v2059
        %v10312 = vpop.f32.mrf.mxu0
        %v10313 = vadd.f32 %v10300, %v10312
        %v10314 = vpop.f32.mrf.mxu0
        %10315 = vdwg.mxu0
        %10316 = vmatpush.bf16.msra.mxu0 %v7194
        %10317 = vmatpush.bf16.msra.mxu0 %v7189
        %10318 = vmatpush.bf16.msra.mxu0 %v7184
        %10319 = vmatpush.bf16.msra.mxu0 %v7179
        %10320 = vmatpush.bf16.msra.mxu0 %v7174
        %10321 = vmatpush.bf16.msra.mxu0 %v7169
        %10322 = vmatpush.bf16.msra.mxu0 %v7164
        %10323 = vmatpush.bf16.msra.mxu0 %v7159
        %10324 = vmatmul.bf16.gmra.mxu0 %v2060
        %v10325 = vpop.f32.mrf.mxu0
        %v10326 = vadd.f32 %v10313, %v10325
        %v10327 = vpop.f32.mrf.mxu0
        %10328 = vdwg.mxu0
        %10329 = vmatpush.bf16.msra.mxu0 %v7234
        %10330 = vmatpush.bf16.msra.mxu0 %v7229
        %10331 = vmatpush.bf16.msra.mxu0 %v7224
        %10332 = vmatpush.bf16.msra.mxu0 %v7219
        %10333 = vmatpush.bf16.msra.mxu0 %v7214
        %10334 = vmatpush.bf16.msra.mxu0 %v7209
        %10335 = vmatpush.bf16.msra.mxu0 %v7204
        %10336 = vmatpush.bf16.msra.mxu0 %v7199
        %10337 = vmatmul.bf16.gmra.mxu0 %v2061
        %v10338 = vpop.f32.mrf.mxu0
        %v10339 = vadd.f32 %v10326, %v10338
        %v10340 = vpop.f32.mrf.mxu0
        %10341 = vdwg.mxu0
        %10342 = vmatpush.bf16.msra.mxu0 %v7274
        %10343 = vmatpush.bf16.msra.mxu0 %v7269
        %10344 = vmatpush.bf16.msra.mxu0 %v7264
        %10345 = vmatpush.bf16.msra.mxu0 %v7259
        %10346 = vmatpush.bf16.msra.mxu0 %v7254
        %10347 = vmatpush.bf16.msra.mxu0 %v7249
        %10348 = vmatpush.bf16.msra.mxu0 %v7244
        %10349 = vmatpush.bf16.msra.mxu0 %v7239
        %10350 = vmatmul.bf16.gmra.mxu0 %v2062
        %v10351 = vpop.f32.mrf.mxu0
        %v10352 = vadd.f32 %v10339, %v10351
        %v10353 = vpop.f32.mrf.mxu0
        %10354 = vdwg.mxu0
        %10355 = vmatpush.bf16.msra.mxu0 %v7314
        %10356 = vmatpush.bf16.msra.mxu0 %v7309
        %10357 = vmatpush.bf16.msra.mxu0 %v7304
        %10358 = vmatpush.bf16.msra.mxu0 %v7299
        %10359 = vmatpush.bf16.msra.mxu0 %v7294
        %10360 = vmatpush.bf16.msra.mxu0 %v7289
        %10361 = vmatpush.bf16.msra.mxu0 %v7284
        %10362 = vmatpush.bf16.msra.mxu0 %v7279
        %10363 = vmatmul.bf16.gmra.mxu0 %v2063
        %v10364 = vpop.f32.mrf.mxu0
        %v10365 = vadd.f32 %v10352, %v10364
        %v10366 = vpop.f32.mrf.mxu0
        %10367 = vdwg.mxu0
        %10368 = vmatpush.bf16.msra.mxu0 %v7354
        %10369 = vmatpush.bf16.msra.mxu0 %v7349
        %10370 = vmatpush.bf16.msra.mxu0 %v7344
        %10371 = vmatpush.bf16.msra.mxu0 %v7339
        %10372 = vmatpush.bf16.msra.mxu0 %v7334
        %10373 = vmatpush.bf16.msra.mxu0 %v7329
        %10374 = vmatpush.bf16.msra.mxu0 %v7324
        %10375 = vmatpush.bf16.msra.mxu0 %v7319
        %10376 = vmatmul.bf16.gmra.mxu0 %v2064
        %v10377 = vpop.f32.mrf.mxu0
        %v10378 = vadd.f32 %v10365, %v10377
        %v10379 = vpop.f32.mrf.mxu0
        %10380 = vdwg.mxu0
        %10381 = vmatpush.bf16.msra.mxu0 %v7394
        %10382 = vmatpush.bf16.msra.mxu0 %v7389
        %10383 = vmatpush.bf16.msra.mxu0 %v7384
        %10384 = vmatpush.bf16.msra.mxu0 %v7379
        %10385 = vmatpush.bf16.msra.mxu0 %v7374
        %10386 = vmatpush.bf16.msra.mxu0 %v7369
        %10387 = vmatpush.bf16.msra.mxu0 %v7364
        %10388 = vmatpush.bf16.msra.mxu0 %v7359
        %10389 = vmatmul.bf16.gmra.mxu0 %v2065
        %v10390 = vpop.f32.mrf.mxu0
        %v10391 = vadd.f32 %v10378, %v10390
        %v10392 = vpop.f32.mrf.mxu0
        %10393 = vdwg.mxu0
        %10394 = vmatpush.bf16.msra.mxu0 %v7434
        %10395 = vmatpush.bf16.msra.mxu0 %v7429
        %10396 = vmatpush.bf16.msra.mxu0 %v7424
        %10397 = vmatpush.bf16.msra.mxu0 %v7419
        %10398 = vmatpush.bf16.msra.mxu0 %v7414
        %10399 = vmatpush.bf16.msra.mxu0 %v7409
        %10400 = vmatpush.bf16.msra.mxu0 %v7404
        %10401 = vmatpush.bf16.msra.mxu0 %v7399
        %10402 = vmatmul.bf16.gmra.mxu0 %v2066
        %v10403 = vpop.f32.mrf.mxu0
        %v10404 = vadd.f32 %v10391, %v10403
        %v10405 = vpop.f32.mrf.mxu0
        %10406 = vdwg.mxu0
        %10407 = vmatpush.bf16.msra.mxu0 %v7474
        %10408 = vmatpush.bf16.msra.mxu0 %v7469
        %10409 = vmatpush.bf16.msra.mxu0 %v7464
        %10410 = vmatpush.bf16.msra.mxu0 %v7459
        %10411 = vmatpush.bf16.msra.mxu0 %v7454
        %10412 = vmatpush.bf16.msra.mxu0 %v7449
        %10413 = vmatpush.bf16.msra.mxu0 %v7444
        %10414 = vmatpush.bf16.msra.mxu0 %v7439
        %10415 = vmatmul.bf16.gmra.mxu0 %v2067
        %v10416 = vpop.f32.mrf.mxu0
        %v10417 = vadd.f32 %v10404, %v10416
        %v10418 = vpop.f32.mrf.mxu0
        %10419 = vdwg.mxu0
        %10420 = vmatpush.bf16.msra.mxu0 %v6235
        %10421 = vmatpush.bf16.msra.mxu0 %v6230
        %10422 = vmatpush.bf16.msra.mxu0 %v6225
        %10423 = vmatpush.bf16.msra.mxu0 %v6220
        %10424 = vmatpush.bf16.msra.mxu0 %v6215
        %10425 = vmatpush.bf16.msra.mxu0 %v6210
        %10426 = vmatpush.bf16.msra.mxu0 %v6205
        %10427 = vmatpush.bf16.msra.mxu0 %v6200
        %10428 = vmatmul.bf16.gmra.mxu0 %v2036
        %v10429 = vpop.f32.mrf.mxu0
        %v10430 = vadd.f32 0.0, %v10429
        %v10431 = vpop.f32.mrf.mxu0
        %10432 = vdwg.mxu0
        %10433 = vmatpush.bf16.msra.mxu0 %v6275
        %10434 = vmatpush.bf16.msra.mxu0 %v6270
        %10435 = vmatpush.bf16.msra.mxu0 %v6265
        %10436 = vmatpush.bf16.msra.mxu0 %v6260
        %10437 = vmatpush.bf16.msra.mxu0 %v6255
        %10438 = vmatpush.bf16.msra.mxu0 %v6250
        %10439 = vmatpush.bf16.msra.mxu0 %v6245
        %10440 = vmatpush.bf16.msra.mxu0 %v6240
        %10441 = vmatmul.bf16.gmra.mxu0 %v2037
        %v10442 = vpop.f32.mrf.mxu0
        %v10443 = vadd.f32 %v10430, %v10442
        %v10444 = vpop.f32.mrf.mxu0
        %10445 = vdwg.mxu0
        %10446 = vmatpush.bf16.msra.mxu0 %v6315
        %10447 = vmatpush.bf16.msra.mxu0 %v6310
        %10448 = vmatpush.bf16.msra.mxu0 %v6305
        %10449 = vmatpush.bf16.msra.mxu0 %v6300
        %10450 = vmatpush.bf16.msra.mxu0 %v6295
        %10451 = vmatpush.bf16.msra.mxu0 %v6290
        %10452 = vmatpush.bf16.msra.mxu0 %v6285
        %10453 = vmatpush.bf16.msra.mxu0 %v6280
        %10454 = vmatmul.bf16.gmra.mxu0 %v2038
        %v10455 = vpop.f32.mrf.mxu0
        %v10456 = vadd.f32 %v10443, %v10455
        %v10457 = vpop.f32.mrf.mxu0
        %10458 = vdwg.mxu0
        %10459 = vmatpush.bf16.msra.mxu0 %v6355
        %10460 = vmatpush.bf16.msra.mxu0 %v6350
        %10461 = vmatpush.bf16.msra.mxu0 %v6345
        %10462 = vmatpush.bf16.msra.mxu0 %v6340
        %10463 = vmatpush.bf16.msra.mxu0 %v6335
        %10464 = vmatpush.bf16.msra.mxu0 %v6330
        %10465 = vmatpush.bf16.msra.mxu0 %v6325
        %10466 = vmatpush.bf16.msra.mxu0 %v6320
        %10467 = vmatmul.bf16.gmra.mxu0 %v2039
        %v10468 = vpop.f32.mrf.mxu0
        %v10469 = vadd.f32 %v10456, %v10468
        %v10470 = vpop.f32.mrf.mxu0
        %10471 = vdwg.mxu0
        %10472 = vmatpush.bf16.msra.mxu0 %v6395
        %10473 = vmatpush.bf16.msra.mxu0 %v6390
        %10474 = vmatpush.bf16.msra.mxu0 %v6385
        %10475 = vmatpush.bf16.msra.mxu0 %v6380
        %10476 = vmatpush.bf16.msra.mxu0 %v6375
        %10477 = vmatpush.bf16.msra.mxu0 %v6370
        %10478 = vmatpush.bf16.msra.mxu0 %v6365
        %10479 = vmatpush.bf16.msra.mxu0 %v6360
        %10480 = vmatmul.bf16.gmra.mxu0 %v2040
        %v10481 = vpop.f32.mrf.mxu0
        %v10482 = vadd.f32 %v10469, %v10481
        %v10483 = vpop.f32.mrf.mxu0
        %10484 = vdwg.mxu0
        %10485 = vmatpush.bf16.msra.mxu0 %v6435
        %10486 = vmatpush.bf16.msra.mxu0 %v6430
        %10487 = vmatpush.bf16.msra.mxu0 %v6425
        %10488 = vmatpush.bf16.msra.mxu0 %v6420
        %10489 = vmatpush.bf16.msra.mxu0 %v6415
        %10490 = vmatpush.bf16.msra.mxu0 %v6410
        %10491 = vmatpush.bf16.msra.mxu0 %v6405
        %10492 = vmatpush.bf16.msra.mxu0 %v6400
        %10493 = vmatmul.bf16.gmra.mxu0 %v2041
        %v10494 = vpop.f32.mrf.mxu0
        %v10495 = vadd.f32 %v10482, %v10494
        %v10496 = vpop.f32.mrf.mxu0
        %10497 = vdwg.mxu0
        %10498 = vmatpush.bf16.msra.mxu0 %v6475
        %10499 = vmatpush.bf16.msra.mxu0 %v6470
        %10500 = vmatpush.bf16.msra.mxu0 %v6465
        %10501 = vmatpush.bf16.msra.mxu0 %v6460
        %10502 = vmatpush.bf16.msra.mxu0 %v6455
        %10503 = vmatpush.bf16.msra.mxu0 %v6450
        %10504 = vmatpush.bf16.msra.mxu0 %v6445
        %10505 = vmatpush.bf16.msra.mxu0 %v6440
        %10506 = vmatmul.bf16.gmra.mxu0 %v2042
        %v10507 = vpop.f32.mrf.mxu0
        %v10508 = vadd.f32 %v10495, %v10507
        %v10509 = vpop.f32.mrf.mxu0
        %10510 = vdwg.mxu0
        %10511 = vmatpush.bf16.msra.mxu0 %v6515
        %10512 = vmatpush.bf16.msra.mxu0 %v6510
        %10513 = vmatpush.bf16.msra.mxu0 %v6505
        %10514 = vmatpush.bf16.msra.mxu0 %v6500
        %10515 = vmatpush.bf16.msra.mxu0 %v6495
        %10516 = vmatpush.bf16.msra.mxu0 %v6490
        %10517 = vmatpush.bf16.msra.mxu0 %v6485
        %10518 = vmatpush.bf16.msra.mxu0 %v6480
        %10519 = vmatmul.bf16.gmra.mxu0 %v2043
        %v10520 = vpop.f32.mrf.mxu0
        %v10521 = vadd.f32 %v10508, %v10520
        %v10522 = vpop.f32.mrf.mxu0
        %10523 = vdwg.mxu0
        %10524 = vmatpush.bf16.msra.mxu0 %v6555
        %10525 = vmatpush.bf16.msra.mxu0 %v6550
        %10526 = vmatpush.bf16.msra.mxu0 %v6545
        %10527 = vmatpush.bf16.msra.mxu0 %v6540
        %10528 = vmatpush.bf16.msra.mxu0 %v6535
        %10529 = vmatpush.bf16.msra.mxu0 %v6530
        %10530 = vmatpush.bf16.msra.mxu0 %v6525
        %10531 = vmatpush.bf16.msra.mxu0 %v6520
        %10532 = vmatmul.bf16.gmra.mxu0 %v2044
        %v10533 = vpop.f32.mrf.mxu0
        %v10534 = vadd.f32 %v10521, %v10533
        %v10535 = vpop.f32.mrf.mxu0
        %10536 = vdwg.mxu0
        %10537 = vmatpush.bf16.msra.mxu0 %v6595
        %10538 = vmatpush.bf16.msra.mxu0 %v6590
        %10539 = vmatpush.bf16.msra.mxu0 %v6585
        %10540 = vmatpush.bf16.msra.mxu0 %v6580
        %10541 = vmatpush.bf16.msra.mxu0 %v6575
        %10542 = vmatpush.bf16.msra.mxu0 %v6570
        %10543 = vmatpush.bf16.msra.mxu0 %v6565
        %10544 = vmatpush.bf16.msra.mxu0 %v6560
        %10545 = vmatmul.bf16.gmra.mxu0 %v2045
        %v10546 = vpop.f32.mrf.mxu0
        %v10547 = vadd.f32 %v10534, %v10546
        %v10548 = vpop.f32.mrf.mxu0
        %10549 = vdwg.mxu0
        %10550 = vmatpush.bf16.msra.mxu0 %v6635
        %10551 = vmatpush.bf16.msra.mxu0 %v6630
        %10552 = vmatpush.bf16.msra.mxu0 %v6625
        %10553 = vmatpush.bf16.msra.mxu0 %v6620
        %10554 = vmatpush.bf16.msra.mxu0 %v6615
        %10555 = vmatpush.bf16.msra.mxu0 %v6610
        %10556 = vmatpush.bf16.msra.mxu0 %v6605
        %10557 = vmatpush.bf16.msra.mxu0 %v6600
        %10558 = vmatmul.bf16.gmra.mxu0 %v2046
        %v10559 = vpop.f32.mrf.mxu0
        %v10560 = vadd.f32 %v10547, %v10559
        %v10561 = vpop.f32.mrf.mxu0
        %10562 = vdwg.mxu0
        %10563 = vmatpush.bf16.msra.mxu0 %v6675
        %10564 = vmatpush.bf16.msra.mxu0 %v6670
        %10565 = vmatpush.bf16.msra.mxu0 %v6665
        %10566 = vmatpush.bf16.msra.mxu0 %v6660
        %10567 = vmatpush.bf16.msra.mxu0 %v6655
        %10568 = vmatpush.bf16.msra.mxu0 %v6650
        %10569 = vmatpush.bf16.msra.mxu0 %v6645
        %10570 = vmatpush.bf16.msra.mxu0 %v6640
        %10571 = vmatmul.bf16.gmra.mxu0 %v2047
        %v10572 = vpop.f32.mrf.mxu0
        %v10573 = vadd.f32 %v10560, %v10572
        %v10574 = vpop.f32.mrf.mxu0
        %10575 = vdwg.mxu0
        %10576 = vmatpush.bf16.msra.mxu0 %v6715
        %10577 = vmatpush.bf16.msra.mxu0 %v6710
        %10578 = vmatpush.bf16.msra.mxu0 %v6705
        %10579 = vmatpush.bf16.msra.mxu0 %v6700
        %10580 = vmatpush.bf16.msra.mxu0 %v6695
        %10581 = vmatpush.bf16.msra.mxu0 %v6690
        %10582 = vmatpush.bf16.msra.mxu0 %v6685
        %10583 = vmatpush.bf16.msra.mxu0 %v6680
        %10584 = vmatmul.bf16.gmra.mxu0 %v2048
        %v10585 = vpop.f32.mrf.mxu0
        %v10586 = vadd.f32 %v10573, %v10585
        %v10587 = vpop.f32.mrf.mxu0
        %10588 = vdwg.mxu0
        %10589 = vmatpush.bf16.msra.mxu0 %v6755
        %10590 = vmatpush.bf16.msra.mxu0 %v6750
        %10591 = vmatpush.bf16.msra.mxu0 %v6745
        %10592 = vmatpush.bf16.msra.mxu0 %v6740
        %10593 = vmatpush.bf16.msra.mxu0 %v6735
        %10594 = vmatpush.bf16.msra.mxu0 %v6730
        %10595 = vmatpush.bf16.msra.mxu0 %v6725
        %10596 = vmatpush.bf16.msra.mxu0 %v6720
        %10597 = vmatmul.bf16.gmra.mxu0 %v2049
        %v10598 = vpop.f32.mrf.mxu0
        %v10599 = vadd.f32 %v10586, %v10598
        %v10600 = vpop.f32.mrf.mxu0
        %10601 = vdwg.mxu0
        %10602 = vmatpush.bf16.msra.mxu0 %v6795
        %10603 = vmatpush.bf16.msra.mxu0 %v6790
        %10604 = vmatpush.bf16.msra.mxu0 %v6785
        %10605 = vmatpush.bf16.msra.mxu0 %v6780
        %10606 = vmatpush.bf16.msra.mxu0 %v6775
        %10607 = vmatpush.bf16.msra.mxu0 %v6770
        %10608 = vmatpush.bf16.msra.mxu0 %v6765
        %10609 = vmatpush.bf16.msra.mxu0 %v6760
        %10610 = vmatmul.bf16.gmra.mxu0 %v2050
        %v10611 = vpop.f32.mrf.mxu0
        %v10612 = vadd.f32 %v10599, %v10611
        %v10613 = vpop.f32.mrf.mxu0
        %10614 = vdwg.mxu0
        %10615 = vmatpush.bf16.msra.mxu0 %v6835
        %10616 = vmatpush.bf16.msra.mxu0 %v6830
        %10617 = vmatpush.bf16.msra.mxu0 %v6825
        %10618 = vmatpush.bf16.msra.mxu0 %v6820
        %10619 = vmatpush.bf16.msra.mxu0 %v6815
        %10620 = vmatpush.bf16.msra.mxu0 %v6810
        %10621 = vmatpush.bf16.msra.mxu0 %v6805
        %10622 = vmatpush.bf16.msra.mxu0 %v6800
        %10623 = vmatmul.bf16.gmra.mxu0 %v2051
        %v10624 = vpop.f32.mrf.mxu0
        %v10625 = vadd.f32 %v10612, %v10624
        %v10626 = vpop.f32.mrf.mxu0
        %10627 = vdwg.mxu0
        %10628 = vmatpush.bf16.msra.mxu0 %v6875
        %10629 = vmatpush.bf16.msra.mxu0 %v6870
        %10630 = vmatpush.bf16.msra.mxu0 %v6865
        %10631 = vmatpush.bf16.msra.mxu0 %v6860
        %10632 = vmatpush.bf16.msra.mxu0 %v6855
        %10633 = vmatpush.bf16.msra.mxu0 %v6850
        %10634 = vmatpush.bf16.msra.mxu0 %v6845
        %10635 = vmatpush.bf16.msra.mxu0 %v6840
        %10636 = vmatmul.bf16.gmra.mxu0 %v2052
        %v10637 = vpop.f32.mrf.mxu0
        %v10638 = vadd.f32 %v10625, %v10637
        %v10639 = vpop.f32.mrf.mxu0
        %10640 = vdwg.mxu0
        %10641 = vmatpush.bf16.msra.mxu0 %v6915
        %10642 = vmatpush.bf16.msra.mxu0 %v6910
        %10643 = vmatpush.bf16.msra.mxu0 %v6905
        %10644 = vmatpush.bf16.msra.mxu0 %v6900
        %10645 = vmatpush.bf16.msra.mxu0 %v6895
        %10646 = vmatpush.bf16.msra.mxu0 %v6890
        %10647 = vmatpush.bf16.msra.mxu0 %v6885
        %10648 = vmatpush.bf16.msra.mxu0 %v6880
        %10649 = vmatmul.bf16.gmra.mxu0 %v2053
        %v10650 = vpop.f32.mrf.mxu0
        %v10651 = vadd.f32 %v10638, %v10650
        %v10652 = vpop.f32.mrf.mxu0
        %10653 = vdwg.mxu0
        %10654 = vmatpush.bf16.msra.mxu0 %v6955
        %10655 = vmatpush.bf16.msra.mxu0 %v6950
        %10656 = vmatpush.bf16.msra.mxu0 %v6945
        %10657 = vmatpush.bf16.msra.mxu0 %v6940
        %10658 = vmatpush.bf16.msra.mxu0 %v6935
        %10659 = vmatpush.bf16.msra.mxu0 %v6930
        %10660 = vmatpush.bf16.msra.mxu0 %v6925
        %10661 = vmatpush.bf16.msra.mxu0 %v6920
        %10662 = vmatmul.bf16.gmra.mxu0 %v2054
        %v10663 = vpop.f32.mrf.mxu0
        %v10664 = vadd.f32 %v10651, %v10663
        %v10665 = vpop.f32.mrf.mxu0
        %10666 = vdwg.mxu0
        %10667 = vmatpush.bf16.msra.mxu0 %v6995
        %10668 = vmatpush.bf16.msra.mxu0 %v6990
        %10669 = vmatpush.bf16.msra.mxu0 %v6985
        %10670 = vmatpush.bf16.msra.mxu0 %v6980
        %10671 = vmatpush.bf16.msra.mxu0 %v6975
        %10672 = vmatpush.bf16.msra.mxu0 %v6970
        %10673 = vmatpush.bf16.msra.mxu0 %v6965
        %10674 = vmatpush.bf16.msra.mxu0 %v6960
        %10675 = vmatmul.bf16.gmra.mxu0 %v2055
        %v10676 = vpop.f32.mrf.mxu0
        %v10677 = vadd.f32 %v10664, %v10676
        %v10678 = vpop.f32.mrf.mxu0
        %10679 = vdwg.mxu0
        %10680 = vmatpush.bf16.msra.mxu0 %v7035
        %10681 = vmatpush.bf16.msra.mxu0 %v7030
        %10682 = vmatpush.bf16.msra.mxu0 %v7025
        %10683 = vmatpush.bf16.msra.mxu0 %v7020
        %10684 = vmatpush.bf16.msra.mxu0 %v7015
        %10685 = vmatpush.bf16.msra.mxu0 %v7010
        %10686 = vmatpush.bf16.msra.mxu0 %v7005
        %10687 = vmatpush.bf16.msra.mxu0 %v7000
        %10688 = vmatmul.bf16.gmra.mxu0 %v2056
        %v10689 = vpop.f32.mrf.mxu0
        %v10690 = vadd.f32 %v10677, %v10689
        %v10691 = vpop.f32.mrf.mxu0
        %10692 = vdwg.mxu0
        %10693 = vmatpush.bf16.msra.mxu0 %v7075
        %10694 = vmatpush.bf16.msra.mxu0 %v7070
        %10695 = vmatpush.bf16.msra.mxu0 %v7065
        %10696 = vmatpush.bf16.msra.mxu0 %v7060
        %10697 = vmatpush.bf16.msra.mxu0 %v7055
        %10698 = vmatpush.bf16.msra.mxu0 %v7050
        %10699 = vmatpush.bf16.msra.mxu0 %v7045
        %10700 = vmatpush.bf16.msra.mxu0 %v7040
        %10701 = vmatmul.bf16.gmra.mxu0 %v2057
        %v10702 = vpop.f32.mrf.mxu0
        %v10703 = vadd.f32 %v10690, %v10702
        %v10704 = vpop.f32.mrf.mxu0
        %10705 = vdwg.mxu0
        %10706 = vmatpush.bf16.msra.mxu0 %v7115
        %10707 = vmatpush.bf16.msra.mxu0 %v7110
        %10708 = vmatpush.bf16.msra.mxu0 %v7105
        %10709 = vmatpush.bf16.msra.mxu0 %v7100
        %10710 = vmatpush.bf16.msra.mxu0 %v7095
        %10711 = vmatpush.bf16.msra.mxu0 %v7090
        %10712 = vmatpush.bf16.msra.mxu0 %v7085
        %10713 = vmatpush.bf16.msra.mxu0 %v7080
        %10714 = vmatmul.bf16.gmra.mxu0 %v2058
        %v10715 = vpop.f32.mrf.mxu0
        %v10716 = vadd.f32 %v10703, %v10715
        %v10717 = vpop.f32.mrf.mxu0
        %10718 = vdwg.mxu0
        %10719 = vmatpush.bf16.msra.mxu0 %v7155
        %10720 = vmatpush.bf16.msra.mxu0 %v7150
        %10721 = vmatpush.bf16.msra.mxu0 %v7145
        %10722 = vmatpush.bf16.msra.mxu0 %v7140
        %10723 = vmatpush.bf16.msra.mxu0 %v7135
        %10724 = vmatpush.bf16.msra.mxu0 %v7130
        %10725 = vmatpush.bf16.msra.mxu0 %v7125
        %10726 = vmatpush.bf16.msra.mxu0 %v7120
        %10727 = vmatmul.bf16.gmra.mxu0 %v2059
        %v10728 = vpop.f32.mrf.mxu0
        %v10729 = vadd.f32 %v10716, %v10728
        %v10730 = vpop.f32.mrf.mxu0
        %10731 = vdwg.mxu0
        %10732 = vmatpush.bf16.msra.mxu0 %v7195
        %10733 = vmatpush.bf16.msra.mxu0 %v7190
        %10734 = vmatpush.bf16.msra.mxu0 %v7185
        %10735 = vmatpush.bf16.msra.mxu0 %v7180
        %10736 = vmatpush.bf16.msra.mxu0 %v7175
        %10737 = vmatpush.bf16.msra.mxu0 %v7170
        %10738 = vmatpush.bf16.msra.mxu0 %v7165
        %10739 = vmatpush.bf16.msra.mxu0 %v7160
        %10740 = vmatmul.bf16.gmra.mxu0 %v2060
        %v10741 = vpop.f32.mrf.mxu0
        %v10742 = vadd.f32 %v10729, %v10741
        %v10743 = vpop.f32.mrf.mxu0
        %10744 = vdwg.mxu0
        %10745 = vmatpush.bf16.msra.mxu0 %v7235
        %10746 = vmatpush.bf16.msra.mxu0 %v7230
        %10747 = vmatpush.bf16.msra.mxu0 %v7225
        %10748 = vmatpush.bf16.msra.mxu0 %v7220
        %10749 = vmatpush.bf16.msra.mxu0 %v7215
        %10750 = vmatpush.bf16.msra.mxu0 %v7210
        %10751 = vmatpush.bf16.msra.mxu0 %v7205
        %10752 = vmatpush.bf16.msra.mxu0 %v7200
        %10753 = vmatmul.bf16.gmra.mxu0 %v2061
        %v10754 = vpop.f32.mrf.mxu0
        %v10755 = vadd.f32 %v10742, %v10754
        %v10756 = vpop.f32.mrf.mxu0
        %10757 = vdwg.mxu0
        %10758 = vmatpush.bf16.msra.mxu0 %v7275
        %10759 = vmatpush.bf16.msra.mxu0 %v7270
        %10760 = vmatpush.bf16.msra.mxu0 %v7265
        %10761 = vmatpush.bf16.msra.mxu0 %v7260
        %10762 = vmatpush.bf16.msra.mxu0 %v7255
        %10763 = vmatpush.bf16.msra.mxu0 %v7250
        %10764 = vmatpush.bf16.msra.mxu0 %v7245
        %10765 = vmatpush.bf16.msra.mxu0 %v7240
        %10766 = vmatmul.bf16.gmra.mxu0 %v2062
        %v10767 = vpop.f32.mrf.mxu0
        %v10768 = vadd.f32 %v10755, %v10767
        %v10769 = vpop.f32.mrf.mxu0
        %10770 = vdwg.mxu0
        %10771 = vmatpush.bf16.msra.mxu0 %v7315
        %10772 = vmatpush.bf16.msra.mxu0 %v7310
        %10773 = vmatpush.bf16.msra.mxu0 %v7305
        %10774 = vmatpush.bf16.msra.mxu0 %v7300
        %10775 = vmatpush.bf16.msra.mxu0 %v7295
        %10776 = vmatpush.bf16.msra.mxu0 %v7290
        %10777 = vmatpush.bf16.msra.mxu0 %v7285
        %10778 = vmatpush.bf16.msra.mxu0 %v7280
        %10779 = vmatmul.bf16.gmra.mxu0 %v2063
        %v10780 = vpop.f32.mrf.mxu0
        %v10781 = vadd.f32 %v10768, %v10780
        %v10782 = vpop.f32.mrf.mxu0
        %10783 = vdwg.mxu0
        %10784 = vmatpush.bf16.msra.mxu0 %v7355
        %10785 = vmatpush.bf16.msra.mxu0 %v7350
        %10786 = vmatpush.bf16.msra.mxu0 %v7345
        %10787 = vmatpush.bf16.msra.mxu0 %v7340
        %10788 = vmatpush.bf16.msra.mxu0 %v7335
        %10789 = vmatpush.bf16.msra.mxu0 %v7330
        %10790 = vmatpush.bf16.msra.mxu0 %v7325
        %10791 = vmatpush.bf16.msra.mxu0 %v7320
        %10792 = vmatmul.bf16.gmra.mxu0 %v2064
        %v10793 = vpop.f32.mrf.mxu0
        %v10794 = vadd.f32 %v10781, %v10793
        %v10795 = vpop.f32.mrf.mxu0
        %10796 = vdwg.mxu0
        %10797 = vmatpush.bf16.msra.mxu0 %v7395
        %10798 = vmatpush.bf16.msra.mxu0 %v7390
        %10799 = vmatpush.bf16.msra.mxu0 %v7385
        %10800 = vmatpush.bf16.msra.mxu0 %v7380
        %10801 = vmatpush.bf16.msra.mxu0 %v7375
        %10802 = vmatpush.bf16.msra.mxu0 %v7370
        %10803 = vmatpush.bf16.msra.mxu0 %v7365
        %10804 = vmatpush.bf16.msra.mxu0 %v7360
        %10805 = vmatmul.bf16.gmra.mxu0 %v2065
        %v10806 = vpop.f32.mrf.mxu0
        %v10807 = vadd.f32 %v10794, %v10806
        %v10808 = vpop.f32.mrf.mxu0
        %10809 = vdwg.mxu0
        %10810 = vmatpush.bf16.msra.mxu0 %v7435
        %10811 = vmatpush.bf16.msra.mxu0 %v7430
        %10812 = vmatpush.bf16.msra.mxu0 %v7425
        %10813 = vmatpush.bf16.msra.mxu0 %v7420
        %10814 = vmatpush.bf16.msra.mxu0 %v7415
        %10815 = vmatpush.bf16.msra.mxu0 %v7410
        %10816 = vmatpush.bf16.msra.mxu0 %v7405
        %10817 = vmatpush.bf16.msra.mxu0 %v7400
        %10818 = vmatmul.bf16.gmra.mxu0 %v2066
        %v10819 = vpop.f32.mrf.mxu0
        %v10820 = vadd.f32 %v10807, %v10819
        %v10821 = vpop.f32.mrf.mxu0
        %10822 = vdwg.mxu0
        %10823 = vmatpush.bf16.msra.mxu0 %v7475
        %10824 = vmatpush.bf16.msra.mxu0 %v7470
        %10825 = vmatpush.bf16.msra.mxu0 %v7465
        %10826 = vmatpush.bf16.msra.mxu0 %v7460
        %10827 = vmatpush.bf16.msra.mxu0 %v7455
        %10828 = vmatpush.bf16.msra.mxu0 %v7450
        %10829 = vmatpush.bf16.msra.mxu0 %v7445
        %10830 = vmatpush.bf16.msra.mxu0 %v7440
        %10831 = vmatmul.bf16.gmra.mxu0 %v2067
        %v10832 = vpop.f32.mrf.mxu0
        %v10833 = vadd.f32 %v10820, %v10832
        %v10834 = vpop.f32.mrf.mxu0
        %10835 = vdwg.mxu0
        %v10836 = vpack.c.bf16 %v9169, %v9169
        %v10837 = vpack.c.bf16 %v9585, %v9585
        %v10838 = vpack.c.bf16 %v10001, %v10001
        %v10839 = vpack.c.bf16 %v10417, %v10417
        %v10840 = vpack.c.bf16 %v10833, %v10833
        %v10841 = vld [vmem:[%s356] sm:$0xf]
        %v10842 = vld [vmem:[%s356 + $0x4] sm:$0xf]
        %v10843 = vld [vmem:[%s356 + $0x8] sm:$0xf]
        %v10844 = vld [vmem:[%s356 + $0xc] sm:$0xf]
        %v10845 = vld [vmem:[%s356 + $0x10] sm:$0xf]
        %v10846 = vld [vmem:[%s356 + $0x14] sm:$0xf]
        %v10847 = vld [vmem:[%s356 + $0x18] sm:$0xf]
        %v10848 = vld [vmem:[%s356 + $0x1c] sm:$0xf]
        %v10849 = vld [vmem:[%s356 + $0x20] sm:$0xf]
        %v10850 = vld [vmem:[%s356 + $0x24] sm:$0xf]
        %v10851 = vld [vmem:[%s356 + $0x28] sm:$0xf]
        %v10852 = vld [vmem:[%s356 + $0x2c] sm:$0xf]
        %v10853 = vld [vmem:[%s356 + $0x30] sm:$0xf]
        %v10854 = vld [vmem:[%s356 + $0x34] sm:$0xf]
        %v10855 = vld [vmem:[%s356 + $0x38] sm:$0xf]
        %v10856 = vld [vmem:[%s356 + $0x3c] sm:$0xf]
        %v10857 = vld [vmem:[%s356 + $0x40] sm:$0xf]
        %v10858 = vld [vmem:[%s356 + $0x44] sm:$0xf]
        %v10859 = vld [vmem:[%s356 + $0x48] sm:$0xf]
        %v10860 = vld [vmem:[%s356 + $0x4c] sm:$0xf]
        %v10861 = vld [vmem:[%s356 + $0x50] sm:$0xf]
        %v10862 = vld [vmem:[%s356 + $0x54] sm:$0xf]
        %v10863 = vld [vmem:[%s356 + $0x58] sm:$0xf]
        %v10864 = vld [vmem:[%s356 + $0x5c] sm:$0xf]
        %v10865 = vld [vmem:[%s356 + $0x60] sm:$0xf]
        %v10866 = vld [vmem:[%s356 + $0x64] sm:$0xf]
        %v10867 = vld [vmem:[%s356 + $0x68] sm:$0xf]
        %v10868 = vld [vmem:[%s356 + $0x6c] sm:$0xf]
        %v10869 = vld [vmem:[%s356 + $0x70] sm:$0xf]
        %v10870 = vld [vmem:[%s356 + $0x74] sm:$0xf]
        %v10871 = vld [vmem:[%s356 + $0x78] sm:$0xf]
        %v10872 = vld [vmem:[%s356 + $0x7c] sm:$0xf]
        %v10873 = vld [vmem:[%s356 + $0x80] sm:$0xf]
        %v10874 = vld [vmem:[%s356 + $0x84] sm:$0xf]
        %v10875 = vld [vmem:[%s356 + $0x88] sm:$0xf]
        %v10876 = vld [vmem:[%s356 + $0x8c] sm:$0xf]
        %v10877 = vld [vmem:[%s356 + $0x90] sm:$0xf]
        %v10878 = vld [vmem:[%s356 + $0x94] sm:$0xf]
        %v10879 = vld [vmem:[%s356 + $0x98] sm:$0xf]
        %v10880 = vld [vmem:[%s356 + $0x9c] sm:$0xf]
        %v10881 = vld [vmem:[%s356 + $0xa0] sm:$0xf]
        %v10882 = vld [vmem:[%s356 + $0xa4] sm:$0xf]
        %v10883 = vld [vmem:[%s356 + $0xa8] sm:$0xf]
        %v10884 = vld [vmem:[%s356 + $0xac] sm:$0xf]
        %v10885 = vld [vmem:[%s356 + $0xb0] sm:$0xf]
        %v10886 = vld [vmem:[%s356 + $0xb4] sm:$0xf]
        %v10887 = vld [vmem:[%s356 + $0xb8] sm:$0xf]
        %v10888 = vld [vmem:[%s356 + $0xbc] sm:$0xf]
        %v10889 = vld [vmem:[%s356 + $0xc0] sm:$0xf]
        %v10890 = vld [vmem:[%s356 + $0xc4] sm:$0xf]
        %v10891 = vld [vmem:[%s356 + $0xc8] sm:$0xf]
        %v10892 = vld [vmem:[%s356 + $0xcc] sm:$0xf]
        %v10893 = vld [vmem:[%s356 + $0xd0] sm:$0xf]
        %v10894 = vld [vmem:[%s356 + $0xd4] sm:$0xf]
        %v10895 = vld [vmem:[%s356 + $0xd8] sm:$0xf]
        %v10896 = vld [vmem:[%s356 + $0xdc] sm:$0xf]
        %v10897 = vld [vmem:[%s356 + $0xe0] sm:$0xf]
        %v10898 = vld [vmem:[%s356 + $0xe4] sm:$0xf]
        %v10899 = vld [vmem:[%s356 + $0xe8] sm:$0xf]
        %v10900 = vld [vmem:[%s356 + $0xec] sm:$0xf]
        %v10901 = vld [vmem:[%s356 + $0xf0] sm:$0xf]
        %v10902 = vld [vmem:[%s356 + $0xf4] sm:$0xf]
        %v10903 = vld [vmem:[%s356 + $0xf8] sm:$0xf]
        %v10904 = vld [vmem:[%s356 + $0xfc] sm:$0xf]
        %v10905 = vld [vmem:[%s356 + $0x100] sm:$0xf]
        %v10906 = vld [vmem:[%s356 + $0x104] sm:$0xf]
        %v10907 = vld [vmem:[%s356 + $0x108] sm:$0xf]
        %v10908 = vld [vmem:[%s356 + $0x10c] sm:$0xf]
        %v10909 = vld [vmem:[%s356 + $0x110] sm:$0xf]
        %v10910 = vld [vmem:[%s356 + $0x114] sm:$0xf]
        %v10911 = vld [vmem:[%s356 + $0x118] sm:$0xf]
        %v10912 = vld [vmem:[%s356 + $0x11c] sm:$0xf]
        %v10913 = vld [vmem:[%s356 + $0x120] sm:$0xf]
        %v10914 = vld [vmem:[%s356 + $0x124] sm:$0xf]
        %v10915 = vld [vmem:[%s356 + $0x128] sm:$0xf]
        %v10916 = vld [vmem:[%s356 + $0x12c] sm:$0xf]
        %v10917 = vld [vmem:[%s356 + $0x130] sm:$0xf]
        %v10918 = vld [vmem:[%s356 + $0x134] sm:$0xf]
        %v10919 = vld [vmem:[%s356 + $0x138] sm:$0xf]
        %v10920 = vld [vmem:[%s356 + $0x13c] sm:$0xf]
        %v10921 = vld [vmem:[%s365] sm:$0x1]
        %v10923 = vperm.slane %v10921, 0
        %v11005 = vunpack.c.l.b16 %v10841
        %v11006 = vunpack.c.l.b16 %v10842
        %v11007 = vunpack.c.l.b16 %v10843
        %v11008 = vunpack.c.l.b16 %v10844
        %v11009 = vunpack.c.l.b16 %v10845
        %v11010 = vunpack.c.l.b16 %v10846
        %v11011 = vunpack.c.l.b16 %v10847
        %v11012 = vunpack.c.l.b16 %v10848
        %v11013 = vunpack.c.l.b16 %v10849
        %v11014 = vunpack.c.l.b16 %v10850
        %v11015 = vunpack.c.l.b16 %v10851
        %v11016 = vunpack.c.l.b16 %v10852
        %v11017 = vunpack.c.l.b16 %v10853
        %v11018 = vunpack.c.l.b16 %v10854
        %v11019 = vunpack.c.l.b16 %v10855
        %v11020 = vunpack.c.l.b16 %v10856
        %v11021 = vunpack.c.l.b16 %v10857
        %v11022 = vunpack.c.l.b16 %v10858
        %v11023 = vunpack.c.l.b16 %v10859
        %v11024 = vunpack.c.l.b16 %v10860
        %v11025 = vunpack.c.l.b16 %v10861
        %v11026 = vunpack.c.l.b16 %v10862
        %v11027 = vunpack.c.l.b16 %v10863
        %v11028 = vunpack.c.l.b16 %v10864
        %v11029 = vunpack.c.l.b16 %v10865
        %v11030 = vunpack.c.l.b16 %v10866
        %v11031 = vunpack.c.l.b16 %v10867
        %v11032 = vunpack.c.l.b16 %v10868
        %v11033 = vunpack.c.l.b16 %v10869
        %v11034 = vunpack.c.l.b16 %v10870
        %v11035 = vunpack.c.l.b16 %v10871
        %v11036 = vunpack.c.l.b16 %v10872
        %v11037 = vunpack.c.l.b16 %v10873
        %v11038 = vunpack.c.l.b16 %v10874
        %v11039 = vunpack.c.l.b16 %v10875
        %v11040 = vunpack.c.l.b16 %v10876
        %v11041 = vunpack.c.l.b16 %v10877
        %v11042 = vunpack.c.l.b16 %v10878
        %v11043 = vunpack.c.l.b16 %v10879
        %v11044 = vunpack.c.l.b16 %v10880
        %v11045 = vunpack.c.l.b16 %v10881
        %v11046 = vunpack.c.l.b16 %v10882
        %v11047 = vunpack.c.l.b16 %v10883
        %v11048 = vunpack.c.l.b16 %v10884
        %v11049 = vunpack.c.l.b16 %v10885
        %v11050 = vunpack.c.l.b16 %v10886
        %v11051 = vunpack.c.l.b16 %v10887
        %v11052 = vunpack.c.l.b16 %v10888
        %v11053 = vunpack.c.l.b16 %v10889
        %v11054 = vunpack.c.l.b16 %v10890
        %v11055 = vunpack.c.l.b16 %v10891
        %v11056 = vunpack.c.l.b16 %v10892
        %v11057 = vunpack.c.l.b16 %v10893
        %v11058 = vunpack.c.l.b16 %v10894
        %v11059 = vunpack.c.l.b16 %v10895
        %v11060 = vunpack.c.l.b16 %v10896
        %v11061 = vunpack.c.l.b16 %v10897
        %v11062 = vunpack.c.l.b16 %v10898
        %v11063 = vunpack.c.l.b16 %v10899
        %v11064 = vunpack.c.l.b16 %v10900
        %v11065 = vunpack.c.l.b16 %v10901
        %v11066 = vunpack.c.l.b16 %v10902
        %v11067 = vunpack.c.l.b16 %v10903
        %v11068 = vunpack.c.l.b16 %v10904
        %v11069 = vunpack.c.l.b16 %v10905
        %v11070 = vunpack.c.l.b16 %v10906
        %v11071 = vunpack.c.l.b16 %v10907
        %v11072 = vunpack.c.l.b16 %v10908
        %v11073 = vunpack.c.l.b16 %v10909
        %v11074 = vunpack.c.l.b16 %v10910
        %v11075 = vunpack.c.l.b16 %v10911
        %v11076 = vunpack.c.l.b16 %v10912
        %v11077 = vunpack.c.l.b16 %v10913
        %v11078 = vunpack.c.l.b16 %v10914
        %v11079 = vunpack.c.l.b16 %v10915
        %v11080 = vunpack.c.l.b16 %v10916
        %v11081 = vunpack.c.l.b16 %v10917
        %v11082 = vunpack.c.l.b16 %v10918
        %v11083 = vunpack.c.l.b16 %v10919
        %v11084 = vunpack.c.l.b16 %v10920
        %v11085 = vpack.c.b16 %v11006, %v11005
        %v11086 = vpack.c.b16 %v11008, %v11007
        %v11087 = vpack.c.b16 %v11010, %v11009
        %v11088 = vpack.c.b16 %v11012, %v11011
        %v11089 = vpack.c.b16 %v11014, %v11013
        %v11090 = vpack.c.b16 %v11016, %v11015
        %v11091 = vpack.c.b16 %v11018, %v11017
        %v11092 = vpack.c.b16 %v11020, %v11019
        %v11093 = vpack.c.b16 %v11022, %v11021
        %v11094 = vpack.c.b16 %v11024, %v11023
        %v11095 = vpack.c.b16 %v11026, %v11025
        %v11096 = vpack.c.b16 %v11028, %v11027
        %v11097 = vpack.c.b16 %v11030, %v11029
        %v11098 = vpack.c.b16 %v11032, %v11031
        %v11099 = vpack.c.b16 %v11034, %v11033
        %v11100 = vpack.c.b16 %v11036, %v11035
        %v11101 = vpack.c.b16 %v11038, %v11037
        %v11102 = vpack.c.b16 %v11040, %v11039
        %v11103 = vpack.c.b16 %v11042, %v11041
        %v11104 = vpack.c.b16 %v11044, %v11043
        %v11105 = vpack.c.b16 %v11046, %v11045
        %v11106 = vpack.c.b16 %v11048, %v11047
        %v11107 = vpack.c.b16 %v11050, %v11049
        %v11108 = vpack.c.b16 %v11052, %v11051
        %v11109 = vpack.c.b16 %v11054, %v11053
        %v11110 = vpack.c.b16 %v11056, %v11055
        %v11111 = vpack.c.b16 %v11058, %v11057
        %v11112 = vpack.c.b16 %v11060, %v11059
        %v11113 = vpack.c.b16 %v11062, %v11061
        %v11114 = vpack.c.b16 %v11064, %v11063
        %v11115 = vpack.c.b16 %v11066, %v11065
        %v11116 = vpack.c.b16 %v11068, %v11067
        %v11117 = vpack.c.b16 %v11070, %v11069
        %v11118 = vpack.c.b16 %v11072, %v11071
        %v11119 = vpack.c.b16 %v11074, %v11073
        %v11120 = vpack.c.b16 %v11076, %v11075
        %v11121 = vpack.c.b16 %v11078, %v11077
        %v11122 = vpack.c.b16 %v11080, %v11079
        %v11123 = vpack.c.b16 %v11082, %v11081
        %v11124 = vpack.c.b16 %v11084, %v11083
        %11165 = vmatpush.bf16.msra.mxu0 %v11092
        %11166 = vmatpush.bf16.msra.mxu0 %v11091
        %11167 = vmatpush.bf16.msra.mxu0 %v11090
        %11168 = vmatpush.bf16.msra.mxu0 %v11089
        %11169 = vmatpush.bf16.msra.mxu0 %v11088
        %11170 = vmatpush.bf16.msra.mxu0 %v11087
        %11171 = vmatpush.bf16.msra.mxu0 %v11086
        %11172 = vmatpush.bf16.msra.mxu0 %v11085
        %11173 = vmatmul.bf16.gmra.mxu0 %v10836
        %v11174 = vpop.f32.mrf.mxu0
        %v11175 = vadd.f32 %v10923, %v11174
        %v11176 = vpop.f32.mrf.mxu0
        %11177 = vdwg.mxu0
        %11178 = vmatpush.bf16.msra.mxu0 %v11100
        %11179 = vmatpush.bf16.msra.mxu0 %v11099
        %11180 = vmatpush.bf16.msra.mxu0 %v11098
        %11181 = vmatpush.bf16.msra.mxu0 %v11097
        %11182 = vmatpush.bf16.msra.mxu0 %v11096
        %11183 = vmatpush.bf16.msra.mxu0 %v11095
        %11184 = vmatpush.bf16.msra.mxu0 %v11094
        %11185 = vmatpush.bf16.msra.mxu0 %v11093
        %11186 = vmatmul.bf16.gmra.mxu0 %v10837
        %v11187 = vpop.f32.mrf.mxu0
        %v11188 = vadd.f32 %v11175, %v11187
        %v11189 = vpop.f32.mrf.mxu0
        %11190 = vdwg.mxu0
        %11191 = vmatpush.bf16.msra.mxu0 %v11108
        %11192 = vmatpush.bf16.msra.mxu0 %v11107
        %11193 = vmatpush.bf16.msra.mxu0 %v11106
        %11194 = vmatpush.bf16.msra.mxu0 %v11105
        %11195 = vmatpush.bf16.msra.mxu0 %v11104
        %11196 = vmatpush.bf16.msra.mxu0 %v11103
        %11197 = vmatpush.bf16.msra.mxu0 %v11102
        %11198 = vmatpush.bf16.msra.mxu0 %v11101
        %11199 = vmatmul.bf16.gmra.mxu0 %v10838
        %v11200 = vpop.f32.mrf.mxu0
        %v11201 = vadd.f32 %v11188, %v11200
        %v11202 = vpop.f32.mrf.mxu0
        %11203 = vdwg.mxu0
        %11204 = vmatpush.bf16.msra.mxu0 %v11116
        %11205 = vmatpush.bf16.msra.mxu0 %v11115
        %11206 = vmatpush.bf16.msra.mxu0 %v11114
        %11207 = vmatpush.bf16.msra.mxu0 %v11113
        %11208 = vmatpush.bf16.msra.mxu0 %v11112
        %11209 = vmatpush.bf16.msra.mxu0 %v11111
        %11210 = vmatpush.bf16.msra.mxu0 %v11110
        %11211 = vmatpush.bf16.msra.mxu0 %v11109
        %11212 = vmatmul.bf16.gmra.mxu0 %v10839
        %v11213 = vpop.f32.mrf.mxu0
        %v11214 = vadd.f32 %v11201, %v11213
        %v11215 = vpop.f32.mrf.mxu0
        %11216 = vdwg.mxu0
        %11217 = vmatpush.bf16.msra.mxu0 %v11124
        %11218 = vmatpush.bf16.msra.mxu0 %v11123
        %11219 = vmatpush.bf16.msra.mxu0 %v11122
        %11220 = vmatpush.bf16.msra.mxu0 %v11121
        %11221 = vmatpush.bf16.msra.mxu0 %v11120
        %11222 = vmatpush.bf16.msra.mxu0 %v11119
        %11223 = vmatpush.bf16.msra.mxu0 %v11118
        %11224 = vmatpush.bf16.msra.mxu0 %v11117
        %11225 = vmatmul.bf16.gmra.mxu0 %v10840
        %v11226 = vpop.f32.mrf.mxu0
        %v11227 = vadd.f32 %v11214, %v11226
        %v11228 = vpop.f32.mrf.mxu0
        %11229 = vdwg.mxu0
        %v11230 = vmax.f32 %v11227, 0.0
        %v11231 = vpack.c.bf16 %v11230, %v11230
        %v11232 = vld [vmem:[%s375] sm:$0xff]
        %v11233 = vld [vmem:[%s375 + $0x8] sm:$0xff]
        %v11234 = vld [vmem:[%s375 + $0x10] sm:$0xf]
        %v11235 = vld [vmem:[%s375 + $0x14] sm:$0xff]
        %v11236 = vld [vmem:[%s375 + $0x1c] sm:$0xff]
        %v11237 = vld [vmem:[%s375 + $0x24] sm:$0xf]
        %v11238 = vld [vmem:[%s375 + $0x28] sm:$0xff]
        %v11239 = vld [vmem:[%s375 + $0x30] sm:$0xff]
        %v11240 = vld [vmem:[%s375 + $0x38] sm:$0xf]
        %v11241 = vld [vmem:[%s375 + $0x3c] sm:$0xff]
        %v11242 = vld [vmem:[%s375 + $0x44] sm:$0xff]
        %v11243 = vld [vmem:[%s375 + $0x4c] sm:$0xf]
        %v11244 = vld [vmem:[%s375 + $0x50] sm:$0xff]
        %v11245 = vld [vmem:[%s375 + $0x58] sm:$0xff]
        %v11246 = vld [vmem:[%s375 + $0x60] sm:$0xf]
        %v11247 = vld [vmem:[%s375 + $0x64] sm:$0xff]
        %v11248 = vld [vmem:[%s375 + $0x6c] sm:$0xff]
        %v11249 = vld [vmem:[%s375 + $0x74] sm:$0xf]
        %v11250 = vld [vmem:[%s375 + $0x78] sm:$0xff]
        %v11251 = vld [vmem:[%s375 + $0x80] sm:$0xff]
        %v11252 = vld [vmem:[%s375 + $0x88] sm:$0xf]
        %v11253 = vld [vmem:[%s375 + $0x8c] sm:$0xff]
        %v11254 = vld [vmem:[%s375 + $0x94] sm:$0xff]
        %v11255 = vld [vmem:[%s375 + $0x9c] sm:$0xf]
        %v11256 = vld [vmem:[%s375 + $0xa0] sm:$0xff]
        %v11257 = vld [vmem:[%s375 + $0xa8] sm:$0xff]
        %v11258 = vld [vmem:[%s375 + $0xb0] sm:$0xf]
        %v11259 = vld [vmem:[%s375 + $0xb4] sm:$0xff]
        %v11260 = vld [vmem:[%s375 + $0xbc] sm:$0xff]
        %v11261 = vld [vmem:[%s375 + $0xc4] sm:$0xf]
        %v11262 = vld [vmem:[%s375 + $0xc8] sm:$0xff]
        %v11263 = vld [vmem:[%s375 + $0xd0] sm:$0xff]
        %v11264 = vld [vmem:[%s375 + $0xd8] sm:$0xf]
        %v11265 = vld [vmem:[%s375 + $0xdc] sm:$0xff]
        %v11266 = vld [vmem:[%s375 + $0xe4] sm:$0xff]
        %v11267 = vld [vmem:[%s375 + $0xec] sm:$0xf]
        %v11268 = vld [vmem:[%s375 + $0xf0] sm:$0xff]
        %v11269 = vld [vmem:[%s375 + $0xf8] sm:$0xff]
        %v11270 = vld [vmem:[%s375 + $0x100] sm:$0xf]
        %v11271 = vld [vmem:[%s375 + $0x104] sm:$0xff]
        %v11272 = vld [vmem:[%s375 + $0x10c] sm:$0xff]
        %v11273 = vld [vmem:[%s375 + $0x114] sm:$0xf]
        %v11274 = vld [vmem:[%s375 + $0x118] sm:$0xff]
        %v11275 = vld [vmem:[%s375 + $0x120] sm:$0xff]
        %v11276 = vld [vmem:[%s375 + $0x128] sm:$0xf]
        %v11277 = vld [vmem:[%s375 + $0x12c] sm:$0xff]
        %v11278 = vld [vmem:[%s375 + $0x134] sm:$0xff]
        %v11279 = vld [vmem:[%s375 + $0x13c] sm:$0xf]
        %v11280 = vld [vmem:[%s385] sm:$0x1f]
        %v11282 = vperm.slane %v11280, 0
        %v11283 = vperm.slane %v11280, 1
        %v11284 = vperm.slane %v11280, 2
        %v11285 = vperm.slane %v11280, 3
        %v11286 = vperm.slane %v11280, 4
        %v11340 = vunpack.c.l.b16 %v11232
        %v11341 = vunpack.c.h.b16 %v11232
        %v11342 = vunpack.c.l.b16 %v11233
        %v11343 = vunpack.c.h.b16 %v11233
        %v11344 = vunpack.c.l.b16 %v11234
        %v11345 = vunpack.c.l.b16 %v11235
        %v11346 = vunpack.c.h.b16 %v11235
        %v11347 = vunpack.c.l.b16 %v11236
        %v11348 = vunpack.c.h.b16 %v11236
        %v11349 = vunpack.c.l.b16 %v11237
        %v11350 = vunpack.c.l.b16 %v11238
        %v11351 = vunpack.c.h.b16 %v11238
        %v11352 = vunpack.c.l.b16 %v11239
        %v11353 = vunpack.c.h.b16 %v11239
        %v11354 = vunpack.c.l.b16 %v11240
        %v11355 = vunpack.c.l.b16 %v11241
        %v11356 = vunpack.c.h.b16 %v11241
        %v11357 = vunpack.c.l.b16 %v11242
        %v11358 = vunpack.c.h.b16 %v11242
        %v11359 = vunpack.c.l.b16 %v11243
        %v11360 = vunpack.c.l.b16 %v11244
        %v11361 = vunpack.c.h.b16 %v11244
        %v11362 = vunpack.c.l.b16 %v11245
        %v11363 = vunpack.c.h.b16 %v11245
        %v11364 = vunpack.c.l.b16 %v11246
        %v11365 = vunpack.c.l.b16 %v11247
        %v11366 = vunpack.c.h.b16 %v11247
        %v11367 = vunpack.c.l.b16 %v11248
        %v11368 = vunpack.c.h.b16 %v11248
        %v11369 = vunpack.c.l.b16 %v11249
        %v11370 = vunpack.c.l.b16 %v11250
        %v11371 = vunpack.c.h.b16 %v11250
        %v11372 = vunpack.c.l.b16 %v11251
        %v11373 = vunpack.c.h.b16 %v11251
        %v11374 = vunpack.c.l.b16 %v11252
        %v11375 = vunpack.c.l.b16 %v11253
        %v11376 = vunpack.c.h.b16 %v11253
        %v11377 = vunpack.c.l.b16 %v11254
        %v11378 = vunpack.c.h.b16 %v11254
        %v11379 = vunpack.c.l.b16 %v11255
        %v11380 = vunpack.c.l.b16 %v11256
        %v11381 = vunpack.c.h.b16 %v11256
        %v11382 = vunpack.c.l.b16 %v11257
        %v11383 = vunpack.c.h.b16 %v11257
        %v11384 = vunpack.c.l.b16 %v11258
        %v11385 = vunpack.c.l.b16 %v11259
        %v11386 = vunpack.c.h.b16 %v11259
        %v11387 = vunpack.c.l.b16 %v11260
        %v11388 = vunpack.c.h.b16 %v11260
        %v11389 = vunpack.c.l.b16 %v11261
        %v11390 = vunpack.c.l.b16 %v11262
        %v11391 = vunpack.c.h.b16 %v11262
        %v11392 = vunpack.c.l.b16 %v11263
        %v11393 = vunpack.c.h.b16 %v11263
        %v11394 = vunpack.c.l.b16 %v11264
        %v11395 = vunpack.c.l.b16 %v11265
        %v11396 = vunpack.c.h.b16 %v11265
        %v11397 = vunpack.c.l.b16 %v11266
        %v11398 = vunpack.c.h.b16 %v11266
        %v11399 = vunpack.c.l.b16 %v11267
        %v11400 = vunpack.c.l.b16 %v11268
        %v11401 = vunpack.c.h.b16 %v11268
        %v11402 = vunpack.c.l.b16 %v11269
        %v11403 = vunpack.c.h.b16 %v11269
        %v11404 = vunpack.c.l.b16 %v11270
        %v11405 = vunpack.c.l.b16 %v11271
        %v11406 = vunpack.c.h.b16 %v11271
        %v11407 = vunpack.c.l.b16 %v11272
        %v11408 = vunpack.c.h.b16 %v11272
        %v11409 = vunpack.c.l.b16 %v11273
        %v11410 = vunpack.c.l.b16 %v11274
        %v11411 = vunpack.c.h.b16 %v11274
        %v11412 = vunpack.c.l.b16 %v11275
        %v11413 = vunpack.c.h.b16 %v11275
        %v11414 = vunpack.c.l.b16 %v11276
        %v11415 = vunpack.c.l.b16 %v11277
        %v11416 = vunpack.c.h.b16 %v11277
        %v11417 = vunpack.c.l.b16 %v11278
        %v11418 = vunpack.c.h.b16 %v11278
        %v11419 = vunpack.c.l.b16 %v11279
        %v11420 = vpack.c.b16 %v11345, %v11340
        %v11421 = vpack.c.b16 %v11346, %v11341
        %v11422 = vpack.c.b16 %v11347, %v11342
        %v11423 = vpack.c.b16 %v11348, %v11343
        %v11424 = vpack.c.b16 %v11349, %v11344
        %v11425 = vpack.c.b16 %v11355, %v11350
        %v11426 = vpack.c.b16 %v11356, %v11351
        %v11427 = vpack.c.b16 %v11357, %v11352
        %v11428 = vpack.c.b16 %v11358, %v11353
        %v11429 = vpack.c.b16 %v11359, %v11354
        %v11430 = vpack.c.b16 %v11365, %v11360
        %v11431 = vpack.c.b16 %v11366, %v11361
        %v11432 = vpack.c.b16 %v11367, %v11362
        %v11433 = vpack.c.b16 %v11368, %v11363
        %v11434 = vpack.c.b16 %v11369, %v11364
        %v11435 = vpack.c.b16 %v11375, %v11370
        %v11436 = vpack.c.b16 %v11376, %v11371
        %v11437 = vpack.c.b16 %v11377, %v11372
        %v11438 = vpack.c.b16 %v11378, %v11373
        %v11439 = vpack.c.b16 %v11379, %v11374
        %v11440 = vpack.c.b16 %v11385, %v11380
        %v11441 = vpack.c.b16 %v11386, %v11381
        %v11442 = vpack.c.b16 %v11387, %v11382
        %v11443 = vpack.c.b16 %v11388, %v11383
        %v11444 = vpack.c.b16 %v11389, %v11384
        %v11445 = vpack.c.b16 %v11395, %v11390
        %v11446 = vpack.c.b16 %v11396, %v11391
        %v11447 = vpack.c.b16 %v11397, %v11392
        %v11448 = vpack.c.b16 %v11398, %v11393
        %v11449 = vpack.c.b16 %v11399, %v11394
        %v11450 = vpack.c.b16 %v11405, %v11400
        %v11451 = vpack.c.b16 %v11406, %v11401
        %v11452 = vpack.c.b16 %v11407, %v11402
        %v11453 = vpack.c.b16 %v11408, %v11403
        %v11454 = vpack.c.b16 %v11409, %v11404
        %v11455 = vpack.c.b16 %v11415, %v11410
        %v11456 = vpack.c.b16 %v11416, %v11411
        %v11457 = vpack.c.b16 %v11417, %v11412
        %v11458 = vpack.c.b16 %v11418, %v11413
        %v11459 = vpack.c.b16 %v11419, %v11414
        %11500 = vmatpush.bf16.msra.mxu0 %v11455
        %11501 = vmatpush.bf16.msra.mxu0 %v11450
        %11502 = vmatpush.bf16.msra.mxu0 %v11445
        %11503 = vmatpush.bf16.msra.mxu0 %v11440
        %11504 = vmatpush.bf16.msra.mxu0 %v11435
        %11505 = vmatpush.bf16.msra.mxu0 %v11430
        %11506 = vmatpush.bf16.msra.mxu0 %v11425
        %11507 = vmatpush.bf16.msra.mxu0 %v11420
        %11508 = vmatmul.bf16.gmra.mxu0 %v11231
        %v11509 = vpop.f32.mrf.mxu0
        %v11510 = vadd.f32 %v11282, %v11509
        %v11511 = vpop.f32.mrf.mxu0
        %11512 = vdwg.mxu0
        %11513 = vmatpush.bf16.msra.mxu0 %v11456
        %11514 = vmatpush.bf16.msra.mxu0 %v11451
        %11515 = vmatpush.bf16.msra.mxu0 %v11446
        %11516 = vmatpush.bf16.msra.mxu0 %v11441
        %11517 = vmatpush.bf16.msra.mxu0 %v11436
        %11518 = vmatpush.bf16.msra.mxu0 %v11431
        %11519 = vmatpush.bf16.msra.mxu0 %v11426
        %11520 = vmatpush.bf16.msra.mxu0 %v11421
        %11521 = vmatmul.bf16.gmra.mxu0 %v11231
        %v11522 = vpop.f32.mrf.mxu0
        %v11523 = vadd.f32 %v11283, %v11522
        %v11524 = vpop.f32.mrf.mxu0
        %11525 = vdwg.mxu0
        %11526 = vmatpush.bf16.msra.mxu0 %v11457
        %11527 = vmatpush.bf16.msra.mxu0 %v11452
        %11528 = vmatpush.bf16.msra.mxu0 %v11447
        %11529 = vmatpush.bf16.msra.mxu0 %v11442
        %11530 = vmatpush.bf16.msra.mxu0 %v11437
        %11531 = vmatpush.bf16.msra.mxu0 %v11432
        %11532 = vmatpush.bf16.msra.mxu0 %v11427
        %11533 = vmatpush.bf16.msra.mxu0 %v11422
        %11534 = vmatmul.bf16.gmra.mxu0 %v11231
        %v11535 = vpop.f32.mrf.mxu0
        %v11536 = vadd.f32 %v11284, %v11535
        %v11537 = vpop.f32.mrf.mxu0
        %11538 = vdwg.mxu0
        %11539 = vmatpush.bf16.msra.mxu0 %v11458
        %11540 = vmatpush.bf16.msra.mxu0 %v11453
        %11541 = vmatpush.bf16.msra.mxu0 %v11448
        %11542 = vmatpush.bf16.msra.mxu0 %v11443
        %11543 = vmatpush.bf16.msra.mxu0 %v11438
        %11544 = vmatpush.bf16.msra.mxu0 %v11433
        %11545 = vmatpush.bf16.msra.mxu0 %v11428
        %11546 = vmatpush.bf16.msra.mxu0 %v11423
        %11547 = vmatmul.bf16.gmra.mxu0 %v11231
        %v11548 = vpop.f32.mrf.mxu0
        %v11549 = vadd.f32 %v11285, %v11548
        %v11550 = vpop.f32.mrf.mxu0
        %11551 = vdwg.mxu0
        %11552 = vmatpush.bf16.msra.mxu0 %v11459
        %11553 = vmatpush.bf16.msra.mxu0 %v11454
        %11554 = vmatpush.bf16.msra.mxu0 %v11449
        %11555 = vmatpush.bf16.msra.mxu0 %v11444
        %11556 = vmatpush.bf16.msra.mxu0 %v11439
        %11557 = vmatpush.bf16.msra.mxu0 %v11434
        %11558 = vmatpush.bf16.msra.mxu0 %v11429
        %11559 = vmatpush.bf16.msra.mxu0 %v11424
        %11560 = vmatmul.bf16.gmra.mxu0 %v11231
        %v11561 = vpop.f32.mrf.mxu0
        %v11562 = vadd.f32 %v11286, %v11561
        %v11563 = vpop.f32.mrf.mxu0
        %11564 = vdwg.mxu0
        %v11565 = vsub.f32 0.0, %v11510
        %v11566 = vsub.f32 0.0, %v11523
        %v11567 = vsub.f32 0.0, %v11536
        %v11568 = vsub.f32 0.0, %v11549
        %v11569 = vsub.f32 0.0, %v11562
        %v11570 = vmul.f32 %v11565, 1.442695
        %v11571 = vpow.pop %v11570
        %v11572 = vmul.f32 %v11566, 1.442695
        %v11573 = vpow.pop %v11572
        %v11574 = vmul.f32 %v11567, 1.442695
        %v11575 = vpow.pop %v11574
        %v11576 = vmul.f32 %v11568, 1.442695
        %v11577 = vpow.pop %v11576
        %v11578 = vmul.f32 %v11569, 1.442695
        %v11579 = vpow.pop %v11578
        %v11580 = vadd.f32 %v11571, 1.0
        %v11581 = vadd.f32 %v11573, 1.0
        %v11582 = vadd.f32 %v11575, 1.0
        %v11583 = vadd.f32 %v11577, 1.0
        %v11584 = vadd.f32 %v11579, 1.0
        %v11585 = vrcp.pop %v11580
        %v11586 = vrcp.pop %v11581
        %v11587 = vrcp.pop %v11582
        %v11588 = vrcp.pop %v11583
        %v11589 = vrcp.pop %v11584
        %v11590 = vrot.slane %v11585, 4
        %v11591 = vadd.f32 %v11585, %v11590
        %v11592 = vrot.slane %v11591, 2
        %v11593 = vadd.f32 %v11591, %v11592
        %v11594 = vrot.slane %v11593, 1
        %v11595 = vadd.f32 %v11593, %v11594
        %v11596 = vrot.slane %v11586, 4
        %v11597 = vadd.f32 %v11586, %v11596
        %v11598 = vrot.slane %v11597, 2
        %v11599 = vadd.f32 %v11597, %v11598
        %v11600 = vrot.slane %v11599, 1
        %v11601 = vadd.f32 %v11599, %v11600
        %v11602 = vrot.slane %v11587, 4
        %v11603 = vadd.f32 %v11587, %v11602
        %v11604 = vrot.slane %v11603, 2
        %v11605 = vadd.f32 %v11603, %v11604
        %v11606 = vrot.slane %v11605, 1
        %v11607 = vadd.f32 %v11605, %v11606
        %v11608 = vrot.slane %v11588, 4
        %v11609 = vadd.f32 %v11588, %v11608
        %v11610 = vrot.slane %v11609, 2
        %v11611 = vadd.f32 %v11609, %v11610
        %v11612 = vrot.slane %v11611, 1
        %v11613 = vadd.f32 %v11611, %v11612
        %v11614 = vrot.slane %v11589, 4
        %v11615 = vadd.f32 %v11589, %v11614
        %v11616 = vrot.slane %v11615, 2
        %v11617 = vadd.f32 %v11615, %v11616
        %v11618 = vrot.slane %v11617, 1
        %v11619 = vadd.f32 %v11617, %v11618
        %v11620 = vmul.f32 %v11595, 0.125
        %v11621 = vmul.f32 %v11601, 0.125
        %v11622 = vmul.f32 %v11607, 0.125
        %v11623 = vmul.f32 %v11613, 0.125
        %v11624 = vmul.f32 %v11619, 0.125
        %v11630 = vrot.slane %v11621, 7
        %v11631 = vrot.slane %v11622, 6
        %v11632 = vrot.slane %v11623, 5
        %v11633 = vrot.slane %v11624, 4
        %vm11634 = vcmask 1040384
        %v11635 = vsel %vm11634, %v11620, %v11630
        %vm11636 = vcmask 1041408
        %v11637 = vsel %vm11636, %v11635, %v11631
        %vm11638 = vcmask 1043459
        %v11639 = vsel %vm11638, %v11632, %v11633
        %vm11640 = vcmask 1042432
        %v11641 = vsel %vm11640, %v11637, %v11639
        %v11643 = vlaneseq
        %vm11644 = vcmp.ge.s32.totalorder %v11643, 0
        %vm11645 = vcmp.lt.s32.totalorder %v11643, 640
        %vm11646 = vmand %vm11644, %vm11645
        %11647 = vst.msk [vmem:[%s433] sm:$0x1f] %vm11646, %v11641
        %s11648 = sand.u32 %s183, 1
        %s11649 = scalar_lea.sflag [#allocation4], %s11648
        %s11650 = sand.u32 %s183, 1
        %s11651 = smul.addr %s11650, 5
        %s11652 = scalar_lea.vmem [#allocation11], %s11651
        // Predicated region
        $region69: #{tpu_custom_call.1} parent=43 // pred_check
          %p11653 = pneg %p193
        $region70: #{tpu_custom_call.1} parent=43 // pred_check_branch
          %11655 = sbr.rel (%p11653) target = $region72
        $region71: #{tpu_custom_call.1} parent=43 // pred_region
          %11657 = vsyncadd %s11649, 0
          %s11658 = smul.addr %s24, 5
          %s11659 = scalar_lea.hbm %s6, %s11658
          %s11661 = sshll.u32 %s11652, 4
          %s11662 = int_to_ptr.vmem [resolvable:$true] %s11661
          %s11663 = sshll.u32 %s11659, 4
          %s11664 = int_to_ptr.hbm [resolvable:$true] %s11663
          %11666 = dma.vmem_to_hbm [thread:$0]  %s11662, 80, %s11664, %s11649
        $region72: #{tpu_custom_call.1} parent=43 // pred_fallthru
          _
      $region44: #{tpu_custom_call.1} parent=5 // pred_fallthru
        _
      %p11667 = scmp.le.s32.totalorder 2, %s19
      // Predicated region
      $region73: #{tpu_custom_call.1} parent=5 // pred_check
        %p11668 = pneg %p11667
      $region74: #{tpu_custom_call.1} parent=5 // pred_check_branch
        %11670 = sbr.rel (%p11668) target = $region76
      $region75: #{tpu_custom_call.1} parent=5 // pred_region
        %s11671 = ssub.s32 %s19, 2
        // Predicated region
        $region77: #{tpu_custom_call.1} parent=75 // pred_check
          %p11672 = pneg %p199
        $region78: #{tpu_custom_call.1} parent=75 // pred_check_branch
          %11674 = sbr.rel (%p11672) target = $region80
        $region79: #{tpu_custom_call.1} parent=75 // pred_region
          %s11675 = sand.u32 %s184, 1
          %s11676 = scalar_lea.sflag [#allocation4], %s11675
          %s11677 = sand.u32 %s184, 1
          %s11678 = smul.addr %s11677, 5
          %s11679 = scalar_lea.vmem [#allocation11], %s11678
          %11681 = dma.done %s11676, 80
        $region80: #{tpu_custom_call.1} parent=75 // pred_fallthru
          _
      $region76: #{tpu_custom_call.1} parent=5 // pred_fallthru
        _
    $region6: #{tpu_custom_call.1} parent=1 // loop_footer
      %s23 = sadd.s32 1, %s19
    $region7: #{tpu_custom_call.1} parent=1 // loop_footer_branch
      %18 = sbr.rel target = $region3
    $region8: #{tpu_custom_call.1} parent=1 // loop_exit
      _
    %11682 = vsyncpa [#allocation3], 1
    %s11683 = scalar_lea.sflag [#allocation3], 1
    %11684 = vsyncpa %s11683, 1
    %11685 = vsyncpa [#allocation6], 1
    %11686 = vsyncpa [#allocation4], 1
    %s11687 = scalar_lea.sflag [#allocation4], 1
    %11688 = vsyncpa %s11687, 1

</llo_original>
